<compile_context>
chip_gen: v7x
topology: tpu7x:2x2x1
jax: 0.10.0
libtpu: 0.0.40
codegen_flags: <defaults>
</compile_context>

<pallas_src>
import functools

import jax
import jax.numpy as jnp
from jax import lax
from jax.experimental import pallas as pl
from jax.experimental.pallas import tpu as pltpu


def _fused_encoder_kernel(x_ref, *refs, H, W, Cmax, Cout_last, pad_off, dils, pads):
    """All conv_block layers for one batch element; activation stays in VMEM.

    x_ref   : (1, H, W, Cmax)   NHWC input tile, channels zero-padded to Cmax
    per layer l (3 refs): w (9*Cmax, Cmax), scale (1, Cmax), bias (1, Cmax)
    o_ref   : (1, Cout_last, H*W)   lane-dense (channels on sublanes, pixels on lanes)
    act_ref : (H+2*pad_off, W+2*pad_off, Cmax) scratch; zero border = conv padding
    col_ref : (H*W, 9*Cmax) persistent im2col scratch
    """
    L = len(dils)
    o_ref = refs[3 * L]
    act_ref = refs[3 * L + 1]
    col_ref = refs[3 * L + 2]

    Hp = H + 2 * pad_off
    Wp = W + 2 * pad_off
    zdt = act_ref.dtype

    # In-kernel zero padding: (re)write only the border strips each step.  The
    # interior is fully overwritten below, so this is all the zeroing needed.
    act_ref[0:pad_off, :, :] = jnp.zeros((pad_off, Wp, Cmax), zdt)
    act_ref[pad_off + H:Hp, :, :] = jnp.zeros((pad_off, Wp, Cmax), zdt)
    act_ref[pad_off:pad_off + H, 0:pad_off, :] = jnp.zeros((H, pad_off, Cmax), zdt)
    act_ref[pad_off:pad_off + H, pad_off + W:Wp, :] = jnp.zeros((H, pad_off, Cmax), zdt)

    # Input was channel-padded to Cmax on the host (tail channels are zero), so
    # this single store also re-zeroes the [Cin:Cmax] interior tail every step.
    act_ref[pad_off:pad_off + H, pad_off:pad_off + W, :] = (
        x_ref[...].reshape(H, W, Cmax).astype(zdt))

    for l in range(L):
        w_ref = refs[3 * l]
        s_ref = refs[3 * l + 1]
        b_ref = refs[3 * l + 2]
        dil, pad = dils[l], pads[l]

        # im2col: write the 9 shifted windows as slabs into the persistent col
        # scratch (no value-level lane-concatenate), then ONE MXU matmul with
        # contraction depth K = 9*Cmax.
        for ky in range(3):
            for kx in range(3):
                t = ky * 3 + kx
                r0 = pad_off - pad + ky * dil
                c0 = pad_off - pad + kx * dil
                win = act_ref[r0:r0 + H, c0:c0 + W, :]            # (H, W, Cmax)
                col_ref[:, t * Cmax:(t + 1) * Cmax] = win.reshape(H * W, Cmax)

        acc = jnp.dot(col_ref[...], w_ref[...],
                      preferred_element_type=jnp.float32)          # (H*W, Cmax) f32
        y = jnp.maximum(acc * s_ref[...] + b_ref[...], 0.0)        # folded BN + ReLU

        if l + 1 < L:
            # Activation stays resident in VMEM for the next layer.
            act_ref[pad_off:pad_off + H, pad_off:pad_off + W, :] = (
                y.reshape(H, W, Cmax).astype(zdt))
        else:
            # Lane-dense epilogue: one small XLU transpose puts H*W (>=128) on
            # lanes so the final store is unmasked and the host needs no
            # NHWC->NCHW transpose (just a free reshape).
            y_t = jnp.transpose(y[:, :Cout_last])                  # (Cout, H*W)
            o_ref[...] = y_t.reshape(1, Cout_last, H * W).astype(o_ref.dtype)


def basic_encoder_forward(x_nchw, params, *, compute_dtype=jnp.float32):
    """Full BasicEncoder forward (NCHW in / NCHW out, like PyTorch)."""
    N, Cin, H, W = map(int, x_nchw.shape)
    L = len(params)
    cins = [int(p["w"].shape[2]) for p in params]
    couts = [int(p["w"].shape[3]) for p in params]
    Cmax = max([Cin] + couts)
    Cout_last = couts[-1]
    dils = tuple(int(p["dilation"]) for p in params)
    pads = tuple(int(p["padding"]) for p in params)
    for d, pd in zip(dils, pads):
        # BasicEncoder's default padding=1 makes every 3x3 conv size-preserving.
        assert pd == d, "fused kernel assumes spatial-size-preserving conv_blocks"
    pmax = max(pads)
    pad_off = -(-pmax // 8) * 8          # 8-aligned interior offset in the scratch
    K = 9 * Cmax

    # NCHW -> NHWC (input only; everything downstream stays inside the kernel),
    # cast to the MXU operand dtype, zero-pad channels to Cmax.
    x_nhwc = jnp.transpose(x_nchw, (0, 2, 3, 1)).astype(compute_dtype)
    if Cin < Cmax:
        x_nhwc = jnp.pad(x_nhwc, ((0, 0), (0, 0), (0, 0), (0, Cmax - Cin)))

    flat_inputs = [x_nhwc]
    in_specs = [pl.BlockSpec((1, H, W, Cmax), lambda n: (n, 0, 0, 0))]
    for p in params:
        cin, cout = int(p["w"].shape[2]), int(p["w"].shape[3])
        # HWIO weight zero-padded to (3,3,Cmax,Cmax) then reshaped so row index
        # (ky*3+kx)*Cmax + c matches the im2col slab order in the kernel.
        wp = jnp.zeros((3, 3, Cmax, Cmax), compute_dtype)
        wp = wp.at[:, :, :cin, :cout].set(p["w"].astype(compute_dtype))
        wp = wp.reshape(K, Cmax)
        sp = jnp.zeros((1, Cmax), jnp.float32).at[0, :cout].set(p["scale"])
        bp = jnp.zeros((1, Cmax), jnp.float32).at[0, :cout].set(p["bias"])
        flat_inputs += [wp, sp, bp]
        in_specs += [
            pl.BlockSpec((K, Cmax), lambda n: (0, 0)),
            pl.BlockSpec((1, Cmax), lambda n: (0, 0)),
            pl.BlockSpec((1, Cmax), lambda n: (0, 0)),
        ]

    kern = functools.partial(
        _fused_encoder_kernel, H=H, W=W, Cmax=Cmax, Cout_last=Cout_last,
        pad_off=pad_off, dils=dils, pads=pads)

    itemsize = jnp.dtype(compute_dtype).itemsize
    flops = sum(2 * N * H * W * 9 * ci * co for ci, co in zip(cins, couts))
    bytes_accessed = (N * H * W * Cmax * itemsize          # input (channel-padded)
                      + N * Cout_last * H * W * 4          # output (f32)
                      + L * K * Cmax * itemsize            # weights
                      + L * 2 * Cmax * 4)                  # scale/bias

    Hp, Wp = H + 2 * pad_off, W + 2 * pad_off
    out_chw = pl.pallas_call(
        kern,
        out_shape=jax.ShapeDtypeStruct((N, Cout_last, H * W), jnp.float32),
        grid_spec=pltpu.PrefetchScalarGridSpec(
            num_scalar_prefetch=0,
            grid=(N,),
            in_specs=in_specs,
            out_specs=pl.BlockSpec((1, Cout_last, H * W), lambda n: (n, 0, 0)),
            scratch_shapes=[
                pltpu.VMEM((Hp, Wp, Cmax), compute_dtype),   # padded activation
                pltpu.VMEM((H * W, K), compute_dtype),       # persistent im2col
            ]),
        compiler_params=pltpu.CompilerParams(
            dimension_semantics=("parallel",),
            vmem_limit_bytes=32 * 1024 * 1024),
        cost_estimate=pl.CostEstimate(
            flops=flops, transcendentals=0, bytes_accessed=bytes_accessed),
    )(*flat_inputs)

    # Output was produced lane-dense as (N, C, H*W): reshape (free) instead of
    # a host-side transpose pass.
    return out_chw.reshape(N, Cout_last, H, W)


# ----- parameter construction (conv weight + folded BN), deterministic -----
def make_block_params(key, cin, cout):
    k_w, k_g, k_b, k_m, k_v = jax.random.split(key, 5)
    w = jax.random.normal(k_w, (3, 3, cin, cout), jnp.float32) * 0.1   # HWIO
    gamma = 1.0 + 0.1 * jax.random.normal(k_g, (cout,), jnp.float32)
    beta = 0.1 * jax.random.normal(k_b, (cout,), jnp.float32)
    running_mean = 0.01 * jax.random.normal(k_m, (cout,), jnp.float32)
    running_var = 1.0 + 0.1 * jnp.abs(jax.random.normal(k_v, (cout,), jnp.float32))
    eps = 1e-5
    scale = gamma / jnp.sqrt(running_var + eps)
    bias = beta - running_mean * scale
    return w, scale, bias


def build_basic_encoder_params(key, in_channel, out_channel, mid_channel,
                               dilation, padding):
    """Replicates BasicEncoder._build_layers channel/dilation plumbing."""
    cfgs = [(in_channel, out_channel, 1, padding)]         # conv_block(in, out)
    for idx, factor in enumerate(dilation):
        cin = out_channel if idx == 0 else mid_channel
        cfgs.append((cin, mid_channel, factor, padding * factor))
    params = []
    keys = jax.random.split(key, len(cfgs))
    for k, (cin, cout, dil, pad) in zip(keys, cfgs):
        w, scale, bias = make_block_params(k, cin, cout)
        params.append(dict(w=w, scale=scale, bias=bias, dilation=dil, padding=pad))
    return params


# ----- pure-JAX reference (for verification) -----
def basic_encoder_reference(x_nchw, params):
    x = jnp.transpose(x_nchw, (0, 2, 3, 1))
    for p in params:
        pad, dil = p["padding"], p["dilation"]
        y = lax.conv_general_dilated(
            x, p["w"], window_strides=(1, 1),
            padding=((pad, pad), (pad, pad)),
            rhs_dilation=(dil, dil),
            dimension_numbers=("NHWC", "HWIO", "NHWC"))
        y = y * p["scale"] + p["bias"]
        x = jnp.maximum(y, 0.0)
    return jnp.transpose(x, (0, 3, 1, 2))


if __name__ == "__main__":
    # BasicEncoder(in=4, out=8, mid=16, dilation=[1, 2], padding=1), small shapes.
    N, Cin, H, W = 2, 4, 16, 16
    out_channel, mid_channel = 8, 16
    dilation = [1, 2]
    padding = 1

    key = jax.random.PRNGKey(0)
    k_x, k_p = jax.random.split(key)
    x = jax.random.normal(k_x, (N, Cin, H, W), jnp.float32)   # NCHW like PyTorch

    params = build_basic_encoder_params(k_p, Cin, out_channel, mid_channel,
                                        dilation, padding)

    ref = jax.block_until_ready(basic_encoder_reference(x, params))

    # f32 path (tight numerical check; recommended on v5e).
    out_f32 = jax.block_until_ready(basic_encoder_forward(x, params))
    assert out_f32.shape == (N, mid_channel, H, W), out_f32.shape
    assert jnp.allclose(out_f32, ref, atol=5e-4, rtol=5e-4), \
        float(jnp.max(jnp.abs(out_f32 - ref)))

    # bf16 MXU-operand + bf16-resident activation path (v6e/v7x); looser tolerance.
    out_bf16 = jax.block_until_ready(
        basic_encoder_forward(x, params, compute_dtype=jnp.bfloat16))
    assert out_bf16.shape == (N, mid_channel, H, W), out_bf16.shape
    assert jnp.allclose(out_bf16, ref, atol=0.15, rtol=0.05), \
        float(jnp.max(jnp.abs(out_bf16 - ref)))

    print("KERNEL_OK")
</pallas_src>

<mosaic_0001>
module attributes {stable_mosaic.version = 11 : i64} {
  func.func @_fused_encoder_kernel(%arg0: i32, %arg1: memref<1x16x16x16xf32, #tpu.memory_space<vmem>>, %arg2: memref<144x16xf32, #tpu.memory_space<vmem>>, %arg3: memref<1x16xf32, #tpu.memory_space<vmem>>, %arg4: memref<1x16xf32, #tpu.memory_space<vmem>>, %arg5: memref<144x16xf32, #tpu.memory_space<vmem>>, %arg6: memref<1x16xf32, #tpu.memory_space<vmem>>, %arg7: memref<1x16xf32, #tpu.memory_space<vmem>>, %arg8: memref<144x16xf32, #tpu.memory_space<vmem>>, %arg9: memref<1x16xf32, #tpu.memory_space<vmem>>, %arg10: memref<1x16xf32, #tpu.memory_space<vmem>>, %arg11: memref<1x16x256xf32, #tpu.memory_space<vmem>>, %arg12: memref<32x32x16xf32, #tpu.memory_space<vmem>>, %arg13: memref<256x144xf32, #tpu.memory_space<vmem>>) attributes {dimension_semantics = [#tpu.dimension_semantics<parallel>], iteration_bounds = array<i64: 2>, scalar_prefetch = 0 : i64, scratch_operands = 2 : i64, tpu.core_type = #tpu.core_type<tc>, window_params = [{transform_indices = @transform_0, window_bounds = array<i64: 1, 16, 16, 16>}, {pipeline_mode = #tpu.pipeline_mode<synchronous>, transform_indices = @transform_1, window_bounds = array<i64: 144, 16>}, {pipeline_mode = #tpu.pipeline_mode<synchronous>, transform_indices = @transform_2, window_bounds = array<i64: 1, 16>}, {pipeline_mode = #tpu.pipeline_mode<synchronous>, transform_indices = @transform_3, window_bounds = array<i64: 1, 16>}, {pipeline_mode = #tpu.pipeline_mode<synchronous>, transform_indices = @transform_4, window_bounds = array<i64: 144, 16>}, {pipeline_mode = #tpu.pipeline_mode<synchronous>, transform_indices = @transform_5, window_bounds = array<i64: 1, 16>}, {pipeline_mode = #tpu.pipeline_mode<synchronous>, transform_indices = @transform_6, window_bounds = array<i64: 1, 16>}, {pipeline_mode = #tpu.pipeline_mode<synchronous>, transform_indices = @transform_7, window_bounds = array<i64: 144, 16>}, {pipeline_mode = #tpu.pipeline_mode<synchronous>, transform_indices = @transform_8, window_bounds = array<i64: 1, 16>}, {pipeline_mode = #tpu.pipeline_mode<synchronous>, transform_indices = @transform_9, window_bounds = array<i64: 1, 16>}, {transform_indices = @transform_10, window_bounds = array<i64: 1, 16, 256>}]} {
    %cst = arith.constant 0.000000e+00 : f32
    %0 = vector.broadcast %cst : f32 to vector<8x32x16xf32>
    %c0 = arith.constant 0 : index
    %c0_0 = arith.constant 0 : index
    %c0_1 = arith.constant 0 : index
    %1 = vector.load %arg12[%c0, %c0_0, %c0_1] : memref<32x32x16xf32, #tpu.memory_space<vmem>>, vector<8x32x16xf32>
    tpu.vector_store %arg12[%c0, %c0_0, %c0_1], %0 {strides = array<i32>} : memref<32x32x16xf32, #tpu.memory_space<vmem>>, vector<8x32x16xf32>,
    %cst_2 = arith.constant 0.000000e+00 : f32
    %2 = vector.broadcast %cst_2 : f32 to vector<8x32x16xf32>
    %c24 = arith.constant 24 : index
    %c0_3 = arith.constant 0 : index
    %c0_4 = arith.constant 0 : index
    %3 = vector.load %arg12[%c24, %c0_3, %c0_4] : memref<32x32x16xf32, #tpu.memory_space<vmem>>, vector<8x32x16xf32>
    tpu.vector_store %arg12[%c24, %c0_3, %c0_4], %2 {strides = array<i32>} : memref<32x32x16xf32, #tpu.memory_space<vmem>>, vector<8x32x16xf32>,
    %cst_5 = arith.constant 0.000000e+00 : f32
    %4 = vector.broadcast %cst_5 : f32 to vector<16x8x16xf32>
    %c8 = arith.constant 8 : index
    %c0_6 = arith.constant 0 : index
    %c0_7 = arith.constant 0 : index
    %5 = vector.load %arg12[%c8, %c0_6, %c0_7] : memref<32x32x16xf32, #tpu.memory_space<vmem>>, vector<16x8x16xf32>
    tpu.vector_store %arg12[%c8, %c0_6, %c0_7], %4 {strides = array<i32>} : memref<32x32x16xf32, #tpu.memory_space<vmem>>, vector<16x8x16xf32>,
    %cst_8 = arith.constant 0.000000e+00 : f32
    %6 = vector.broadcast %cst_8 : f32 to vector<16x8x16xf32>
    %c8_9 = arith.constant 8 : index
    %c24_10 = arith.constant 24 : index
    %c0_11 = arith.constant 0 : index
    %7 = vector.load %arg12[%c8_9, %c24_10, %c0_11] : memref<32x32x16xf32, #tpu.memory_space<vmem>>, vector<16x8x16xf32>
    tpu.vector_store %arg12[%c8_9, %c24_10, %c0_11], %6 {strides = array<i32>} : memref<32x32x16xf32, #tpu.memory_space<vmem>>, vector<16x8x16xf32>,
    %c0_12 = arith.constant 0 : index
    %c0_13 = arith.constant 0 : index
    %c0_14 = arith.constant 0 : index
    %c0_15 = arith.constant 0 : index
    %8 = vector.load %arg1[%c0_12, %c0_13, %c0_14, %c0_15] : memref<1x16x16x16xf32, #tpu.memory_space<vmem>>, vector<1x16x16x16xf32>
    %9 = vector.shape_cast %8 : vector<1x16x16x16xf32> to vector<16x16x16xf32>
    %c8_16 = arith.constant 8 : index
    %c8_17 = arith.constant 8 : index
    %c0_18 = arith.constant 0 : index
    %10 = vector.load %arg12[%c8_16, %c8_17, %c0_18] : memref<32x32x16xf32, #tpu.memory_space<vmem>>, vector<16x16x16xf32>
    tpu.vector_store %arg12[%c8_16, %c8_17, %c0_18], %9 {strides = array<i32>} : memref<32x32x16xf32, #tpu.memory_space<vmem>>, vector<16x16x16xf32>,
    %c7 = arith.constant 7 : index
    %c7_19 = arith.constant 7 : index
    %c0_20 = arith.constant 0 : index
    %11 = vector.load %arg12[%c7, %c7_19, %c0_20] : memref<32x32x16xf32, #tpu.memory_space<vmem>>, vector<16x16x16xf32>
    %12 = vector.shape_cast %11 : vector<16x16x16xf32> to vector<256x16xf32>
    %c0_21 = arith.constant 0 : index
    %c0_22 = arith.constant 0 : index
    %13 = vector.load %arg13[%c0_21, %c0_22] : memref<256x144xf32, #tpu.memory_space<vmem>>, vector<256x16xf32>
    tpu.vector_store %arg13[%c0_21, %c0_22], %12 {strides = array<i32>} : memref<256x144xf32, #tpu.memory_space<vmem>>, vector<256x16xf32>,
    %c7_23 = arith.constant 7 : index
    %c8_24 = arith.constant 8 : index
    %c0_25 = arith.constant 0 : index
    %14 = vector.load %arg12[%c7_23, %c8_24, %c0_25] : memref<32x32x16xf32, #tpu.memory_space<vmem>>, vector<16x16x16xf32>
    %15 = vector.shape_cast %14 : vector<16x16x16xf32> to vector<256x16xf32>
    %c0_26 = arith.constant 0 : index
    %c16 = arith.constant 16 : index
    %16 = vector.load %arg13[%c0_26, %c16] : memref<256x144xf32, #tpu.memory_space<vmem>>, vector<256x16xf32>
    tpu.vector_store %arg13[%c0_26, %c16], %15 {strides = array<i32>} : memref<256x144xf32, #tpu.memory_space<vmem>>, vector<256x16xf32>,
    %c7_27 = arith.constant 7 : index
    %c9 = arith.constant 9 : index
    %c0_28 = arith.constant 0 : index
    %17 = vector.load %arg12[%c7_27, %c9, %c0_28] : memref<32x32x16xf32, #tpu.memory_space<vmem>>, vector<16x16x16xf32>
    %18 = vector.shape_cast %17 : vector<16x16x16xf32> to vector<256x16xf32>
    %c0_29 = arith.constant 0 : index
    %c32 = arith.constant 32 : index
    %19 = vector.load %arg13[%c0_29, %c32] : memref<256x144xf32, #tpu.memory_space<vmem>>, vector<256x16xf32>
    tpu.vector_store %arg13[%c0_29, %c32], %18 {strides = array<i32>} : memref<256x144xf32, #tpu.memory_space<vmem>>, vector<256x16xf32>,
    %c8_30 = arith.constant 8 : index
    %c7_31 = arith.constant 7 : index
    %c0_32 = arith.constant 0 : index
    %20 = vector.load %arg12[%c8_30, %c7_31, %c0_32] : memref<32x32x16xf32, #tpu.memory_space<vmem>>, vector<16x16x16xf32>
    %21 = vector.shape_cast %20 : vector<16x16x16xf32> to vector<256x16xf32>
    %c0_33 = arith.constant 0 : index
    %c48 = arith.constant 48 : index
    %22 = vector.load %arg13[%c0_33, %c48] : memref<256x144xf32, #tpu.memory_space<vmem>>, vector<256x16xf32>
    tpu.vector_store %arg13[%c0_33, %c48], %21 {strides = array<i32>} : memref<256x144xf32, #tpu.memory_space<vmem>>, vector<256x16xf32>,
    %c8_34 = arith.constant 8 : index
    %c8_35 = arith.constant 8 : index
    %c0_36 = arith.constant 0 : index
    %23 = vector.load %arg12[%c8_34, %c8_35, %c0_36] : memref<32x32x16xf32, #tpu.memory_space<vmem>>, vector<16x16x16xf32>
    %24 = vector.shape_cast %23 : vector<16x16x16xf32> to vector<256x16xf32>
    %c0_37 = arith.constant 0 : index
    %c64 = arith.constant 64 : index
    %25 = vector.load %arg13[%c0_37, %c64] : memref<256x144xf32, #tpu.memory_space<vmem>>, vector<256x16xf32>
    tpu.vector_store %arg13[%c0_37, %c64], %24 {strides = array<i32>} : memref<256x144xf32, #tpu.memory_space<vmem>>, vector<256x16xf32>,
    %c8_38 = arith.constant 8 : index
    %c9_39 = arith.constant 9 : index
    %c0_40 = arith.constant 0 : index
    %26 = vector.load %arg12[%c8_38, %c9_39, %c0_40] : memref<32x32x16xf32, #tpu.memory_space<vmem>>, vector<16x16x16xf32>
    %27 = vector.shape_cast %26 : vector<16x16x16xf32> to vector<256x16xf32>
    %c0_41 = arith.constant 0 : index
    %c80 = arith.constant 80 : index
    %28 = vector.load %arg13[%c0_41, %c80] : memref<256x144xf32, #tpu.memory_space<vmem>>, vector<256x16xf32>
    tpu.vector_store %arg13[%c0_41, %c80], %27 {strides = array<i32>} : memref<256x144xf32, #tpu.memory_space<vmem>>, vector<256x16xf32>,
    %c9_42 = arith.constant 9 : index
    %c7_43 = arith.constant 7 : index
    %c0_44 = arith.constant 0 : index
    %29 = vector.load %arg12[%c9_42, %c7_43, %c0_44] : memref<32x32x16xf32, #tpu.memory_space<vmem>>, vector<16x16x16xf32>
    %30 = vector.shape_cast %29 : vector<16x16x16xf32> to vector<256x16xf32>
    %c0_45 = arith.constant 0 : index
    %c96 = arith.constant 96 : index
    %31 = vector.load %arg13[%c0_45, %c96] : memref<256x144xf32, #tpu.memory_space<vmem>>, vector<256x16xf32>
    tpu.vector_store %arg13[%c0_45, %c96], %30 {strides = array<i32>} : memref<256x144xf32, #tpu.memory_space<vmem>>, vector<256x16xf32>,
    %c9_46 = arith.constant 9 : index
    %c8_47 = arith.constant 8 : index
    %c0_48 = arith.constant 0 : index
    %32 = vector.load %arg12[%c9_46, %c8_47, %c0_48] : memref<32x32x16xf32, #tpu.memory_space<vmem>>, vector<16x16x16xf32>
    %33 = vector.shape_cast %32 : vector<16x16x16xf32> to vector<256x16xf32>
    %c0_49 = arith.constant 0 : index
    %c112 = arith.constant 112 : index
    %34 = vector.load %arg13[%c0_49, %c112] : memref<256x144xf32, #tpu.memory_space<vmem>>, vector<256x16xf32>
    tpu.vector_store %arg13[%c0_49, %c112], %33 {strides = array<i32>} : memref<256x144xf32, #tpu.memory_space<vmem>>, vector<256x16xf32>,
    %c9_50 = arith.constant 9 : index
    %c9_51 = arith.constant 9 : index
    %c0_52 = arith.constant 0 : index
    %35 = vector.load %arg12[%c9_50, %c9_51, %c0_52] : memref<32x32x16xf32, #tpu.memory_space<vmem>>, vector<16x16x16xf32>
    %36 = vector.shape_cast %35 : vector<16x16x16xf32> to vector<256x16xf32>
    %c0_53 = arith.constant 0 : index
    %c128 = arith.constant 128 : index
    %37 = vector.load %arg13[%c0_53, %c128] : memref<256x144xf32, #tpu.memory_space<vmem>>, vector<256x16xf32>
    tpu.vector_store %arg13[%c0_53, %c128], %36 {strides = array<i32>} : memref<256x144xf32, #tpu.memory_space<vmem>>, vector<256x16xf32>,
    %c0_54 = arith.constant 0 : index
    %c0_55 = arith.constant 0 : index
    %38 = vector.load %arg13[%c0_54, %c0_55] : memref<256x144xf32, #tpu.memory_space<vmem>>, vector<256x144xf32>
    %c0_56 = arith.constant 0 : index
    %c0_57 = arith.constant 0 : index
    %39 = vector.load %arg2[%c0_56, %c0_57] : memref<144x16xf32, #tpu.memory_space<vmem>>, vector<144x16xf32>
    %cst_58 = arith.constant dense<0.000000e+00> : vector<256x16xf32>
    %40 = tpu.matmul %38, %39, %cst_58 {dimension_numbers = #tpu.dot_dimension_numbers<[1], [0], [0], [1], [0, 0, 1, 1], [], []>} : vector<256x144xf32>, vector<144x16xf32>, vector<256x16xf32> -> vector<256x16xf32>
    %c0_59 = arith.constant 0 : index
    %c0_60 = arith.constant 0 : index
    %41 = vector.load %arg3[%c0_59, %c0_60] : memref<1x16xf32, #tpu.memory_space<vmem>>, vector<1x16xf32>
    %42 = vector.broadcast %41 : vector<1x16xf32> to vector<256x16xf32>
    %43 = arith.mulf %40, %42 : vector<256x16xf32>
    %c0_61 = arith.constant 0 : index
    %c0_62 = arith.constant 0 : index
    %44 = vector.load %arg4[%c0_61, %c0_62] : memref<1x16xf32, #tpu.memory_space<vmem>>, vector<1x16xf32>
    %45 = vector.broadcast %44 : vector<1x16xf32> to vector<256x16xf32>
    %46 = arith.addf %43, %45 : vector<256x16xf32>
    %cst_63 = arith.constant 0.000000e+00 : f32
    %47 = vector.broadcast %cst_63 : f32 to vector<256x16xf32>
    %48 = arith.maximumf %46, %47 : vector<256x16xf32>
    %49 = vector.shape_cast %48 : vector<256x16xf32> to vector<16x16x16xf32>
    %c8_64 = arith.constant 8 : index
    %c8_65 = arith.constant 8 : index
    %c0_66 = arith.constant 0 : index
    %50 = vector.load %arg12[%c8_64, %c8_65, %c0_66] : memref<32x32x16xf32, #tpu.memory_space<vmem>>, vector<16x16x16xf32>
    tpu.vector_store %arg12[%c8_64, %c8_65, %c0_66], %49 {strides = array<i32>} : memref<32x32x16xf32, #tpu.memory_space<vmem>>, vector<16x16x16xf32>,
    %c7_67 = arith.constant 7 : index
    %c7_68 = arith.constant 7 : index
    %c0_69 = arith.constant 0 : index
    %51 = vector.load %arg12[%c7_67, %c7_68, %c0_69] : memref<32x32x16xf32, #tpu.memory_space<vmem>>, vector<16x16x16xf32>
    %52 = vector.shape_cast %51 : vector<16x16x16xf32> to vector<256x16xf32>
    %c0_70 = arith.constant 0 : index
    %c0_71 = arith.constant 0 : index
    %53 = vector.load %arg13[%c0_70, %c0_71] : memref<256x144xf32, #tpu.memory_space<vmem>>, vector<256x16xf32>
    tpu.vector_store %arg13[%c0_70, %c0_71], %52 {strides = array<i32>} : memref<256x144xf32, #tpu.memory_space<vmem>>, vector<256x16xf32>,
    %c7_72 = arith.constant 7 : index
    %c8_73 = arith.constant 8 : index
    %c0_74 = arith.constant 0 : index
    %54 = vector.load %arg12[%c7_72, %c8_73, %c0_74] : memref<32x32x16xf32, #tpu.memory_space<vmem>>, vector<16x16x16xf32>
    %55 = vector.shape_cast %54 : vector<16x16x16xf32> to vector<256x16xf32>
    %c0_75 = arith.constant 0 : index
    %c16_76 = arith.constant 16 : index
    %56 = vector.load %arg13[%c0_75, %c16_76] : memref<256x144xf32, #tpu.memory_space<vmem>>, vector<256x16xf32>
    tpu.vector_store %arg13[%c0_75, %c16_76], %55 {strides = array<i32>} : memref<256x144xf32, #tpu.memory_space<vmem>>, vector<256x16xf32>,
    %c7_77 = arith.constant 7 : index
    %c9_78 = arith.constant 9 : index
    %c0_79 = arith.constant 0 : index
    %57 = vector.load %arg12[%c7_77, %c9_78, %c0_79] : memref<32x32x16xf32, #tpu.memory_space<vmem>>, vector<16x16x16xf32>
    %58 = vector.shape_cast %57 : vector<16x16x16xf32> to vector<256x16xf32>
    %c0_80 = arith.constant 0 : index
    %c32_81 = arith.constant 32 : index
    %59 = vector.load %arg13[%c0_80, %c32_81] : memref<256x144xf32, #tpu.memory_space<vmem>>, vector<256x16xf32>
    tpu.vector_store %arg13[%c0_80, %c32_81], %58 {strides = array<i32>} : memref<256x144xf32, #tpu.memory_space<vmem>>, vector<256x16xf32>,
    %c8_82 = arith.constant 8 : index
    %c7_83 = arith.constant 7 : index
    %c0_84 = arith.constant 0 : index
    %60 = vector.load %arg12[%c8_82, %c7_83, %c0_84] : memref<32x32x16xf32, #tpu.memory_space<vmem>>, vector<16x16x16xf32>
    %61 = vector.shape_cast %60 : vector<16x16x16xf32> to vector<256x16xf32>
    %c0_85 = arith.constant 0 : index
    %c48_86 = arith.constant 48 : index
    %62 = vector.load %arg13[%c0_85, %c48_86] : memref<256x144xf32, #tpu.memory_space<vmem>>, vector<256x16xf32>
    tpu.vector_store %arg13[%c0_85, %c48_86], %61 {strides = array<i32>} : memref<256x144xf32, #tpu.memory_space<vmem>>, vector<256x16xf32>,
    %c8_87 = arith.constant 8 : index
    %c8_88 = arith.constant 8 : index
    %c0_89 = arith.constant 0 : index
    %63 = vector.load %arg12[%c8_87, %c8_88, %c0_89] : memref<32x32x16xf32, #tpu.memory_space<vmem>>, vector<16x16x16xf32>
    %64 = vector.shape_cast %63 : vector<16x16x16xf32> to vector<256x16xf32>
    %c0_90 = arith.constant 0 : index
    %c64_91 = arith.constant 64 : index
    %65 = vector.load %arg13[%c0_90, %c64_91] : memref<256x144xf32, #tpu.memory_space<vmem>>, vector<256x16xf32>
    tpu.vector_store %arg13[%c0_90, %c64_91], %64 {strides = array<i32>} : memref<256x144xf32, #tpu.memory_space<vmem>>, vector<256x16xf32>,
    %c8_92 = arith.constant 8 : index
    %c9_93 = arith.constant 9 : index
    %c0_94 = arith.constant 0 : index
    %66 = vector.load %arg12[%c8_92, %c9_93, %c0_94] : memref<32x32x16xf32, #tpu.memory_space<vmem>>, vector<16x16x16xf32>
    %67 = vector.shape_cast %66 : vector<16x16x16xf32> to vector<256x16xf32>
    %c0_95 = arith.constant 0 : index
    %c80_96 = arith.constant 80 : index
    %68 = vector.load %arg13[%c0_95, %c80_96] : memref<256x144xf32, #tpu.memory_space<vmem>>, vector<256x16xf32>
    tpu.vector_store %arg13[%c0_95, %c80_96], %67 {strides = array<i32>} : memref<256x144xf32, #tpu.memory_space<vmem>>, vector<256x16xf32>,
    %c9_97 = arith.constant 9 : index
    %c7_98 = arith.constant 7 : index
    %c0_99 = arith.constant 0 : index
    %69 = vector.load %arg12[%c9_97, %c7_98, %c0_99] : memref<32x32x16xf32, #tpu.memory_space<vmem>>, vector<16x16x16xf32>
    %70 = vector.shape_cast %69 : vector<16x16x16xf32> to vector<256x16xf32>
    %c0_100 = arith.constant 0 : index
    %c96_101 = arith.constant 96 : index
    %71 = vector.load %arg13[%c0_100, %c96_101] : memref<256x144xf32, #tpu.memory_space<vmem>>, vector<256x16xf32>
    tpu.vector_store %arg13[%c0_100, %c96_101], %70 {strides = array<i32>} : memref<256x144xf32, #tpu.memory_space<vmem>>, vector<256x16xf32>,
    %c9_102 = arith.constant 9 : index
    %c8_103 = arith.constant 8 : index
    %c0_104 = arith.constant 0 : index
    %72 = vector.load %arg12[%c9_102, %c8_103, %c0_104] : memref<32x32x16xf32, #tpu.memory_space<vmem>>, vector<16x16x16xf32>
    %73 = vector.shape_cast %72 : vector<16x16x16xf32> to vector<256x16xf32>
    %c0_105 = arith.constant 0 : index
    %c112_106 = arith.constant 112 : index
    %74 = vector.load %arg13[%c0_105, %c112_106] : memref<256x144xf32, #tpu.memory_space<vmem>>, vector<256x16xf32>
    tpu.vector_store %arg13[%c0_105, %c112_106], %73 {strides = array<i32>} : memref<256x144xf32, #tpu.memory_space<vmem>>, vector<256x16xf32>,
    %c9_107 = arith.constant 9 : index
    %c9_108 = arith.constant 9 : index
    %c0_109 = arith.constant 0 : index
    %75 = vector.load %arg12[%c9_107, %c9_108, %c0_109] : memref<32x32x16xf32, #tpu.memory_space<vmem>>, vector<16x16x16xf32>
    %76 = vector.shape_cast %75 : vector<16x16x16xf32> to vector<256x16xf32>
    %c0_110 = arith.constant 0 : index
    %c128_111 = arith.constant 128 : index
    %77 = vector.load %arg13[%c0_110, %c128_111] : memref<256x144xf32, #tpu.memory_space<vmem>>, vector<256x16xf32>
    tpu.vector_store %arg13[%c0_110, %c128_111], %76 {strides = array<i32>} : memref<256x144xf32, #tpu.memory_space<vmem>>, vector<256x16xf32>,
    %c0_112 = arith.constant 0 : index
    %c0_113 = arith.constant 0 : index
    %78 = vector.load %arg13[%c0_112, %c0_113] : memref<256x144xf32, #tpu.memory_space<vmem>>, vector<256x144xf32>
    %c0_114 = arith.constant 0 : index
    %c0_115 = arith.constant 0 : index
    %79 = vector.load %arg5[%c0_114, %c0_115] : memref<144x16xf32, #tpu.memory_space<vmem>>, vector<144x16xf32>
    %cst_116 = arith.constant dense<0.000000e+00> : vector<256x16xf32>
    %80 = tpu.matmul %78, %79, %cst_116 {dimension_numbers = #tpu.dot_dimension_numbers<[1], [0], [0], [1], [0, 0, 1, 1], [], []>} : vector<256x144xf32>, vector<144x16xf32>, vector<256x16xf32> -> vector<256x16xf32>
    %c0_117 = arith.constant 0 : index
    %c0_118 = arith.constant 0 : index
    %81 = vector.load %arg6[%c0_117, %c0_118] : memref<1x16xf32, #tpu.memory_space<vmem>>, vector<1x16xf32>
    %82 = vector.broadcast %81 : vector<1x16xf32> to vector<256x16xf32>
    %83 = arith.mulf %80, %82 : vector<256x16xf32>
    %c0_119 = arith.constant 0 : index
    %c0_120 = arith.constant 0 : index
    %84 = vector.load %arg7[%c0_119, %c0_120] : memref<1x16xf32, #tpu.memory_space<vmem>>, vector<1x16xf32>
    %85 = vector.broadcast %84 : vector<1x16xf32> to vector<256x16xf32>
    %86 = arith.addf %83, %85 : vector<256x16xf32>
    %cst_121 = arith.constant 0.000000e+00 : f32
    %87 = vector.broadcast %cst_121 : f32 to vector<256x16xf32>
    %88 = arith.maximumf %86, %87 : vector<256x16xf32>
    %89 = vector.shape_cast %88 : vector<256x16xf32> to vector<16x16x16xf32>
    %c8_122 = arith.constant 8 : index
    %c8_123 = arith.constant 8 : index
    %c0_124 = arith.constant 0 : index
    %90 = vector.load %arg12[%c8_122, %c8_123, %c0_124] : memref<32x32x16xf32, #tpu.memory_space<vmem>>, vector<16x16x16xf32>
    tpu.vector_store %arg12[%c8_122, %c8_123, %c0_124], %89 {strides = array<i32>} : memref<32x32x16xf32, #tpu.memory_space<vmem>>, vector<16x16x16xf32>,
    %c6 = arith.constant 6 : index
    %c6_125 = arith.constant 6 : index
    %c0_126 = arith.constant 0 : index
    %91 = vector.load %arg12[%c6, %c6_125, %c0_126] : memref<32x32x16xf32, #tpu.memory_space<vmem>>, vector<16x16x16xf32>
    %92 = vector.shape_cast %91 : vector<16x16x16xf32> to vector<256x16xf32>
    %c0_127 = arith.constant 0 : index
    %c0_128 = arith.constant 0 : index
    %93 = vector.load %arg13[%c0_127, %c0_128] : memref<256x144xf32, #tpu.memory_space<vmem>>, vector<256x16xf32>
    tpu.vector_store %arg13[%c0_127, %c0_128], %92 {strides = array<i32>} : memref<256x144xf32, #tpu.memory_space<vmem>>, vector<256x16xf32>,
    %c6_129 = arith.constant 6 : index
    %c8_130 = arith.constant 8 : index
    %c0_131 = arith.constant 0 : index
    %94 = vector.load %arg12[%c6_129, %c8_130, %c0_131] : memref<32x32x16xf32, #tpu.memory_space<vmem>>, vector<16x16x16xf32>
    %95 = vector.shape_cast %94 : vector<16x16x16xf32> to vector<256x16xf32>
    %c0_132 = arith.constant 0 : index
    %c16_133 = arith.constant 16 : index
    %96 = vector.load %arg13[%c0_132, %c16_133] : memref<256x144xf32, #tpu.memory_space<vmem>>, vector<256x16xf32>
    tpu.vector_store %arg13[%c0_132, %c16_133], %95 {strides = array<i32>} : memref<256x144xf32, #tpu.memory_space<vmem>>, vector<256x16xf32>,
    %c6_134 = arith.constant 6 : index
    %c10 = arith.constant 10 : index
    %c0_135 = arith.constant 0 : index
    %97 = vector.load %arg12[%c6_134, %c10, %c0_135] : memref<32x32x16xf32, #tpu.memory_space<vmem>>, vector<16x16x16xf32>
    %98 = vector.shape_cast %97 : vector<16x16x16xf32> to vector<256x16xf32>
    %c0_136 = arith.constant 0 : index
    %c32_137 = arith.constant 32 : index
    %99 = vector.load %arg13[%c0_136, %c32_137] : memref<256x144xf32, #tpu.memory_space<vmem>>, vector<256x16xf32>
    tpu.vector_store %arg13[%c0_136, %c32_137], %98 {strides = array<i32>} : memref<256x144xf32, #tpu.memory_space<vmem>>, vector<256x16xf32>,
    %c8_138 = arith.constant 8 : index
    %c6_139 = arith.constant 6 : index
    %c0_140 = arith.constant 0 : index
    %100 = vector.load %arg12[%c8_138, %c6_139, %c0_140] : memref<32x32x16xf32, #tpu.memory_space<vmem>>, vector<16x16x16xf32>
    %101 = vector.shape_cast %100 : vector<16x16x16xf32> to vector<256x16xf32>
    %c0_141 = arith.constant 0 : index
    %c48_142 = arith.constant 48 : index
    %102 = vector.load %arg13[%c0_141, %c48_142] : memref<256x144xf32, #tpu.memory_space<vmem>>, vector<256x16xf32>
    tpu.vector_store %arg13[%c0_141, %c48_142], %101 {strides = array<i32>} : memref<256x144xf32, #tpu.memory_space<vmem>>, vector<256x16xf32>,
    %c8_143 = arith.constant 8 : index
    %c8_144 = arith.constant 8 : index
    %c0_145 = arith.constant 0 : index
    %103 = vector.load %arg12[%c8_143, %c8_144, %c0_145] : memref<32x32x16xf32, #tpu.memory_space<vmem>>, vector<16x16x16xf32>
    %104 = vector.shape_cast %103 : vector<16x16x16xf32> to vector<256x16xf32>
    %c0_146 = arith.constant 0 : index
    %c64_147 = arith.constant 64 : index
    %105 = vector.load %arg13[%c0_146, %c64_147] : memref<256x144xf32, #tpu.memory_space<vmem>>, vector<256x16xf32>
    tpu.vector_store %arg13[%c0_146, %c64_147], %104 {strides = array<i32>} : memref<256x144xf32, #tpu.memory_space<vmem>>, vector<256x16xf32>,
    %c8_148 = arith.constant 8 : index
    %c10_149 = arith.constant 10 : index
    %c0_150 = arith.constant 0 : index
    %106 = vector.load %arg12[%c8_148, %c10_149, %c0_150] : memref<32x32x16xf32, #tpu.memory_space<vmem>>, vector<16x16x16xf32>
    %107 = vector.shape_cast %106 : vector<16x16x16xf32> to vector<256x16xf32>
    %c0_151 = arith.constant 0 : index
    %c80_152 = arith.constant 80 : index
    %108 = vector.load %arg13[%c0_151, %c80_152] : memref<256x144xf32, #tpu.memory_space<vmem>>, vector<256x16xf32>
    tpu.vector_store %arg13[%c0_151, %c80_152], %107 {strides = array<i32>} : memref<256x144xf32, #tpu.memory_space<vmem>>, vector<256x16xf32>,
    %c10_153 = arith.constant 10 : index
    %c6_154 = arith.constant 6 : index
    %c0_155 = arith.constant 0 : index
    %109 = vector.load %arg12[%c10_153, %c6_154, %c0_155] : memref<32x32x16xf32, #tpu.memory_space<vmem>>, vector<16x16x16xf32>
    %110 = vector.shape_cast %109 : vector<16x16x16xf32> to vector<256x16xf32>
    %c0_156 = arith.constant 0 : index
    %c96_157 = arith.constant 96 : index
    %111 = vector.load %arg13[%c0_156, %c96_157] : memref<256x144xf32, #tpu.memory_space<vmem>>, vector<256x16xf32>
    tpu.vector_store %arg13[%c0_156, %c96_157], %110 {strides = array<i32>} : memref<256x144xf32, #tpu.memory_space<vmem>>, vector<256x16xf32>,
    %c10_158 = arith.constant 10 : index
    %c8_159 = arith.constant 8 : index
    %c0_160 = arith.constant 0 : index
    %112 = vector.load %arg12[%c10_158, %c8_159, %c0_160] : memref<32x32x16xf32, #tpu.memory_space<vmem>>, vector<16x16x16xf32>
    %113 = vector.shape_cast %112 : vector<16x16x16xf32> to vector<256x16xf32>
    %c0_161 = arith.constant 0 : index
    %c112_162 = arith.constant 112 : index
    %114 = vector.load %arg13[%c0_161, %c112_162] : memref<256x144xf32, #tpu.memory_space<vmem>>, vector<256x16xf32>
    tpu.vector_store %arg13[%c0_161, %c112_162], %113 {strides = array<i32>} : memref<256x144xf32, #tpu.memory_space<vmem>>, vector<256x16xf32>,
    %c10_163 = arith.constant 10 : index
    %c10_164 = arith.constant 10 : index
    %c0_165 = arith.constant 0 : index
    %115 = vector.load %arg12[%c10_163, %c10_164, %c0_165] : memref<32x32x16xf32, #tpu.memory_space<vmem>>, vector<16x16x16xf32>
    %116 = vector.shape_cast %115 : vector<16x16x16xf32> to vector<256x16xf32>
    %c0_166 = arith.constant 0 : index
    %c128_167 = arith.constant 128 : index
    %117 = vector.load %arg13[%c0_166, %c128_167] : memref<256x144xf32, #tpu.memory_space<vmem>>, vector<256x16xf32>
    tpu.vector_store %arg13[%c0_166, %c128_167], %116 {strides = array<i32>} : memref<256x144xf32, #tpu.memory_space<vmem>>, vector<256x16xf32>,
    %c0_168 = arith.constant 0 : index
    %c0_169 = arith.constant 0 : index
    %118 = vector.load %arg13[%c0_168, %c0_169] : memref<256x144xf32, #tpu.memory_space<vmem>>, vector<256x144xf32>
    %c0_170 = arith.constant 0 : index
    %c0_171 = arith.constant 0 : index
    %119 = vector.load %arg8[%c0_170, %c0_171] : memref<144x16xf32, #tpu.memory_space<vmem>>, vector<144x16xf32>
    %cst_172 = arith.constant dense<0.000000e+00> : vector<256x16xf32>
    %120 = tpu.matmul %118, %119, %cst_172 {dimension_numbers = #tpu.dot_dimension_numbers<[1], [0], [0], [1], [0, 0, 1, 1], [], []>} : vector<256x144xf32>, vector<144x16xf32>, vector<256x16xf32> -> vector<256x16xf32>
    %c0_173 = arith.constant 0 : index
    %c0_174 = arith.constant 0 : index
    %121 = vector.load %arg9[%c0_173, %c0_174] : memref<1x16xf32, #tpu.memory_space<vmem>>, vector<1x16xf32>
    %122 = vector.broadcast %121 : vector<1x16xf32> to vector<256x16xf32>
    %123 = arith.mulf %120, %122 : vector<256x16xf32>
    %c0_175 = arith.constant 0 : index
    %c0_176 = arith.constant 0 : index
    %124 = vector.load %arg10[%c0_175, %c0_176] : memref<1x16xf32, #tpu.memory_space<vmem>>, vector<1x16xf32>
    %125 = vector.broadcast %124 : vector<1x16xf32> to vector<256x16xf32>
    %126 = arith.addf %123, %125 : vector<256x16xf32>
    %cst_177 = arith.constant 0.000000e+00 : f32
    %127 = vector.broadcast %cst_177 : f32 to vector<256x16xf32>
    %128 = arith.maximumf %126, %127 : vector<256x16xf32>
    %129 = tpu.transpose %128, [1, 0] : vector<256x16xf32> -> vector<16x256xf32>
    %130 = vector.shape_cast %129 : vector<16x256xf32> to vector<1x16x256xf32>
    %c0_178 = arith.constant 0 : index
    %c0_179 = arith.constant 0 : index
    %c0_180 = arith.constant 0 : index
    %131 = vector.load %arg11[%c0_178, %c0_179, %c0_180] : memref<1x16x256xf32, #tpu.memory_space<vmem>>, vector<1x16x256xf32>
    tpu.vector_store %arg11[%c0_178, %c0_179, %c0_180], %130 {strides = array<i32>} : memref<1x16x256xf32, #tpu.memory_space<vmem>>, vector<1x16x256xf32>,
    return
  }
  func.func @transform_0(%arg0: i32) -> (i32, i32, i32, i32) {
    %c0_i32 = arith.constant 0 : i32
    %c0_i32_0 = arith.constant 0 : i32
    %c0_i32_1 = arith.constant 0 : i32
    %c0_i32_2 = arith.constant 0 : i32
    return %arg0, %c0_i32, %c0_i32_0, %c0_i32_1 : i32, i32, i32, i32
  }
  func.func @transform_1(%arg0: i32) -> (i32, i32) {
    %c0_i32 = arith.constant 0 : i32
    %c0_i32_0 = arith.constant 0 : i32
    %c0_i32_1 = arith.constant 0 : i32
    return %c0_i32, %c0_i32_0 : i32, i32
  }
  func.func @transform_2(%arg0: i32) -> (i32, i32) {
    %c0_i32 = arith.constant 0 : i32
    %c0_i32_0 = arith.constant 0 : i32
    %c0_i32_1 = arith.constant 0 : i32
    return %c0_i32, %c0_i32_0 : i32, i32
  }
  func.func @transform_3(%arg0: i32) -> (i32, i32) {
    %c0_i32 = arith.constant 0 : i32
    %c0_i32_0 = arith.constant 0 : i32
    %c0_i32_1 = arith.constant 0 : i32
    return %c0_i32, %c0_i32_0 : i32, i32
  }
  func.func @transform_4(%arg0: i32) -> (i32, i32) {
    %c0_i32 = arith.constant 0 : i32
    %c0_i32_0 = arith.constant 0 : i32
    %c0_i32_1 = arith.constant 0 : i32
    return %c0_i32, %c0_i32_0 : i32, i32
  }
  func.func @transform_5(%arg0: i32) -> (i32, i32) {
    %c0_i32 = arith.constant 0 : i32
    %c0_i32_0 = arith.constant 0 : i32
    %c0_i32_1 = arith.constant 0 : i32
    return %c0_i32, %c0_i32_0 : i32, i32
  }
  func.func @transform_6(%arg0: i32) -> (i32, i32) {
    %c0_i32 = arith.constant 0 : i32
    %c0_i32_0 = arith.constant 0 : i32
    %c0_i32_1 = arith.constant 0 : i32
    return %c0_i32, %c0_i32_0 : i32, i32
  }
  func.func @transform_7(%arg0: i32) -> (i32, i32) {
    %c0_i32 = arith.constant 0 : i32
    %c0_i32_0 = arith.constant 0 : i32
    %c0_i32_1 = arith.constant 0 : i32
    return %c0_i32, %c0_i32_0 : i32, i32
  }
  func.func @transform_8(%arg0: i32) -> (i32, i32) {
    %c0_i32 = arith.constant 0 : i32
    %c0_i32_0 = arith.constant 0 : i32
    %c0_i32_1 = arith.constant 0 : i32
    return %c0_i32, %c0_i32_0 : i32, i32
  }
  func.func @transform_9(%arg0: i32) -> (i32, i32) {
    %c0_i32 = arith.constant 0 : i32
    %c0_i32_0 = arith.constant 0 : i32
    %c0_i32_1 = arith.constant 0 : i32
    return %c0_i32, %c0_i32_0 : i32, i32
  }
  func.func @transform_10(%arg0: i32) -> (i32, i32, i32) {
    %c0_i32 = arith.constant 0 : i32
    %c0_i32_0 = arith.constant 0 : i32
    %c0_i32_1 = arith.constant 0 : i32
    return %arg0, %c0_i32, %c0_i32_0 : i32, i32, i32
  }
}

</mosaic_0001>

<llo_original>
// kernel: tpu_custom_call.1
$region0: #{tpu_custom_call.1}
  #allocation0 [shape = 'u32[]', space=smem, size = 0x4, offset = 0x4, fixed_abs, tag = 'smem constant byte address 0x4 - core index']
  #allocation1 [shape = 'u32[144,128]{1,0:T(1,128)}', space=vmem, size = 0x12000, scoped, tag = 'internal scratch']
  #allocation2 [shape = 'f32[32,32,16]{2,1,0:T(8,128)}', space=vmem, size = 0x80000, scoped, tag = 'scratch operand']
  #allocation3 [shape = 'f32[256,144]{1,0:T(8,128)}', space=vmem, size = 0x40000, scoped, tag = 'scratch operand']
  %s0 = inlined_call_operand.vmem [shape: f32[2,16,16,16], index: 0, kind: input, shape index: {}]
  %s1 = inlined_call_operand.vmem [shape: f32[144,16], index: 1, kind: input, shape index: {}]
  %s2 = inlined_call_operand.vmem [shape: f32[1,16], index: 2, kind: input, shape index: {}]
  %s3 = inlined_call_operand.vmem [shape: f32[1,16], index: 3, kind: input, shape index: {}]
  %s4 = inlined_call_operand.vmem [shape: f32[144,16], index: 4, kind: input, shape index: {}]
  %s5 = inlined_call_operand.hbm [shape: f32[1,16], index: 5, kind: input, shape index: {}]
  %s6 = inlined_call_operand.vmem [shape: f32[1,16], index: 6, kind: input, shape index: {}]
  %s7 = inlined_call_operand.vmem [shape: f32[144,16], index: 7, kind: input, shape index: {}]
  %s8 = inlined_call_operand.vmem [shape: f32[1,16], index: 8, kind: input, shape index: {}]
  %s9 = inlined_call_operand.vmem [shape: f32[1,16], index: 9, kind: input, shape index: {}]
  %s10 = inlined_call_operand.hbm [shape: f32[2,16,256], index: 10, kind: output, shape index: {}]
  %s11 = sld [smem:[#allocation0]]
  $region77: #{tpu_custom_call.1} parent=0
    _
  %s13 = ssub.s32 1, %s11
  %s14 = scalar_select 0, %s13, %s11
  $region1: #{tpu_custom_call.1} parent=0
    #allocation4 [shape = 'u8[512]{0}', space=vmem, size = 0x400, scoped, tag = 'input window, operand 5, single buffered']
    #allocation5 [shape = 's32[2]{0}', space=sflag, size = 0x8, scoped, tag = 'scoped memory for tpu_custom_call.1']
    #allocation6 [shape = 's32[2]{0}', space=sflag, size = 0x8, scoped, tag = 'scoped memory for tpu_custom_call.1']
    #allocation7 [shape = 'u8[32768]{0}', space=vmem, size = 0x8000, scoped, tag = 'output window, operand 0']
    %15 = vsyncpa [#allocation5], 0
    %16 = vsyncpa [#allocation6], 0
    %s17 = scalar_lea.sflag [#allocation6], 1
    %18 = vsyncpa %s17, 0
    loop: start=0, step=1, limit=4
    $region2: #{tpu_custom_call.1} parent=1 // loop_pre_header
      _
    $region3: #{tpu_custom_call.1} parent=1 // loop_header
      %s20 = sphi 0, %s24
      %p21 = scmp.ge.s32.totalorder %s20, 4
      %s30 = sphi 0, %s32
      %s33 = sphi 0, %s30
      %s34 = sphi 0, %s33
      %s50 = sphi 0, %s34
      %s54 = sphi 0, %s54
      %s56 = sphi 0, %s54
      %s57 = sphi 0, %s56
      %s71 = sphi 0, %s57
      %s75 = sphi 0, %s75
      %s77 = sphi 0, %s75
      %s78 = sphi 0, %s77
      %s92 = sphi 0, %s78
      %s96 = sphi 0, %s96
      %s98 = sphi 0, %s96
      %s99 = sphi 0, %s98
      %s113 = sphi 0, %s99
      %s117 = sphi 0, %s117
      %s119 = sphi 0, %s117
      %s120 = sphi 0, %s119
      %s134 = sphi 0, %s120
      %s138 = sphi 0, %s138
      %s140 = sphi 0, %s138
      %s141 = sphi 0, %s140
      %s155 = sphi 0, %s141
      %s159 = sphi 0, %s159
      %s161 = sphi 0, %s159
      %s162 = sphi 0, %s161
      %s176 = sphi 0, %s162
      %s180 = sphi 0, %s180
      %s182 = sphi 0, %s180
      %s183 = sphi 0, %s182
      %s197 = sphi 0, %s183
      %s201 = sphi 0, %s201
      %s203 = sphi 0, %s201
      %s204 = sphi 0, %s203
      %s218 = sphi 0, %s204
      %s222 = sphi 0, %s222
      %s224 = sphi 0, %s222
      %s225 = sphi 0, %s224
      %s239 = sphi 0, %s225
      %s245 = sphi 0, %s247
      %s248 = sphi 0, %s245
      %s249 = sphi 0, %s248
      %s265 = sphi 0, %s249
    $region4: #{tpu_custom_call.1} parent=1 // loop_header_branch
      %23 = sbr.rel (%p21) target = $region8
    $region5: #{tpu_custom_call.1} parent=1 // loop_body
      %s25 = ssub.s32 %s20, 1
      %s26 = ssub.s32 %s20, 2
      %s27 = sadd.s32 %s20, 1
      %s28 = ssub.s32 %s20, %s27
      %p29 = scmp.eq.s32.totalorder %s28, 0
      %s31 = sadd.s32 %s30, 1
      %s32 = scalar_select %p29, %s30, %s31
      %p35 = pneg %p29
      %p36 = scmp.eq.s32.totalorder %s20, 1
      %p37 = por %p35, %p36
      %p38 = scmp.ne.s32.totalorder %s30, %s33
      %p39 = scmp.eq.s32.totalorder %s20, 0
      %p40 = por %p38, %p39
      %p41 = scmp.ne.s32.totalorder %s30, %s33
      %p42 = scmp.eq.s32.totalorder %s25, 1
      %p43 = por %p41, %p42
      %p44 = scmp.ne.s32.totalorder %s33, %s34
      %p45 = scmp.eq.s32.totalorder %s25, 0
      %p46 = por %p44, %p45
      %p47 = scmp.ne.s32.totalorder %s33, %s34
      %p48 = scmp.eq.s32.totalorder %s26, 1
      %p49 = por %p47, %p48
      %p51 = scmp.ne.s32.totalorder %s34, %s50
      %p52 = scmp.eq.s32.totalorder %s26, 0
      %p53 = por %p51, %p52
      %s55 = sadd.s32 %s54, 1
      %p58 = scmp.eq.s32.totalorder %s20, 1
      %p59 = scmp.ne.s32.totalorder %s54, %s56
      %p60 = scmp.eq.s32.totalorder %s20, 0
      %p61 = por %p59, %p60
      %p62 = scmp.ne.s32.totalorder %s54, %s56
      %p63 = scmp.eq.s32.totalorder %s25, 1
      %p64 = por %p62, %p63
      %p65 = scmp.ne.s32.totalorder %s56, %s57
      %p66 = scmp.eq.s32.totalorder %s25, 0
      %p67 = por %p65, %p66
      %p68 = scmp.ne.s32.totalorder %s56, %s57
      %p69 = scmp.eq.s32.totalorder %s26, 1
      %p70 = por %p68, %p69
      %p72 = scmp.ne.s32.totalorder %s57, %s71
      %p73 = scmp.eq.s32.totalorder %s26, 0
      %p74 = por %p72, %p73
      %s76 = sadd.s32 %s75, 1
      %p79 = scmp.eq.s32.totalorder %s20, 1
      %p80 = scmp.ne.s32.totalorder %s75, %s77
      %p81 = scmp.eq.s32.totalorder %s20, 0
      %p82 = por %p80, %p81
      %p83 = scmp.ne.s32.totalorder %s75, %s77
      %p84 = scmp.eq.s32.totalorder %s25, 1
      %p85 = por %p83, %p84
      %p86 = scmp.ne.s32.totalorder %s77, %s78
      %p87 = scmp.eq.s32.totalorder %s25, 0
      %p88 = por %p86, %p87
      %p89 = scmp.ne.s32.totalorder %s77, %s78
      %p90 = scmp.eq.s32.totalorder %s26, 1
      %p91 = por %p89, %p90
      %p93 = scmp.ne.s32.totalorder %s78, %s92
      %p94 = scmp.eq.s32.totalorder %s26, 0
      %p95 = por %p93, %p94
      %s97 = sadd.s32 %s96, 1
      %p100 = scmp.eq.s32.totalorder %s20, 1
      %p101 = scmp.ne.s32.totalorder %s96, %s98
      %p102 = scmp.eq.s32.totalorder %s20, 0
      %p103 = por %p101, %p102
      %p104 = scmp.ne.s32.totalorder %s96, %s98
      %p105 = scmp.eq.s32.totalorder %s25, 1
      %p106 = por %p104, %p105
      %p107 = scmp.ne.s32.totalorder %s98, %s99
      %p108 = scmp.eq.s32.totalorder %s25, 0
      %p109 = por %p107, %p108
      %p110 = scmp.ne.s32.totalorder %s98, %s99
      %p111 = scmp.eq.s32.totalorder %s26, 1
      %p112 = por %p110, %p111
      %p114 = scmp.ne.s32.totalorder %s99, %s113
      %p115 = scmp.eq.s32.totalorder %s26, 0
      %p116 = por %p114, %p115
      %s118 = sadd.s32 %s117, 1
      %p121 = scmp.eq.s32.totalorder %s20, 1
      %p122 = scmp.ne.s32.totalorder %s117, %s119
      %p123 = scmp.eq.s32.totalorder %s20, 0
      %p124 = por %p122, %p123
      %p125 = scmp.ne.s32.totalorder %s117, %s119
      %p126 = scmp.eq.s32.totalorder %s25, 1
      %p127 = por %p125, %p126
      %p128 = scmp.ne.s32.totalorder %s119, %s120
      %p129 = scmp.eq.s32.totalorder %s25, 0
      %p130 = por %p128, %p129
      %p131 = scmp.ne.s32.totalorder %s119, %s120
      %p132 = scmp.eq.s32.totalorder %s26, 1
      %p133 = por %p131, %p132
      %p135 = scmp.ne.s32.totalorder %s120, %s134
      %p136 = scmp.eq.s32.totalorder %s26, 0
      %p137 = por %p135, %p136
      %s139 = sadd.s32 %s138, 1
      %p142 = scmp.eq.s32.totalorder %s20, 1
      %p143 = scmp.ne.s32.totalorder %s138, %s140
      %p144 = scmp.eq.s32.totalorder %s20, 0
      %p145 = por %p143, %p144
      %p146 = scmp.ne.s32.totalorder %s138, %s140
      %p147 = scmp.eq.s32.totalorder %s25, 1
      %p148 = por %p146, %p147
      %p149 = scmp.ne.s32.totalorder %s140, %s141
      %p150 = scmp.eq.s32.totalorder %s25, 0
      %p151 = por %p149, %p150
      %p152 = scmp.ne.s32.totalorder %s140, %s141
      %p153 = scmp.eq.s32.totalorder %s26, 1
      %p154 = por %p152, %p153
      %p156 = scmp.ne.s32.totalorder %s141, %s155
      %p157 = scmp.eq.s32.totalorder %s26, 0
      %p158 = por %p156, %p157
      %s160 = sadd.s32 %s159, 1
      %p163 = scmp.eq.s32.totalorder %s20, 1
      %p164 = scmp.ne.s32.totalorder %s159, %s161
      %p165 = scmp.eq.s32.totalorder %s20, 0
      %p166 = por %p164, %p165
      %p167 = scmp.ne.s32.totalorder %s159, %s161
      %p168 = scmp.eq.s32.totalorder %s25, 1
      %p169 = por %p167, %p168
      %p170 = scmp.ne.s32.totalorder %s161, %s162
      %p171 = scmp.eq.s32.totalorder %s25, 0
      %p172 = por %p170, %p171
      %p173 = scmp.ne.s32.totalorder %s161, %s162
      %p174 = scmp.eq.s32.totalorder %s26, 1
      %p175 = por %p173, %p174
      %p177 = scmp.ne.s32.totalorder %s162, %s176
      %p178 = scmp.eq.s32.totalorder %s26, 0
      %p179 = por %p177, %p178
      %s181 = sadd.s32 %s180, 1
      %p184 = scmp.eq.s32.totalorder %s20, 1
      %p185 = scmp.ne.s32.totalorder %s180, %s182
      %p186 = scmp.eq.s32.totalorder %s20, 0
      %p187 = por %p185, %p186
      %p188 = scmp.ne.s32.totalorder %s180, %s182
      %p189 = scmp.eq.s32.totalorder %s25, 1
      %p190 = por %p188, %p189
      %p191 = scmp.ne.s32.totalorder %s182, %s183
      %p192 = scmp.eq.s32.totalorder %s25, 0
      %p193 = por %p191, %p192
      %p194 = scmp.ne.s32.totalorder %s182, %s183
      %p195 = scmp.eq.s32.totalorder %s26, 1
      %p196 = por %p194, %p195
      %p198 = scmp.ne.s32.totalorder %s183, %s197
      %p199 = scmp.eq.s32.totalorder %s26, 0
      %p200 = por %p198, %p199
      %s202 = sadd.s32 %s201, 1
      %p205 = scmp.eq.s32.totalorder %s20, 1
      %p206 = scmp.ne.s32.totalorder %s201, %s203
      %p207 = scmp.eq.s32.totalorder %s20, 0
      %p208 = por %p206, %p207
      %p209 = scmp.ne.s32.totalorder %s201, %s203
      %p210 = scmp.eq.s32.totalorder %s25, 1
      %p211 = por %p209, %p210
      %p212 = scmp.ne.s32.totalorder %s203, %s204
      %p213 = scmp.eq.s32.totalorder %s25, 0
      %p214 = por %p212, %p213
      %p215 = scmp.ne.s32.totalorder %s203, %s204
      %p216 = scmp.eq.s32.totalorder %s26, 1
      %p217 = por %p215, %p216
      %p219 = scmp.ne.s32.totalorder %s204, %s218
      %p220 = scmp.eq.s32.totalorder %s26, 0
      %p221 = por %p219, %p220
      %s223 = sadd.s32 %s222, 1
      %p226 = scmp.eq.s32.totalorder %s20, 1
      %p227 = scmp.ne.s32.totalorder %s222, %s224
      %p228 = scmp.eq.s32.totalorder %s20, 0
      %p229 = por %p227, %p228
      %p230 = scmp.ne.s32.totalorder %s222, %s224
      %p231 = scmp.eq.s32.totalorder %s25, 1
      %p232 = por %p230, %p231
      %p233 = scmp.ne.s32.totalorder %s224, %s225
      %p234 = scmp.eq.s32.totalorder %s25, 0
      %p235 = por %p233, %p234
      %p236 = scmp.ne.s32.totalorder %s224, %s225
      %p237 = scmp.eq.s32.totalorder %s26, 1
      %p238 = por %p236, %p237
      %p240 = scmp.ne.s32.totalorder %s225, %s239
      %p241 = scmp.eq.s32.totalorder %s26, 0
      %p242 = por %p240, %p241
      %s243 = ssub.s32 %s20, %s27
      %p244 = scmp.eq.s32.totalorder %s243, 0
      %s246 = sadd.s32 %s245, 1
      %s247 = scalar_select %p244, %s245, %s246
      %p250 = pneg %p244
      %p251 = scmp.eq.s32.totalorder %s20, 1
      %p252 = por %p250, %p251
      %p253 = scmp.ne.s32.totalorder %s245, %s248
      %p254 = scmp.eq.s32.totalorder %s20, 0
      %p255 = por %p253, %p254
      %p256 = scmp.ne.s32.totalorder %s245, %s248
      %p257 = scmp.eq.s32.totalorder %s25, 1
      %p258 = por %p256, %p257
      %p259 = scmp.ne.s32.totalorder %s248, %s249
      %p260 = scmp.eq.s32.totalorder %s25, 0
      %p261 = por %p259, %p260
      %p262 = scmp.ne.s32.totalorder %s248, %s249
      %p263 = scmp.eq.s32.totalorder %s26, 1
      %p264 = por %p262, %p263
      %p266 = scmp.ne.s32.totalorder %s249, %s265
      %p267 = scmp.eq.s32.totalorder %s26, 0
      %p268 = por %p266, %p267
      %p269 = scmp.le.s32.totalorder 1, %s20
      %p270 = scmp.lt.s32.totalorder %s20, 3
      %p271 = pnand %p269, %p270
      %p272 = pneg %p271
      // Predicated region
      $region9: #{tpu_custom_call.1} parent=5 // pred_check
        _
      $region10: #{tpu_custom_call.1} parent=5 // pred_check_branch
        %274 = sbr.rel (%p271) target = $region12
      $region11: #{tpu_custom_call.1} parent=5 // pred_region
        %s275 = ssub.s32 %s20, 1
        // Predicated region
        $region13: #{tpu_custom_call.1} parent=11 // pred_check
          %p276 = pneg %p67
        $region14: #{tpu_custom_call.1} parent=11 // pred_check_branch
          %278 = sbr.rel (%p276) target = $region16
        $region15: #{tpu_custom_call.1} parent=11 // pred_region
          _
        $region16: #{tpu_custom_call.1} parent=11 // pred_fallthru
          _
        // Predicated region
        $region17: #{tpu_custom_call.1} parent=11 // pred_check
          %p279 = pneg %p88
        $region18: #{tpu_custom_call.1} parent=11 // pred_check_branch
          %281 = sbr.rel (%p279) target = $region20
        $region19: #{tpu_custom_call.1} parent=11 // pred_region
          _
        $region20: #{tpu_custom_call.1} parent=11 // pred_fallthru
          _
        // Predicated region
        $region21: #{tpu_custom_call.1} parent=11 // pred_check
          %p282 = pneg %p109
        $region22: #{tpu_custom_call.1} parent=11 // pred_check_branch
          %284 = sbr.rel (%p282) target = $region24
        $region23: #{tpu_custom_call.1} parent=11 // pred_region
          _
        $region24: #{tpu_custom_call.1} parent=11 // pred_fallthru
          _
        // Predicated region
        $region25: #{tpu_custom_call.1} parent=11 // pred_check
          %p285 = pneg %p130
        $region26: #{tpu_custom_call.1} parent=11 // pred_check_branch
          %287 = sbr.rel (%p285) target = $region28
        $region27: #{tpu_custom_call.1} parent=11 // pred_region
          _
        $region28: #{tpu_custom_call.1} parent=11 // pred_fallthru
          _
        // Predicated region
        $region29: #{tpu_custom_call.1} parent=11 // pred_check
          %p288 = pneg %p151
        $region30: #{tpu_custom_call.1} parent=11 // pred_check_branch
          %290 = sbr.rel (%p288) target = $region32
        $region31: #{tpu_custom_call.1} parent=11 // pred_region
          %s292 = ssub.s32 16, 16
          %293 = vsyncadd [#allocation5], %s292
          %s295 = sshll.u32 [#allocation4], 4
          %s296 = int_to_ptr.vmem [resolvable:$true] %s295
          %298 = dma.hbm_to_vmem [thread:$0]  %s5, 16, %s296, [#allocation5]
        $region32: #{tpu_custom_call.1} parent=11 // pred_fallthru
          _
        // Predicated region
        $region33: #{tpu_custom_call.1} parent=11 // pred_check
          %p299 = pneg %p172
        $region34: #{tpu_custom_call.1} parent=11 // pred_check_branch
          %301 = sbr.rel (%p299) target = $region36
        $region35: #{tpu_custom_call.1} parent=11 // pred_region
          _
        $region36: #{tpu_custom_call.1} parent=11 // pred_fallthru
          _
        // Predicated region
        $region37: #{tpu_custom_call.1} parent=11 // pred_check
          %p302 = pneg %p193
        $region38: #{tpu_custom_call.1} parent=11 // pred_check_branch
          %304 = sbr.rel (%p302) target = $region40
        $region39: #{tpu_custom_call.1} parent=11 // pred_region
          _
        $region40: #{tpu_custom_call.1} parent=11 // pred_fallthru
          _
        // Predicated region
        $region41: #{tpu_custom_call.1} parent=11 // pred_check
          %p305 = pneg %p214
        $region42: #{tpu_custom_call.1} parent=11 // pred_check_branch
          %307 = sbr.rel (%p305) target = $region44
        $region43: #{tpu_custom_call.1} parent=11 // pred_region
          _
        $region44: #{tpu_custom_call.1} parent=11 // pred_fallthru
          _
        // Predicated region
        $region45: #{tpu_custom_call.1} parent=11 // pred_check
          %p308 = pneg %p235
        $region46: #{tpu_custom_call.1} parent=11 // pred_check_branch
          %310 = sbr.rel (%p308) target = $region48
        $region47: #{tpu_custom_call.1} parent=11 // pred_region
          _
        $region48: #{tpu_custom_call.1} parent=11 // pred_fallthru
          _
      $region12: #{tpu_custom_call.1} parent=5 // pred_fallthru
        _
      %p311 = scmp.lt.s32.totalorder %s20, 2
      // Predicated region
      $region49: #{tpu_custom_call.1} parent=5 // pred_check
        %p312 = pneg %p311
      $region50: #{tpu_custom_call.1} parent=5 // pred_check_branch
        %314 = sbr.rel (%p312) target = $region52
      $region51: #{tpu_custom_call.1} parent=5 // pred_region
        // Predicated region
        $region53: #{tpu_custom_call.1} parent=51 // pred_check
          %p315 = pneg %p40
        $region54: #{tpu_custom_call.1} parent=51 // pred_check_branch
          %317 = sbr.rel (%p315) target = $region56
        $region55: #{tpu_custom_call.1} parent=51 // pred_region
          %p318 = scmp.lt.s32.totalorder %s20, 1
          %s319 = scalar_select %p318, %s20, 1
          %s320 = smul.addr %s319, 32
          %s321 = smul.addr %s320, 8
          %s322 = scalar_lea.vmem %s0, %s321
        $region56: #{tpu_custom_call.1} parent=51 // pred_fallthru
          _
      $region52: #{tpu_custom_call.1} parent=5 // pred_fallthru
        _
      %p323 = scmp.le.s32.totalorder 1, %s20
      %p324 = scmp.lt.s32.totalorder %s20, 3
      %p325 = pnand %p323, %p324
      %p326 = pneg %p325
      // Predicated region
      $region57: #{tpu_custom_call.1} parent=5 // pred_check
        _
      $region58: #{tpu_custom_call.1} parent=5 // pred_check_branch
        %328 = sbr.rel (%p325) target = $region60
      $region59: #{tpu_custom_call.1} parent=5 // pred_region
        %s329 = ssub.s32 %s20, 1
        // Predicated region
        $region61: #{tpu_custom_call.1} parent=59 // pred_check
          %p330 = pneg %p151
        $region62: #{tpu_custom_call.1} parent=59 // pred_check_branch
          %332 = sbr.rel (%p330) target = $region64
        $region63: #{tpu_custom_call.1} parent=59 // pred_region
          %333 = dma.done [#allocation5], 16
        $region64: #{tpu_custom_call.1} parent=59 // pred_fallthru
          _
        %p334 = scmp.lt.s32.totalorder %s25, 1
        %s335 = scalar_select %p334, %s25, 1
        %s336 = smul.addr %s335, 32
        %s337 = smul.addr %s336, 8
        %s338 = scalar_lea.vmem %s0, %s337
        %p339 = pneg %p46
        %p340 = pneg %p43
        %p341 = pneg %p67
        %p342 = pneg %p64
        %p343 = pneg %p88
        %p344 = pneg %p85
        %p345 = pneg %p109
        %p346 = pneg %p106
        %p347 = pneg %p130
        %p348 = pneg %p127
        %p349 = pneg %p151
        %p350 = pneg %p148
        %p351 = pneg %p172
        %p352 = pneg %p169
        %p353 = pneg %p193
        %p354 = pneg %p190
        %p355 = pneg %p214
        %p356 = pneg %p211
        %p357 = pneg %p235
        %p358 = pneg %p232
        %p359 = pneg %p261
        %p360 = pneg %p258
        %s361 = sand.u32 %s248, 1
        %s362 = scalar_lea.sflag [#allocation6], %s361
        %s363 = sand.u32 %s248, 1
        %s364 = smul.addr %s363, 32
        %s365 = scalar_lea.vmem [#allocation7], %s364
        %p366 = scmp.lt.s32.totalorder %s25, 1
        %s367 = scalar_select %p366, %s25, 1
        %s368 = smul.addr %s367, 32
        %s369 = smul.addr %s368, 8
        %s370 = scalar_lea.vmem %s0, %s369
        %vm371 = vcmask 130048
        %372 = vst.msk [vmem:[#allocation2] sm:$0xff] %vm371, 0.0
        %373 = vst.msk [vmem:[#allocation2 + $0x8] sm:$0xff] %vm371, 0.0
        %374 = vst.msk [vmem:[#allocation2 + $0x10] sm:$0xff] %vm371, 0.0
        %375 = vst.msk [vmem:[#allocation2 + $0x18] sm:$0xff] %vm371, 0.0
        %376 = vst.msk [vmem:[#allocation2 + $0x20] sm:$0xff] %vm371, 0.0
        %377 = vst.msk [vmem:[#allocation2 + $0x28] sm:$0xff] %vm371, 0.0
        %378 = vst.msk [vmem:[#allocation2 + $0x30] sm:$0xff] %vm371, 0.0
        %379 = vst.msk [vmem:[#allocation2 + $0x38] sm:$0xff] %vm371, 0.0
        %380 = vst.msk [vmem:[#allocation2 + $0x40] sm:$0xff] %vm371, 0.0
        %381 = vst.msk [vmem:[#allocation2 + $0x48] sm:$0xff] %vm371, 0.0
        %382 = vst.msk [vmem:[#allocation2 + $0x50] sm:$0xff] %vm371, 0.0
        %383 = vst.msk [vmem:[#allocation2 + $0x58] sm:$0xff] %vm371, 0.0
        %384 = vst.msk [vmem:[#allocation2 + $0x60] sm:$0xff] %vm371, 0.0
        %385 = vst.msk [vmem:[#allocation2 + $0x68] sm:$0xff] %vm371, 0.0
        %386 = vst.msk [vmem:[#allocation2 + $0x70] sm:$0xff] %vm371, 0.0
        %387 = vst.msk [vmem:[#allocation2 + $0x78] sm:$0xff] %vm371, 0.0
        %388 = vst.msk [vmem:[#allocation2 + $0x80] sm:$0xff] %vm371, 0.0
        %389 = vst.msk [vmem:[#allocation2 + $0x88] sm:$0xff] %vm371, 0.0
        %390 = vst.msk [vmem:[#allocation2 + $0x90] sm:$0xff] %vm371, 0.0
        %391 = vst.msk [vmem:[#allocation2 + $0x98] sm:$0xff] %vm371, 0.0
        %392 = vst.msk [vmem:[#allocation2 + $0xa0] sm:$0xff] %vm371, 0.0
        %393 = vst.msk [vmem:[#allocation2 + $0xa8] sm:$0xff] %vm371, 0.0
        %394 = vst.msk [vmem:[#allocation2 + $0xb0] sm:$0xff] %vm371, 0.0
        %395 = vst.msk [vmem:[#allocation2 + $0xb8] sm:$0xff] %vm371, 0.0
        %396 = vst.msk [vmem:[#allocation2 + $0xc0] sm:$0xff] %vm371, 0.0
        %397 = vst.msk [vmem:[#allocation2 + $0xc8] sm:$0xff] %vm371, 0.0
        %398 = vst.msk [vmem:[#allocation2 + $0xd0] sm:$0xff] %vm371, 0.0
        %399 = vst.msk [vmem:[#allocation2 + $0xd8] sm:$0xff] %vm371, 0.0
        %400 = vst.msk [vmem:[#allocation2 + $0xe0] sm:$0xff] %vm371, 0.0
        %401 = vst.msk [vmem:[#allocation2 + $0xe8] sm:$0xff] %vm371, 0.0
        %402 = vst.msk [vmem:[#allocation2 + $0xf0] sm:$0xff] %vm371, 0.0
        %403 = vst.msk [vmem:[#allocation2 + $0xf8] sm:$0xff] %vm371, 0.0
        %s404 = scalar_lea.vmem [#allocation2], 768
        %405 = vst.msk [vmem:[%s404] sm:$0xff] %vm371, 0.0
        %406 = vst.msk [vmem:[%s404 + $0x8] sm:$0xff] %vm371, 0.0
        %407 = vst.msk [vmem:[%s404 + $0x10] sm:$0xff] %vm371, 0.0
        %408 = vst.msk [vmem:[%s404 + $0x18] sm:$0xff] %vm371, 0.0
        %409 = vst.msk [vmem:[%s404 + $0x20] sm:$0xff] %vm371, 0.0
        %410 = vst.msk [vmem:[%s404 + $0x28] sm:$0xff] %vm371, 0.0
        %411 = vst.msk [vmem:[%s404 + $0x30] sm:$0xff] %vm371, 0.0
        %412 = vst.msk [vmem:[%s404 + $0x38] sm:$0xff] %vm371, 0.0
        %413 = vst.msk [vmem:[%s404 + $0x40] sm:$0xff] %vm371, 0.0
        %414 = vst.msk [vmem:[%s404 + $0x48] sm:$0xff] %vm371, 0.0
        %415 = vst.msk [vmem:[%s404 + $0x50] sm:$0xff] %vm371, 0.0
        %416 = vst.msk [vmem:[%s404 + $0x58] sm:$0xff] %vm371, 0.0
        %417 = vst.msk [vmem:[%s404 + $0x60] sm:$0xff] %vm371, 0.0
        %418 = vst.msk [vmem:[%s404 + $0x68] sm:$0xff] %vm371, 0.0
        %419 = vst.msk [vmem:[%s404 + $0x70] sm:$0xff] %vm371, 0.0
        %420 = vst.msk [vmem:[%s404 + $0x78] sm:$0xff] %vm371, 0.0
        %421 = vst.msk [vmem:[%s404 + $0x80] sm:$0xff] %vm371, 0.0
        %422 = vst.msk [vmem:[%s404 + $0x88] sm:$0xff] %vm371, 0.0
        %423 = vst.msk [vmem:[%s404 + $0x90] sm:$0xff] %vm371, 0.0
        %424 = vst.msk [vmem:[%s404 + $0x98] sm:$0xff] %vm371, 0.0
        %425 = vst.msk [vmem:[%s404 + $0xa0] sm:$0xff] %vm371, 0.0
        %426 = vst.msk [vmem:[%s404 + $0xa8] sm:$0xff] %vm371, 0.0
        %427 = vst.msk [vmem:[%s404 + $0xb0] sm:$0xff] %vm371, 0.0
        %428 = vst.msk [vmem:[%s404 + $0xb8] sm:$0xff] %vm371, 0.0
        %429 = vst.msk [vmem:[%s404 + $0xc0] sm:$0xff] %vm371, 0.0
        %430 = vst.msk [vmem:[%s404 + $0xc8] sm:$0xff] %vm371, 0.0
        %431 = vst.msk [vmem:[%s404 + $0xd0] sm:$0xff] %vm371, 0.0
        %432 = vst.msk [vmem:[%s404 + $0xd8] sm:$0xff] %vm371, 0.0
        %433 = vst.msk [vmem:[%s404 + $0xe0] sm:$0xff] %vm371, 0.0
        %434 = vst.msk [vmem:[%s404 + $0xe8] sm:$0xff] %vm371, 0.0
        %435 = vst.msk [vmem:[%s404 + $0xf0] sm:$0xff] %vm371, 0.0
        %436 = vst.msk [vmem:[%s404 + $0xf8] sm:$0xff] %vm371, 0.0
        %s437 = scalar_lea.vmem [#allocation2], 256
        %438 = vst.msk [vmem:[%s437] sm:$0xff] %vm371, 0.0
        %439 = vst.msk [vmem:[%s437 + $0x20] sm:$0xff] %vm371, 0.0
        %440 = vst.msk [vmem:[%s437 + $0x40] sm:$0xff] %vm371, 0.0
        %441 = vst.msk [vmem:[%s437 + $0x60] sm:$0xff] %vm371, 0.0
        %442 = vst.msk [vmem:[%s437 + $0x80] sm:$0xff] %vm371, 0.0
        %443 = vst.msk [vmem:[%s437 + $0xa0] sm:$0xff] %vm371, 0.0
        %444 = vst.msk [vmem:[%s437 + $0xc0] sm:$0xff] %vm371, 0.0
        %445 = vst.msk [vmem:[%s437 + $0xe0] sm:$0xff] %vm371, 0.0
        %446 = vst.msk [vmem:[%s437 + $0x100] sm:$0xff] %vm371, 0.0
        %447 = vst.msk [vmem:[%s437 + $0x120] sm:$0xff] %vm371, 0.0
        %448 = vst.msk [vmem:[%s437 + $0x140] sm:$0xff] %vm371, 0.0
        %449 = vst.msk [vmem:[%s437 + $0x160] sm:$0xff] %vm371, 0.0
        %450 = vst.msk [vmem:[%s437 + $0x180] sm:$0xff] %vm371, 0.0
        %451 = vst.msk [vmem:[%s437 + $0x1a0] sm:$0xff] %vm371, 0.0
        %452 = vst.msk [vmem:[%s437 + $0x1c0] sm:$0xff] %vm371, 0.0
        %453 = vst.msk [vmem:[%s437 + $0x1e0] sm:$0xff] %vm371, 0.0
        %454 = vst.msk [vmem:[%s437 + $0x18] sm:$0xff] %vm371, 0.0
        %455 = vst.msk [vmem:[%s437 + $0x38] sm:$0xff] %vm371, 0.0
        %456 = vst.msk [vmem:[%s437 + $0x58] sm:$0xff] %vm371, 0.0
        %457 = vst.msk [vmem:[%s437 + $0x78] sm:$0xff] %vm371, 0.0
        %458 = vst.msk [vmem:[%s437 + $0x98] sm:$0xff] %vm371, 0.0
        %459 = vst.msk [vmem:[%s437 + $0xb8] sm:$0xff] %vm371, 0.0
        %460 = vst.msk [vmem:[%s437 + $0xd8] sm:$0xff] %vm371, 0.0
        %461 = vst.msk [vmem:[%s437 + $0xf8] sm:$0xff] %vm371, 0.0
        %462 = vst.msk [vmem:[%s437 + $0x118] sm:$0xff] %vm371, 0.0
        %463 = vst.msk [vmem:[%s437 + $0x138] sm:$0xff] %vm371, 0.0
        %464 = vst.msk [vmem:[%s437 + $0x158] sm:$0xff] %vm371, 0.0
        %465 = vst.msk [vmem:[%s437 + $0x178] sm:$0xff] %vm371, 0.0
        %466 = vst.msk [vmem:[%s437 + $0x198] sm:$0xff] %vm371, 0.0
        %467 = vst.msk [vmem:[%s437 + $0x1b8] sm:$0xff] %vm371, 0.0
        %468 = vst.msk [vmem:[%s437 + $0x1d8] sm:$0xff] %vm371, 0.0
        %469 = vst.msk [vmem:[%s437 + $0x1f8] sm:$0xff] %vm371, 0.0
        %v470 = vld [vmem:[%s370] sm:$0xff]
        %v471 = vld [vmem:[%s370 + $0x8] sm:$0xff]
        %v472 = vld [vmem:[%s370 + $0x10] sm:$0xff]
        %v473 = vld [vmem:[%s370 + $0x18] sm:$0xff]
        %v474 = vld [vmem:[%s370 + $0x20] sm:$0xff]
        %v475 = vld [vmem:[%s370 + $0x28] sm:$0xff]
        %v476 = vld [vmem:[%s370 + $0x30] sm:$0xff]
        %v477 = vld [vmem:[%s370 + $0x38] sm:$0xff]
        %v478 = vld [vmem:[%s370 + $0x40] sm:$0xff]
        %v479 = vld [vmem:[%s370 + $0x48] sm:$0xff]
        %v480 = vld [vmem:[%s370 + $0x50] sm:$0xff]
        %v481 = vld [vmem:[%s370 + $0x58] sm:$0xff]
        %v482 = vld [vmem:[%s370 + $0x60] sm:$0xff]
        %v483 = vld [vmem:[%s370 + $0x68] sm:$0xff]
        %v484 = vld [vmem:[%s370 + $0x70] sm:$0xff]
        %v485 = vld [vmem:[%s370 + $0x78] sm:$0xff]
        %v486 = vld [vmem:[%s370 + $0x80] sm:$0xff]
        %v487 = vld [vmem:[%s370 + $0x88] sm:$0xff]
        %v488 = vld [vmem:[%s370 + $0x90] sm:$0xff]
        %v489 = vld [vmem:[%s370 + $0x98] sm:$0xff]
        %v490 = vld [vmem:[%s370 + $0xa0] sm:$0xff]
        %v491 = vld [vmem:[%s370 + $0xa8] sm:$0xff]
        %v492 = vld [vmem:[%s370 + $0xb0] sm:$0xff]
        %v493 = vld [vmem:[%s370 + $0xb8] sm:$0xff]
        %v494 = vld [vmem:[%s370 + $0xc0] sm:$0xff]
        %v495 = vld [vmem:[%s370 + $0xc8] sm:$0xff]
        %v496 = vld [vmem:[%s370 + $0xd0] sm:$0xff]
        %v497 = vld [vmem:[%s370 + $0xd8] sm:$0xff]
        %v498 = vld [vmem:[%s370 + $0xe0] sm:$0xff]
        %v499 = vld [vmem:[%s370 + $0xe8] sm:$0xff]
        %v500 = vld [vmem:[%s370 + $0xf0] sm:$0xff]
        %v501 = vld [vmem:[%s370 + $0xf8] sm:$0xff]
        %502 = vst.msk [vmem:[%s437 + $0x8] sm:$0xff] %vm371, %v470
        %503 = vst.msk [vmem:[%s437 + $0x10] sm:$0xff] %vm371, %v471
        %504 = vst.msk [vmem:[%s437 + $0x28] sm:$0xff] %vm371, %v472
        %505 = vst.msk [vmem:[%s437 + $0x30] sm:$0xff] %vm371, %v473
        %506 = vst.msk [vmem:[%s437 + $0x48] sm:$0xff] %vm371, %v474
        %507 = vst.msk [vmem:[%s437 + $0x50] sm:$0xff] %vm371, %v475
        %508 = vst.msk [vmem:[%s437 + $0x68] sm:$0xff] %vm371, %v476
        %509 = vst.msk [vmem:[%s437 + $0x70] sm:$0xff] %vm371, %v477
        %510 = vst.msk [vmem:[%s437 + $0x88] sm:$0xff] %vm371, %v478
        %511 = vst.msk [vmem:[%s437 + $0x90] sm:$0xff] %vm371, %v479
        %512 = vst.msk [vmem:[%s437 + $0xa8] sm:$0xff] %vm371, %v480
        %513 = vst.msk [vmem:[%s437 + $0xb0] sm:$0xff] %vm371, %v481
        %514 = vst.msk [vmem:[%s437 + $0xc8] sm:$0xff] %vm371, %v482
        %515 = vst.msk [vmem:[%s437 + $0xd0] sm:$0xff] %vm371, %v483
        %516 = vst.msk [vmem:[%s437 + $0xe8] sm:$0xff] %vm371, %v484
        %517 = vst.msk [vmem:[%s437 + $0xf0] sm:$0xff] %vm371, %v485
        %518 = vst.msk [vmem:[%s437 + $0x108] sm:$0xff] %vm371, %v486
        %519 = vst.msk [vmem:[%s437 + $0x110] sm:$0xff] %vm371, %v487
        %520 = vst.msk [vmem:[%s437 + $0x128] sm:$0xff] %vm371, %v488
        %521 = vst.msk [vmem:[%s437 + $0x130] sm:$0xff] %vm371, %v489
        %522 = vst.msk [vmem:[%s437 + $0x148] sm:$0xff] %vm371, %v490
        %523 = vst.msk [vmem:[%s437 + $0x150] sm:$0xff] %vm371, %v491
        %524 = vst.msk [vmem:[%s437 + $0x168] sm:$0xff] %vm371, %v492
        %525 = vst.msk [vmem:[%s437 + $0x170] sm:$0xff] %vm371, %v493
        %526 = vst.msk [vmem:[%s437 + $0x188] sm:$0xff] %vm371, %v494
        %527 = vst.msk [vmem:[%s437 + $0x190] sm:$0xff] %vm371, %v495
        %528 = vst.msk [vmem:[%s437 + $0x1a8] sm:$0xff] %vm371, %v496
        %529 = vst.msk [vmem:[%s437 + $0x1b0] sm:$0xff] %vm371, %v497
        %530 = vst.msk [vmem:[%s437 + $0x1c8] sm:$0xff] %vm371, %v498
        %531 = vst.msk [vmem:[%s437 + $0x1d0] sm:$0xff] %vm371, %v499
        %532 = vst.msk [vmem:[%s437 + $0x1e8] sm:$0xff] %vm371, %v500
        %533 = vst.msk [vmem:[%s437 + $0x1f0] sm:$0xff] %vm371, %v501
        %s534 = scalar_lea.vmem [#allocation2], 224
        %v535 = vld [vmem:[%s534 + $0x7] sm:$0xff]
        %v536 = vld [vmem:[%s534 + $0xf] sm:$0xff]
        %v537 = vld [vmem:[%s534 + $0x27] sm:$0xff]
        %v538 = vld [vmem:[%s534 + $0x2f] sm:$0xff]
        %v539 = vld [vmem:[%s534 + $0x47] sm:$0xff]
        %v540 = vld [vmem:[%s534 + $0x4f] sm:$0xff]
        %v541 = vld [vmem:[%s534 + $0x67] sm:$0xff]
        %v542 = vld [vmem:[%s534 + $0x6f] sm:$0xff]
        %v543 = vld [vmem:[%s534 + $0x87] sm:$0xff]
        %v544 = vld [vmem:[%s534 + $0x8f] sm:$0xff]
        %v545 = vld [vmem:[%s534 + $0xa7] sm:$0xff]
        %v546 = vld [vmem:[%s534 + $0xaf] sm:$0xff]
        %v547 = vld [vmem:[%s534 + $0xc7] sm:$0xff]
        %v548 = vld [vmem:[%s534 + $0xcf] sm:$0xff]
        %v549 = vld [vmem:[%s534 + $0xe7] sm:$0xff]
        %v550 = vld [vmem:[%s534 + $0xef] sm:$0xff]
        %v551 = vld [vmem:[%s534 + $0x107] sm:$0xff]
        %v552 = vld [vmem:[%s534 + $0x10f] sm:$0xff]
        %v553 = vld [vmem:[%s534 + $0x127] sm:$0xff]
        %v554 = vld [vmem:[%s534 + $0x12f] sm:$0xff]
        %v555 = vld [vmem:[%s534 + $0x147] sm:$0xff]
        %v556 = vld [vmem:[%s534 + $0x14f] sm:$0xff]
        %v557 = vld [vmem:[%s534 + $0x167] sm:$0xff]
        %v558 = vld [vmem:[%s534 + $0x16f] sm:$0xff]
        %v559 = vld [vmem:[%s534 + $0x187] sm:$0xff]
        %v560 = vld [vmem:[%s534 + $0x18f] sm:$0xff]
        %v561 = vld [vmem:[%s534 + $0x1a7] sm:$0xff]
        %v562 = vld [vmem:[%s534 + $0x1af] sm:$0xff]
        %v563 = vld [vmem:[%s534 + $0x1c7] sm:$0xff]
        %v564 = vld [vmem:[%s534 + $0x1cf] sm:$0xff]
        %v565 = vld [vmem:[%s534 + $0x1e7] sm:$0xff]
        %v566 = vld [vmem:[%s534 + $0x1ef] sm:$0xff]
        %567 = vst.msk [vmem:[#allocation3] sm:$0xff] %vm371, %v535
        %568 = vst.msk [vmem:[#allocation3 + $0x10] sm:$0xff] %vm371, %v536
        %569 = vst.msk [vmem:[#allocation3 + $0x20] sm:$0xff] %vm371, %v537
        %570 = vst.msk [vmem:[#allocation3 + $0x30] sm:$0xff] %vm371, %v538
        %571 = vst.msk [vmem:[#allocation3 + $0x40] sm:$0xff] %vm371, %v539
        %572 = vst.msk [vmem:[#allocation3 + $0x50] sm:$0xff] %vm371, %v540
        %573 = vst.msk [vmem:[#allocation3 + $0x60] sm:$0xff] %vm371, %v541
        %574 = vst.msk [vmem:[#allocation3 + $0x70] sm:$0xff] %vm371, %v542
        %575 = vst.msk [vmem:[#allocation3 + $0x80] sm:$0xff] %vm371, %v543
        %576 = vst.msk [vmem:[#allocation3 + $0x90] sm:$0xff] %vm371, %v544
        %577 = vst.msk [vmem:[#allocation3 + $0xa0] sm:$0xff] %vm371, %v545
        %578 = vst.msk [vmem:[#allocation3 + $0xb0] sm:$0xff] %vm371, %v546
        %579 = vst.msk [vmem:[#allocation3 + $0xc0] sm:$0xff] %vm371, %v547
        %580 = vst.msk [vmem:[#allocation3 + $0xd0] sm:$0xff] %vm371, %v548
        %581 = vst.msk [vmem:[#allocation3 + $0xe0] sm:$0xff] %vm371, %v549
        %582 = vst.msk [vmem:[#allocation3 + $0xf0] sm:$0xff] %vm371, %v550
        %583 = vst.msk [vmem:[#allocation3 + $0x100] sm:$0xff] %vm371, %v551
        %584 = vst.msk [vmem:[#allocation3 + $0x110] sm:$0xff] %vm371, %v552
        %585 = vst.msk [vmem:[#allocation3 + $0x120] sm:$0xff] %vm371, %v553
        %586 = vst.msk [vmem:[#allocation3 + $0x130] sm:$0xff] %vm371, %v554
        %587 = vst.msk [vmem:[#allocation3 + $0x140] sm:$0xff] %vm371, %v555
        %588 = vst.msk [vmem:[#allocation3 + $0x150] sm:$0xff] %vm371, %v556
        %589 = vst.msk [vmem:[#allocation3 + $0x160] sm:$0xff] %vm371, %v557
        %590 = vst.msk [vmem:[#allocation3 + $0x170] sm:$0xff] %vm371, %v558
        %591 = vst.msk [vmem:[#allocation3 + $0x180] sm:$0xff] %vm371, %v559
        %592 = vst.msk [vmem:[#allocation3 + $0x190] sm:$0xff] %vm371, %v560
        %593 = vst.msk [vmem:[#allocation3 + $0x1a0] sm:$0xff] %vm371, %v561
        %594 = vst.msk [vmem:[#allocation3 + $0x1b0] sm:$0xff] %vm371, %v562
        %595 = vst.msk [vmem:[#allocation3 + $0x1c0] sm:$0xff] %vm371, %v563
        %596 = vst.msk [vmem:[#allocation3 + $0x1d0] sm:$0xff] %vm371, %v564
        %597 = vst.msk [vmem:[#allocation3 + $0x1e0] sm:$0xff] %vm371, %v565
        %598 = vst.msk [vmem:[#allocation3 + $0x1f0] sm:$0xff] %vm371, %v566
        %v599 = vld [vmem:[%s534 + $0x8] sm:$0xff]
        %v600 = vld [vmem:[%s534 + $0x10] sm:$0xff]
        %v601 = vld [vmem:[%s534 + $0x28] sm:$0xff]
        %v602 = vld [vmem:[%s534 + $0x30] sm:$0xff]
        %v603 = vld [vmem:[%s534 + $0x48] sm:$0xff]
        %v604 = vld [vmem:[%s534 + $0x50] sm:$0xff]
        %v605 = vld [vmem:[%s534 + $0x68] sm:$0xff]
        %v606 = vld [vmem:[%s534 + $0x70] sm:$0xff]
        %v607 = vld [vmem:[%s534 + $0x88] sm:$0xff]
        %v608 = vld [vmem:[%s534 + $0x90] sm:$0xff]
        %v609 = vld [vmem:[%s534 + $0xa8] sm:$0xff]
        %v610 = vld [vmem:[%s534 + $0xb0] sm:$0xff]
        %v611 = vld [vmem:[%s534 + $0xc8] sm:$0xff]
        %v612 = vld [vmem:[%s534 + $0xd0] sm:$0xff]
        %v613 = vld [vmem:[%s534 + $0xe8] sm:$0xff]
        %v614 = vld [vmem:[%s534 + $0xf0] sm:$0xff]
        %v615 = vld [vmem:[%s534 + $0x108] sm:$0xff]
        %v616 = vld [vmem:[%s534 + $0x110] sm:$0xff]
        %v617 = vld [vmem:[%s534 + $0x128] sm:$0xff]
        %v618 = vld [vmem:[%s534 + $0x130] sm:$0xff]
        %v619 = vld [vmem:[%s534 + $0x148] sm:$0xff]
        %v620 = vld [vmem:[%s534 + $0x150] sm:$0xff]
        %v621 = vld [vmem:[%s534 + $0x168] sm:$0xff]
        %v622 = vld [vmem:[%s534 + $0x170] sm:$0xff]
        %v623 = vld [vmem:[%s534 + $0x188] sm:$0xff]
        %v624 = vld [vmem:[%s534 + $0x190] sm:$0xff]
        %v625 = vld [vmem:[%s534 + $0x1a8] sm:$0xff]
        %v626 = vld [vmem:[%s534 + $0x1b0] sm:$0xff]
        %v627 = vld [vmem:[%s534 + $0x1c8] sm:$0xff]
        %v628 = vld [vmem:[%s534 + $0x1d0] sm:$0xff]
        %v629 = vld [vmem:[%s534 + $0x1e8] sm:$0xff]
        %v630 = vld [vmem:[%s534 + $0x1f0] sm:$0xff]
        %663 = vrot.lane.b32.xlu0 %v599, 16
        %v664 = vpop.permute.xlu0 %663
        %665 = vrot.lane.b32.xlu0 %v600, 16
        %v666 = vpop.permute.xlu0 %665
        %667 = vrot.lane.b32.xlu0 %v601, 16
        %v668 = vpop.permute.xlu0 %667
        %669 = vrot.lane.b32.xlu0 %v602, 16
        %v670 = vpop.permute.xlu0 %669
        %671 = vrot.lane.b32.xlu0 %v603, 16
        %v672 = vpop.permute.xlu0 %671
        %673 = vrot.lane.b32.xlu0 %v604, 16
        %v674 = vpop.permute.xlu0 %673
        %675 = vrot.lane.b32.xlu0 %v605, 16
        %v676 = vpop.permute.xlu0 %675
        %677 = vrot.lane.b32.xlu0 %v606, 16
        %v678 = vpop.permute.xlu0 %677
        %679 = vrot.lane.b32.xlu0 %v607, 16
        %v680 = vpop.permute.xlu0 %679
        %681 = vrot.lane.b32.xlu0 %v608, 16
        %v682 = vpop.permute.xlu0 %681
        %683 = vrot.lane.b32.xlu0 %v609, 16
        %v684 = vpop.permute.xlu0 %683
        %685 = vrot.lane.b32.xlu0 %v610, 16
        %v686 = vpop.permute.xlu0 %685
        %687 = vrot.lane.b32.xlu0 %v611, 16
        %v688 = vpop.permute.xlu0 %687
        %689 = vrot.lane.b32.xlu0 %v612, 16
        %v690 = vpop.permute.xlu0 %689
        %691 = vrot.lane.b32.xlu0 %v613, 16
        %v692 = vpop.permute.xlu0 %691
        %693 = vrot.lane.b32.xlu0 %v614, 16
        %v694 = vpop.permute.xlu0 %693
        %695 = vrot.lane.b32.xlu0 %v615, 16
        %v696 = vpop.permute.xlu0 %695
        %697 = vrot.lane.b32.xlu0 %v616, 16
        %v698 = vpop.permute.xlu0 %697
        %699 = vrot.lane.b32.xlu0 %v617, 16
        %v700 = vpop.permute.xlu0 %699
        %701 = vrot.lane.b32.xlu0 %v618, 16
        %v702 = vpop.permute.xlu0 %701
        %703 = vrot.lane.b32.xlu0 %v619, 16
        %v704 = vpop.permute.xlu0 %703
        %705 = vrot.lane.b32.xlu0 %v620, 16
        %v706 = vpop.permute.xlu0 %705
        %707 = vrot.lane.b32.xlu0 %v621, 16
        %v708 = vpop.permute.xlu0 %707
        %709 = vrot.lane.b32.xlu0 %v622, 16
        %v710 = vpop.permute.xlu0 %709
        %711 = vrot.lane.b32.xlu0 %v623, 16
        %v712 = vpop.permute.xlu0 %711
        %713 = vrot.lane.b32.xlu0 %v624, 16
        %v714 = vpop.permute.xlu0 %713
        %715 = vrot.lane.b32.xlu0 %v625, 16
        %v716 = vpop.permute.xlu0 %715
        %717 = vrot.lane.b32.xlu0 %v626, 16
        %v718 = vpop.permute.xlu0 %717
        %719 = vrot.lane.b32.xlu0 %v627, 16
        %v720 = vpop.permute.xlu0 %719
        %721 = vrot.lane.b32.xlu0 %v628, 16
        %v722 = vpop.permute.xlu0 %721
        %723 = vrot.lane.b32.xlu0 %v629, 16
        %v724 = vpop.permute.xlu0 %723
        %725 = vrot.lane.b32.xlu0 %v630, 16
        %v726 = vpop.permute.xlu0 %725
        %vm759 = vcmask 261248
        %760 = vst.msk [vmem:[#allocation3] sm:$0xff] %vm759, %v664
        %761 = vst.msk [vmem:[#allocation3 + $0x10] sm:$0xff] %vm759, %v666
        %762 = vst.msk [vmem:[#allocation3 + $0x20] sm:$0xff] %vm759, %v668
        %763 = vst.msk [vmem:[#allocation3 + $0x30] sm:$0xff] %vm759, %v670
        %764 = vst.msk [vmem:[#allocation3 + $0x40] sm:$0xff] %vm759, %v672
        %765 = vst.msk [vmem:[#allocation3 + $0x50] sm:$0xff] %vm759, %v674
        %766 = vst.msk [vmem:[#allocation3 + $0x60] sm:$0xff] %vm759, %v676
        %767 = vst.msk [vmem:[#allocation3 + $0x70] sm:$0xff] %vm759, %v678
        %768 = vst.msk [vmem:[#allocation3 + $0x80] sm:$0xff] %vm759, %v680
        %769 = vst.msk [vmem:[#allocation3 + $0x90] sm:$0xff] %vm759, %v682
        %770 = vst.msk [vmem:[#allocation3 + $0xa0] sm:$0xff] %vm759, %v684
        %771 = vst.msk [vmem:[#allocation3 + $0xb0] sm:$0xff] %vm759, %v686
        %772 = vst.msk [vmem:[#allocation3 + $0xc0] sm:$0xff] %vm759, %v688
        %773 = vst.msk [vmem:[#allocation3 + $0xd0] sm:$0xff] %vm759, %v690
        %774 = vst.msk [vmem:[#allocation3 + $0xe0] sm:$0xff] %vm759, %v692
        %775 = vst.msk [vmem:[#allocation3 + $0xf0] sm:$0xff] %vm759, %v694
        %776 = vst.msk [vmem:[#allocation3 + $0x100] sm:$0xff] %vm759, %v696
        %777 = vst.msk [vmem:[#allocation3 + $0x110] sm:$0xff] %vm759, %v698
        %778 = vst.msk [vmem:[#allocation3 + $0x120] sm:$0xff] %vm759, %v700
        %779 = vst.msk [vmem:[#allocation3 + $0x130] sm:$0xff] %vm759, %v702
        %780 = vst.msk [vmem:[#allocation3 + $0x140] sm:$0xff] %vm759, %v704
        %781 = vst.msk [vmem:[#allocation3 + $0x150] sm:$0xff] %vm759, %v706
        %782 = vst.msk [vmem:[#allocation3 + $0x160] sm:$0xff] %vm759, %v708
        %783 = vst.msk [vmem:[#allocation3 + $0x170] sm:$0xff] %vm759, %v710
        %784 = vst.msk [vmem:[#allocation3 + $0x180] sm:$0xff] %vm759, %v712
        %785 = vst.msk [vmem:[#allocation3 + $0x190] sm:$0xff] %vm759, %v714
        %786 = vst.msk [vmem:[#allocation3 + $0x1a0] sm:$0xff] %vm759, %v716
        %787 = vst.msk [vmem:[#allocation3 + $0x1b0] sm:$0xff] %vm759, %v718
        %788 = vst.msk [vmem:[#allocation3 + $0x1c0] sm:$0xff] %vm759, %v720
        %789 = vst.msk [vmem:[#allocation3 + $0x1d0] sm:$0xff] %vm759, %v722
        %790 = vst.msk [vmem:[#allocation3 + $0x1e0] sm:$0xff] %vm759, %v724
        %791 = vst.msk [vmem:[#allocation3 + $0x1f0] sm:$0xff] %vm759, %v726
        %v792 = vld [vmem:[%s534 + $0x9] sm:$0xff]
        %v793 = vld [vmem:[%s534 + $0x11] sm:$0xff]
        %v794 = vld [vmem:[%s534 + $0x29] sm:$0xff]
        %v795 = vld [vmem:[%s534 + $0x31] sm:$0xff]
        %v796 = vld [vmem:[%s534 + $0x49] sm:$0xff]
        %v797 = vld [vmem:[%s534 + $0x51] sm:$0xff]
        %v798 = vld [vmem:[%s534 + $0x69] sm:$0xff]
        %v799 = vld [vmem:[%s534 + $0x71] sm:$0xff]
        %v800 = vld [vmem:[%s534 + $0x89] sm:$0xff]
        %v801 = vld [vmem:[%s534 + $0x91] sm:$0xff]
        %v802 = vld [vmem:[%s534 + $0xa9] sm:$0xff]
        %v803 = vld [vmem:[%s534 + $0xb1] sm:$0xff]
        %v804 = vld [vmem:[%s534 + $0xc9] sm:$0xff]
        %v805 = vld [vmem:[%s534 + $0xd1] sm:$0xff]
        %v806 = vld [vmem:[%s534 + $0xe9] sm:$0xff]
        %v807 = vld [vmem:[%s534 + $0xf1] sm:$0xff]
        %v808 = vld [vmem:[%s534 + $0x109] sm:$0xff]
        %v809 = vld [vmem:[%s534 + $0x111] sm:$0xff]
        %v810 = vld [vmem:[%s534 + $0x129] sm:$0xff]
        %v811 = vld [vmem:[%s534 + $0x131] sm:$0xff]
        %v812 = vld [vmem:[%s534 + $0x149] sm:$0xff]
        %v813 = vld [vmem:[%s534 + $0x151] sm:$0xff]
        %v814 = vld [vmem:[%s534 + $0x169] sm:$0xff]
        %v815 = vld [vmem:[%s534 + $0x171] sm:$0xff]
        %v816 = vld [vmem:[%s534 + $0x189] sm:$0xff]
        %v817 = vld [vmem:[%s534 + $0x191] sm:$0xff]
        %v818 = vld [vmem:[%s534 + $0x1a9] sm:$0xff]
        %v819 = vld [vmem:[%s534 + $0x1b1] sm:$0xff]
        %v820 = vld [vmem:[%s534 + $0x1c9] sm:$0xff]
        %v821 = vld [vmem:[%s534 + $0x1d1] sm:$0xff]
        %v822 = vld [vmem:[%s534 + $0x1e9] sm:$0xff]
        %v823 = vld [vmem:[%s534 + $0x1f1] sm:$0xff]
        %856 = vrot.lane.b32.xlu0 %v792, 32
        %v857 = vpop.permute.xlu0 %856
        %858 = vrot.lane.b32.xlu0 %v793, 32
        %v859 = vpop.permute.xlu0 %858
        %860 = vrot.lane.b32.xlu0 %v794, 32
        %v861 = vpop.permute.xlu0 %860
        %862 = vrot.lane.b32.xlu0 %v795, 32
        %v863 = vpop.permute.xlu0 %862
        %864 = vrot.lane.b32.xlu0 %v796, 32
        %v865 = vpop.permute.xlu0 %864
        %866 = vrot.lane.b32.xlu0 %v797, 32
        %v867 = vpop.permute.xlu0 %866
        %868 = vrot.lane.b32.xlu0 %v798, 32
        %v869 = vpop.permute.xlu0 %868
        %870 = vrot.lane.b32.xlu0 %v799, 32
        %v871 = vpop.permute.xlu0 %870
        %872 = vrot.lane.b32.xlu0 %v800, 32
        %v873 = vpop.permute.xlu0 %872
        %874 = vrot.lane.b32.xlu0 %v801, 32
        %v875 = vpop.permute.xlu0 %874
        %876 = vrot.lane.b32.xlu0 %v802, 32
        %v877 = vpop.permute.xlu0 %876
        %878 = vrot.lane.b32.xlu0 %v803, 32
        %v879 = vpop.permute.xlu0 %878
        %880 = vrot.lane.b32.xlu0 %v804, 32
        %v881 = vpop.permute.xlu0 %880
        %882 = vrot.lane.b32.xlu0 %v805, 32
        %v883 = vpop.permute.xlu0 %882
        %884 = vrot.lane.b32.xlu0 %v806, 32
        %v885 = vpop.permute.xlu0 %884
        %886 = vrot.lane.b32.xlu0 %v807, 32
        %v887 = vpop.permute.xlu0 %886
        %888 = vrot.lane.b32.xlu0 %v808, 32
        %v889 = vpop.permute.xlu0 %888
        %890 = vrot.lane.b32.xlu0 %v809, 32
        %v891 = vpop.permute.xlu0 %890
        %892 = vrot.lane.b32.xlu0 %v810, 32
        %v893 = vpop.permute.xlu0 %892
        %894 = vrot.lane.b32.xlu0 %v811, 32
        %v895 = vpop.permute.xlu0 %894
        %896 = vrot.lane.b32.xlu0 %v812, 32
        %v897 = vpop.permute.xlu0 %896
        %898 = vrot.lane.b32.xlu0 %v813, 32
        %v899 = vpop.permute.xlu0 %898
        %900 = vrot.lane.b32.xlu0 %v814, 32
        %v901 = vpop.permute.xlu0 %900
        %902 = vrot.lane.b32.xlu0 %v815, 32
        %v903 = vpop.permute.xlu0 %902
        %904 = vrot.lane.b32.xlu0 %v816, 32
        %v905 = vpop.permute.xlu0 %904
        %906 = vrot.lane.b32.xlu0 %v817, 32
        %v907 = vpop.permute.xlu0 %906
        %908 = vrot.lane.b32.xlu0 %v818, 32
        %v909 = vpop.permute.xlu0 %908
        %910 = vrot.lane.b32.xlu0 %v819, 32
        %v911 = vpop.permute.xlu0 %910
        %912 = vrot.lane.b32.xlu0 %v820, 32
        %v913 = vpop.permute.xlu0 %912
        %914 = vrot.lane.b32.xlu0 %v821, 32
        %v915 = vpop.permute.xlu0 %914
        %916 = vrot.lane.b32.xlu0 %v822, 32
        %v917 = vpop.permute.xlu0 %916
        %918 = vrot.lane.b32.xlu0 %v823, 32
        %v919 = vpop.permute.xlu0 %918
        %vm952 = vcmask 392448
        %953 = vst.msk [vmem:[#allocation3] sm:$0xff] %vm952, %v857
        %954 = vst.msk [vmem:[#allocation3 + $0x10] sm:$0xff] %vm952, %v859
        %955 = vst.msk [vmem:[#allocation3 + $0x20] sm:$0xff] %vm952, %v861
        %956 = vst.msk [vmem:[#allocation3 + $0x30] sm:$0xff] %vm952, %v863
        %957 = vst.msk [vmem:[#allocation3 + $0x40] sm:$0xff] %vm952, %v865
        %958 = vst.msk [vmem:[#allocation3 + $0x50] sm:$0xff] %vm952, %v867
        %959 = vst.msk [vmem:[#allocation3 + $0x60] sm:$0xff] %vm952, %v869
        %960 = vst.msk [vmem:[#allocation3 + $0x70] sm:$0xff] %vm952, %v871
        %961 = vst.msk [vmem:[#allocation3 + $0x80] sm:$0xff] %vm952, %v873
        %962 = vst.msk [vmem:[#allocation3 + $0x90] sm:$0xff] %vm952, %v875
        %963 = vst.msk [vmem:[#allocation3 + $0xa0] sm:$0xff] %vm952, %v877
        %964 = vst.msk [vmem:[#allocation3 + $0xb0] sm:$0xff] %vm952, %v879
        %965 = vst.msk [vmem:[#allocation3 + $0xc0] sm:$0xff] %vm952, %v881
        %966 = vst.msk [vmem:[#allocation3 + $0xd0] sm:$0xff] %vm952, %v883
        %967 = vst.msk [vmem:[#allocation3 + $0xe0] sm:$0xff] %vm952, %v885
        %968 = vst.msk [vmem:[#allocation3 + $0xf0] sm:$0xff] %vm952, %v887
        %969 = vst.msk [vmem:[#allocation3 + $0x100] sm:$0xff] %vm952, %v889
        %970 = vst.msk [vmem:[#allocation3 + $0x110] sm:$0xff] %vm952, %v891
        %971 = vst.msk [vmem:[#allocation3 + $0x120] sm:$0xff] %vm952, %v893
        %972 = vst.msk [vmem:[#allocation3 + $0x130] sm:$0xff] %vm952, %v895
        %973 = vst.msk [vmem:[#allocation3 + $0x140] sm:$0xff] %vm952, %v897
        %974 = vst.msk [vmem:[#allocation3 + $0x150] sm:$0xff] %vm952, %v899
        %975 = vst.msk [vmem:[#allocation3 + $0x160] sm:$0xff] %vm952, %v901
        %976 = vst.msk [vmem:[#allocation3 + $0x170] sm:$0xff] %vm952, %v903
        %977 = vst.msk [vmem:[#allocation3 + $0x180] sm:$0xff] %vm952, %v905
        %978 = vst.msk [vmem:[#allocation3 + $0x190] sm:$0xff] %vm952, %v907
        %979 = vst.msk [vmem:[#allocation3 + $0x1a0] sm:$0xff] %vm952, %v909
        %980 = vst.msk [vmem:[#allocation3 + $0x1b0] sm:$0xff] %vm952, %v911
        %981 = vst.msk [vmem:[#allocation3 + $0x1c0] sm:$0xff] %vm952, %v913
        %982 = vst.msk [vmem:[#allocation3 + $0x1d0] sm:$0xff] %vm952, %v915
        %983 = vst.msk [vmem:[#allocation3 + $0x1e0] sm:$0xff] %vm952, %v917
        %984 = vst.msk [vmem:[#allocation3 + $0x1f0] sm:$0xff] %vm952, %v919
        %v985 = vld [vmem:[%s437 + $0x7] sm:$0xff]
        %v986 = vld [vmem:[%s437 + $0xf] sm:$0xff]
        %v987 = vld [vmem:[%s437 + $0x27] sm:$0xff]
        %v988 = vld [vmem:[%s437 + $0x2f] sm:$0xff]
        %v989 = vld [vmem:[%s437 + $0x47] sm:$0xff]
        %v990 = vld [vmem:[%s437 + $0x4f] sm:$0xff]
        %v991 = vld [vmem:[%s437 + $0x67] sm:$0xff]
        %v992 = vld [vmem:[%s437 + $0x6f] sm:$0xff]
        %v993 = vld [vmem:[%s437 + $0x87] sm:$0xff]
        %v994 = vld [vmem:[%s437 + $0x8f] sm:$0xff]
        %v995 = vld [vmem:[%s437 + $0xa7] sm:$0xff]
        %v996 = vld [vmem:[%s437 + $0xaf] sm:$0xff]
        %v997 = vld [vmem:[%s437 + $0xc7] sm:$0xff]
        %v998 = vld [vmem:[%s437 + $0xcf] sm:$0xff]
        %v999 = vld [vmem:[%s437 + $0xe7] sm:$0xff]
        %v1000 = vld [vmem:[%s437 + $0xef] sm:$0xff]
        %v1001 = vld [vmem:[%s437 + $0x107] sm:$0xff]
        %v1002 = vld [vmem:[%s437 + $0x10f] sm:$0xff]
        %v1003 = vld [vmem:[%s437 + $0x127] sm:$0xff]
        %v1004 = vld [vmem:[%s437 + $0x12f] sm:$0xff]
        %v1005 = vld [vmem:[%s437 + $0x147] sm:$0xff]
        %v1006 = vld [vmem:[%s437 + $0x14f] sm:$0xff]
        %v1007 = vld [vmem:[%s437 + $0x167] sm:$0xff]
        %v1008 = vld [vmem:[%s437 + $0x16f] sm:$0xff]
        %v1009 = vld [vmem:[%s437 + $0x187] sm:$0xff]
        %v1010 = vld [vmem:[%s437 + $0x18f] sm:$0xff]
        %v1011 = vld [vmem:[%s437 + $0x1a7] sm:$0xff]
        %v1012 = vld [vmem:[%s437 + $0x1af] sm:$0xff]
        %v1013 = vld [vmem:[%s437 + $0x1c7] sm:$0xff]
        %v1014 = vld [vmem:[%s437 + $0x1cf] sm:$0xff]
        %v1015 = vld [vmem:[%s437 + $0x1e7] sm:$0xff]
        %v1016 = vld [vmem:[%s437 + $0x1ef] sm:$0xff]
        %1049 = vrot.lane.b32.xlu0 %v985, 48
        %v1050 = vpop.permute.xlu0 %1049
        %1051 = vrot.lane.b32.xlu0 %v986, 48
        %v1052 = vpop.permute.xlu0 %1051
        %1053 = vrot.lane.b32.xlu0 %v987, 48
        %v1054 = vpop.permute.xlu0 %1053
        %1055 = vrot.lane.b32.xlu0 %v988, 48
        %v1056 = vpop.permute.xlu0 %1055
        %1057 = vrot.lane.b32.xlu0 %v989, 48
        %v1058 = vpop.permute.xlu0 %1057
        %1059 = vrot.lane.b32.xlu0 %v990, 48
        %v1060 = vpop.permute.xlu0 %1059
        %1061 = vrot.lane.b32.xlu0 %v991, 48
        %v1062 = vpop.permute.xlu0 %1061
        %1063 = vrot.lane.b32.xlu0 %v992, 48
        %v1064 = vpop.permute.xlu0 %1063
        %1065 = vrot.lane.b32.xlu0 %v993, 48
        %v1066 = vpop.permute.xlu0 %1065
        %1067 = vrot.lane.b32.xlu0 %v994, 48
        %v1068 = vpop.permute.xlu0 %1067
        %1069 = vrot.lane.b32.xlu0 %v995, 48
        %v1070 = vpop.permute.xlu0 %1069
        %1071 = vrot.lane.b32.xlu0 %v996, 48
        %v1072 = vpop.permute.xlu0 %1071
        %1073 = vrot.lane.b32.xlu0 %v997, 48
        %v1074 = vpop.permute.xlu0 %1073
        %1075 = vrot.lane.b32.xlu0 %v998, 48
        %v1076 = vpop.permute.xlu0 %1075
        %1077 = vrot.lane.b32.xlu0 %v999, 48
        %v1078 = vpop.permute.xlu0 %1077
        %1079 = vrot.lane.b32.xlu0 %v1000, 48
        %v1080 = vpop.permute.xlu0 %1079
        %1081 = vrot.lane.b32.xlu0 %v1001, 48
        %v1082 = vpop.permute.xlu0 %1081
        %1083 = vrot.lane.b32.xlu0 %v1002, 48
        %v1084 = vpop.permute.xlu0 %1083
        %1085 = vrot.lane.b32.xlu0 %v1003, 48
        %v1086 = vpop.permute.xlu0 %1085
        %1087 = vrot.lane.b32.xlu0 %v1004, 48
        %v1088 = vpop.permute.xlu0 %1087
        %1089 = vrot.lane.b32.xlu0 %v1005, 48
        %v1090 = vpop.permute.xlu0 %1089
        %1091 = vrot.lane.b32.xlu0 %v1006, 48
        %v1092 = vpop.permute.xlu0 %1091
        %1093 = vrot.lane.b32.xlu0 %v1007, 48
        %v1094 = vpop.permute.xlu0 %1093
        %1095 = vrot.lane.b32.xlu0 %v1008, 48
        %v1096 = vpop.permute.xlu0 %1095
        %1097 = vrot.lane.b32.xlu0 %v1009, 48
        %v1098 = vpop.permute.xlu0 %1097
        %1099 = vrot.lane.b32.xlu0 %v1010, 48
        %v1100 = vpop.permute.xlu0 %1099
        %1101 = vrot.lane.b32.xlu0 %v1011, 48
        %v1102 = vpop.permute.xlu0 %1101
        %1103 = vrot.lane.b32.xlu0 %v1012, 48
        %v1104 = vpop.permute.xlu0 %1103
        %1105 = vrot.lane.b32.xlu0 %v1013, 48
        %v1106 = vpop.permute.xlu0 %1105
        %1107 = vrot.lane.b32.xlu0 %v1014, 48
        %v1108 = vpop.permute.xlu0 %1107
        %1109 = vrot.lane.b32.xlu0 %v1015, 48
        %v1110 = vpop.permute.xlu0 %1109
        %1111 = vrot.lane.b32.xlu0 %v1016, 48
        %v1112 = vpop.permute.xlu0 %1111
        %vm1145 = vcmask 523648
        %1146 = vst.msk [vmem:[#allocation3] sm:$0xff] %vm1145, %v1050
        %1147 = vst.msk [vmem:[#allocation3 + $0x10] sm:$0xff] %vm1145, %v1052
        %1148 = vst.msk [vmem:[#allocation3 + $0x20] sm:$0xff] %vm1145, %v1054
        %1149 = vst.msk [vmem:[#allocation3 + $0x30] sm:$0xff] %vm1145, %v1056
        %1150 = vst.msk [vmem:[#allocation3 + $0x40] sm:$0xff] %vm1145, %v1058
        %1151 = vst.msk [vmem:[#allocation3 + $0x50] sm:$0xff] %vm1145, %v1060
        %1152 = vst.msk [vmem:[#allocation3 + $0x60] sm:$0xff] %vm1145, %v1062
        %1153 = vst.msk [vmem:[#allocation3 + $0x70] sm:$0xff] %vm1145, %v1064
        %1154 = vst.msk [vmem:[#allocation3 + $0x80] sm:$0xff] %vm1145, %v1066
        %1155 = vst.msk [vmem:[#allocation3 + $0x90] sm:$0xff] %vm1145, %v1068
        %1156 = vst.msk [vmem:[#allocation3 + $0xa0] sm:$0xff] %vm1145, %v1070
        %1157 = vst.msk [vmem:[#allocation3 + $0xb0] sm:$0xff] %vm1145, %v1072
        %1158 = vst.msk [vmem:[#allocation3 + $0xc0] sm:$0xff] %vm1145, %v1074
        %1159 = vst.msk [vmem:[#allocation3 + $0xd0] sm:$0xff] %vm1145, %v1076
        %1160 = vst.msk [vmem:[#allocation3 + $0xe0] sm:$0xff] %vm1145, %v1078
        %1161 = vst.msk [vmem:[#allocation3 + $0xf0] sm:$0xff] %vm1145, %v1080
        %1162 = vst.msk [vmem:[#allocation3 + $0x100] sm:$0xff] %vm1145, %v1082
        %1163 = vst.msk [vmem:[#allocation3 + $0x110] sm:$0xff] %vm1145, %v1084
        %1164 = vst.msk [vmem:[#allocation3 + $0x120] sm:$0xff] %vm1145, %v1086
        %1165 = vst.msk [vmem:[#allocation3 + $0x130] sm:$0xff] %vm1145, %v1088
        %1166 = vst.msk [vmem:[#allocation3 + $0x140] sm:$0xff] %vm1145, %v1090
        %1167 = vst.msk [vmem:[#allocation3 + $0x150] sm:$0xff] %vm1145, %v1092
        %1168 = vst.msk [vmem:[#allocation3 + $0x160] sm:$0xff] %vm1145, %v1094
        %1169 = vst.msk [vmem:[#allocation3 + $0x170] sm:$0xff] %vm1145, %v1096
        %1170 = vst.msk [vmem:[#allocation3 + $0x180] sm:$0xff] %vm1145, %v1098
        %1171 = vst.msk [vmem:[#allocation3 + $0x190] sm:$0xff] %vm1145, %v1100
        %1172 = vst.msk [vmem:[#allocation3 + $0x1a0] sm:$0xff] %vm1145, %v1102
        %1173 = vst.msk [vmem:[#allocation3 + $0x1b0] sm:$0xff] %vm1145, %v1104
        %1174 = vst.msk [vmem:[#allocation3 + $0x1c0] sm:$0xff] %vm1145, %v1106
        %1175 = vst.msk [vmem:[#allocation3 + $0x1d0] sm:$0xff] %vm1145, %v1108
        %1176 = vst.msk [vmem:[#allocation3 + $0x1e0] sm:$0xff] %vm1145, %v1110
        %1177 = vst.msk [vmem:[#allocation3 + $0x1f0] sm:$0xff] %vm1145, %v1112
        %v1178 = vld [vmem:[%s437 + $0x8] sm:$0xff]
        %v1179 = vld [vmem:[%s437 + $0x10] sm:$0xff]
        %v1180 = vld [vmem:[%s437 + $0x28] sm:$0xff]
        %v1181 = vld [vmem:[%s437 + $0x30] sm:$0xff]
        %v1182 = vld [vmem:[%s437 + $0x48] sm:$0xff]
        %v1183 = vld [vmem:[%s437 + $0x50] sm:$0xff]
        %v1184 = vld [vmem:[%s437 + $0x68] sm:$0xff]
        %v1185 = vld [vmem:[%s437 + $0x70] sm:$0xff]
        %v1186 = vld [vmem:[%s437 + $0x88] sm:$0xff]
        %v1187 = vld [vmem:[%s437 + $0x90] sm:$0xff]
        %v1188 = vld [vmem:[%s437 + $0xa8] sm:$0xff]
        %v1189 = vld [vmem:[%s437 + $0xb0] sm:$0xff]
        %v1190 = vld [vmem:[%s437 + $0xc8] sm:$0xff]
        %v1191 = vld [vmem:[%s437 + $0xd0] sm:$0xff]
        %v1192 = vld [vmem:[%s437 + $0xe8] sm:$0xff]
        %v1193 = vld [vmem:[%s437 + $0xf0] sm:$0xff]
        %v1194 = vld [vmem:[%s437 + $0x108] sm:$0xff]
        %v1195 = vld [vmem:[%s437 + $0x110] sm:$0xff]
        %v1196 = vld [vmem:[%s437 + $0x128] sm:$0xff]
        %v1197 = vld [vmem:[%s437 + $0x130] sm:$0xff]
        %v1198 = vld [vmem:[%s437 + $0x148] sm:$0xff]
        %v1199 = vld [vmem:[%s437 + $0x150] sm:$0xff]
        %v1200 = vld [vmem:[%s437 + $0x168] sm:$0xff]
        %v1201 = vld [vmem:[%s437 + $0x170] sm:$0xff]
        %v1202 = vld [vmem:[%s437 + $0x188] sm:$0xff]
        %v1203 = vld [vmem:[%s437 + $0x190] sm:$0xff]
        %v1204 = vld [vmem:[%s437 + $0x1a8] sm:$0xff]
        %v1205 = vld [vmem:[%s437 + $0x1b0] sm:$0xff]
        %v1206 = vld [vmem:[%s437 + $0x1c8] sm:$0xff]
        %v1207 = vld [vmem:[%s437 + $0x1d0] sm:$0xff]
        %v1208 = vld [vmem:[%s437 + $0x1e8] sm:$0xff]
        %v1209 = vld [vmem:[%s437 + $0x1f0] sm:$0xff]
        %1242 = vrot.lane.b32.xlu0 %v1178, 64
        %v1243 = vpop.permute.xlu0 %1242
        %1244 = vrot.lane.b32.xlu0 %v1179, 64
        %v1245 = vpop.permute.xlu0 %1244
        %1246 = vrot.lane.b32.xlu0 %v1180, 64
        %v1247 = vpop.permute.xlu0 %1246
        %1248 = vrot.lane.b32.xlu0 %v1181, 64
        %v1249 = vpop.permute.xlu0 %1248
        %1250 = vrot.lane.b32.xlu0 %v1182, 64
        %v1251 = vpop.permute.xlu0 %1250
        %1252 = vrot.lane.b32.xlu0 %v1183, 64
        %v1253 = vpop.permute.xlu0 %1252
        %1254 = vrot.lane.b32.xlu0 %v1184, 64
        %v1255 = vpop.permute.xlu0 %1254
        %1256 = vrot.lane.b32.xlu0 %v1185, 64
        %v1257 = vpop.permute.xlu0 %1256
        %1258 = vrot.lane.b32.xlu0 %v1186, 64
        %v1259 = vpop.permute.xlu0 %1258
        %1260 = vrot.lane.b32.xlu0 %v1187, 64
        %v1261 = vpop.permute.xlu0 %1260
        %1262 = vrot.lane.b32.xlu0 %v1188, 64
        %v1263 = vpop.permute.xlu0 %1262
        %1264 = vrot.lane.b32.xlu0 %v1189, 64
        %v1265 = vpop.permute.xlu0 %1264
        %1266 = vrot.lane.b32.xlu0 %v1190, 64
        %v1267 = vpop.permute.xlu0 %1266
        %1268 = vrot.lane.b32.xlu0 %v1191, 64
        %v1269 = vpop.permute.xlu0 %1268
        %1270 = vrot.lane.b32.xlu0 %v1192, 64
        %v1271 = vpop.permute.xlu0 %1270
        %1272 = vrot.lane.b32.xlu0 %v1193, 64
        %v1273 = vpop.permute.xlu0 %1272
        %1274 = vrot.lane.b32.xlu0 %v1194, 64
        %v1275 = vpop.permute.xlu0 %1274
        %1276 = vrot.lane.b32.xlu0 %v1195, 64
        %v1277 = vpop.permute.xlu0 %1276
        %1278 = vrot.lane.b32.xlu0 %v1196, 64
        %v1279 = vpop.permute.xlu0 %1278
        %1280 = vrot.lane.b32.xlu0 %v1197, 64
        %v1281 = vpop.permute.xlu0 %1280
        %1282 = vrot.lane.b32.xlu0 %v1198, 64
        %v1283 = vpop.permute.xlu0 %1282
        %1284 = vrot.lane.b32.xlu0 %v1199, 64
        %v1285 = vpop.permute.xlu0 %1284
        %1286 = vrot.lane.b32.xlu0 %v1200, 64
        %v1287 = vpop.permute.xlu0 %1286
        %1288 = vrot.lane.b32.xlu0 %v1201, 64
        %v1289 = vpop.permute.xlu0 %1288
        %1290 = vrot.lane.b32.xlu0 %v1202, 64
        %v1291 = vpop.permute.xlu0 %1290
        %1292 = vrot.lane.b32.xlu0 %v1203, 64
        %v1293 = vpop.permute.xlu0 %1292
        %1294 = vrot.lane.b32.xlu0 %v1204, 64
        %v1295 = vpop.permute.xlu0 %1294
        %1296 = vrot.lane.b32.xlu0 %v1205, 64
        %v1297 = vpop.permute.xlu0 %1296
        %1298 = vrot.lane.b32.xlu0 %v1206, 64
        %v1299 = vpop.permute.xlu0 %1298
        %1300 = vrot.lane.b32.xlu0 %v1207, 64
        %v1301 = vpop.permute.xlu0 %1300
        %1302 = vrot.lane.b32.xlu0 %v1208, 64
        %v1303 = vpop.permute.xlu0 %1302
        %1304 = vrot.lane.b32.xlu0 %v1209, 64
        %v1305 = vpop.permute.xlu0 %1304
        %vm1338 = vcmask 654848
        %1339 = vst.msk [vmem:[#allocation3] sm:$0xff] %vm1338, %v1243
        %1340 = vst.msk [vmem:[#allocation3 + $0x10] sm:$0xff] %vm1338, %v1245
        %1341 = vst.msk [vmem:[#allocation3 + $0x20] sm:$0xff] %vm1338, %v1247
        %1342 = vst.msk [vmem:[#allocation3 + $0x30] sm:$0xff] %vm1338, %v1249
        %1343 = vst.msk [vmem:[#allocation3 + $0x40] sm:$0xff] %vm1338, %v1251
        %1344 = vst.msk [vmem:[#allocation3 + $0x50] sm:$0xff] %vm1338, %v1253
        %1345 = vst.msk [vmem:[#allocation3 + $0x60] sm:$0xff] %vm1338, %v1255
        %1346 = vst.msk [vmem:[#allocation3 + $0x70] sm:$0xff] %vm1338, %v1257
        %1347 = vst.msk [vmem:[#allocation3 + $0x80] sm:$0xff] %vm1338, %v1259
        %1348 = vst.msk [vmem:[#allocation3 + $0x90] sm:$0xff] %vm1338, %v1261
        %1349 = vst.msk [vmem:[#allocation3 + $0xa0] sm:$0xff] %vm1338, %v1263
        %1350 = vst.msk [vmem:[#allocation3 + $0xb0] sm:$0xff] %vm1338, %v1265
        %1351 = vst.msk [vmem:[#allocation3 + $0xc0] sm:$0xff] %vm1338, %v1267
        %1352 = vst.msk [vmem:[#allocation3 + $0xd0] sm:$0xff] %vm1338, %v1269
        %1353 = vst.msk [vmem:[#allocation3 + $0xe0] sm:$0xff] %vm1338, %v1271
        %1354 = vst.msk [vmem:[#allocation3 + $0xf0] sm:$0xff] %vm1338, %v1273
        %1355 = vst.msk [vmem:[#allocation3 + $0x100] sm:$0xff] %vm1338, %v1275
        %1356 = vst.msk [vmem:[#allocation3 + $0x110] sm:$0xff] %vm1338, %v1277
        %1357 = vst.msk [vmem:[#allocation3 + $0x120] sm:$0xff] %vm1338, %v1279
        %1358 = vst.msk [vmem:[#allocation3 + $0x130] sm:$0xff] %vm1338, %v1281
        %1359 = vst.msk [vmem:[#allocation3 + $0x140] sm:$0xff] %vm1338, %v1283
        %1360 = vst.msk [vmem:[#allocation3 + $0x150] sm:$0xff] %vm1338, %v1285
        %1361 = vst.msk [vmem:[#allocation3 + $0x160] sm:$0xff] %vm1338, %v1287
        %1362 = vst.msk [vmem:[#allocation3 + $0x170] sm:$0xff] %vm1338, %v1289
        %1363 = vst.msk [vmem:[#allocation3 + $0x180] sm:$0xff] %vm1338, %v1291
        %1364 = vst.msk [vmem:[#allocation3 + $0x190] sm:$0xff] %vm1338, %v1293
        %1365 = vst.msk [vmem:[#allocation3 + $0x1a0] sm:$0xff] %vm1338, %v1295
        %1366 = vst.msk [vmem:[#allocation3 + $0x1b0] sm:$0xff] %vm1338, %v1297
        %1367 = vst.msk [vmem:[#allocation3 + $0x1c0] sm:$0xff] %vm1338, %v1299
        %1368 = vst.msk [vmem:[#allocation3 + $0x1d0] sm:$0xff] %vm1338, %v1301
        %1369 = vst.msk [vmem:[#allocation3 + $0x1e0] sm:$0xff] %vm1338, %v1303
        %1370 = vst.msk [vmem:[#allocation3 + $0x1f0] sm:$0xff] %vm1338, %v1305
        %v1371 = vld [vmem:[%s437 + $0x9] sm:$0xff]
        %v1372 = vld [vmem:[%s437 + $0x11] sm:$0xff]
        %v1373 = vld [vmem:[%s437 + $0x29] sm:$0xff]
        %v1374 = vld [vmem:[%s437 + $0x31] sm:$0xff]
        %v1375 = vld [vmem:[%s437 + $0x49] sm:$0xff]
        %v1376 = vld [vmem:[%s437 + $0x51] sm:$0xff]
        %v1377 = vld [vmem:[%s437 + $0x69] sm:$0xff]
        %v1378 = vld [vmem:[%s437 + $0x71] sm:$0xff]
        %v1379 = vld [vmem:[%s437 + $0x89] sm:$0xff]
        %v1380 = vld [vmem:[%s437 + $0x91] sm:$0xff]
        %v1381 = vld [vmem:[%s437 + $0xa9] sm:$0xff]
        %v1382 = vld [vmem:[%s437 + $0xb1] sm:$0xff]
        %v1383 = vld [vmem:[%s437 + $0xc9] sm:$0xff]
        %v1384 = vld [vmem:[%s437 + $0xd1] sm:$0xff]
        %v1385 = vld [vmem:[%s437 + $0xe9] sm:$0xff]
        %v1386 = vld [vmem:[%s437 + $0xf1] sm:$0xff]
        %v1387 = vld [vmem:[%s437 + $0x109] sm:$0xff]
        %v1388 = vld [vmem:[%s437 + $0x111] sm:$0xff]
        %v1389 = vld [vmem:[%s437 + $0x129] sm:$0xff]
        %v1390 = vld [vmem:[%s437 + $0x131] sm:$0xff]
        %v1391 = vld [vmem:[%s437 + $0x149] sm:$0xff]
        %v1392 = vld [vmem:[%s437 + $0x151] sm:$0xff]
        %v1393 = vld [vmem:[%s437 + $0x169] sm:$0xff]
        %v1394 = vld [vmem:[%s437 + $0x171] sm:$0xff]
        %v1395 = vld [vmem:[%s437 + $0x189] sm:$0xff]
        %v1396 = vld [vmem:[%s437 + $0x191] sm:$0xff]
        %v1397 = vld [vmem:[%s437 + $0x1a9] sm:$0xff]
        %v1398 = vld [vmem:[%s437 + $0x1b1] sm:$0xff]
        %v1399 = vld [vmem:[%s437 + $0x1c9] sm:$0xff]
        %v1400 = vld [vmem:[%s437 + $0x1d1] sm:$0xff]
        %v1401 = vld [vmem:[%s437 + $0x1e9] sm:$0xff]
        %v1402 = vld [vmem:[%s437 + $0x1f1] sm:$0xff]
        %1435 = vrot.lane.b32.xlu0 %v1371, 80
        %v1436 = vpop.permute.xlu0 %1435
        %1437 = vrot.lane.b32.xlu0 %v1372, 80
        %v1438 = vpop.permute.xlu0 %1437
        %1439 = vrot.lane.b32.xlu0 %v1373, 80
        %v1440 = vpop.permute.xlu0 %1439
        %1441 = vrot.lane.b32.xlu0 %v1374, 80
        %v1442 = vpop.permute.xlu0 %1441
        %1443 = vrot.lane.b32.xlu0 %v1375, 80
        %v1444 = vpop.permute.xlu0 %1443
        %1445 = vrot.lane.b32.xlu0 %v1376, 80
        %v1446 = vpop.permute.xlu0 %1445
        %1447 = vrot.lane.b32.xlu0 %v1377, 80
        %v1448 = vpop.permute.xlu0 %1447
        %1449 = vrot.lane.b32.xlu0 %v1378, 80
        %v1450 = vpop.permute.xlu0 %1449
        %1451 = vrot.lane.b32.xlu0 %v1379, 80
        %v1452 = vpop.permute.xlu0 %1451
        %1453 = vrot.lane.b32.xlu0 %v1380, 80
        %v1454 = vpop.permute.xlu0 %1453
        %1455 = vrot.lane.b32.xlu0 %v1381, 80
        %v1456 = vpop.permute.xlu0 %1455
        %1457 = vrot.lane.b32.xlu0 %v1382, 80
        %v1458 = vpop.permute.xlu0 %1457
        %1459 = vrot.lane.b32.xlu0 %v1383, 80
        %v1460 = vpop.permute.xlu0 %1459
        %1461 = vrot.lane.b32.xlu0 %v1384, 80
        %v1462 = vpop.permute.xlu0 %1461
        %1463 = vrot.lane.b32.xlu0 %v1385, 80
        %v1464 = vpop.permute.xlu0 %1463
        %1465 = vrot.lane.b32.xlu0 %v1386, 80
        %v1466 = vpop.permute.xlu0 %1465
        %1467 = vrot.lane.b32.xlu0 %v1387, 80
        %v1468 = vpop.permute.xlu0 %1467
        %1469 = vrot.lane.b32.xlu0 %v1388, 80
        %v1470 = vpop.permute.xlu0 %1469
        %1471 = vrot.lane.b32.xlu0 %v1389, 80
        %v1472 = vpop.permute.xlu0 %1471
        %1473 = vrot.lane.b32.xlu0 %v1390, 80
        %v1474 = vpop.permute.xlu0 %1473
        %1475 = vrot.lane.b32.xlu0 %v1391, 80
        %v1476 = vpop.permute.xlu0 %1475
        %1477 = vrot.lane.b32.xlu0 %v1392, 80
        %v1478 = vpop.permute.xlu0 %1477
        %1479 = vrot.lane.b32.xlu0 %v1393, 80
        %v1480 = vpop.permute.xlu0 %1479
        %1481 = vrot.lane.b32.xlu0 %v1394, 80
        %v1482 = vpop.permute.xlu0 %1481
        %1483 = vrot.lane.b32.xlu0 %v1395, 80
        %v1484 = vpop.permute.xlu0 %1483
        %1485 = vrot.lane.b32.xlu0 %v1396, 80
        %v1486 = vpop.permute.xlu0 %1485
        %1487 = vrot.lane.b32.xlu0 %v1397, 80
        %v1488 = vpop.permute.xlu0 %1487
        %1489 = vrot.lane.b32.xlu0 %v1398, 80
        %v1490 = vpop.permute.xlu0 %1489
        %1491 = vrot.lane.b32.xlu0 %v1399, 80
        %v1492 = vpop.permute.xlu0 %1491
        %1493 = vrot.lane.b32.xlu0 %v1400, 80
        %v1494 = vpop.permute.xlu0 %1493
        %1495 = vrot.lane.b32.xlu0 %v1401, 80
        %v1496 = vpop.permute.xlu0 %1495
        %1497 = vrot.lane.b32.xlu0 %v1402, 80
        %v1498 = vpop.permute.xlu0 %1497
        %vm1531 = vcmask 786048
        %1532 = vst.msk [vmem:[#allocation3] sm:$0xff] %vm1531, %v1436
        %1533 = vst.msk [vmem:[#allocation3 + $0x10] sm:$0xff] %vm1531, %v1438
        %1534 = vst.msk [vmem:[#allocation3 + $0x20] sm:$0xff] %vm1531, %v1440
        %1535 = vst.msk [vmem:[#allocation3 + $0x30] sm:$0xff] %vm1531, %v1442
        %1536 = vst.msk [vmem:[#allocation3 + $0x40] sm:$0xff] %vm1531, %v1444
        %1537 = vst.msk [vmem:[#allocation3 + $0x50] sm:$0xff] %vm1531, %v1446
        %1538 = vst.msk [vmem:[#allocation3 + $0x60] sm:$0xff] %vm1531, %v1448
        %1539 = vst.msk [vmem:[#allocation3 + $0x70] sm:$0xff] %vm1531, %v1450
        %1540 = vst.msk [vmem:[#allocation3 + $0x80] sm:$0xff] %vm1531, %v1452
        %1541 = vst.msk [vmem:[#allocation3 + $0x90] sm:$0xff] %vm1531, %v1454
        %1542 = vst.msk [vmem:[#allocation3 + $0xa0] sm:$0xff] %vm1531, %v1456
        %1543 = vst.msk [vmem:[#allocation3 + $0xb0] sm:$0xff] %vm1531, %v1458
        %1544 = vst.msk [vmem:[#allocation3 + $0xc0] sm:$0xff] %vm1531, %v1460
        %1545 = vst.msk [vmem:[#allocation3 + $0xd0] sm:$0xff] %vm1531, %v1462
        %1546 = vst.msk [vmem:[#allocation3 + $0xe0] sm:$0xff] %vm1531, %v1464
        %1547 = vst.msk [vmem:[#allocation3 + $0xf0] sm:$0xff] %vm1531, %v1466
        %1548 = vst.msk [vmem:[#allocation3 + $0x100] sm:$0xff] %vm1531, %v1468
        %1549 = vst.msk [vmem:[#allocation3 + $0x110] sm:$0xff] %vm1531, %v1470
        %1550 = vst.msk [vmem:[#allocation3 + $0x120] sm:$0xff] %vm1531, %v1472
        %1551 = vst.msk [vmem:[#allocation3 + $0x130] sm:$0xff] %vm1531, %v1474
        %1552 = vst.msk [vmem:[#allocation3 + $0x140] sm:$0xff] %vm1531, %v1476
        %1553 = vst.msk [vmem:[#allocation3 + $0x150] sm:$0xff] %vm1531, %v1478
        %1554 = vst.msk [vmem:[#allocation3 + $0x160] sm:$0xff] %vm1531, %v1480
        %1555 = vst.msk [vmem:[#allocation3 + $0x170] sm:$0xff] %vm1531, %v1482
        %1556 = vst.msk [vmem:[#allocation3 + $0x180] sm:$0xff] %vm1531, %v1484
        %1557 = vst.msk [vmem:[#allocation3 + $0x190] sm:$0xff] %vm1531, %v1486
        %1558 = vst.msk [vmem:[#allocation3 + $0x1a0] sm:$0xff] %vm1531, %v1488
        %1559 = vst.msk [vmem:[#allocation3 + $0x1b0] sm:$0xff] %vm1531, %v1490
        %1560 = vst.msk [vmem:[#allocation3 + $0x1c0] sm:$0xff] %vm1531, %v1492
        %1561 = vst.msk [vmem:[#allocation3 + $0x1d0] sm:$0xff] %vm1531, %v1494
        %1562 = vst.msk [vmem:[#allocation3 + $0x1e0] sm:$0xff] %vm1531, %v1496
        %1563 = vst.msk [vmem:[#allocation3 + $0x1f0] sm:$0xff] %vm1531, %v1498
        %s1564 = scalar_lea.vmem [#allocation2], 288
        %v1565 = vld [vmem:[%s1564 + $0x7] sm:$0xff]
        %v1566 = vld [vmem:[%s1564 + $0xf] sm:$0xff]
        %v1567 = vld [vmem:[%s1564 + $0x27] sm:$0xff]
        %v1568 = vld [vmem:[%s1564 + $0x2f] sm:$0xff]
        %v1569 = vld [vmem:[%s1564 + $0x47] sm:$0xff]
        %v1570 = vld [vmem:[%s1564 + $0x4f] sm:$0xff]
        %v1571 = vld [vmem:[%s1564 + $0x67] sm:$0xff]
        %v1572 = vld [vmem:[%s1564 + $0x6f] sm:$0xff]
        %v1573 = vld [vmem:[%s1564 + $0x87] sm:$0xff]
        %v1574 = vld [vmem:[%s1564 + $0x8f] sm:$0xff]
        %v1575 = vld [vmem:[%s1564 + $0xa7] sm:$0xff]
        %v1576 = vld [vmem:[%s1564 + $0xaf] sm:$0xff]
        %v1577 = vld [vmem:[%s1564 + $0xc7] sm:$0xff]
        %v1578 = vld [vmem:[%s1564 + $0xcf] sm:$0xff]
        %v1579 = vld [vmem:[%s1564 + $0xe7] sm:$0xff]
        %v1580 = vld [vmem:[%s1564 + $0xef] sm:$0xff]
        %v1581 = vld [vmem:[%s1564 + $0x107] sm:$0xff]
        %v1582 = vld [vmem:[%s1564 + $0x10f] sm:$0xff]
        %v1583 = vld [vmem:[%s1564 + $0x127] sm:$0xff]
        %v1584 = vld [vmem:[%s1564 + $0x12f] sm:$0xff]
        %v1585 = vld [vmem:[%s1564 + $0x147] sm:$0xff]
        %v1586 = vld [vmem:[%s1564 + $0x14f] sm:$0xff]
        %v1587 = vld [vmem:[%s1564 + $0x167] sm:$0xff]
        %v1588 = vld [vmem:[%s1564 + $0x16f] sm:$0xff]
        %v1589 = vld [vmem:[%s1564 + $0x187] sm:$0xff]
        %v1590 = vld [vmem:[%s1564 + $0x18f] sm:$0xff]
        %v1591 = vld [vmem:[%s1564 + $0x1a7] sm:$0xff]
        %v1592 = vld [vmem:[%s1564 + $0x1af] sm:$0xff]
        %v1593 = vld [vmem:[%s1564 + $0x1c7] sm:$0xff]
        %v1594 = vld [vmem:[%s1564 + $0x1cf] sm:$0xff]
        %v1595 = vld [vmem:[%s1564 + $0x1e7] sm:$0xff]
        %v1596 = vld [vmem:[%s1564 + $0x1ef] sm:$0xff]
        %1629 = vrot.lane.b32.xlu0 %v1565, 96
        %v1630 = vpop.permute.xlu0 %1629
        %1631 = vrot.lane.b32.xlu0 %v1566, 96
        %v1632 = vpop.permute.xlu0 %1631
        %1633 = vrot.lane.b32.xlu0 %v1567, 96
        %v1634 = vpop.permute.xlu0 %1633
        %1635 = vrot.lane.b32.xlu0 %v1568, 96
        %v1636 = vpop.permute.xlu0 %1635
        %1637 = vrot.lane.b32.xlu0 %v1569, 96
        %v1638 = vpop.permute.xlu0 %1637
        %1639 = vrot.lane.b32.xlu0 %v1570, 96
        %v1640 = vpop.permute.xlu0 %1639
        %1641 = vrot.lane.b32.xlu0 %v1571, 96
        %v1642 = vpop.permute.xlu0 %1641
        %1643 = vrot.lane.b32.xlu0 %v1572, 96
        %v1644 = vpop.permute.xlu0 %1643
        %1645 = vrot.lane.b32.xlu0 %v1573, 96
        %v1646 = vpop.permute.xlu0 %1645
        %1647 = vrot.lane.b32.xlu0 %v1574, 96
        %v1648 = vpop.permute.xlu0 %1647
        %1649 = vrot.lane.b32.xlu0 %v1575, 96
        %v1650 = vpop.permute.xlu0 %1649
        %1651 = vrot.lane.b32.xlu0 %v1576, 96
        %v1652 = vpop.permute.xlu0 %1651
        %1653 = vrot.lane.b32.xlu0 %v1577, 96
        %v1654 = vpop.permute.xlu0 %1653
        %1655 = vrot.lane.b32.xlu0 %v1578, 96
        %v1656 = vpop.permute.xlu0 %1655
        %1657 = vrot.lane.b32.xlu0 %v1579, 96
        %v1658 = vpop.permute.xlu0 %1657
        %1659 = vrot.lane.b32.xlu0 %v1580, 96
        %v1660 = vpop.permute.xlu0 %1659
        %1661 = vrot.lane.b32.xlu0 %v1581, 96
        %v1662 = vpop.permute.xlu0 %1661
        %1663 = vrot.lane.b32.xlu0 %v1582, 96
        %v1664 = vpop.permute.xlu0 %1663
        %1665 = vrot.lane.b32.xlu0 %v1583, 96
        %v1666 = vpop.permute.xlu0 %1665
        %1667 = vrot.lane.b32.xlu0 %v1584, 96
        %v1668 = vpop.permute.xlu0 %1667
        %1669 = vrot.lane.b32.xlu0 %v1585, 96
        %v1670 = vpop.permute.xlu0 %1669
        %1671 = vrot.lane.b32.xlu0 %v1586, 96
        %v1672 = vpop.permute.xlu0 %1671
        %1673 = vrot.lane.b32.xlu0 %v1587, 96
        %v1674 = vpop.permute.xlu0 %1673
        %1675 = vrot.lane.b32.xlu0 %v1588, 96
        %v1676 = vpop.permute.xlu0 %1675
        %1677 = vrot.lane.b32.xlu0 %v1589, 96
        %v1678 = vpop.permute.xlu0 %1677
        %1679 = vrot.lane.b32.xlu0 %v1590, 96
        %v1680 = vpop.permute.xlu0 %1679
        %1681 = vrot.lane.b32.xlu0 %v1591, 96
        %v1682 = vpop.permute.xlu0 %1681
        %1683 = vrot.lane.b32.xlu0 %v1592, 96
        %v1684 = vpop.permute.xlu0 %1683
        %1685 = vrot.lane.b32.xlu0 %v1593, 96
        %v1686 = vpop.permute.xlu0 %1685
        %1687 = vrot.lane.b32.xlu0 %v1594, 96
        %v1688 = vpop.permute.xlu0 %1687
        %1689 = vrot.lane.b32.xlu0 %v1595, 96
        %v1690 = vpop.permute.xlu0 %1689
        %1691 = vrot.lane.b32.xlu0 %v1596, 96
        %v1692 = vpop.permute.xlu0 %1691
        %vm1725 = vcmask 917248
        %1726 = vst.msk [vmem:[#allocation3] sm:$0xff] %vm1725, %v1630
        %1727 = vst.msk [vmem:[#allocation3 + $0x10] sm:$0xff] %vm1725, %v1632
        %1728 = vst.msk [vmem:[#allocation3 + $0x20] sm:$0xff] %vm1725, %v1634
        %1729 = vst.msk [vmem:[#allocation3 + $0x30] sm:$0xff] %vm1725, %v1636
        %1730 = vst.msk [vmem:[#allocation3 + $0x40] sm:$0xff] %vm1725, %v1638
        %1731 = vst.msk [vmem:[#allocation3 + $0x50] sm:$0xff] %vm1725, %v1640
        %1732 = vst.msk [vmem:[#allocation3 + $0x60] sm:$0xff] %vm1725, %v1642
        %1733 = vst.msk [vmem:[#allocation3 + $0x70] sm:$0xff] %vm1725, %v1644
        %1734 = vst.msk [vmem:[#allocation3 + $0x80] sm:$0xff] %vm1725, %v1646
        %1735 = vst.msk [vmem:[#allocation3 + $0x90] sm:$0xff] %vm1725, %v1648
        %1736 = vst.msk [vmem:[#allocation3 + $0xa0] sm:$0xff] %vm1725, %v1650
        %1737 = vst.msk [vmem:[#allocation3 + $0xb0] sm:$0xff] %vm1725, %v1652
        %1738 = vst.msk [vmem:[#allocation3 + $0xc0] sm:$0xff] %vm1725, %v1654
        %1739 = vst.msk [vmem:[#allocation3 + $0xd0] sm:$0xff] %vm1725, %v1656
        %1740 = vst.msk [vmem:[#allocation3 + $0xe0] sm:$0xff] %vm1725, %v1658
        %1741 = vst.msk [vmem:[#allocation3 + $0xf0] sm:$0xff] %vm1725, %v1660
        %1742 = vst.msk [vmem:[#allocation3 + $0x100] sm:$0xff] %vm1725, %v1662
        %1743 = vst.msk [vmem:[#allocation3 + $0x110] sm:$0xff] %vm1725, %v1664
        %1744 = vst.msk [vmem:[#allocation3 + $0x120] sm:$0xff] %vm1725, %v1666
        %1745 = vst.msk [vmem:[#allocation3 + $0x130] sm:$0xff] %vm1725, %v1668
        %1746 = vst.msk [vmem:[#allocation3 + $0x140] sm:$0xff] %vm1725, %v1670
        %1747 = vst.msk [vmem:[#allocation3 + $0x150] sm:$0xff] %vm1725, %v1672
        %1748 = vst.msk [vmem:[#allocation3 + $0x160] sm:$0xff] %vm1725, %v1674
        %1749 = vst.msk [vmem:[#allocation3 + $0x170] sm:$0xff] %vm1725, %v1676
        %1750 = vst.msk [vmem:[#allocation3 + $0x180] sm:$0xff] %vm1725, %v1678
        %1751 = vst.msk [vmem:[#allocation3 + $0x190] sm:$0xff] %vm1725, %v1680
        %1752 = vst.msk [vmem:[#allocation3 + $0x1a0] sm:$0xff] %vm1725, %v1682
        %1753 = vst.msk [vmem:[#allocation3 + $0x1b0] sm:$0xff] %vm1725, %v1684
        %1754 = vst.msk [vmem:[#allocation3 + $0x1c0] sm:$0xff] %vm1725, %v1686
        %1755 = vst.msk [vmem:[#allocation3 + $0x1d0] sm:$0xff] %vm1725, %v1688
        %1756 = vst.msk [vmem:[#allocation3 + $0x1e0] sm:$0xff] %vm1725, %v1690
        %1757 = vst.msk [vmem:[#allocation3 + $0x1f0] sm:$0xff] %vm1725, %v1692
        %v1758 = vld [vmem:[%s1564 + $0x8] sm:$0xff]
        %v1759 = vld [vmem:[%s1564 + $0x10] sm:$0xff]
        %v1760 = vld [vmem:[%s1564 + $0x28] sm:$0xff]
        %v1761 = vld [vmem:[%s1564 + $0x30] sm:$0xff]
        %v1762 = vld [vmem:[%s1564 + $0x48] sm:$0xff]
        %v1763 = vld [vmem:[%s1564 + $0x50] sm:$0xff]
        %v1764 = vld [vmem:[%s1564 + $0x68] sm:$0xff]
        %v1765 = vld [vmem:[%s1564 + $0x70] sm:$0xff]
        %v1766 = vld [vmem:[%s1564 + $0x88] sm:$0xff]
        %v1767 = vld [vmem:[%s1564 + $0x90] sm:$0xff]
        %v1768 = vld [vmem:[%s1564 + $0xa8] sm:$0xff]
        %v1769 = vld [vmem:[%s1564 + $0xb0] sm:$0xff]
        %v1770 = vld [vmem:[%s1564 + $0xc8] sm:$0xff]
        %v1771 = vld [vmem:[%s1564 + $0xd0] sm:$0xff]
        %v1772 = vld [vmem:[%s1564 + $0xe8] sm:$0xff]
        %v1773 = vld [vmem:[%s1564 + $0xf0] sm:$0xff]
        %v1774 = vld [vmem:[%s1564 + $0x108] sm:$0xff]
        %v1775 = vld [vmem:[%s1564 + $0x110] sm:$0xff]
        %v1776 = vld [vmem:[%s1564 + $0x128] sm:$0xff]
        %v1777 = vld [vmem:[%s1564 + $0x130] sm:$0xff]
        %v1778 = vld [vmem:[%s1564 + $0x148] sm:$0xff]
        %v1779 = vld [vmem:[%s1564 + $0x150] sm:$0xff]
        %v1780 = vld [vmem:[%s1564 + $0x168] sm:$0xff]
        %v1781 = vld [vmem:[%s1564 + $0x170] sm:$0xff]
        %v1782 = vld [vmem:[%s1564 + $0x188] sm:$0xff]
        %v1783 = vld [vmem:[%s1564 + $0x190] sm:$0xff]
        %v1784 = vld [vmem:[%s1564 + $0x1a8] sm:$0xff]
        %v1785 = vld [vmem:[%s1564 + $0x1b0] sm:$0xff]
        %v1786 = vld [vmem:[%s1564 + $0x1c8] sm:$0xff]
        %v1787 = vld [vmem:[%s1564 + $0x1d0] sm:$0xff]
        %v1788 = vld [vmem:[%s1564 + $0x1e8] sm:$0xff]
        %v1789 = vld [vmem:[%s1564 + $0x1f0] sm:$0xff]
        %1822 = vrot.lane.b32.xlu0 %v1758, 112
        %v1823 = vpop.permute.xlu0 %1822
        %1824 = vrot.lane.b32.xlu0 %v1759, 112
        %v1825 = vpop.permute.xlu0 %1824
        %1826 = vrot.lane.b32.xlu0 %v1760, 112
        %v1827 = vpop.permute.xlu0 %1826
        %1828 = vrot.lane.b32.xlu0 %v1761, 112
        %v1829 = vpop.permute.xlu0 %1828
        %1830 = vrot.lane.b32.xlu0 %v1762, 112
        %v1831 = vpop.permute.xlu0 %1830
        %1832 = vrot.lane.b32.xlu0 %v1763, 112
        %v1833 = vpop.permute.xlu0 %1832
        %1834 = vrot.lane.b32.xlu0 %v1764, 112
        %v1835 = vpop.permute.xlu0 %1834
        %1836 = vrot.lane.b32.xlu0 %v1765, 112
        %v1837 = vpop.permute.xlu0 %1836
        %1838 = vrot.lane.b32.xlu0 %v1766, 112
        %v1839 = vpop.permute.xlu0 %1838
        %1840 = vrot.lane.b32.xlu0 %v1767, 112
        %v1841 = vpop.permute.xlu0 %1840
        %1842 = vrot.lane.b32.xlu0 %v1768, 112
        %v1843 = vpop.permute.xlu0 %1842
        %1844 = vrot.lane.b32.xlu0 %v1769, 112
        %v1845 = vpop.permute.xlu0 %1844
        %1846 = vrot.lane.b32.xlu0 %v1770, 112
        %v1847 = vpop.permute.xlu0 %1846
        %1848 = vrot.lane.b32.xlu0 %v1771, 112
        %v1849 = vpop.permute.xlu0 %1848
        %1850 = vrot.lane.b32.xlu0 %v1772, 112
        %v1851 = vpop.permute.xlu0 %1850
        %1852 = vrot.lane.b32.xlu0 %v1773, 112
        %v1853 = vpop.permute.xlu0 %1852
        %1854 = vrot.lane.b32.xlu0 %v1774, 112
        %v1855 = vpop.permute.xlu0 %1854
        %1856 = vrot.lane.b32.xlu0 %v1775, 112
        %v1857 = vpop.permute.xlu0 %1856
        %1858 = vrot.lane.b32.xlu0 %v1776, 112
        %v1859 = vpop.permute.xlu0 %1858
        %1860 = vrot.lane.b32.xlu0 %v1777, 112
        %v1861 = vpop.permute.xlu0 %1860
        %1862 = vrot.lane.b32.xlu0 %v1778, 112
        %v1863 = vpop.permute.xlu0 %1862
        %1864 = vrot.lane.b32.xlu0 %v1779, 112
        %v1865 = vpop.permute.xlu0 %1864
        %1866 = vrot.lane.b32.xlu0 %v1780, 112
        %v1867 = vpop.permute.xlu0 %1866
        %1868 = vrot.lane.b32.xlu0 %v1781, 112
        %v1869 = vpop.permute.xlu0 %1868
        %1870 = vrot.lane.b32.xlu0 %v1782, 112
        %v1871 = vpop.permute.xlu0 %1870
        %1872 = vrot.lane.b32.xlu0 %v1783, 112
        %v1873 = vpop.permute.xlu0 %1872
        %1874 = vrot.lane.b32.xlu0 %v1784, 112
        %v1875 = vpop.permute.xlu0 %1874
        %1876 = vrot.lane.b32.xlu0 %v1785, 112
        %v1877 = vpop.permute.xlu0 %1876
        %1878 = vrot.lane.b32.xlu0 %v1786, 112
        %v1879 = vpop.permute.xlu0 %1878
        %1880 = vrot.lane.b32.xlu0 %v1787, 112
        %v1881 = vpop.permute.xlu0 %1880
        %1882 = vrot.lane.b32.xlu0 %v1788, 112
        %v1883 = vpop.permute.xlu0 %1882
        %1884 = vrot.lane.b32.xlu0 %v1789, 112
        %v1885 = vpop.permute.xlu0 %1884
        %vm1918 = vcmask 1048448
        %1919 = vst.msk [vmem:[#allocation3] sm:$0xff] %vm1918, %v1823
        %1920 = vst.msk [vmem:[#allocation3 + $0x10] sm:$0xff] %vm1918, %v1825
        %1921 = vst.msk [vmem:[#allocation3 + $0x20] sm:$0xff] %vm1918, %v1827
        %1922 = vst.msk [vmem:[#allocation3 + $0x30] sm:$0xff] %vm1918, %v1829
        %1923 = vst.msk [vmem:[#allocation3 + $0x40] sm:$0xff] %vm1918, %v1831
        %1924 = vst.msk [vmem:[#allocation3 + $0x50] sm:$0xff] %vm1918, %v1833
        %1925 = vst.msk [vmem:[#allocation3 + $0x60] sm:$0xff] %vm1918, %v1835
        %1926 = vst.msk [vmem:[#allocation3 + $0x70] sm:$0xff] %vm1918, %v1837
        %1927 = vst.msk [vmem:[#allocation3 + $0x80] sm:$0xff] %vm1918, %v1839
        %1928 = vst.msk [vmem:[#allocation3 + $0x90] sm:$0xff] %vm1918, %v1841
        %1929 = vst.msk [vmem:[#allocation3 + $0xa0] sm:$0xff] %vm1918, %v1843
        %1930 = vst.msk [vmem:[#allocation3 + $0xb0] sm:$0xff] %vm1918, %v1845
        %1931 = vst.msk [vmem:[#allocation3 + $0xc0] sm:$0xff] %vm1918, %v1847
        %1932 = vst.msk [vmem:[#allocation3 + $0xd0] sm:$0xff] %vm1918, %v1849
        %1933 = vst.msk [vmem:[#allocation3 + $0xe0] sm:$0xff] %vm1918, %v1851
        %1934 = vst.msk [vmem:[#allocation3 + $0xf0] sm:$0xff] %vm1918, %v1853
        %1935 = vst.msk [vmem:[#allocation3 + $0x100] sm:$0xff] %vm1918, %v1855
        %1936 = vst.msk [vmem:[#allocation3 + $0x110] sm:$0xff] %vm1918, %v1857
        %1937 = vst.msk [vmem:[#allocation3 + $0x120] sm:$0xff] %vm1918, %v1859
        %1938 = vst.msk [vmem:[#allocation3 + $0x130] sm:$0xff] %vm1918, %v1861
        %1939 = vst.msk [vmem:[#allocation3 + $0x140] sm:$0xff] %vm1918, %v1863
        %1940 = vst.msk [vmem:[#allocation3 + $0x150] sm:$0xff] %vm1918, %v1865
        %1941 = vst.msk [vmem:[#allocation3 + $0x160] sm:$0xff] %vm1918, %v1867
        %1942 = vst.msk [vmem:[#allocation3 + $0x170] sm:$0xff] %vm1918, %v1869
        %1943 = vst.msk [vmem:[#allocation3 + $0x180] sm:$0xff] %vm1918, %v1871
        %1944 = vst.msk [vmem:[#allocation3 + $0x190] sm:$0xff] %vm1918, %v1873
        %1945 = vst.msk [vmem:[#allocation3 + $0x1a0] sm:$0xff] %vm1918, %v1875
        %1946 = vst.msk [vmem:[#allocation3 + $0x1b0] sm:$0xff] %vm1918, %v1877
        %1947 = vst.msk [vmem:[#allocation3 + $0x1c0] sm:$0xff] %vm1918, %v1879
        %1948 = vst.msk [vmem:[#allocation3 + $0x1d0] sm:$0xff] %vm1918, %v1881
        %1949 = vst.msk [vmem:[#allocation3 + $0x1e0] sm:$0xff] %vm1918, %v1883
        %1950 = vst.msk [vmem:[#allocation3 + $0x1f0] sm:$0xff] %vm1918, %v1885
        %v1951 = vld [vmem:[%s1564 + $0x9] sm:$0xff]
        %v1952 = vld [vmem:[%s1564 + $0x11] sm:$0xff]
        %v1953 = vld [vmem:[%s1564 + $0x29] sm:$0xff]
        %v1954 = vld [vmem:[%s1564 + $0x31] sm:$0xff]
        %v1955 = vld [vmem:[%s1564 + $0x49] sm:$0xff]
        %v1956 = vld [vmem:[%s1564 + $0x51] sm:$0xff]
        %v1957 = vld [vmem:[%s1564 + $0x69] sm:$0xff]
        %v1958 = vld [vmem:[%s1564 + $0x71] sm:$0xff]
        %v1959 = vld [vmem:[%s1564 + $0x89] sm:$0xff]
        %v1960 = vld [vmem:[%s1564 + $0x91] sm:$0xff]
        %v1961 = vld [vmem:[%s1564 + $0xa9] sm:$0xff]
        %v1962 = vld [vmem:[%s1564 + $0xb1] sm:$0xff]
        %v1963 = vld [vmem:[%s1564 + $0xc9] sm:$0xff]
        %v1964 = vld [vmem:[%s1564 + $0xd1] sm:$0xff]
        %v1965 = vld [vmem:[%s1564 + $0xe9] sm:$0xff]
        %v1966 = vld [vmem:[%s1564 + $0xf1] sm:$0xff]
        %v1967 = vld [vmem:[%s1564 + $0x109] sm:$0xff]
        %v1968 = vld [vmem:[%s1564 + $0x111] sm:$0xff]
        %v1969 = vld [vmem:[%s1564 + $0x129] sm:$0xff]
        %v1970 = vld [vmem:[%s1564 + $0x131] sm:$0xff]
        %v1971 = vld [vmem:[%s1564 + $0x149] sm:$0xff]
        %v1972 = vld [vmem:[%s1564 + $0x151] sm:$0xff]
        %v1973 = vld [vmem:[%s1564 + $0x169] sm:$0xff]
        %v1974 = vld [vmem:[%s1564 + $0x171] sm:$0xff]
        %v1975 = vld [vmem:[%s1564 + $0x189] sm:$0xff]
        %v1976 = vld [vmem:[%s1564 + $0x191] sm:$0xff]
        %v1977 = vld [vmem:[%s1564 + $0x1a9] sm:$0xff]
        %v1978 = vld [vmem:[%s1564 + $0x1b1] sm:$0xff]
        %v1979 = vld [vmem:[%s1564 + $0x1c9] sm:$0xff]
        %v1980 = vld [vmem:[%s1564 + $0x1d1] sm:$0xff]
        %v1981 = vld [vmem:[%s1564 + $0x1e9] sm:$0xff]
        %v1982 = vld [vmem:[%s1564 + $0x1f1] sm:$0xff]
        %1983 = vst.msk [vmem:[#allocation3 + $0x8] sm:$0xff] %vm371, %v1951
        %1984 = vst.msk [vmem:[#allocation3 + $0x18] sm:$0xff] %vm371, %v1952
        %1985 = vst.msk [vmem:[#allocation3 + $0x28] sm:$0xff] %vm371, %v1953
        %1986 = vst.msk [vmem:[#allocation3 + $0x38] sm:$0xff] %vm371, %v1954
        %1987 = vst.msk [vmem:[#allocation3 + $0x48] sm:$0xff] %vm371, %v1955
        %1988 = vst.msk [vmem:[#allocation3 + $0x58] sm:$0xff] %vm371, %v1956
        %1989 = vst.msk [vmem:[#allocation3 + $0x68] sm:$0xff] %vm371, %v1957
        %1990 = vst.msk [vmem:[#allocation3 + $0x78] sm:$0xff] %vm371, %v1958
        %1991 = vst.msk [vmem:[#allocation3 + $0x88] sm:$0xff] %vm371, %v1959
        %1992 = vst.msk [vmem:[#allocation3 + $0x98] sm:$0xff] %vm371, %v1960
        %1993 = vst.msk [vmem:[#allocation3 + $0xa8] sm:$0xff] %vm371, %v1961
        %1994 = vst.msk [vmem:[#allocation3 + $0xb8] sm:$0xff] %vm371, %v1962
        %1995 = vst.msk [vmem:[#allocation3 + $0xc8] sm:$0xff] %vm371, %v1963
        %1996 = vst.msk [vmem:[#allocation3 + $0xd8] sm:$0xff] %vm371, %v1964
        %1997 = vst.msk [vmem:[#allocation3 + $0xe8] sm:$0xff] %vm371, %v1965
        %1998 = vst.msk [vmem:[#allocation3 + $0xf8] sm:$0xff] %vm371, %v1966
        %1999 = vst.msk [vmem:[#allocation3 + $0x108] sm:$0xff] %vm371, %v1967
        %2000 = vst.msk [vmem:[#allocation3 + $0x118] sm:$0xff] %vm371, %v1968
        %2001 = vst.msk [vmem:[#allocation3 + $0x128] sm:$0xff] %vm371, %v1969
        %2002 = vst.msk [vmem:[#allocation3 + $0x138] sm:$0xff] %vm371, %v1970
        %2003 = vst.msk [vmem:[#allocation3 + $0x148] sm:$0xff] %vm371, %v1971
        %2004 = vst.msk [vmem:[#allocation3 + $0x158] sm:$0xff] %vm371, %v1972
        %2005 = vst.msk [vmem:[#allocation3 + $0x168] sm:$0xff] %vm371, %v1973
        %2006 = vst.msk [vmem:[#allocation3 + $0x178] sm:$0xff] %vm371, %v1974
        %2007 = vst.msk [vmem:[#allocation3 + $0x188] sm:$0xff] %vm371, %v1975
        %2008 = vst.msk [vmem:[#allocation3 + $0x198] sm:$0xff] %vm371, %v1976
        %2009 = vst.msk [vmem:[#allocation3 + $0x1a8] sm:$0xff] %vm371, %v1977
        %2010 = vst.msk [vmem:[#allocation3 + $0x1b8] sm:$0xff] %vm371, %v1978
        %2011 = vst.msk [vmem:[#allocation3 + $0x1c8] sm:$0xff] %vm371, %v1979
        %2012 = vst.msk [vmem:[#allocation3 + $0x1d8] sm:$0xff] %vm371, %v1980
        %2013 = vst.msk [vmem:[#allocation3 + $0x1e8] sm:$0xff] %vm371, %v1981
        %2014 = vst.msk [vmem:[#allocation3 + $0x1f8] sm:$0xff] %vm371, %v1982
        %v2015 = vld [vmem:[#allocation3] sm:$0xff]
        %v2016 = vld [vmem:[#allocation3 + $0x8] sm:$0xff]
        %v2017 = vld [vmem:[#allocation3 + $0x10] sm:$0xff]
        %v2018 = vld [vmem:[#allocation3 + $0x18] sm:$0xff]
        %v2019 = vld [vmem:[#allocation3 + $0x20] sm:$0xff]
        %v2020 = vld [vmem:[#allocation3 + $0x28] sm:$0xff]
        %v2021 = vld [vmem:[#allocation3 + $0x30] sm:$0xff]
        %v2022 = vld [vmem:[#allocation3 + $0x38] sm:$0xff]
        %v2023 = vld [vmem:[#allocation3 + $0x40] sm:$0xff]
        %v2024 = vld [vmem:[#allocation3 + $0x48] sm:$0xff]
        %v2025 = vld [vmem:[#allocation3 + $0x50] sm:$0xff]
        %v2026 = vld [vmem:[#allocation3 + $0x58] sm:$0xff]
        %v2027 = vld [vmem:[#allocation3 + $0x60] sm:$0xff]
        %v2028 = vld [vmem:[#allocation3 + $0x68] sm:$0xff]
        %v2029 = vld [vmem:[#allocation3 + $0x70] sm:$0xff]
        %v2030 = vld [vmem:[#allocation3 + $0x78] sm:$0xff]
        %v2031 = vld [vmem:[#allocation3 + $0x80] sm:$0xff]
        %v2032 = vld [vmem:[#allocation3 + $0x88] sm:$0xff]
        %v2033 = vld [vmem:[#allocation3 + $0x90] sm:$0xff]
        %v2034 = vld [vmem:[#allocation3 + $0x98] sm:$0xff]
        %v2035 = vld [vmem:[#allocation3 + $0xa0] sm:$0xff]
        %v2036 = vld [vmem:[#allocation3 + $0xa8] sm:$0xff]
        %v2037 = vld [vmem:[#allocation3 + $0xb0] sm:$0xff]
        %v2038 = vld [vmem:[#allocation3 + $0xb8] sm:$0xff]
        %v2039 = vld [vmem:[#allocation3 + $0xc0] sm:$0xff]
        %v2040 = vld [vmem:[#allocation3 + $0xc8] sm:$0xff]
        %v2041 = vld [vmem:[#allocation3 + $0xd0] sm:$0xff]
        %v2042 = vld [vmem:[#allocation3 + $0xd8] sm:$0xff]
        %v2043 = vld [vmem:[#allocation3 + $0xe0] sm:$0xff]
        %v2044 = vld [vmem:[#allocation3 + $0xe8] sm:$0xff]
        %v2045 = vld [vmem:[#allocation3 + $0xf0] sm:$0xff]
        %v2046 = vld [vmem:[#allocation3 + $0xf8] sm:$0xff]
        %v2047 = vld [vmem:[#allocation3 + $0x100] sm:$0xff]
        %v2048 = vld [vmem:[#allocation3 + $0x108] sm:$0xff]
        %v2049 = vld [vmem:[#allocation3 + $0x110] sm:$0xff]
        %v2050 = vld [vmem:[#allocation3 + $0x118] sm:$0xff]
        %v2051 = vld [vmem:[#allocation3 + $0x120] sm:$0xff]
        %v2052 = vld [vmem:[#allocation3 + $0x128] sm:$0xff]
        %v2053 = vld [vmem:[#allocation3 + $0x130] sm:$0xff]
        %v2054 = vld [vmem:[#allocation3 + $0x138] sm:$0xff]
        %v2055 = vld [vmem:[#allocation3 + $0x140] sm:$0xff]
        %v2056 = vld [vmem:[#allocation3 + $0x148] sm:$0xff]
        %v2057 = vld [vmem:[#allocation3 + $0x150] sm:$0xff]
        %v2058 = vld [vmem:[#allocation3 + $0x158] sm:$0xff]
        %v2059 = vld [vmem:[#allocation3 + $0x160] sm:$0xff]
        %v2060 = vld [vmem:[#allocation3 + $0x168] sm:$0xff]
        %v2061 = vld [vmem:[#allocation3 + $0x170] sm:$0xff]
        %v2062 = vld [vmem:[#allocation3 + $0x178] sm:$0xff]
        %v2063 = vld [vmem:[#allocation3 + $0x180] sm:$0xff]
        %v2064 = vld [vmem:[#allocation3 + $0x188] sm:$0xff]
        %v2065 = vld [vmem:[#allocation3 + $0x190] sm:$0xff]
        %v2066 = vld [vmem:[#allocation3 + $0x198] sm:$0xff]
        %v2067 = vld [vmem:[#allocation3 + $0x1a0] sm:$0xff]
        %v2068 = vld [vmem:[#allocation3 + $0x1a8] sm:$0xff]
        %v2069 = vld [vmem:[#allocation3 + $0x1b0] sm:$0xff]
        %v2070 = vld [vmem:[#allocation3 + $0x1b8] sm:$0xff]
        %v2071 = vld [vmem:[#allocation3 + $0x1c0] sm:$0xff]
        %v2072 = vld [vmem:[#allocation3 + $0x1c8] sm:$0xff]
        %v2073 = vld [vmem:[#allocation3 + $0x1d0] sm:$0xff]
        %v2074 = vld [vmem:[#allocation3 + $0x1d8] sm:$0xff]
        %v2075 = vld [vmem:[#allocation3 + $0x1e0] sm:$0xff]
        %v2076 = vld [vmem:[#allocation3 + $0x1e8] sm:$0xff]
        %v2077 = vld [vmem:[#allocation3 + $0x1f0] sm:$0xff]
        %v2078 = vld [vmem:[#allocation3 + $0x1f8] sm:$0xff]
        %v2079 = vld [vmem:[%s1] sm:$0xff]
        %v2080 = vld [vmem:[%s1 + $0x8] sm:$0xff]
        %v2081 = vld [vmem:[%s1 + $0x10] sm:$0xff]
        %v2082 = vld [vmem:[%s1 + $0x18] sm:$0xff]
        %v2083 = vld [vmem:[%s1 + $0x20] sm:$0xff]
        %v2084 = vld [vmem:[%s1 + $0x28] sm:$0xff]
        %v2085 = vld [vmem:[%s1 + $0x30] sm:$0xff]
        %v2086 = vld [vmem:[%s1 + $0x38] sm:$0xff]
        %v2087 = vld [vmem:[%s1 + $0x40] sm:$0xff]
        %v2088 = vld [vmem:[%s1 + $0x48] sm:$0xff]
        %v2089 = vld [vmem:[%s1 + $0x50] sm:$0xff]
        %v2090 = vld [vmem:[%s1 + $0x58] sm:$0xff]
        %v2091 = vld [vmem:[%s1 + $0x60] sm:$0xff]
        %v2092 = vld [vmem:[%s1 + $0x68] sm:$0xff]
        %v2093 = vld [vmem:[%s1 + $0x70] sm:$0xff]
        %v2094 = vld [vmem:[%s1 + $0x78] sm:$0xff]
        %v2095 = vld [vmem:[%s1 + $0x80] sm:$0xff]
        %v2096 = vld [vmem:[%s1 + $0x88] sm:$0xff]
        %v2098 = vsel %vm371, %v2016, 0
        %v2101 = vsel %vm371, %v2018, 0
        %v2104 = vsel %vm371, %v2020, 0
        %v2107 = vsel %vm371, %v2022, 0
        %v2110 = vsel %vm371, %v2024, 0
        %v2113 = vsel %vm371, %v2026, 0
        %v2116 = vsel %vm371, %v2028, 0
        %v2119 = vsel %vm371, %v2030, 0
        %v2122 = vsel %vm371, %v2032, 0
        %v2125 = vsel %vm371, %v2034, 0
        %v2128 = vsel %vm371, %v2036, 0
        %v2131 = vsel %vm371, %v2038, 0
        %v2134 = vsel %vm371, %v2040, 0
        %v2137 = vsel %vm371, %v2042, 0
        %v2140 = vsel %vm371, %v2044, 0
        %v2143 = vsel %vm371, %v2046, 0
        %v2146 = vsel %vm371, %v2048, 0
        %v2149 = vsel %vm371, %v2050, 0
        %v2152 = vsel %vm371, %v2052, 0
        %v2155 = vsel %vm371, %v2054, 0
        %v2158 = vsel %vm371, %v2056, 0
        %v2161 = vsel %vm371, %v2058, 0
        %v2164 = vsel %vm371, %v2060, 0
        %v2167 = vsel %vm371, %v2062, 0
        %v2170 = vsel %vm371, %v2064, 0
        %v2173 = vsel %vm371, %v2066, 0
        %v2176 = vsel %vm371, %v2068, 0
        %v2179 = vsel %vm371, %v2070, 0
        %v2182 = vsel %vm371, %v2072, 0
        %v2185 = vsel %vm371, %v2074, 0
        %v2188 = vsel %vm371, %v2076, 0
        %v2191 = vsel %vm371, %v2078, 0
        %2193 = vmatprep.subr.mxu0 0.0
        %2194 = vmatpush1.msra.mxu0 %v2079
        %2195 = vmatprep.subr.mxu0 0.0
        %2196 = vmatpush1.msra.mxu0 %v2080
        %2197 = vmatprep.subr.mxu0 0.0
        %2198 = vmatpush1.msra.mxu0 %v2081
        %2199 = vmatprep.subr.mxu0 0.0
        %2200 = vmatpush1.msra.mxu0 %v2082
        %2201 = vmatprep.subr.mxu0 0.0
        %2202 = vmatpush1.msra.mxu0 %v2083
        %2203 = vmatprep.subr.mxu0 0.0
        %2204 = vmatpush1.msra.mxu0 %v2084
        %2205 = vmatprep.subr.mxu0 0.0
        %2206 = vmatpush1.msra.mxu0 %v2085
        %2207 = vmatprep.subr.mxu0 0.0
        %2208 = vmatpush1.msra.mxu0 %v2086
        %2209 = vmatprep.subr.mxu0 0.0
        %2210 = vmatpush1.msra.mxu0 %v2087
        %2211 = vmatprep.subr.mxu0 0.0
        %2212 = vmatpush1.msra.mxu0 %v2088
        %2213 = vmatprep.subr.mxu0 0.0
        %2214 = vmatpush1.msra.mxu0 %v2089
        %2215 = vmatprep.subr.mxu0 0.0
        %2216 = vmatpush1.msra.mxu0 %v2090
        %2217 = vmatprep.subr.mxu0 0.0
        %2218 = vmatpush1.msra.mxu0 %v2091
        %2219 = vmatprep.subr.mxu0 0.0
        %2220 = vmatpush1.msra.mxu0 %v2092
        %2221 = vmatprep.subr.mxu0 0.0
        %2222 = vmatpush1.msra.mxu0 %v2093
        %2223 = vmatprep.subr.mxu0 0.0
        %2224 = vmatpush1.msra.mxu0 %v2094
        %2225 = vmatprep.subr.mxu0 0.0
        %2226 = vmatpush1.msra.mxu0 %v2095
        %2227 = vmatprep.subr.mxu0 0.0
        %2228 = vmatpush1.msra.mxu0 %v2096
        %2229 = vmatprep.subr.mxu0 0.0
        %2230 = vmatpush1.msra.mxu0 0.0
        %2231 = vmatprep.subr.mxu0 0.0
        %2232 = vmatpush1.msra.mxu0 0.0
        %2233 = vmatprep.subr.mxu0 0.0
        %2234 = vmatpush1.msra.mxu0 0.0
        %2235 = vmatprep.subr.mxu0 0.0
        %2236 = vmatpush1.msra.mxu0 0.0
        %2237 = vmatprep.subr.mxu0 0.0
        %2238 = vmatpush1.msra.mxu0 0.0
        %2239 = vmatprep.subr.mxu0 0.0
        %2240 = vmatpush1.msra.mxu0 0.0
        %2241 = vmatprep.subr.mxu0 0.0
        %2242 = vmatpush1.msra.mxu0 0.0
        %2243 = vmatprep.subr.mxu0 0.0
        %2244 = vmatpush1.msra.mxu0 0.0
        %2245 = vmatprep.subr.mxu0 0.0
        %2246 = vmatpush1.msra.mxu0 0.0
        %2247 = vmatprep.subr.mxu0 0.0
        %2248 = vmatpush1.msra.mxu0 0.0
        %2249 = vmatprep.subr.mxu0 0.0
        %2250 = vmatpush1.msra.mxu0 0.0
        %2251 = vmatprep.subr.mxu0 0.0
        %2252 = vmatpush1.msra.mxu0 0.0
        %2253 = vmatprep.subr.mxu0 0.0
        %2254 = vmatpush1.msra.mxu0 0.0
        %2255 = vmatprep.subr.mxu0 0.0
        %2256 = vmatpush1.msra.mxu0 0.0
        %2257 = vmatprep.mubr.f32.mxu0 %v2098
        %2258 = vmatmul.mubr.f32.gmra.mrb[0].mxu0 %v2015
        %v2259 = vpop.f32.mrb[0].mxu0
        %v2260 = vadd.f32 0.0, %v2259
        %v2261 = vpop.f32.mrb[0].mxu0
        %2262 = vmatprep.mubr.f32.mxu0 %v2101
        %2263 = vmatmul.mubr.f32.gmra.mrb[0].mxu0 %v2017
        %v2264 = vpop.f32.mrb[0].mxu0
        %v2265 = vadd.f32 0.0, %v2264
        %v2266 = vpop.f32.mrb[0].mxu0
        %2267 = vmatprep.mubr.f32.mxu0 %v2104
        %2268 = vmatmul.mubr.f32.gmra.mrb[0].mxu0 %v2019
        %v2269 = vpop.f32.mrb[0].mxu0
        %v2270 = vadd.f32 0.0, %v2269
        %v2271 = vpop.f32.mrb[0].mxu0
        %2272 = vmatprep.mubr.f32.mxu0 %v2107
        %2273 = vmatmul.mubr.f32.gmra.mrb[0].mxu0 %v2021
        %v2274 = vpop.f32.mrb[0].mxu0
        %v2275 = vadd.f32 0.0, %v2274
        %v2276 = vpop.f32.mrb[0].mxu0
        %2277 = vmatprep.mubr.f32.mxu0 %v2110
        %2278 = vmatmul.mubr.f32.gmra.mrb[0].mxu0 %v2023
        %v2279 = vpop.f32.mrb[0].mxu0
        %v2280 = vadd.f32 0.0, %v2279
        %v2281 = vpop.f32.mrb[0].mxu0
        %2282 = vmatprep.mubr.f32.mxu0 %v2113
        %2283 = vmatmul.mubr.f32.gmra.mrb[0].mxu0 %v2025
        %v2284 = vpop.f32.mrb[0].mxu0
        %v2285 = vadd.f32 0.0, %v2284
        %v2286 = vpop.f32.mrb[0].mxu0
        %2287 = vmatprep.mubr.f32.mxu0 %v2116
        %2288 = vmatmul.mubr.f32.gmra.mrb[0].mxu0 %v2027
        %v2289 = vpop.f32.mrb[0].mxu0
        %v2290 = vadd.f32 0.0, %v2289
        %v2291 = vpop.f32.mrb[0].mxu0
        %2292 = vmatprep.mubr.f32.mxu0 %v2119
        %2293 = vmatmul.mubr.f32.gmra.mrb[0].mxu0 %v2029
        %v2294 = vpop.f32.mrb[0].mxu0
        %v2295 = vadd.f32 0.0, %v2294
        %v2296 = vpop.f32.mrb[0].mxu0
        %2297 = vmatprep.mubr.f32.mxu0 %v2122
        %2298 = vmatmul.mubr.f32.gmra.mrb[0].mxu0 %v2031
        %v2299 = vpop.f32.mrb[0].mxu0
        %v2300 = vadd.f32 0.0, %v2299
        %v2301 = vpop.f32.mrb[0].mxu0
        %2302 = vmatprep.mubr.f32.mxu0 %v2125
        %2303 = vmatmul.mubr.f32.gmra.mrb[0].mxu0 %v2033
        %v2304 = vpop.f32.mrb[0].mxu0
        %v2305 = vadd.f32 0.0, %v2304
        %v2306 = vpop.f32.mrb[0].mxu0
        %2307 = vmatprep.mubr.f32.mxu0 %v2128
        %2308 = vmatmul.mubr.f32.gmra.mrb[0].mxu0 %v2035
        %v2309 = vpop.f32.mrb[0].mxu0
        %v2310 = vadd.f32 0.0, %v2309
        %v2311 = vpop.f32.mrb[0].mxu0
        %2312 = vmatprep.mubr.f32.mxu0 %v2131
        %2313 = vmatmul.mubr.f32.gmra.mrb[0].mxu0 %v2037
        %v2314 = vpop.f32.mrb[0].mxu0
        %v2315 = vadd.f32 0.0, %v2314
        %v2316 = vpop.f32.mrb[0].mxu0
        %2317 = vmatprep.mubr.f32.mxu0 %v2134
        %2318 = vmatmul.mubr.f32.gmra.mrb[0].mxu0 %v2039
        %v2319 = vpop.f32.mrb[0].mxu0
        %v2320 = vadd.f32 0.0, %v2319
        %v2321 = vpop.f32.mrb[0].mxu0
        %2322 = vmatprep.mubr.f32.mxu0 %v2137
        %2323 = vmatmul.mubr.f32.gmra.mrb[0].mxu0 %v2041
        %v2324 = vpop.f32.mrb[0].mxu0
        %v2325 = vadd.f32 0.0, %v2324
        %v2326 = vpop.f32.mrb[0].mxu0
        %2327 = vmatprep.mubr.f32.mxu0 %v2140
        %2328 = vmatmul.mubr.f32.gmra.mrb[0].mxu0 %v2043
        %v2329 = vpop.f32.mrb[0].mxu0
        %v2330 = vadd.f32 0.0, %v2329
        %v2331 = vpop.f32.mrb[0].mxu0
        %2332 = vmatprep.mubr.f32.mxu0 %v2143
        %2333 = vmatmul.mubr.f32.gmra.mrb[0].mxu0 %v2045
        %v2334 = vpop.f32.mrb[0].mxu0
        %v2335 = vadd.f32 0.0, %v2334
        %v2336 = vpop.f32.mrb[0].mxu0
        %2337 = vmatprep.mubr.f32.mxu0 %v2146
        %2338 = vmatmul.mubr.f32.gmra.mrb[0].mxu0 %v2047
        %v2339 = vpop.f32.mrb[0].mxu0
        %v2340 = vadd.f32 0.0, %v2339
        %v2341 = vpop.f32.mrb[0].mxu0
        %2342 = vmatprep.mubr.f32.mxu0 %v2149
        %2343 = vmatmul.mubr.f32.gmra.mrb[0].mxu0 %v2049
        %v2344 = vpop.f32.mrb[0].mxu0
        %v2345 = vadd.f32 0.0, %v2344
        %v2346 = vpop.f32.mrb[0].mxu0
        %2347 = vmatprep.mubr.f32.mxu0 %v2152
        %2348 = vmatmul.mubr.f32.gmra.mrb[0].mxu0 %v2051
        %v2349 = vpop.f32.mrb[0].mxu0
        %v2350 = vadd.f32 0.0, %v2349
        %v2351 = vpop.f32.mrb[0].mxu0
        %2352 = vmatprep.mubr.f32.mxu0 %v2155
        %2353 = vmatmul.mubr.f32.gmra.mrb[0].mxu0 %v2053
        %v2354 = vpop.f32.mrb[0].mxu0
        %v2355 = vadd.f32 0.0, %v2354
        %v2356 = vpop.f32.mrb[0].mxu0
        %2357 = vmatprep.mubr.f32.mxu0 %v2158
        %2358 = vmatmul.mubr.f32.gmra.mrb[0].mxu0 %v2055
        %v2359 = vpop.f32.mrb[0].mxu0
        %v2360 = vadd.f32 0.0, %v2359
        %v2361 = vpop.f32.mrb[0].mxu0
        %2362 = vmatprep.mubr.f32.mxu0 %v2161
        %2363 = vmatmul.mubr.f32.gmra.mrb[0].mxu0 %v2057
        %v2364 = vpop.f32.mrb[0].mxu0
        %v2365 = vadd.f32 0.0, %v2364
        %v2366 = vpop.f32.mrb[0].mxu0
        %2367 = vmatprep.mubr.f32.mxu0 %v2164
        %2368 = vmatmul.mubr.f32.gmra.mrb[0].mxu0 %v2059
        %v2369 = vpop.f32.mrb[0].mxu0
        %v2370 = vadd.f32 0.0, %v2369
        %v2371 = vpop.f32.mrb[0].mxu0
        %2372 = vmatprep.mubr.f32.mxu0 %v2167
        %2373 = vmatmul.mubr.f32.gmra.mrb[0].mxu0 %v2061
        %v2374 = vpop.f32.mrb[0].mxu0
        %v2375 = vadd.f32 0.0, %v2374
        %v2376 = vpop.f32.mrb[0].mxu0
        %2377 = vmatprep.mubr.f32.mxu0 %v2170
        %2378 = vmatmul.mubr.f32.gmra.mrb[0].mxu0 %v2063
        %v2379 = vpop.f32.mrb[0].mxu0
        %v2380 = vadd.f32 0.0, %v2379
        %v2381 = vpop.f32.mrb[0].mxu0
        %2382 = vmatprep.mubr.f32.mxu0 %v2173
        %2383 = vmatmul.mubr.f32.gmra.mrb[0].mxu0 %v2065
        %v2384 = vpop.f32.mrb[0].mxu0
        %v2385 = vadd.f32 0.0, %v2384
        %v2386 = vpop.f32.mrb[0].mxu0
        %2387 = vmatprep.mubr.f32.mxu0 %v2176
        %2388 = vmatmul.mubr.f32.gmra.mrb[0].mxu0 %v2067
        %v2389 = vpop.f32.mrb[0].mxu0
        %v2390 = vadd.f32 0.0, %v2389
        %v2391 = vpop.f32.mrb[0].mxu0
        %2392 = vmatprep.mubr.f32.mxu0 %v2179
        %2393 = vmatmul.mubr.f32.gmra.mrb[0].mxu0 %v2069
        %v2394 = vpop.f32.mrb[0].mxu0
        %v2395 = vadd.f32 0.0, %v2394
        %v2396 = vpop.f32.mrb[0].mxu0
        %2397 = vmatprep.mubr.f32.mxu0 %v2182
        %2398 = vmatmul.mubr.f32.gmra.mrb[0].mxu0 %v2071
        %v2399 = vpop.f32.mrb[0].mxu0
        %v2400 = vadd.f32 0.0, %v2399
        %v2401 = vpop.f32.mrb[0].mxu0
        %2402 = vmatprep.mubr.f32.mxu0 %v2185
        %2403 = vmatmul.mubr.f32.gmra.mrb[0].mxu0 %v2073
        %v2404 = vpop.f32.mrb[0].mxu0
        %v2405 = vadd.f32 0.0, %v2404
        %v2406 = vpop.f32.mrb[0].mxu0
        %2407 = vmatprep.mubr.f32.mxu0 %v2188
        %2408 = vmatmul.mubr.f32.gmra.mrb[0].mxu0 %v2075
        %v2409 = vpop.f32.mrb[0].mxu0
        %v2410 = vadd.f32 0.0, %v2409
        %v2411 = vpop.f32.mrb[0].mxu0
        %2412 = vmatprep.mubr.f32.mxu0 %v2191
        %2413 = vmatmul.mubr.f32.gmra.mrb[0].mxu0 %v2077
        %v2414 = vpop.f32.mrb[0].mxu0
        %v2415 = vadd.f32 0.0, %v2414
        %v2416 = vpop.f32.mrb[0].mxu0
        %2417 = vdwg.mxu0
        %v2418 = vld [vmem:[%s2] sm:$0x1]
        %v2420 = vlaneseq
        %v2421 = vshrl.u32 %v2420, 7
        %v2422 = vsub.s32 0, %v2421
        %v2423 = vrot.slane %v2418, %v2422
        %v2425 = vmul.f32 %v2260, %v2423
        %v2426 = vmul.f32 %v2265, %v2423
        %v2427 = vmul.f32 %v2270, %v2423
        %v2428 = vmul.f32 %v2275, %v2423
        %v2429 = vmul.f32 %v2280, %v2423
        %v2430 = vmul.f32 %v2285, %v2423
        %v2431 = vmul.f32 %v2290, %v2423
        %v2432 = vmul.f32 %v2295, %v2423
        %v2433 = vmul.f32 %v2300, %v2423
        %v2434 = vmul.f32 %v2305, %v2423
        %v2435 = vmul.f32 %v2310, %v2423
        %v2436 = vmul.f32 %v2315, %v2423
        %v2437 = vmul.f32 %v2320, %v2423
        %v2438 = vmul.f32 %v2325, %v2423
        %v2439 = vmul.f32 %v2330, %v2423
        %v2440 = vmul.f32 %v2335, %v2423
        %v2441 = vmul.f32 %v2340, %v2423
        %v2442 = vmul.f32 %v2345, %v2423
        %v2443 = vmul.f32 %v2350, %v2423
        %v2444 = vmul.f32 %v2355, %v2423
        %v2445 = vmul.f32 %v2360, %v2423
        %v2446 = vmul.f32 %v2365, %v2423
        %v2447 = vmul.f32 %v2370, %v2423
        %v2448 = vmul.f32 %v2375, %v2423
        %v2449 = vmul.f32 %v2380, %v2423
        %v2450 = vmul.f32 %v2385, %v2423
        %v2451 = vmul.f32 %v2390, %v2423
        %v2452 = vmul.f32 %v2395, %v2423
        %v2453 = vmul.f32 %v2400, %v2423
        %v2454 = vmul.f32 %v2405, %v2423
        %v2455 = vmul.f32 %v2410, %v2423
        %v2456 = vmul.f32 %v2415, %v2423
        %v2457 = vld [vmem:[%s3] sm:$0x1]
        %v2459 = vlaneseq
        %v2460 = vshrl.u32 %v2459, 7
        %v2461 = vsub.s32 0, %v2460
        %v2462 = vrot.slane %v2457, %v2461
        %v2464 = vadd.f32 %v2425, %v2462
        %v2465 = vadd.f32 %v2426, %v2462
        %v2466 = vadd.f32 %v2427, %v2462
        %v2467 = vadd.f32 %v2428, %v2462
        %v2468 = vadd.f32 %v2429, %v2462
        %v2469 = vadd.f32 %v2430, %v2462
        %v2470 = vadd.f32 %v2431, %v2462
        %v2471 = vadd.f32 %v2432, %v2462
        %v2472 = vadd.f32 %v2433, %v2462
        %v2473 = vadd.f32 %v2434, %v2462
        %v2474 = vadd.f32 %v2435, %v2462
        %v2475 = vadd.f32 %v2436, %v2462
        %v2476 = vadd.f32 %v2437, %v2462
        %v2477 = vadd.f32 %v2438, %v2462
        %v2478 = vadd.f32 %v2439, %v2462
        %v2479 = vadd.f32 %v2440, %v2462
        %v2480 = vadd.f32 %v2441, %v2462
        %v2481 = vadd.f32 %v2442, %v2462
        %v2482 = vadd.f32 %v2443, %v2462
        %v2483 = vadd.f32 %v2444, %v2462
        %v2484 = vadd.f32 %v2445, %v2462
        %v2485 = vadd.f32 %v2446, %v2462
        %v2486 = vadd.f32 %v2447, %v2462
        %v2487 = vadd.f32 %v2448, %v2462
        %v2488 = vadd.f32 %v2449, %v2462
        %v2489 = vadd.f32 %v2450, %v2462
        %v2490 = vadd.f32 %v2451, %v2462
        %v2491 = vadd.f32 %v2452, %v2462
        %v2492 = vadd.f32 %v2453, %v2462
        %v2493 = vadd.f32 %v2454, %v2462
        %v2494 = vadd.f32 %v2455, %v2462
        %v2495 = vadd.f32 %v2456, %v2462
        %v2496 = vmax.f32 %v2464, 0.0
        %v2497 = vmax.f32 %v2465, 0.0
        %v2498 = vmax.f32 %v2466, 0.0
        %v2499 = vmax.f32 %v2467, 0.0
        %v2500 = vmax.f32 %v2468, 0.0
        %v2501 = vmax.f32 %v2469, 0.0
        %v2502 = vmax.f32 %v2470, 0.0
        %v2503 = vmax.f32 %v2471, 0.0
        %v2504 = vmax.f32 %v2472, 0.0
        %v2505 = vmax.f32 %v2473, 0.0
        %v2506 = vmax.f32 %v2474, 0.0
        %v2507 = vmax.f32 %v2475, 0.0
        %v2508 = vmax.f32 %v2476, 0.0
        %v2509 = vmax.f32 %v2477, 0.0
        %v2510 = vmax.f32 %v2478, 0.0
        %v2511 = vmax.f32 %v2479, 0.0
        %v2512 = vmax.f32 %v2480, 0.0
        %v2513 = vmax.f32 %v2481, 0.0
        %v2514 = vmax.f32 %v2482, 0.0
        %v2515 = vmax.f32 %v2483, 0.0
        %v2516 = vmax.f32 %v2484, 0.0
        %v2517 = vmax.f32 %v2485, 0.0
        %v2518 = vmax.f32 %v2486, 0.0
        %v2519 = vmax.f32 %v2487, 0.0
        %v2520 = vmax.f32 %v2488, 0.0
        %v2521 = vmax.f32 %v2489, 0.0
        %v2522 = vmax.f32 %v2490, 0.0
        %v2523 = vmax.f32 %v2491, 0.0
        %v2524 = vmax.f32 %v2492, 0.0
        %v2525 = vmax.f32 %v2493, 0.0
        %v2526 = vmax.f32 %v2494, 0.0
        %v2527 = vmax.f32 %v2495, 0.0
        %2528 = vst.msk [vmem:[%s437 + $0x8] sm:$0xff] %vm371, %v2496
        %2529 = vst.msk [vmem:[%s437 + $0x10] sm:$0xff] %vm371, %v2497
        %2530 = vst.msk [vmem:[%s437 + $0x28] sm:$0xff] %vm371, %v2498
        %2531 = vst.msk [vmem:[%s437 + $0x30] sm:$0xff] %vm371, %v2499
        %2532 = vst.msk [vmem:[%s437 + $0x48] sm:$0xff] %vm371, %v2500
        %2533 = vst.msk [vmem:[%s437 + $0x50] sm:$0xff] %vm371, %v2501
        %2534 = vst.msk [vmem:[%s437 + $0x68] sm:$0xff] %vm371, %v2502
        %2535 = vst.msk [vmem:[%s437 + $0x70] sm:$0xff] %vm371, %v2503
        %2536 = vst.msk [vmem:[%s437 + $0x88] sm:$0xff] %vm371, %v2504
        %2537 = vst.msk [vmem:[%s437 + $0x90] sm:$0xff] %vm371, %v2505
        %2538 = vst.msk [vmem:[%s437 + $0xa8] sm:$0xff] %vm371, %v2506
        %2539 = vst.msk [vmem:[%s437 + $0xb0] sm:$0xff] %vm371, %v2507
        %2540 = vst.msk [vmem:[%s437 + $0xc8] sm:$0xff] %vm371, %v2508
        %2541 = vst.msk [vmem:[%s437 + $0xd0] sm:$0xff] %vm371, %v2509
        %2542 = vst.msk [vmem:[%s437 + $0xe8] sm:$0xff] %vm371, %v2510
        %2543 = vst.msk [vmem:[%s437 + $0xf0] sm:$0xff] %vm371, %v2511
        %2544 = vst.msk [vmem:[%s437 + $0x108] sm:$0xff] %vm371, %v2512
        %2545 = vst.msk [vmem:[%s437 + $0x110] sm:$0xff] %vm371, %v2513
        %2546 = vst.msk [vmem:[%s437 + $0x128] sm:$0xff] %vm371, %v2514
        %2547 = vst.msk [vmem:[%s437 + $0x130] sm:$0xff] %vm371, %v2515
        %2548 = vst.msk [vmem:[%s437 + $0x148] sm:$0xff] %vm371, %v2516
        %2549 = vst.msk [vmem:[%s437 + $0x150] sm:$0xff] %vm371, %v2517
        %2550 = vst.msk [vmem:[%s437 + $0x168] sm:$0xff] %vm371, %v2518
        %2551 = vst.msk [vmem:[%s437 + $0x170] sm:$0xff] %vm371, %v2519
        %2552 = vst.msk [vmem:[%s437 + $0x188] sm:$0xff] %vm371, %v2520
        %2553 = vst.msk [vmem:[%s437 + $0x190] sm:$0xff] %vm371, %v2521
        %2554 = vst.msk [vmem:[%s437 + $0x1a8] sm:$0xff] %vm371, %v2522
        %2555 = vst.msk [vmem:[%s437 + $0x1b0] sm:$0xff] %vm371, %v2523
        %2556 = vst.msk [vmem:[%s437 + $0x1c8] sm:$0xff] %vm371, %v2524
        %2557 = vst.msk [vmem:[%s437 + $0x1d0] sm:$0xff] %vm371, %v2525
        %2558 = vst.msk [vmem:[%s437 + $0x1e8] sm:$0xff] %vm371, %v2526
        %2559 = vst.msk [vmem:[%s437 + $0x1f0] sm:$0xff] %vm371, %v2527
        %v2560 = vld [vmem:[%s534 + $0x7] sm:$0xff]
        %v2561 = vld [vmem:[%s534 + $0xf] sm:$0xff]
        %v2562 = vld [vmem:[%s534 + $0x27] sm:$0xff]
        %v2563 = vld [vmem:[%s534 + $0x2f] sm:$0xff]
        %v2564 = vld [vmem:[%s534 + $0x47] sm:$0xff]
        %v2565 = vld [vmem:[%s534 + $0x4f] sm:$0xff]
        %v2566 = vld [vmem:[%s534 + $0x67] sm:$0xff]
        %v2567 = vld [vmem:[%s534 + $0x6f] sm:$0xff]
        %v2568 = vld [vmem:[%s534 + $0x87] sm:$0xff]
        %v2569 = vld [vmem:[%s534 + $0x8f] sm:$0xff]
        %v2570 = vld [vmem:[%s534 + $0xa7] sm:$0xff]
        %v2571 = vld [vmem:[%s534 + $0xaf] sm:$0xff]
        %v2572 = vld [vmem:[%s534 + $0xc7] sm:$0xff]
        %v2573 = vld [vmem:[%s534 + $0xcf] sm:$0xff]
        %v2574 = vld [vmem:[%s534 + $0xe7] sm:$0xff]
        %v2575 = vld [vmem:[%s534 + $0xef] sm:$0xff]
        %v2576 = vld [vmem:[%s534 + $0x107] sm:$0xff]
        %v2577 = vld [vmem:[%s534 + $0x10f] sm:$0xff]
        %v2578 = vld [vmem:[%s534 + $0x127] sm:$0xff]
        %v2579 = vld [vmem:[%s534 + $0x12f] sm:$0xff]
        %v2580 = vld [vmem:[%s534 + $0x147] sm:$0xff]
        %v2581 = vld [vmem:[%s534 + $0x14f] sm:$0xff]
        %v2582 = vld [vmem:[%s534 + $0x167] sm:$0xff]
        %v2583 = vld [vmem:[%s534 + $0x16f] sm:$0xff]
        %v2584 = vld [vmem:[%s534 + $0x187] sm:$0xff]
        %v2585 = vld [vmem:[%s534 + $0x18f] sm:$0xff]
        %v2586 = vld [vmem:[%s534 + $0x1a7] sm:$0xff]
        %v2587 = vld [vmem:[%s534 + $0x1af] sm:$0xff]
        %v2588 = vld [vmem:[%s534 + $0x1c7] sm:$0xff]
        %v2589 = vld [vmem:[%s534 + $0x1cf] sm:$0xff]
        %v2590 = vld [vmem:[%s534 + $0x1e7] sm:$0xff]
        %v2591 = vld [vmem:[%s534 + $0x1ef] sm:$0xff]
        %2592 = vst.msk [vmem:[#allocation3] sm:$0xff] %vm371, %v2560
        %2593 = vst.msk [vmem:[#allocation3 + $0x10] sm:$0xff] %vm371, %v2561
        %2594 = vst.msk [vmem:[#allocation3 + $0x20] sm:$0xff] %vm371, %v2562
        %2595 = vst.msk [vmem:[#allocation3 + $0x30] sm:$0xff] %vm371, %v2563
        %2596 = vst.msk [vmem:[#allocation3 + $0x40] sm:$0xff] %vm371, %v2564
        %2597 = vst.msk [vmem:[#allocation3 + $0x50] sm:$0xff] %vm371, %v2565
        %2598 = vst.msk [vmem:[#allocation3 + $0x60] sm:$0xff] %vm371, %v2566
        %2599 = vst.msk [vmem:[#allocation3 + $0x70] sm:$0xff] %vm371, %v2567
        %2600 = vst.msk [vmem:[#allocation3 + $0x80] sm:$0xff] %vm371, %v2568
        %2601 = vst.msk [vmem:[#allocation3 + $0x90] sm:$0xff] %vm371, %v2569
        %2602 = vst.msk [vmem:[#allocation3 + $0xa0] sm:$0xff] %vm371, %v2570
        %2603 = vst.msk [vmem:[#allocation3 + $0xb0] sm:$0xff] %vm371, %v2571
        %2604 = vst.msk [vmem:[#allocation3 + $0xc0] sm:$0xff] %vm371, %v2572
        %2605 = vst.msk [vmem:[#allocation3 + $0xd0] sm:$0xff] %vm371, %v2573
        %2606 = vst.msk [vmem:[#allocation3 + $0xe0] sm:$0xff] %vm371, %v2574
        %2607 = vst.msk [vmem:[#allocation3 + $0xf0] sm:$0xff] %vm371, %v2575
        %2608 = vst.msk [vmem:[#allocation3 + $0x100] sm:$0xff] %vm371, %v2576
        %2609 = vst.msk [vmem:[#allocation3 + $0x110] sm:$0xff] %vm371, %v2577
        %2610 = vst.msk [vmem:[#allocation3 + $0x120] sm:$0xff] %vm371, %v2578
        %2611 = vst.msk [vmem:[#allocation3 + $0x130] sm:$0xff] %vm371, %v2579
        %2612 = vst.msk [vmem:[#allocation3 + $0x140] sm:$0xff] %vm371, %v2580
        %2613 = vst.msk [vmem:[#allocation3 + $0x150] sm:$0xff] %vm371, %v2581
        %2614 = vst.msk [vmem:[#allocation3 + $0x160] sm:$0xff] %vm371, %v2582
        %2615 = vst.msk [vmem:[#allocation3 + $0x170] sm:$0xff] %vm371, %v2583
        %2616 = vst.msk [vmem:[#allocation3 + $0x180] sm:$0xff] %vm371, %v2584
        %2617 = vst.msk [vmem:[#allocation3 + $0x190] sm:$0xff] %vm371, %v2585
        %2618 = vst.msk [vmem:[#allocation3 + $0x1a0] sm:$0xff] %vm371, %v2586
        %2619 = vst.msk [vmem:[#allocation3 + $0x1b0] sm:$0xff] %vm371, %v2587
        %2620 = vst.msk [vmem:[#allocation3 + $0x1c0] sm:$0xff] %vm371, %v2588
        %2621 = vst.msk [vmem:[#allocation3 + $0x1d0] sm:$0xff] %vm371, %v2589
        %2622 = vst.msk [vmem:[#allocation3 + $0x1e0] sm:$0xff] %vm371, %v2590
        %2623 = vst.msk [vmem:[#allocation3 + $0x1f0] sm:$0xff] %vm371, %v2591
        %v2624 = vld [vmem:[%s534 + $0x8] sm:$0xff]
        %v2625 = vld [vmem:[%s534 + $0x10] sm:$0xff]
        %v2626 = vld [vmem:[%s534 + $0x28] sm:$0xff]
        %v2627 = vld [vmem:[%s534 + $0x30] sm:$0xff]
        %v2628 = vld [vmem:[%s534 + $0x48] sm:$0xff]
        %v2629 = vld [vmem:[%s534 + $0x50] sm:$0xff]
        %v2630 = vld [vmem:[%s534 + $0x68] sm:$0xff]
        %v2631 = vld [vmem:[%s534 + $0x70] sm:$0xff]
        %v2632 = vld [vmem:[%s534 + $0x88] sm:$0xff]
        %v2633 = vld [vmem:[%s534 + $0x90] sm:$0xff]
        %v2634 = vld [vmem:[%s534 + $0xa8] sm:$0xff]
        %v2635 = vld [vmem:[%s534 + $0xb0] sm:$0xff]
        %v2636 = vld [vmem:[%s534 + $0xc8] sm:$0xff]
        %v2637 = vld [vmem:[%s534 + $0xd0] sm:$0xff]
        %v2638 = vld [vmem:[%s534 + $0xe8] sm:$0xff]
        %v2639 = vld [vmem:[%s534 + $0xf0] sm:$0xff]
        %v2640 = vld [vmem:[%s534 + $0x108] sm:$0xff]
        %v2641 = vld [vmem:[%s534 + $0x110] sm:$0xff]
        %v2642 = vld [vmem:[%s534 + $0x128] sm:$0xff]
        %v2643 = vld [vmem:[%s534 + $0x130] sm:$0xff]
        %v2644 = vld [vmem:[%s534 + $0x148] sm:$0xff]
        %v2645 = vld [vmem:[%s534 + $0x150] sm:$0xff]
        %v2646 = vld [vmem:[%s534 + $0x168] sm:$0xff]
        %v2647 = vld [vmem:[%s534 + $0x170] sm:$0xff]
        %v2648 = vld [vmem:[%s534 + $0x188] sm:$0xff]
        %v2649 = vld [vmem:[%s534 + $0x190] sm:$0xff]
        %v2650 = vld [vmem:[%s534 + $0x1a8] sm:$0xff]
        %v2651 = vld [vmem:[%s534 + $0x1b0] sm:$0xff]
        %v2652 = vld [vmem:[%s534 + $0x1c8] sm:$0xff]
        %v2653 = vld [vmem:[%s534 + $0x1d0] sm:$0xff]
        %v2654 = vld [vmem:[%s534 + $0x1e8] sm:$0xff]
        %v2655 = vld [vmem:[%s534 + $0x1f0] sm:$0xff]
        %2688 = vrot.lane.b32.xlu0 %v2624, 16
        %v2689 = vpop.permute.xlu0 %2688
        %2690 = vrot.lane.b32.xlu0 %v2625, 16
        %v2691 = vpop.permute.xlu0 %2690
        %2692 = vrot.lane.b32.xlu0 %v2626, 16
        %v2693 = vpop.permute.xlu0 %2692
        %2694 = vrot.lane.b32.xlu0 %v2627, 16
        %v2695 = vpop.permute.xlu0 %2694
        %2696 = vrot.lane.b32.xlu0 %v2628, 16
        %v2697 = vpop.permute.xlu0 %2696
        %2698 = vrot.lane.b32.xlu0 %v2629, 16
        %v2699 = vpop.permute.xlu0 %2698
        %2700 = vrot.lane.b32.xlu0 %v2630, 16
        %v2701 = vpop.permute.xlu0 %2700
        %2702 = vrot.lane.b32.xlu0 %v2631, 16
        %v2703 = vpop.permute.xlu0 %2702
        %2704 = vrot.lane.b32.xlu0 %v2632, 16
        %v2705 = vpop.permute.xlu0 %2704
        %2706 = vrot.lane.b32.xlu0 %v2633, 16
        %v2707 = vpop.permute.xlu0 %2706
        %2708 = vrot.lane.b32.xlu0 %v2634, 16
        %v2709 = vpop.permute.xlu0 %2708
        %2710 = vrot.lane.b32.xlu0 %v2635, 16
        %v2711 = vpop.permute.xlu0 %2710
        %2712 = vrot.lane.b32.xlu0 %v2636, 16
        %v2713 = vpop.permute.xlu0 %2712
        %2714 = vrot.lane.b32.xlu0 %v2637, 16
        %v2715 = vpop.permute.xlu0 %2714
        %2716 = vrot.lane.b32.xlu0 %v2638, 16
        %v2717 = vpop.permute.xlu0 %2716
        %2718 = vrot.lane.b32.xlu0 %v2639, 16
        %v2719 = vpop.permute.xlu0 %2718
        %2720 = vrot.lane.b32.xlu0 %v2640, 16
        %v2721 = vpop.permute.xlu0 %2720
        %2722 = vrot.lane.b32.xlu0 %v2641, 16
        %v2723 = vpop.permute.xlu0 %2722
        %2724 = vrot.lane.b32.xlu0 %v2642, 16
        %v2725 = vpop.permute.xlu0 %2724
        %2726 = vrot.lane.b32.xlu0 %v2643, 16
        %v2727 = vpop.permute.xlu0 %2726
        %2728 = vrot.lane.b32.xlu0 %v2644, 16
        %v2729 = vpop.permute.xlu0 %2728
        %2730 = vrot.lane.b32.xlu0 %v2645, 16
        %v2731 = vpop.permute.xlu0 %2730
        %2732 = vrot.lane.b32.xlu0 %v2646, 16
        %v2733 = vpop.permute.xlu0 %2732
        %2734 = vrot.lane.b32.xlu0 %v2647, 16
        %v2735 = vpop.permute.xlu0 %2734
        %2736 = vrot.lane.b32.xlu0 %v2648, 16
        %v2737 = vpop.permute.xlu0 %2736
        %2738 = vrot.lane.b32.xlu0 %v2649, 16
        %v2739 = vpop.permute.xlu0 %2738
        %2740 = vrot.lane.b32.xlu0 %v2650, 16
        %v2741 = vpop.permute.xlu0 %2740
        %2742 = vrot.lane.b32.xlu0 %v2651, 16
        %v2743 = vpop.permute.xlu0 %2742
        %2744 = vrot.lane.b32.xlu0 %v2652, 16
        %v2745 = vpop.permute.xlu0 %2744
        %2746 = vrot.lane.b32.xlu0 %v2653, 16
        %v2747 = vpop.permute.xlu0 %2746
        %2748 = vrot.lane.b32.xlu0 %v2654, 16
        %v2749 = vpop.permute.xlu0 %2748
        %2750 = vrot.lane.b32.xlu0 %v2655, 16
        %v2751 = vpop.permute.xlu0 %2750
        %2784 = vst.msk [vmem:[#allocation3] sm:$0xff] %vm759, %v2689
        %2785 = vst.msk [vmem:[#allocation3 + $0x10] sm:$0xff] %vm759, %v2691
        %2786 = vst.msk [vmem:[#allocation3 + $0x20] sm:$0xff] %vm759, %v2693
        %2787 = vst.msk [vmem:[#allocation3 + $0x30] sm:$0xff] %vm759, %v2695
        %2788 = vst.msk [vmem:[#allocation3 + $0x40] sm:$0xff] %vm759, %v2697
        %2789 = vst.msk [vmem:[#allocation3 + $0x50] sm:$0xff] %vm759, %v2699
        %2790 = vst.msk [vmem:[#allocation3 + $0x60] sm:$0xff] %vm759, %v2701
        %2791 = vst.msk [vmem:[#allocation3 + $0x70] sm:$0xff] %vm759, %v2703
        %2792 = vst.msk [vmem:[#allocation3 + $0x80] sm:$0xff] %vm759, %v2705
        %2793 = vst.msk [vmem:[#allocation3 + $0x90] sm:$0xff] %vm759, %v2707
        %2794 = vst.msk [vmem:[#allocation3 + $0xa0] sm:$0xff] %vm759, %v2709
        %2795 = vst.msk [vmem:[#allocation3 + $0xb0] sm:$0xff] %vm759, %v2711
        %2796 = vst.msk [vmem:[#allocation3 + $0xc0] sm:$0xff] %vm759, %v2713
        %2797 = vst.msk [vmem:[#allocation3 + $0xd0] sm:$0xff] %vm759, %v2715
        %2798 = vst.msk [vmem:[#allocation3 + $0xe0] sm:$0xff] %vm759, %v2717
        %2799 = vst.msk [vmem:[#allocation3 + $0xf0] sm:$0xff] %vm759, %v2719
        %2800 = vst.msk [vmem:[#allocation3 + $0x100] sm:$0xff] %vm759, %v2721
        %2801 = vst.msk [vmem:[#allocation3 + $0x110] sm:$0xff] %vm759, %v2723
        %2802 = vst.msk [vmem:[#allocation3 + $0x120] sm:$0xff] %vm759, %v2725
        %2803 = vst.msk [vmem:[#allocation3 + $0x130] sm:$0xff] %vm759, %v2727
        %2804 = vst.msk [vmem:[#allocation3 + $0x140] sm:$0xff] %vm759, %v2729
        %2805 = vst.msk [vmem:[#allocation3 + $0x150] sm:$0xff] %vm759, %v2731
        %2806 = vst.msk [vmem:[#allocation3 + $0x160] sm:$0xff] %vm759, %v2733
        %2807 = vst.msk [vmem:[#allocation3 + $0x170] sm:$0xff] %vm759, %v2735
        %2808 = vst.msk [vmem:[#allocation3 + $0x180] sm:$0xff] %vm759, %v2737
        %2809 = vst.msk [vmem:[#allocation3 + $0x190] sm:$0xff] %vm759, %v2739
        %2810 = vst.msk [vmem:[#allocation3 + $0x1a0] sm:$0xff] %vm759, %v2741
        %2811 = vst.msk [vmem:[#allocation3 + $0x1b0] sm:$0xff] %vm759, %v2743
        %2812 = vst.msk [vmem:[#allocation3 + $0x1c0] sm:$0xff] %vm759, %v2745
        %2813 = vst.msk [vmem:[#allocation3 + $0x1d0] sm:$0xff] %vm759, %v2747
        %2814 = vst.msk [vmem:[#allocation3 + $0x1e0] sm:$0xff] %vm759, %v2749
        %2815 = vst.msk [vmem:[#allocation3 + $0x1f0] sm:$0xff] %vm759, %v2751
        %v2816 = vld [vmem:[%s534 + $0x9] sm:$0xff]
        %v2817 = vld [vmem:[%s534 + $0x11] sm:$0xff]
        %v2818 = vld [vmem:[%s534 + $0x29] sm:$0xff]
        %v2819 = vld [vmem:[%s534 + $0x31] sm:$0xff]
        %v2820 = vld [vmem:[%s534 + $0x49] sm:$0xff]
        %v2821 = vld [vmem:[%s534 + $0x51] sm:$0xff]
        %v2822 = vld [vmem:[%s534 + $0x69] sm:$0xff]
        %v2823 = vld [vmem:[%s534 + $0x71] sm:$0xff]
        %v2824 = vld [vmem:[%s534 + $0x89] sm:$0xff]
        %v2825 = vld [vmem:[%s534 + $0x91] sm:$0xff]
        %v2826 = vld [vmem:[%s534 + $0xa9] sm:$0xff]
        %v2827 = vld [vmem:[%s534 + $0xb1] sm:$0xff]
        %v2828 = vld [vmem:[%s534 + $0xc9] sm:$0xff]
        %v2829 = vld [vmem:[%s534 + $0xd1] sm:$0xff]
        %v2830 = vld [vmem:[%s534 + $0xe9] sm:$0xff]
        %v2831 = vld [vmem:[%s534 + $0xf1] sm:$0xff]
        %v2832 = vld [vmem:[%s534 + $0x109] sm:$0xff]
        %v2833 = vld [vmem:[%s534 + $0x111] sm:$0xff]
        %v2834 = vld [vmem:[%s534 + $0x129] sm:$0xff]
        %v2835 = vld [vmem:[%s534 + $0x131] sm:$0xff]
        %v2836 = vld [vmem:[%s534 + $0x149] sm:$0xff]
        %v2837 = vld [vmem:[%s534 + $0x151] sm:$0xff]
        %v2838 = vld [vmem:[%s534 + $0x169] sm:$0xff]
        %v2839 = vld [vmem:[%s534 + $0x171] sm:$0xff]
        %v2840 = vld [vmem:[%s534 + $0x189] sm:$0xff]
        %v2841 = vld [vmem:[%s534 + $0x191] sm:$0xff]
        %v2842 = vld [vmem:[%s534 + $0x1a9] sm:$0xff]
        %v2843 = vld [vmem:[%s534 + $0x1b1] sm:$0xff]
        %v2844 = vld [vmem:[%s534 + $0x1c9] sm:$0xff]
        %v2845 = vld [vmem:[%s534 + $0x1d1] sm:$0xff]
        %v2846 = vld [vmem:[%s534 + $0x1e9] sm:$0xff]
        %v2847 = vld [vmem:[%s534 + $0x1f1] sm:$0xff]
        %2880 = vrot.lane.b32.xlu0 %v2816, 32
        %v2881 = vpop.permute.xlu0 %2880
        %2882 = vrot.lane.b32.xlu0 %v2817, 32
        %v2883 = vpop.permute.xlu0 %2882
        %2884 = vrot.lane.b32.xlu0 %v2818, 32
        %v2885 = vpop.permute.xlu0 %2884
        %2886 = vrot.lane.b32.xlu0 %v2819, 32
        %v2887 = vpop.permute.xlu0 %2886
        %2888 = vrot.lane.b32.xlu0 %v2820, 32
        %v2889 = vpop.permute.xlu0 %2888
        %2890 = vrot.lane.b32.xlu0 %v2821, 32
        %v2891 = vpop.permute.xlu0 %2890
        %2892 = vrot.lane.b32.xlu0 %v2822, 32
        %v2893 = vpop.permute.xlu0 %2892
        %2894 = vrot.lane.b32.xlu0 %v2823, 32
        %v2895 = vpop.permute.xlu0 %2894
        %2896 = vrot.lane.b32.xlu0 %v2824, 32
        %v2897 = vpop.permute.xlu0 %2896
        %2898 = vrot.lane.b32.xlu0 %v2825, 32
        %v2899 = vpop.permute.xlu0 %2898
        %2900 = vrot.lane.b32.xlu0 %v2826, 32
        %v2901 = vpop.permute.xlu0 %2900
        %2902 = vrot.lane.b32.xlu0 %v2827, 32
        %v2903 = vpop.permute.xlu0 %2902
        %2904 = vrot.lane.b32.xlu0 %v2828, 32
        %v2905 = vpop.permute.xlu0 %2904
        %2906 = vrot.lane.b32.xlu0 %v2829, 32
        %v2907 = vpop.permute.xlu0 %2906
        %2908 = vrot.lane.b32.xlu0 %v2830, 32
        %v2909 = vpop.permute.xlu0 %2908
        %2910 = vrot.lane.b32.xlu0 %v2831, 32
        %v2911 = vpop.permute.xlu0 %2910
        %2912 = vrot.lane.b32.xlu0 %v2832, 32
        %v2913 = vpop.permute.xlu0 %2912
        %2914 = vrot.lane.b32.xlu0 %v2833, 32
        %v2915 = vpop.permute.xlu0 %2914
        %2916 = vrot.lane.b32.xlu0 %v2834, 32
        %v2917 = vpop.permute.xlu0 %2916
        %2918 = vrot.lane.b32.xlu0 %v2835, 32
        %v2919 = vpop.permute.xlu0 %2918
        %2920 = vrot.lane.b32.xlu0 %v2836, 32
        %v2921 = vpop.permute.xlu0 %2920
        %2922 = vrot.lane.b32.xlu0 %v2837, 32
        %v2923 = vpop.permute.xlu0 %2922
        %2924 = vrot.lane.b32.xlu0 %v2838, 32
        %v2925 = vpop.permute.xlu0 %2924
        %2926 = vrot.lane.b32.xlu0 %v2839, 32
        %v2927 = vpop.permute.xlu0 %2926
        %2928 = vrot.lane.b32.xlu0 %v2840, 32
        %v2929 = vpop.permute.xlu0 %2928
        %2930 = vrot.lane.b32.xlu0 %v2841, 32
        %v2931 = vpop.permute.xlu0 %2930
        %2932 = vrot.lane.b32.xlu0 %v2842, 32
        %v2933 = vpop.permute.xlu0 %2932
        %2934 = vrot.lane.b32.xlu0 %v2843, 32
        %v2935 = vpop.permute.xlu0 %2934
        %2936 = vrot.lane.b32.xlu0 %v2844, 32
        %v2937 = vpop.permute.xlu0 %2936
        %2938 = vrot.lane.b32.xlu0 %v2845, 32
        %v2939 = vpop.permute.xlu0 %2938
        %2940 = vrot.lane.b32.xlu0 %v2846, 32
        %v2941 = vpop.permute.xlu0 %2940
        %2942 = vrot.lane.b32.xlu0 %v2847, 32
        %v2943 = vpop.permute.xlu0 %2942
        %2976 = vst.msk [vmem:[#allocation3] sm:$0xff] %vm952, %v2881
        %2977 = vst.msk [vmem:[#allocation3 + $0x10] sm:$0xff] %vm952, %v2883
        %2978 = vst.msk [vmem:[#allocation3 + $0x20] sm:$0xff] %vm952, %v2885
        %2979 = vst.msk [vmem:[#allocation3 + $0x30] sm:$0xff] %vm952, %v2887
        %2980 = vst.msk [vmem:[#allocation3 + $0x40] sm:$0xff] %vm952, %v2889
        %2981 = vst.msk [vmem:[#allocation3 + $0x50] sm:$0xff] %vm952, %v2891
        %2982 = vst.msk [vmem:[#allocation3 + $0x60] sm:$0xff] %vm952, %v2893
        %2983 = vst.msk [vmem:[#allocation3 + $0x70] sm:$0xff] %vm952, %v2895
        %2984 = vst.msk [vmem:[#allocation3 + $0x80] sm:$0xff] %vm952, %v2897
        %2985 = vst.msk [vmem:[#allocation3 + $0x90] sm:$0xff] %vm952, %v2899
        %2986 = vst.msk [vmem:[#allocation3 + $0xa0] sm:$0xff] %vm952, %v2901
        %2987 = vst.msk [vmem:[#allocation3 + $0xb0] sm:$0xff] %vm952, %v2903
        %2988 = vst.msk [vmem:[#allocation3 + $0xc0] sm:$0xff] %vm952, %v2905
        %2989 = vst.msk [vmem:[#allocation3 + $0xd0] sm:$0xff] %vm952, %v2907
        %2990 = vst.msk [vmem:[#allocation3 + $0xe0] sm:$0xff] %vm952, %v2909
        %2991 = vst.msk [vmem:[#allocation3 + $0xf0] sm:$0xff] %vm952, %v2911
        %2992 = vst.msk [vmem:[#allocation3 + $0x100] sm:$0xff] %vm952, %v2913
        %2993 = vst.msk [vmem:[#allocation3 + $0x110] sm:$0xff] %vm952, %v2915
        %2994 = vst.msk [vmem:[#allocation3 + $0x120] sm:$0xff] %vm952, %v2917
        %2995 = vst.msk [vmem:[#allocation3 + $0x130] sm:$0xff] %vm952, %v2919
        %2996 = vst.msk [vmem:[#allocation3 + $0x140] sm:$0xff] %vm952, %v2921
        %2997 = vst.msk [vmem:[#allocation3 + $0x150] sm:$0xff] %vm952, %v2923
        %2998 = vst.msk [vmem:[#allocation3 + $0x160] sm:$0xff] %vm952, %v2925
        %2999 = vst.msk [vmem:[#allocation3 + $0x170] sm:$0xff] %vm952, %v2927
        %3000 = vst.msk [vmem:[#allocation3 + $0x180] sm:$0xff] %vm952, %v2929
        %3001 = vst.msk [vmem:[#allocation3 + $0x190] sm:$0xff] %vm952, %v2931
        %3002 = vst.msk [vmem:[#allocation3 + $0x1a0] sm:$0xff] %vm952, %v2933
        %3003 = vst.msk [vmem:[#allocation3 + $0x1b0] sm:$0xff] %vm952, %v2935
        %3004 = vst.msk [vmem:[#allocation3 + $0x1c0] sm:$0xff] %vm952, %v2937
        %3005 = vst.msk [vmem:[#allocation3 + $0x1d0] sm:$0xff] %vm952, %v2939
        %3006 = vst.msk [vmem:[#allocation3 + $0x1e0] sm:$0xff] %vm952, %v2941
        %3007 = vst.msk [vmem:[#allocation3 + $0x1f0] sm:$0xff] %vm952, %v2943
        %v3008 = vld [vmem:[%s437 + $0x7] sm:$0xff]
        %v3009 = vld [vmem:[%s437 + $0xf] sm:$0xff]
        %v3010 = vld [vmem:[%s437 + $0x27] sm:$0xff]
        %v3011 = vld [vmem:[%s437 + $0x2f] sm:$0xff]
        %v3012 = vld [vmem:[%s437 + $0x47] sm:$0xff]
        %v3013 = vld [vmem:[%s437 + $0x4f] sm:$0xff]
        %v3014 = vld [vmem:[%s437 + $0x67] sm:$0xff]
        %v3015 = vld [vmem:[%s437 + $0x6f] sm:$0xff]
        %v3016 = vld [vmem:[%s437 + $0x87] sm:$0xff]
        %v3017 = vld [vmem:[%s437 + $0x8f] sm:$0xff]
        %v3018 = vld [vmem:[%s437 + $0xa7] sm:$0xff]
        %v3019 = vld [vmem:[%s437 + $0xaf] sm:$0xff]
        %v3020 = vld [vmem:[%s437 + $0xc7] sm:$0xff]
        %v3021 = vld [vmem:[%s437 + $0xcf] sm:$0xff]
        %v3022 = vld [vmem:[%s437 + $0xe7] sm:$0xff]
        %v3023 = vld [vmem:[%s437 + $0xef] sm:$0xff]
        %v3024 = vld [vmem:[%s437 + $0x107] sm:$0xff]
        %v3025 = vld [vmem:[%s437 + $0x10f] sm:$0xff]
        %v3026 = vld [vmem:[%s437 + $0x127] sm:$0xff]
        %v3027 = vld [vmem:[%s437 + $0x12f] sm:$0xff]
        %v3028 = vld [vmem:[%s437 + $0x147] sm:$0xff]
        %v3029 = vld [vmem:[%s437 + $0x14f] sm:$0xff]
        %v3030 = vld [vmem:[%s437 + $0x167] sm:$0xff]
        %v3031 = vld [vmem:[%s437 + $0x16f] sm:$0xff]
        %v3032 = vld [vmem:[%s437 + $0x187] sm:$0xff]
        %v3033 = vld [vmem:[%s437 + $0x18f] sm:$0xff]
        %v3034 = vld [vmem:[%s437 + $0x1a7] sm:$0xff]
        %v3035 = vld [vmem:[%s437 + $0x1af] sm:$0xff]
        %v3036 = vld [vmem:[%s437 + $0x1c7] sm:$0xff]
        %v3037 = vld [vmem:[%s437 + $0x1cf] sm:$0xff]
        %v3038 = vld [vmem:[%s437 + $0x1e7] sm:$0xff]
        %v3039 = vld [vmem:[%s437 + $0x1ef] sm:$0xff]
        %3072 = vrot.lane.b32.xlu0 %v3008, 48
        %v3073 = vpop.permute.xlu0 %3072
        %3074 = vrot.lane.b32.xlu0 %v3009, 48
        %v3075 = vpop.permute.xlu0 %3074
        %3076 = vrot.lane.b32.xlu0 %v3010, 48
        %v3077 = vpop.permute.xlu0 %3076
        %3078 = vrot.lane.b32.xlu0 %v3011, 48
        %v3079 = vpop.permute.xlu0 %3078
        %3080 = vrot.lane.b32.xlu0 %v3012, 48
        %v3081 = vpop.permute.xlu0 %3080
        %3082 = vrot.lane.b32.xlu0 %v3013, 48
        %v3083 = vpop.permute.xlu0 %3082
        %3084 = vrot.lane.b32.xlu0 %v3014, 48
        %v3085 = vpop.permute.xlu0 %3084
        %3086 = vrot.lane.b32.xlu0 %v3015, 48
        %v3087 = vpop.permute.xlu0 %3086
        %3088 = vrot.lane.b32.xlu0 %v3016, 48
        %v3089 = vpop.permute.xlu0 %3088
        %3090 = vrot.lane.b32.xlu0 %v3017, 48
        %v3091 = vpop.permute.xlu0 %3090
        %3092 = vrot.lane.b32.xlu0 %v3018, 48
        %v3093 = vpop.permute.xlu0 %3092
        %3094 = vrot.lane.b32.xlu0 %v3019, 48
        %v3095 = vpop.permute.xlu0 %3094
        %3096 = vrot.lane.b32.xlu0 %v3020, 48
        %v3097 = vpop.permute.xlu0 %3096
        %3098 = vrot.lane.b32.xlu0 %v3021, 48
        %v3099 = vpop.permute.xlu0 %3098
        %3100 = vrot.lane.b32.xlu0 %v3022, 48
        %v3101 = vpop.permute.xlu0 %3100
        %3102 = vrot.lane.b32.xlu0 %v3023, 48
        %v3103 = vpop.permute.xlu0 %3102
        %3104 = vrot.lane.b32.xlu0 %v3024, 48
        %v3105 = vpop.permute.xlu0 %3104
        %3106 = vrot.lane.b32.xlu0 %v3025, 48
        %v3107 = vpop.permute.xlu0 %3106
        %3108 = vrot.lane.b32.xlu0 %v3026, 48
        %v3109 = vpop.permute.xlu0 %3108
        %3110 = vrot.lane.b32.xlu0 %v3027, 48
        %v3111 = vpop.permute.xlu0 %3110
        %3112 = vrot.lane.b32.xlu0 %v3028, 48
        %v3113 = vpop.permute.xlu0 %3112
        %3114 = vrot.lane.b32.xlu0 %v3029, 48
        %v3115 = vpop.permute.xlu0 %3114
        %3116 = vrot.lane.b32.xlu0 %v3030, 48
        %v3117 = vpop.permute.xlu0 %3116
        %3118 = vrot.lane.b32.xlu0 %v3031, 48
        %v3119 = vpop.permute.xlu0 %3118
        %3120 = vrot.lane.b32.xlu0 %v3032, 48
        %v3121 = vpop.permute.xlu0 %3120
        %3122 = vrot.lane.b32.xlu0 %v3033, 48
        %v3123 = vpop.permute.xlu0 %3122
        %3124 = vrot.lane.b32.xlu0 %v3034, 48
        %v3125 = vpop.permute.xlu0 %3124
        %3126 = vrot.lane.b32.xlu0 %v3035, 48
        %v3127 = vpop.permute.xlu0 %3126
        %3128 = vrot.lane.b32.xlu0 %v3036, 48
        %v3129 = vpop.permute.xlu0 %3128
        %3130 = vrot.lane.b32.xlu0 %v3037, 48
        %v3131 = vpop.permute.xlu0 %3130
        %3132 = vrot.lane.b32.xlu0 %v3038, 48
        %v3133 = vpop.permute.xlu0 %3132
        %3134 = vrot.lane.b32.xlu0 %v3039, 48
        %v3135 = vpop.permute.xlu0 %3134
        %3168 = vst.msk [vmem:[#allocation3] sm:$0xff] %vm1145, %v3073
        %3169 = vst.msk [vmem:[#allocation3 + $0x10] sm:$0xff] %vm1145, %v3075
        %3170 = vst.msk [vmem:[#allocation3 + $0x20] sm:$0xff] %vm1145, %v3077
        %3171 = vst.msk [vmem:[#allocation3 + $0x30] sm:$0xff] %vm1145, %v3079
        %3172 = vst.msk [vmem:[#allocation3 + $0x40] sm:$0xff] %vm1145, %v3081
        %3173 = vst.msk [vmem:[#allocation3 + $0x50] sm:$0xff] %vm1145, %v3083
        %3174 = vst.msk [vmem:[#allocation3 + $0x60] sm:$0xff] %vm1145, %v3085
        %3175 = vst.msk [vmem:[#allocation3 + $0x70] sm:$0xff] %vm1145, %v3087
        %3176 = vst.msk [vmem:[#allocation3 + $0x80] sm:$0xff] %vm1145, %v3089
        %3177 = vst.msk [vmem:[#allocation3 + $0x90] sm:$0xff] %vm1145, %v3091
        %3178 = vst.msk [vmem:[#allocation3 + $0xa0] sm:$0xff] %vm1145, %v3093
        %3179 = vst.msk [vmem:[#allocation3 + $0xb0] sm:$0xff] %vm1145, %v3095
        %3180 = vst.msk [vmem:[#allocation3 + $0xc0] sm:$0xff] %vm1145, %v3097
        %3181 = vst.msk [vmem:[#allocation3 + $0xd0] sm:$0xff] %vm1145, %v3099
        %3182 = vst.msk [vmem:[#allocation3 + $0xe0] sm:$0xff] %vm1145, %v3101
        %3183 = vst.msk [vmem:[#allocation3 + $0xf0] sm:$0xff] %vm1145, %v3103
        %3184 = vst.msk [vmem:[#allocation3 + $0x100] sm:$0xff] %vm1145, %v3105
        %3185 = vst.msk [vmem:[#allocation3 + $0x110] sm:$0xff] %vm1145, %v3107
        %3186 = vst.msk [vmem:[#allocation3 + $0x120] sm:$0xff] %vm1145, %v3109
        %3187 = vst.msk [vmem:[#allocation3 + $0x130] sm:$0xff] %vm1145, %v3111
        %3188 = vst.msk [vmem:[#allocation3 + $0x140] sm:$0xff] %vm1145, %v3113
        %3189 = vst.msk [vmem:[#allocation3 + $0x150] sm:$0xff] %vm1145, %v3115
        %3190 = vst.msk [vmem:[#allocation3 + $0x160] sm:$0xff] %vm1145, %v3117
        %3191 = vst.msk [vmem:[#allocation3 + $0x170] sm:$0xff] %vm1145, %v3119
        %3192 = vst.msk [vmem:[#allocation3 + $0x180] sm:$0xff] %vm1145, %v3121
        %3193 = vst.msk [vmem:[#allocation3 + $0x190] sm:$0xff] %vm1145, %v3123
        %3194 = vst.msk [vmem:[#allocation3 + $0x1a0] sm:$0xff] %vm1145, %v3125
        %3195 = vst.msk [vmem:[#allocation3 + $0x1b0] sm:$0xff] %vm1145, %v3127
        %3196 = vst.msk [vmem:[#allocation3 + $0x1c0] sm:$0xff] %vm1145, %v3129
        %3197 = vst.msk [vmem:[#allocation3 + $0x1d0] sm:$0xff] %vm1145, %v3131
        %3198 = vst.msk [vmem:[#allocation3 + $0x1e0] sm:$0xff] %vm1145, %v3133
        %3199 = vst.msk [vmem:[#allocation3 + $0x1f0] sm:$0xff] %vm1145, %v3135
        %v3200 = vld [vmem:[%s437 + $0x8] sm:$0xff]
        %v3201 = vld [vmem:[%s437 + $0x10] sm:$0xff]
        %v3202 = vld [vmem:[%s437 + $0x28] sm:$0xff]
        %v3203 = vld [vmem:[%s437 + $0x30] sm:$0xff]
        %v3204 = vld [vmem:[%s437 + $0x48] sm:$0xff]
        %v3205 = vld [vmem:[%s437 + $0x50] sm:$0xff]
        %v3206 = vld [vmem:[%s437 + $0x68] sm:$0xff]
        %v3207 = vld [vmem:[%s437 + $0x70] sm:$0xff]
        %v3208 = vld [vmem:[%s437 + $0x88] sm:$0xff]
        %v3209 = vld [vmem:[%s437 + $0x90] sm:$0xff]
        %v3210 = vld [vmem:[%s437 + $0xa8] sm:$0xff]
        %v3211 = vld [vmem:[%s437 + $0xb0] sm:$0xff]
        %v3212 = vld [vmem:[%s437 + $0xc8] sm:$0xff]
        %v3213 = vld [vmem:[%s437 + $0xd0] sm:$0xff]
        %v3214 = vld [vmem:[%s437 + $0xe8] sm:$0xff]
        %v3215 = vld [vmem:[%s437 + $0xf0] sm:$0xff]
        %v3216 = vld [vmem:[%s437 + $0x108] sm:$0xff]
        %v3217 = vld [vmem:[%s437 + $0x110] sm:$0xff]
        %v3218 = vld [vmem:[%s437 + $0x128] sm:$0xff]
        %v3219 = vld [vmem:[%s437 + $0x130] sm:$0xff]
        %v3220 = vld [vmem:[%s437 + $0x148] sm:$0xff]
        %v3221 = vld [vmem:[%s437 + $0x150] sm:$0xff]
        %v3222 = vld [vmem:[%s437 + $0x168] sm:$0xff]
        %v3223 = vld [vmem:[%s437 + $0x170] sm:$0xff]
        %v3224 = vld [vmem:[%s437 + $0x188] sm:$0xff]
        %v3225 = vld [vmem:[%s437 + $0x190] sm:$0xff]
        %v3226 = vld [vmem:[%s437 + $0x1a8] sm:$0xff]
        %v3227 = vld [vmem:[%s437 + $0x1b0] sm:$0xff]
        %v3228 = vld [vmem:[%s437 + $0x1c8] sm:$0xff]
        %v3229 = vld [vmem:[%s437 + $0x1d0] sm:$0xff]
        %v3230 = vld [vmem:[%s437 + $0x1e8] sm:$0xff]
        %v3231 = vld [vmem:[%s437 + $0x1f0] sm:$0xff]
        %3264 = vrot.lane.b32.xlu0 %v3200, 64
        %v3265 = vpop.permute.xlu0 %3264
        %3266 = vrot.lane.b32.xlu0 %v3201, 64
        %v3267 = vpop.permute.xlu0 %3266
        %3268 = vrot.lane.b32.xlu0 %v3202, 64
        %v3269 = vpop.permute.xlu0 %3268
        %3270 = vrot.lane.b32.xlu0 %v3203, 64
        %v3271 = vpop.permute.xlu0 %3270
        %3272 = vrot.lane.b32.xlu0 %v3204, 64
        %v3273 = vpop.permute.xlu0 %3272
        %3274 = vrot.lane.b32.xlu0 %v3205, 64
        %v3275 = vpop.permute.xlu0 %3274
        %3276 = vrot.lane.b32.xlu0 %v3206, 64
        %v3277 = vpop.permute.xlu0 %3276
        %3278 = vrot.lane.b32.xlu0 %v3207, 64
        %v3279 = vpop.permute.xlu0 %3278
        %3280 = vrot.lane.b32.xlu0 %v3208, 64
        %v3281 = vpop.permute.xlu0 %3280
        %3282 = vrot.lane.b32.xlu0 %v3209, 64
        %v3283 = vpop.permute.xlu0 %3282
        %3284 = vrot.lane.b32.xlu0 %v3210, 64
        %v3285 = vpop.permute.xlu0 %3284
        %3286 = vrot.lane.b32.xlu0 %v3211, 64
        %v3287 = vpop.permute.xlu0 %3286
        %3288 = vrot.lane.b32.xlu0 %v3212, 64
        %v3289 = vpop.permute.xlu0 %3288
        %3290 = vrot.lane.b32.xlu0 %v3213, 64
        %v3291 = vpop.permute.xlu0 %3290
        %3292 = vrot.lane.b32.xlu0 %v3214, 64
        %v3293 = vpop.permute.xlu0 %3292
        %3294 = vrot.lane.b32.xlu0 %v3215, 64
        %v3295 = vpop.permute.xlu0 %3294
        %3296 = vrot.lane.b32.xlu0 %v3216, 64
        %v3297 = vpop.permute.xlu0 %3296
        %3298 = vrot.lane.b32.xlu0 %v3217, 64
        %v3299 = vpop.permute.xlu0 %3298
        %3300 = vrot.lane.b32.xlu0 %v3218, 64
        %v3301 = vpop.permute.xlu0 %3300
        %3302 = vrot.lane.b32.xlu0 %v3219, 64
        %v3303 = vpop.permute.xlu0 %3302
        %3304 = vrot.lane.b32.xlu0 %v3220, 64
        %v3305 = vpop.permute.xlu0 %3304
        %3306 = vrot.lane.b32.xlu0 %v3221, 64
        %v3307 = vpop.permute.xlu0 %3306
        %3308 = vrot.lane.b32.xlu0 %v3222, 64
        %v3309 = vpop.permute.xlu0 %3308
        %3310 = vrot.lane.b32.xlu0 %v3223, 64
        %v3311 = vpop.permute.xlu0 %3310
        %3312 = vrot.lane.b32.xlu0 %v3224, 64
        %v3313 = vpop.permute.xlu0 %3312
        %3314 = vrot.lane.b32.xlu0 %v3225, 64
        %v3315 = vpop.permute.xlu0 %3314
        %3316 = vrot.lane.b32.xlu0 %v3226, 64
        %v3317 = vpop.permute.xlu0 %3316
        %3318 = vrot.lane.b32.xlu0 %v3227, 64
        %v3319 = vpop.permute.xlu0 %3318
        %3320 = vrot.lane.b32.xlu0 %v3228, 64
        %v3321 = vpop.permute.xlu0 %3320
        %3322 = vrot.lane.b32.xlu0 %v3229, 64
        %v3323 = vpop.permute.xlu0 %3322
        %3324 = vrot.lane.b32.xlu0 %v3230, 64
        %v3325 = vpop.permute.xlu0 %3324
        %3326 = vrot.lane.b32.xlu0 %v3231, 64
        %v3327 = vpop.permute.xlu0 %3326
        %3360 = vst.msk [vmem:[#allocation3] sm:$0xff] %vm1338, %v3265
        %3361 = vst.msk [vmem:[#allocation3 + $0x10] sm:$0xff] %vm1338, %v3267
        %3362 = vst.msk [vmem:[#allocation3 + $0x20] sm:$0xff] %vm1338, %v3269
        %3363 = vst.msk [vmem:[#allocation3 + $0x30] sm:$0xff] %vm1338, %v3271
        %3364 = vst.msk [vmem:[#allocation3 + $0x40] sm:$0xff] %vm1338, %v3273
        %3365 = vst.msk [vmem:[#allocation3 + $0x50] sm:$0xff] %vm1338, %v3275
        %3366 = vst.msk [vmem:[#allocation3 + $0x60] sm:$0xff] %vm1338, %v3277
        %3367 = vst.msk [vmem:[#allocation3 + $0x70] sm:$0xff] %vm1338, %v3279
        %3368 = vst.msk [vmem:[#allocation3 + $0x80] sm:$0xff] %vm1338, %v3281
        %3369 = vst.msk [vmem:[#allocation3 + $0x90] sm:$0xff] %vm1338, %v3283
        %3370 = vst.msk [vmem:[#allocation3 + $0xa0] sm:$0xff] %vm1338, %v3285
        %3371 = vst.msk [vmem:[#allocation3 + $0xb0] sm:$0xff] %vm1338, %v3287
        %3372 = vst.msk [vmem:[#allocation3 + $0xc0] sm:$0xff] %vm1338, %v3289
        %3373 = vst.msk [vmem:[#allocation3 + $0xd0] sm:$0xff] %vm1338, %v3291
        %3374 = vst.msk [vmem:[#allocation3 + $0xe0] sm:$0xff] %vm1338, %v3293
        %3375 = vst.msk [vmem:[#allocation3 + $0xf0] sm:$0xff] %vm1338, %v3295
        %3376 = vst.msk [vmem:[#allocation3 + $0x100] sm:$0xff] %vm1338, %v3297
        %3377 = vst.msk [vmem:[#allocation3 + $0x110] sm:$0xff] %vm1338, %v3299
        %3378 = vst.msk [vmem:[#allocation3 + $0x120] sm:$0xff] %vm1338, %v3301
        %3379 = vst.msk [vmem:[#allocation3 + $0x130] sm:$0xff] %vm1338, %v3303
        %3380 = vst.msk [vmem:[#allocation3 + $0x140] sm:$0xff] %vm1338, %v3305
        %3381 = vst.msk [vmem:[#allocation3 + $0x150] sm:$0xff] %vm1338, %v3307
        %3382 = vst.msk [vmem:[#allocation3 + $0x160] sm:$0xff] %vm1338, %v3309
        %3383 = vst.msk [vmem:[#allocation3 + $0x170] sm:$0xff] %vm1338, %v3311
        %3384 = vst.msk [vmem:[#allocation3 + $0x180] sm:$0xff] %vm1338, %v3313
        %3385 = vst.msk [vmem:[#allocation3 + $0x190] sm:$0xff] %vm1338, %v3315
        %3386 = vst.msk [vmem:[#allocation3 + $0x1a0] sm:$0xff] %vm1338, %v3317
        %3387 = vst.msk [vmem:[#allocation3 + $0x1b0] sm:$0xff] %vm1338, %v3319
        %3388 = vst.msk [vmem:[#allocation3 + $0x1c0] sm:$0xff] %vm1338, %v3321
        %3389 = vst.msk [vmem:[#allocation3 + $0x1d0] sm:$0xff] %vm1338, %v3323
        %3390 = vst.msk [vmem:[#allocation3 + $0x1e0] sm:$0xff] %vm1338, %v3325
        %3391 = vst.msk [vmem:[#allocation3 + $0x1f0] sm:$0xff] %vm1338, %v3327
        %v3392 = vld [vmem:[%s437 + $0x9] sm:$0xff]
        %v3393 = vld [vmem:[%s437 + $0x11] sm:$0xff]
        %v3394 = vld [vmem:[%s437 + $0x29] sm:$0xff]
        %v3395 = vld [vmem:[%s437 + $0x31] sm:$0xff]
        %v3396 = vld [vmem:[%s437 + $0x49] sm:$0xff]
        %v3397 = vld [vmem:[%s437 + $0x51] sm:$0xff]
        %v3398 = vld [vmem:[%s437 + $0x69] sm:$0xff]
        %v3399 = vld [vmem:[%s437 + $0x71] sm:$0xff]
        %v3400 = vld [vmem:[%s437 + $0x89] sm:$0xff]
        %v3401 = vld [vmem:[%s437 + $0x91] sm:$0xff]
        %v3402 = vld [vmem:[%s437 + $0xa9] sm:$0xff]
        %v3403 = vld [vmem:[%s437 + $0xb1] sm:$0xff]
        %v3404 = vld [vmem:[%s437 + $0xc9] sm:$0xff]
        %v3405 = vld [vmem:[%s437 + $0xd1] sm:$0xff]
        %v3406 = vld [vmem:[%s437 + $0xe9] sm:$0xff]
        %v3407 = vld [vmem:[%s437 + $0xf1] sm:$0xff]
        %v3408 = vld [vmem:[%s437 + $0x109] sm:$0xff]
        %v3409 = vld [vmem:[%s437 + $0x111] sm:$0xff]
        %v3410 = vld [vmem:[%s437 + $0x129] sm:$0xff]
        %v3411 = vld [vmem:[%s437 + $0x131] sm:$0xff]
        %v3412 = vld [vmem:[%s437 + $0x149] sm:$0xff]
        %v3413 = vld [vmem:[%s437 + $0x151] sm:$0xff]
        %v3414 = vld [vmem:[%s437 + $0x169] sm:$0xff]
        %v3415 = vld [vmem:[%s437 + $0x171] sm:$0xff]
        %v3416 = vld [vmem:[%s437 + $0x189] sm:$0xff]
        %v3417 = vld [vmem:[%s437 + $0x191] sm:$0xff]
        %v3418 = vld [vmem:[%s437 + $0x1a9] sm:$0xff]
        %v3419 = vld [vmem:[%s437 + $0x1b1] sm:$0xff]
        %v3420 = vld [vmem:[%s437 + $0x1c9] sm:$0xff]
        %v3421 = vld [vmem:[%s437 + $0x1d1] sm:$0xff]
        %v3422 = vld [vmem:[%s437 + $0x1e9] sm:$0xff]
        %v3423 = vld [vmem:[%s437 + $0x1f1] sm:$0xff]
        %3456 = vrot.lane.b32.xlu0 %v3392, 80
        %v3457 = vpop.permute.xlu0 %3456
        %3458 = vrot.lane.b32.xlu0 %v3393, 80
        %v3459 = vpop.permute.xlu0 %3458
        %3460 = vrot.lane.b32.xlu0 %v3394, 80
        %v3461 = vpop.permute.xlu0 %3460
        %3462 = vrot.lane.b32.xlu0 %v3395, 80
        %v3463 = vpop.permute.xlu0 %3462
        %3464 = vrot.lane.b32.xlu0 %v3396, 80
        %v3465 = vpop.permute.xlu0 %3464
        %3466 = vrot.lane.b32.xlu0 %v3397, 80
        %v3467 = vpop.permute.xlu0 %3466
        %3468 = vrot.lane.b32.xlu0 %v3398, 80
        %v3469 = vpop.permute.xlu0 %3468
        %3470 = vrot.lane.b32.xlu0 %v3399, 80
        %v3471 = vpop.permute.xlu0 %3470
        %3472 = vrot.lane.b32.xlu0 %v3400, 80
        %v3473 = vpop.permute.xlu0 %3472
        %3474 = vrot.lane.b32.xlu0 %v3401, 80
        %v3475 = vpop.permute.xlu0 %3474
        %3476 = vrot.lane.b32.xlu0 %v3402, 80
        %v3477 = vpop.permute.xlu0 %3476
        %3478 = vrot.lane.b32.xlu0 %v3403, 80
        %v3479 = vpop.permute.xlu0 %3478
        %3480 = vrot.lane.b32.xlu0 %v3404, 80
        %v3481 = vpop.permute.xlu0 %3480
        %3482 = vrot.lane.b32.xlu0 %v3405, 80
        %v3483 = vpop.permute.xlu0 %3482
        %3484 = vrot.lane.b32.xlu0 %v3406, 80
        %v3485 = vpop.permute.xlu0 %3484
        %3486 = vrot.lane.b32.xlu0 %v3407, 80
        %v3487 = vpop.permute.xlu0 %3486
        %3488 = vrot.lane.b32.xlu0 %v3408, 80
        %v3489 = vpop.permute.xlu0 %3488
        %3490 = vrot.lane.b32.xlu0 %v3409, 80
        %v3491 = vpop.permute.xlu0 %3490
        %3492 = vrot.lane.b32.xlu0 %v3410, 80
        %v3493 = vpop.permute.xlu0 %3492
        %3494 = vrot.lane.b32.xlu0 %v3411, 80
        %v3495 = vpop.permute.xlu0 %3494
        %3496 = vrot.lane.b32.xlu0 %v3412, 80
        %v3497 = vpop.permute.xlu0 %3496
        %3498 = vrot.lane.b32.xlu0 %v3413, 80
        %v3499 = vpop.permute.xlu0 %3498
        %3500 = vrot.lane.b32.xlu0 %v3414, 80
        %v3501 = vpop.permute.xlu0 %3500
        %3502 = vrot.lane.b32.xlu0 %v3415, 80
        %v3503 = vpop.permute.xlu0 %3502
        %3504 = vrot.lane.b32.xlu0 %v3416, 80
        %v3505 = vpop.permute.xlu0 %3504
        %3506 = vrot.lane.b32.xlu0 %v3417, 80
        %v3507 = vpop.permute.xlu0 %3506
        %3508 = vrot.lane.b32.xlu0 %v3418, 80
        %v3509 = vpop.permute.xlu0 %3508
        %3510 = vrot.lane.b32.xlu0 %v3419, 80
        %v3511 = vpop.permute.xlu0 %3510
        %3512 = vrot.lane.b32.xlu0 %v3420, 80
        %v3513 = vpop.permute.xlu0 %3512
        %3514 = vrot.lane.b32.xlu0 %v3421, 80
        %v3515 = vpop.permute.xlu0 %3514
        %3516 = vrot.lane.b32.xlu0 %v3422, 80
        %v3517 = vpop.permute.xlu0 %3516
        %3518 = vrot.lane.b32.xlu0 %v3423, 80
        %v3519 = vpop.permute.xlu0 %3518
        %3552 = vst.msk [vmem:[#allocation3] sm:$0xff] %vm1531, %v3457
        %3553 = vst.msk [vmem:[#allocation3 + $0x10] sm:$0xff] %vm1531, %v3459
        %3554 = vst.msk [vmem:[#allocation3 + $0x20] sm:$0xff] %vm1531, %v3461
        %3555 = vst.msk [vmem:[#allocation3 + $0x30] sm:$0xff] %vm1531, %v3463
        %3556 = vst.msk [vmem:[#allocation3 + $0x40] sm:$0xff] %vm1531, %v3465
        %3557 = vst.msk [vmem:[#allocation3 + $0x50] sm:$0xff] %vm1531, %v3467
        %3558 = vst.msk [vmem:[#allocation3 + $0x60] sm:$0xff] %vm1531, %v3469
        %3559 = vst.msk [vmem:[#allocation3 + $0x70] sm:$0xff] %vm1531, %v3471
        %3560 = vst.msk [vmem:[#allocation3 + $0x80] sm:$0xff] %vm1531, %v3473
        %3561 = vst.msk [vmem:[#allocation3 + $0x90] sm:$0xff] %vm1531, %v3475
        %3562 = vst.msk [vmem:[#allocation3 + $0xa0] sm:$0xff] %vm1531, %v3477
        %3563 = vst.msk [vmem:[#allocation3 + $0xb0] sm:$0xff] %vm1531, %v3479
        %3564 = vst.msk [vmem:[#allocation3 + $0xc0] sm:$0xff] %vm1531, %v3481
        %3565 = vst.msk [vmem:[#allocation3 + $0xd0] sm:$0xff] %vm1531, %v3483
        %3566 = vst.msk [vmem:[#allocation3 + $0xe0] sm:$0xff] %vm1531, %v3485
        %3567 = vst.msk [vmem:[#allocation3 + $0xf0] sm:$0xff] %vm1531, %v3487
        %3568 = vst.msk [vmem:[#allocation3 + $0x100] sm:$0xff] %vm1531, %v3489
        %3569 = vst.msk [vmem:[#allocation3 + $0x110] sm:$0xff] %vm1531, %v3491
        %3570 = vst.msk [vmem:[#allocation3 + $0x120] sm:$0xff] %vm1531, %v3493
        %3571 = vst.msk [vmem:[#allocation3 + $0x130] sm:$0xff] %vm1531, %v3495
        %3572 = vst.msk [vmem:[#allocation3 + $0x140] sm:$0xff] %vm1531, %v3497
        %3573 = vst.msk [vmem:[#allocation3 + $0x150] sm:$0xff] %vm1531, %v3499
        %3574 = vst.msk [vmem:[#allocation3 + $0x160] sm:$0xff] %vm1531, %v3501
        %3575 = vst.msk [vmem:[#allocation3 + $0x170] sm:$0xff] %vm1531, %v3503
        %3576 = vst.msk [vmem:[#allocation3 + $0x180] sm:$0xff] %vm1531, %v3505
        %3577 = vst.msk [vmem:[#allocation3 + $0x190] sm:$0xff] %vm1531, %v3507
        %3578 = vst.msk [vmem:[#allocation3 + $0x1a0] sm:$0xff] %vm1531, %v3509
        %3579 = vst.msk [vmem:[#allocation3 + $0x1b0] sm:$0xff] %vm1531, %v3511
        %3580 = vst.msk [vmem:[#allocation3 + $0x1c0] sm:$0xff] %vm1531, %v3513
        %3581 = vst.msk [vmem:[#allocation3 + $0x1d0] sm:$0xff] %vm1531, %v3515
        %3582 = vst.msk [vmem:[#allocation3 + $0x1e0] sm:$0xff] %vm1531, %v3517
        %3583 = vst.msk [vmem:[#allocation3 + $0x1f0] sm:$0xff] %vm1531, %v3519
        %v3584 = vld [vmem:[%s1564 + $0x7] sm:$0xff]
        %v3585 = vld [vmem:[%s1564 + $0xf] sm:$0xff]
        %v3586 = vld [vmem:[%s1564 + $0x27] sm:$0xff]
        %v3587 = vld [vmem:[%s1564 + $0x2f] sm:$0xff]
        %v3588 = vld [vmem:[%s1564 + $0x47] sm:$0xff]
        %v3589 = vld [vmem:[%s1564 + $0x4f] sm:$0xff]
        %v3590 = vld [vmem:[%s1564 + $0x67] sm:$0xff]
        %v3591 = vld [vmem:[%s1564 + $0x6f] sm:$0xff]
        %v3592 = vld [vmem:[%s1564 + $0x87] sm:$0xff]
        %v3593 = vld [vmem:[%s1564 + $0x8f] sm:$0xff]
        %v3594 = vld [vmem:[%s1564 + $0xa7] sm:$0xff]
        %v3595 = vld [vmem:[%s1564 + $0xaf] sm:$0xff]
        %v3596 = vld [vmem:[%s1564 + $0xc7] sm:$0xff]
        %v3597 = vld [vmem:[%s1564 + $0xcf] sm:$0xff]
        %v3598 = vld [vmem:[%s1564 + $0xe7] sm:$0xff]
        %v3599 = vld [vmem:[%s1564 + $0xef] sm:$0xff]
        %v3600 = vld [vmem:[%s1564 + $0x107] sm:$0xff]
        %v3601 = vld [vmem:[%s1564 + $0x10f] sm:$0xff]
        %v3602 = vld [vmem:[%s1564 + $0x127] sm:$0xff]
        %v3603 = vld [vmem:[%s1564 + $0x12f] sm:$0xff]
        %v3604 = vld [vmem:[%s1564 + $0x147] sm:$0xff]
        %v3605 = vld [vmem:[%s1564 + $0x14f] sm:$0xff]
        %v3606 = vld [vmem:[%s1564 + $0x167] sm:$0xff]
        %v3607 = vld [vmem:[%s1564 + $0x16f] sm:$0xff]
        %v3608 = vld [vmem:[%s1564 + $0x187] sm:$0xff]
        %v3609 = vld [vmem:[%s1564 + $0x18f] sm:$0xff]
        %v3610 = vld [vmem:[%s1564 + $0x1a7] sm:$0xff]
        %v3611 = vld [vmem:[%s1564 + $0x1af] sm:$0xff]
        %v3612 = vld [vmem:[%s1564 + $0x1c7] sm:$0xff]
        %v3613 = vld [vmem:[%s1564 + $0x1cf] sm:$0xff]
        %v3614 = vld [vmem:[%s1564 + $0x1e7] sm:$0xff]
        %v3615 = vld [vmem:[%s1564 + $0x1ef] sm:$0xff]
        %3648 = vrot.lane.b32.xlu0 %v3584, 96
        %v3649 = vpop.permute.xlu0 %3648
        %3650 = vrot.lane.b32.xlu0 %v3585, 96
        %v3651 = vpop.permute.xlu0 %3650
        %3652 = vrot.lane.b32.xlu0 %v3586, 96
        %v3653 = vpop.permute.xlu0 %3652
        %3654 = vrot.lane.b32.xlu0 %v3587, 96
        %v3655 = vpop.permute.xlu0 %3654
        %3656 = vrot.lane.b32.xlu0 %v3588, 96
        %v3657 = vpop.permute.xlu0 %3656
        %3658 = vrot.lane.b32.xlu0 %v3589, 96
        %v3659 = vpop.permute.xlu0 %3658
        %3660 = vrot.lane.b32.xlu0 %v3590, 96
        %v3661 = vpop.permute.xlu0 %3660
        %3662 = vrot.lane.b32.xlu0 %v3591, 96
        %v3663 = vpop.permute.xlu0 %3662
        %3664 = vrot.lane.b32.xlu0 %v3592, 96
        %v3665 = vpop.permute.xlu0 %3664
        %3666 = vrot.lane.b32.xlu0 %v3593, 96
        %v3667 = vpop.permute.xlu0 %3666
        %3668 = vrot.lane.b32.xlu0 %v3594, 96
        %v3669 = vpop.permute.xlu0 %3668
        %3670 = vrot.lane.b32.xlu0 %v3595, 96
        %v3671 = vpop.permute.xlu0 %3670
        %3672 = vrot.lane.b32.xlu0 %v3596, 96
        %v3673 = vpop.permute.xlu0 %3672
        %3674 = vrot.lane.b32.xlu0 %v3597, 96
        %v3675 = vpop.permute.xlu0 %3674
        %3676 = vrot.lane.b32.xlu0 %v3598, 96
        %v3677 = vpop.permute.xlu0 %3676
        %3678 = vrot.lane.b32.xlu0 %v3599, 96
        %v3679 = vpop.permute.xlu0 %3678
        %3680 = vrot.lane.b32.xlu0 %v3600, 96
        %v3681 = vpop.permute.xlu0 %3680
        %3682 = vrot.lane.b32.xlu0 %v3601, 96
        %v3683 = vpop.permute.xlu0 %3682
        %3684 = vrot.lane.b32.xlu0 %v3602, 96
        %v3685 = vpop.permute.xlu0 %3684
        %3686 = vrot.lane.b32.xlu0 %v3603, 96
        %v3687 = vpop.permute.xlu0 %3686
        %3688 = vrot.lane.b32.xlu0 %v3604, 96
        %v3689 = vpop.permute.xlu0 %3688
        %3690 = vrot.lane.b32.xlu0 %v3605, 96
        %v3691 = vpop.permute.xlu0 %3690
        %3692 = vrot.lane.b32.xlu0 %v3606, 96
        %v3693 = vpop.permute.xlu0 %3692
        %3694 = vrot.lane.b32.xlu0 %v3607, 96
        %v3695 = vpop.permute.xlu0 %3694
        %3696 = vrot.lane.b32.xlu0 %v3608, 96
        %v3697 = vpop.permute.xlu0 %3696
        %3698 = vrot.lane.b32.xlu0 %v3609, 96
        %v3699 = vpop.permute.xlu0 %3698
        %3700 = vrot.lane.b32.xlu0 %v3610, 96
        %v3701 = vpop.permute.xlu0 %3700
        %3702 = vrot.lane.b32.xlu0 %v3611, 96
        %v3703 = vpop.permute.xlu0 %3702
        %3704 = vrot.lane.b32.xlu0 %v3612, 96
        %v3705 = vpop.permute.xlu0 %3704
        %3706 = vrot.lane.b32.xlu0 %v3613, 96
        %v3707 = vpop.permute.xlu0 %3706
        %3708 = vrot.lane.b32.xlu0 %v3614, 96
        %v3709 = vpop.permute.xlu0 %3708
        %3710 = vrot.lane.b32.xlu0 %v3615, 96
        %v3711 = vpop.permute.xlu0 %3710
        %3744 = vst.msk [vmem:[#allocation3] sm:$0xff] %vm1725, %v3649
        %3745 = vst.msk [vmem:[#allocation3 + $0x10] sm:$0xff] %vm1725, %v3651
        %3746 = vst.msk [vmem:[#allocation3 + $0x20] sm:$0xff] %vm1725, %v3653
        %3747 = vst.msk [vmem:[#allocation3 + $0x30] sm:$0xff] %vm1725, %v3655
        %3748 = vst.msk [vmem:[#allocation3 + $0x40] sm:$0xff] %vm1725, %v3657
        %3749 = vst.msk [vmem:[#allocation3 + $0x50] sm:$0xff] %vm1725, %v3659
        %3750 = vst.msk [vmem:[#allocation3 + $0x60] sm:$0xff] %vm1725, %v3661
        %3751 = vst.msk [vmem:[#allocation3 + $0x70] sm:$0xff] %vm1725, %v3663
        %3752 = vst.msk [vmem:[#allocation3 + $0x80] sm:$0xff] %vm1725, %v3665
        %3753 = vst.msk [vmem:[#allocation3 + $0x90] sm:$0xff] %vm1725, %v3667
        %3754 = vst.msk [vmem:[#allocation3 + $0xa0] sm:$0xff] %vm1725, %v3669
        %3755 = vst.msk [vmem:[#allocation3 + $0xb0] sm:$0xff] %vm1725, %v3671
        %3756 = vst.msk [vmem:[#allocation3 + $0xc0] sm:$0xff] %vm1725, %v3673
        %3757 = vst.msk [vmem:[#allocation3 + $0xd0] sm:$0xff] %vm1725, %v3675
        %3758 = vst.msk [vmem:[#allocation3 + $0xe0] sm:$0xff] %vm1725, %v3677
        %3759 = vst.msk [vmem:[#allocation3 + $0xf0] sm:$0xff] %vm1725, %v3679
        %3760 = vst.msk [vmem:[#allocation3 + $0x100] sm:$0xff] %vm1725, %v3681
        %3761 = vst.msk [vmem:[#allocation3 + $0x110] sm:$0xff] %vm1725, %v3683
        %3762 = vst.msk [vmem:[#allocation3 + $0x120] sm:$0xff] %vm1725, %v3685
        %3763 = vst.msk [vmem:[#allocation3 + $0x130] sm:$0xff] %vm1725, %v3687
        %3764 = vst.msk [vmem:[#allocation3 + $0x140] sm:$0xff] %vm1725, %v3689
        %3765 = vst.msk [vmem:[#allocation3 + $0x150] sm:$0xff] %vm1725, %v3691
        %3766 = vst.msk [vmem:[#allocation3 + $0x160] sm:$0xff] %vm1725, %v3693
        %3767 = vst.msk [vmem:[#allocation3 + $0x170] sm:$0xff] %vm1725, %v3695
        %3768 = vst.msk [vmem:[#allocation3 + $0x180] sm:$0xff] %vm1725, %v3697
        %3769 = vst.msk [vmem:[#allocation3 + $0x190] sm:$0xff] %vm1725, %v3699
        %3770 = vst.msk [vmem:[#allocation3 + $0x1a0] sm:$0xff] %vm1725, %v3701
        %3771 = vst.msk [vmem:[#allocation3 + $0x1b0] sm:$0xff] %vm1725, %v3703
        %3772 = vst.msk [vmem:[#allocation3 + $0x1c0] sm:$0xff] %vm1725, %v3705
        %3773 = vst.msk [vmem:[#allocation3 + $0x1d0] sm:$0xff] %vm1725, %v3707
        %3774 = vst.msk [vmem:[#allocation3 + $0x1e0] sm:$0xff] %vm1725, %v3709
        %3775 = vst.msk [vmem:[#allocation3 + $0x1f0] sm:$0xff] %vm1725, %v3711
        %v3776 = vld [vmem:[%s1564 + $0x8] sm:$0xff]
        %v3777 = vld [vmem:[%s1564 + $0x10] sm:$0xff]
        %v3778 = vld [vmem:[%s1564 + $0x28] sm:$0xff]
        %v3779 = vld [vmem:[%s1564 + $0x30] sm:$0xff]
        %v3780 = vld [vmem:[%s1564 + $0x48] sm:$0xff]
        %v3781 = vld [vmem:[%s1564 + $0x50] sm:$0xff]
        %v3782 = vld [vmem:[%s1564 + $0x68] sm:$0xff]
        %v3783 = vld [vmem:[%s1564 + $0x70] sm:$0xff]
        %v3784 = vld [vmem:[%s1564 + $0x88] sm:$0xff]
        %v3785 = vld [vmem:[%s1564 + $0x90] sm:$0xff]
        %v3786 = vld [vmem:[%s1564 + $0xa8] sm:$0xff]
        %v3787 = vld [vmem:[%s1564 + $0xb0] sm:$0xff]
        %v3788 = vld [vmem:[%s1564 + $0xc8] sm:$0xff]
        %v3789 = vld [vmem:[%s1564 + $0xd0] sm:$0xff]
        %v3790 = vld [vmem:[%s1564 + $0xe8] sm:$0xff]
        %v3791 = vld [vmem:[%s1564 + $0xf0] sm:$0xff]
        %v3792 = vld [vmem:[%s1564 + $0x108] sm:$0xff]
        %v3793 = vld [vmem:[%s1564 + $0x110] sm:$0xff]
        %v3794 = vld [vmem:[%s1564 + $0x128] sm:$0xff]
        %v3795 = vld [vmem:[%s1564 + $0x130] sm:$0xff]
        %v3796 = vld [vmem:[%s1564 + $0x148] sm:$0xff]
        %v3797 = vld [vmem:[%s1564 + $0x150] sm:$0xff]
        %v3798 = vld [vmem:[%s1564 + $0x168] sm:$0xff]
        %v3799 = vld [vmem:[%s1564 + $0x170] sm:$0xff]
        %v3800 = vld [vmem:[%s1564 + $0x188] sm:$0xff]
        %v3801 = vld [vmem:[%s1564 + $0x190] sm:$0xff]
        %v3802 = vld [vmem:[%s1564 + $0x1a8] sm:$0xff]
        %v3803 = vld [vmem:[%s1564 + $0x1b0] sm:$0xff]
        %v3804 = vld [vmem:[%s1564 + $0x1c8] sm:$0xff]
        %v3805 = vld [vmem:[%s1564 + $0x1d0] sm:$0xff]
        %v3806 = vld [vmem:[%s1564 + $0x1e8] sm:$0xff]
        %v3807 = vld [vmem:[%s1564 + $0x1f0] sm:$0xff]
        %3840 = vrot.lane.b32.xlu0 %v3776, 112
        %v3841 = vpop.permute.xlu0 %3840
        %3842 = vrot.lane.b32.xlu0 %v3777, 112
        %v3843 = vpop.permute.xlu0 %3842
        %3844 = vrot.lane.b32.xlu0 %v3778, 112
        %v3845 = vpop.permute.xlu0 %3844
        %3846 = vrot.lane.b32.xlu0 %v3779, 112
        %v3847 = vpop.permute.xlu0 %3846
        %3848 = vrot.lane.b32.xlu0 %v3780, 112
        %v3849 = vpop.permute.xlu0 %3848
        %3850 = vrot.lane.b32.xlu0 %v3781, 112
        %v3851 = vpop.permute.xlu0 %3850
        %3852 = vrot.lane.b32.xlu0 %v3782, 112
        %v3853 = vpop.permute.xlu0 %3852
        %3854 = vrot.lane.b32.xlu0 %v3783, 112
        %v3855 = vpop.permute.xlu0 %3854
        %3856 = vrot.lane.b32.xlu0 %v3784, 112
        %v3857 = vpop.permute.xlu0 %3856
        %3858 = vrot.lane.b32.xlu0 %v3785, 112
        %v3859 = vpop.permute.xlu0 %3858
        %3860 = vrot.lane.b32.xlu0 %v3786, 112
        %v3861 = vpop.permute.xlu0 %3860
        %3862 = vrot.lane.b32.xlu0 %v3787, 112
        %v3863 = vpop.permute.xlu0 %3862
        %3864 = vrot.lane.b32.xlu0 %v3788, 112
        %v3865 = vpop.permute.xlu0 %3864
        %3866 = vrot.lane.b32.xlu0 %v3789, 112
        %v3867 = vpop.permute.xlu0 %3866
        %3868 = vrot.lane.b32.xlu0 %v3790, 112
        %v3869 = vpop.permute.xlu0 %3868
        %3870 = vrot.lane.b32.xlu0 %v3791, 112
        %v3871 = vpop.permute.xlu0 %3870
        %3872 = vrot.lane.b32.xlu0 %v3792, 112
        %v3873 = vpop.permute.xlu0 %3872
        %3874 = vrot.lane.b32.xlu0 %v3793, 112
        %v3875 = vpop.permute.xlu0 %3874
        %3876 = vrot.lane.b32.xlu0 %v3794, 112
        %v3877 = vpop.permute.xlu0 %3876
        %3878 = vrot.lane.b32.xlu0 %v3795, 112
        %v3879 = vpop.permute.xlu0 %3878
        %3880 = vrot.lane.b32.xlu0 %v3796, 112
        %v3881 = vpop.permute.xlu0 %3880
        %3882 = vrot.lane.b32.xlu0 %v3797, 112
        %v3883 = vpop.permute.xlu0 %3882
        %3884 = vrot.lane.b32.xlu0 %v3798, 112
        %v3885 = vpop.permute.xlu0 %3884
        %3886 = vrot.lane.b32.xlu0 %v3799, 112
        %v3887 = vpop.permute.xlu0 %3886
        %3888 = vrot.lane.b32.xlu0 %v3800, 112
        %v3889 = vpop.permute.xlu0 %3888
        %3890 = vrot.lane.b32.xlu0 %v3801, 112
        %v3891 = vpop.permute.xlu0 %3890
        %3892 = vrot.lane.b32.xlu0 %v3802, 112
        %v3893 = vpop.permute.xlu0 %3892
        %3894 = vrot.lane.b32.xlu0 %v3803, 112
        %v3895 = vpop.permute.xlu0 %3894
        %3896 = vrot.lane.b32.xlu0 %v3804, 112
        %v3897 = vpop.permute.xlu0 %3896
        %3898 = vrot.lane.b32.xlu0 %v3805, 112
        %v3899 = vpop.permute.xlu0 %3898
        %3900 = vrot.lane.b32.xlu0 %v3806, 112
        %v3901 = vpop.permute.xlu0 %3900
        %3902 = vrot.lane.b32.xlu0 %v3807, 112
        %v3903 = vpop.permute.xlu0 %3902
        %3936 = vst.msk [vmem:[#allocation3] sm:$0xff] %vm1918, %v3841
        %3937 = vst.msk [vmem:[#allocation3 + $0x10] sm:$0xff] %vm1918, %v3843
        %3938 = vst.msk [vmem:[#allocation3 + $0x20] sm:$0xff] %vm1918, %v3845
        %3939 = vst.msk [vmem:[#allocation3 + $0x30] sm:$0xff] %vm1918, %v3847
        %3940 = vst.msk [vmem:[#allocation3 + $0x40] sm:$0xff] %vm1918, %v3849
        %3941 = vst.msk [vmem:[#allocation3 + $0x50] sm:$0xff] %vm1918, %v3851
        %3942 = vst.msk [vmem:[#allocation3 + $0x60] sm:$0xff] %vm1918, %v3853
        %3943 = vst.msk [vmem:[#allocation3 + $0x70] sm:$0xff] %vm1918, %v3855
        %3944 = vst.msk [vmem:[#allocation3 + $0x80] sm:$0xff] %vm1918, %v3857
        %3945 = vst.msk [vmem:[#allocation3 + $0x90] sm:$0xff] %vm1918, %v3859
        %3946 = vst.msk [vmem:[#allocation3 + $0xa0] sm:$0xff] %vm1918, %v3861
        %3947 = vst.msk [vmem:[#allocation3 + $0xb0] sm:$0xff] %vm1918, %v3863
        %3948 = vst.msk [vmem:[#allocation3 + $0xc0] sm:$0xff] %vm1918, %v3865
        %3949 = vst.msk [vmem:[#allocation3 + $0xd0] sm:$0xff] %vm1918, %v3867
        %3950 = vst.msk [vmem:[#allocation3 + $0xe0] sm:$0xff] %vm1918, %v3869
        %3951 = vst.msk [vmem:[#allocation3 + $0xf0] sm:$0xff] %vm1918, %v3871
        %3952 = vst.msk [vmem:[#allocation3 + $0x100] sm:$0xff] %vm1918, %v3873
        %3953 = vst.msk [vmem:[#allocation3 + $0x110] sm:$0xff] %vm1918, %v3875
        %3954 = vst.msk [vmem:[#allocation3 + $0x120] sm:$0xff] %vm1918, %v3877
        %3955 = vst.msk [vmem:[#allocation3 + $0x130] sm:$0xff] %vm1918, %v3879
        %3956 = vst.msk [vmem:[#allocation3 + $0x140] sm:$0xff] %vm1918, %v3881
        %3957 = vst.msk [vmem:[#allocation3 + $0x150] sm:$0xff] %vm1918, %v3883
        %3958 = vst.msk [vmem:[#allocation3 + $0x160] sm:$0xff] %vm1918, %v3885
        %3959 = vst.msk [vmem:[#allocation3 + $0x170] sm:$0xff] %vm1918, %v3887
        %3960 = vst.msk [vmem:[#allocation3 + $0x180] sm:$0xff] %vm1918, %v3889
        %3961 = vst.msk [vmem:[#allocation3 + $0x190] sm:$0xff] %vm1918, %v3891
        %3962 = vst.msk [vmem:[#allocation3 + $0x1a0] sm:$0xff] %vm1918, %v3893
        %3963 = vst.msk [vmem:[#allocation3 + $0x1b0] sm:$0xff] %vm1918, %v3895
        %3964 = vst.msk [vmem:[#allocation3 + $0x1c0] sm:$0xff] %vm1918, %v3897
        %3965 = vst.msk [vmem:[#allocation3 + $0x1d0] sm:$0xff] %vm1918, %v3899
        %3966 = vst.msk [vmem:[#allocation3 + $0x1e0] sm:$0xff] %vm1918, %v3901
        %3967 = vst.msk [vmem:[#allocation3 + $0x1f0] sm:$0xff] %vm1918, %v3903
        %v3968 = vld [vmem:[%s1564 + $0x9] sm:$0xff]
        %v3969 = vld [vmem:[%s1564 + $0x11] sm:$0xff]
        %v3970 = vld [vmem:[%s1564 + $0x29] sm:$0xff]
        %v3971 = vld [vmem:[%s1564 + $0x31] sm:$0xff]
        %v3972 = vld [vmem:[%s1564 + $0x49] sm:$0xff]
        %v3973 = vld [vmem:[%s1564 + $0x51] sm:$0xff]
        %v3974 = vld [vmem:[%s1564 + $0x69] sm:$0xff]
        %v3975 = vld [vmem:[%s1564 + $0x71] sm:$0xff]
        %v3976 = vld [vmem:[%s1564 + $0x89] sm:$0xff]
        %v3977 = vld [vmem:[%s1564 + $0x91] sm:$0xff]
        %v3978 = vld [vmem:[%s1564 + $0xa9] sm:$0xff]
        %v3979 = vld [vmem:[%s1564 + $0xb1] sm:$0xff]
        %v3980 = vld [vmem:[%s1564 + $0xc9] sm:$0xff]
        %v3981 = vld [vmem:[%s1564 + $0xd1] sm:$0xff]
        %v3982 = vld [vmem:[%s1564 + $0xe9] sm:$0xff]
        %v3983 = vld [vmem:[%s1564 + $0xf1] sm:$0xff]
        %v3984 = vld [vmem:[%s1564 + $0x109] sm:$0xff]
        %v3985 = vld [vmem:[%s1564 + $0x111] sm:$0xff]
        %v3986 = vld [vmem:[%s1564 + $0x129] sm:$0xff]
        %v3987 = vld [vmem:[%s1564 + $0x131] sm:$0xff]
        %v3988 = vld [vmem:[%s1564 + $0x149] sm:$0xff]
        %v3989 = vld [vmem:[%s1564 + $0x151] sm:$0xff]
        %v3990 = vld [vmem:[%s1564 + $0x169] sm:$0xff]
        %v3991 = vld [vmem:[%s1564 + $0x171] sm:$0xff]
        %v3992 = vld [vmem:[%s1564 + $0x189] sm:$0xff]
        %v3993 = vld [vmem:[%s1564 + $0x191] sm:$0xff]
        %v3994 = vld [vmem:[%s1564 + $0x1a9] sm:$0xff]
        %v3995 = vld [vmem:[%s1564 + $0x1b1] sm:$0xff]
        %v3996 = vld [vmem:[%s1564 + $0x1c9] sm:$0xff]
        %v3997 = vld [vmem:[%s1564 + $0x1d1] sm:$0xff]
        %v3998 = vld [vmem:[%s1564 + $0x1e9] sm:$0xff]
        %v3999 = vld [vmem:[%s1564 + $0x1f1] sm:$0xff]
        %4000 = vst.msk [vmem:[#allocation3 + $0x8] sm:$0xff] %vm371, %v3968
        %4001 = vst.msk [vmem:[#allocation3 + $0x18] sm:$0xff] %vm371, %v3969
        %4002 = vst.msk [vmem:[#allocation3 + $0x28] sm:$0xff] %vm371, %v3970
        %4003 = vst.msk [vmem:[#allocation3 + $0x38] sm:$0xff] %vm371, %v3971
        %4004 = vst.msk [vmem:[#allocation3 + $0x48] sm:$0xff] %vm371, %v3972
        %4005 = vst.msk [vmem:[#allocation3 + $0x58] sm:$0xff] %vm371, %v3973
        %4006 = vst.msk [vmem:[#allocation3 + $0x68] sm:$0xff] %vm371, %v3974
        %4007 = vst.msk [vmem:[#allocation3 + $0x78] sm:$0xff] %vm371, %v3975
        %4008 = vst.msk [vmem:[#allocation3 + $0x88] sm:$0xff] %vm371, %v3976
        %4009 = vst.msk [vmem:[#allocation3 + $0x98] sm:$0xff] %vm371, %v3977
        %4010 = vst.msk [vmem:[#allocation3 + $0xa8] sm:$0xff] %vm371, %v3978
        %4011 = vst.msk [vmem:[#allocation3 + $0xb8] sm:$0xff] %vm371, %v3979
        %4012 = vst.msk [vmem:[#allocation3 + $0xc8] sm:$0xff] %vm371, %v3980
        %4013 = vst.msk [vmem:[#allocation3 + $0xd8] sm:$0xff] %vm371, %v3981
        %4014 = vst.msk [vmem:[#allocation3 + $0xe8] sm:$0xff] %vm371, %v3982
        %4015 = vst.msk [vmem:[#allocation3 + $0xf8] sm:$0xff] %vm371, %v3983
        %4016 = vst.msk [vmem:[#allocation3 + $0x108] sm:$0xff] %vm371, %v3984
        %4017 = vst.msk [vmem:[#allocation3 + $0x118] sm:$0xff] %vm371, %v3985
        %4018 = vst.msk [vmem:[#allocation3 + $0x128] sm:$0xff] %vm371, %v3986
        %4019 = vst.msk [vmem:[#allocation3 + $0x138] sm:$0xff] %vm371, %v3987
        %4020 = vst.msk [vmem:[#allocation3 + $0x148] sm:$0xff] %vm371, %v3988
        %4021 = vst.msk [vmem:[#allocation3 + $0x158] sm:$0xff] %vm371, %v3989
        %4022 = vst.msk [vmem:[#allocation3 + $0x168] sm:$0xff] %vm371, %v3990
        %4023 = vst.msk [vmem:[#allocation3 + $0x178] sm:$0xff] %vm371, %v3991
        %4024 = vst.msk [vmem:[#allocation3 + $0x188] sm:$0xff] %vm371, %v3992
        %4025 = vst.msk [vmem:[#allocation3 + $0x198] sm:$0xff] %vm371, %v3993
        %4026 = vst.msk [vmem:[#allocation3 + $0x1a8] sm:$0xff] %vm371, %v3994
        %4027 = vst.msk [vmem:[#allocation3 + $0x1b8] sm:$0xff] %vm371, %v3995
        %4028 = vst.msk [vmem:[#allocation3 + $0x1c8] sm:$0xff] %vm371, %v3996
        %4029 = vst.msk [vmem:[#allocation3 + $0x1d8] sm:$0xff] %vm371, %v3997
        %4030 = vst.msk [vmem:[#allocation3 + $0x1e8] sm:$0xff] %vm371, %v3998
        %4031 = vst.msk [vmem:[#allocation3 + $0x1f8] sm:$0xff] %vm371, %v3999
        %v4032 = vld [vmem:[#allocation3] sm:$0xff]
        %v4033 = vld [vmem:[#allocation3 + $0x8] sm:$0xff]
        %v4034 = vld [vmem:[#allocation3 + $0x10] sm:$0xff]
        %v4035 = vld [vmem:[#allocation3 + $0x18] sm:$0xff]
        %v4036 = vld [vmem:[#allocation3 + $0x20] sm:$0xff]
        %v4037 = vld [vmem:[#allocation3 + $0x28] sm:$0xff]
        %v4038 = vld [vmem:[#allocation3 + $0x30] sm:$0xff]
        %v4039 = vld [vmem:[#allocation3 + $0x38] sm:$0xff]
        %v4040 = vld [vmem:[#allocation3 + $0x40] sm:$0xff]
        %v4041 = vld [vmem:[#allocation3 + $0x48] sm:$0xff]
        %v4042 = vld [vmem:[#allocation3 + $0x50] sm:$0xff]
        %v4043 = vld [vmem:[#allocation3 + $0x58] sm:$0xff]
        %v4044 = vld [vmem:[#allocation3 + $0x60] sm:$0xff]
        %v4045 = vld [vmem:[#allocation3 + $0x68] sm:$0xff]
        %v4046 = vld [vmem:[#allocation3 + $0x70] sm:$0xff]
        %v4047 = vld [vmem:[#allocation3 + $0x78] sm:$0xff]
        %v4048 = vld [vmem:[#allocation3 + $0x80] sm:$0xff]
        %v4049 = vld [vmem:[#allocation3 + $0x88] sm:$0xff]
        %v4050 = vld [vmem:[#allocation3 + $0x90] sm:$0xff]
        %v4051 = vld [vmem:[#allocation3 + $0x98] sm:$0xff]
        %v4052 = vld [vmem:[#allocation3 + $0xa0] sm:$0xff]
        %v4053 = vld [vmem:[#allocation3 + $0xa8] sm:$0xff]
        %v4054 = vld [vmem:[#allocation3 + $0xb0] sm:$0xff]
        %v4055 = vld [vmem:[#allocation3 + $0xb8] sm:$0xff]
        %v4056 = vld [vmem:[#allocation3 + $0xc0] sm:$0xff]
        %v4057 = vld [vmem:[#allocation3 + $0xc8] sm:$0xff]
        %v4058 = vld [vmem:[#allocation3 + $0xd0] sm:$0xff]
        %v4059 = vld [vmem:[#allocation3 + $0xd8] sm:$0xff]
        %v4060 = vld [vmem:[#allocation3 + $0xe0] sm:$0xff]
        %v4061 = vld [vmem:[#allocation3 + $0xe8] sm:$0xff]
        %v4062 = vld [vmem:[#allocation3 + $0xf0] sm:$0xff]
        %v4063 = vld [vmem:[#allocation3 + $0xf8] sm:$0xff]
        %v4064 = vld [vmem:[#allocation3 + $0x100] sm:$0xff]
        %v4065 = vld [vmem:[#allocation3 + $0x108] sm:$0xff]
        %v4066 = vld [vmem:[#allocation3 + $0x110] sm:$0xff]
        %v4067 = vld [vmem:[#allocation3 + $0x118] sm:$0xff]
        %v4068 = vld [vmem:[#allocation3 + $0x120] sm:$0xff]
        %v4069 = vld [vmem:[#allocation3 + $0x128] sm:$0xff]
        %v4070 = vld [vmem:[#allocation3 + $0x130] sm:$0xff]
        %v4071 = vld [vmem:[#allocation3 + $0x138] sm:$0xff]
        %v4072 = vld [vmem:[#allocation3 + $0x140] sm:$0xff]
        %v4073 = vld [vmem:[#allocation3 + $0x148] sm:$0xff]
        %v4074 = vld [vmem:[#allocation3 + $0x150] sm:$0xff]
        %v4075 = vld [vmem:[#allocation3 + $0x158] sm:$0xff]
        %v4076 = vld [vmem:[#allocation3 + $0x160] sm:$0xff]
        %v4077 = vld [vmem:[#allocation3 + $0x168] sm:$0xff]
        %v4078 = vld [vmem:[#allocation3 + $0x170] sm:$0xff]
        %v4079 = vld [vmem:[#allocation3 + $0x178] sm:$0xff]
        %v4080 = vld [vmem:[#allocation3 + $0x180] sm:$0xff]
        %v4081 = vld [vmem:[#allocation3 + $0x188] sm:$0xff]
        %v4082 = vld [vmem:[#allocation3 + $0x190] sm:$0xff]
        %v4083 = vld [vmem:[#allocation3 + $0x198] sm:$0xff]
        %v4084 = vld [vmem:[#allocation3 + $0x1a0] sm:$0xff]
        %v4085 = vld [vmem:[#allocation3 + $0x1a8] sm:$0xff]
        %v4086 = vld [vmem:[#allocation3 + $0x1b0] sm:$0xff]
        %v4087 = vld [vmem:[#allocation3 + $0x1b8] sm:$0xff]
        %v4088 = vld [vmem:[#allocation3 + $0x1c0] sm:$0xff]
        %v4089 = vld [vmem:[#allocation3 + $0x1c8] sm:$0xff]
        %v4090 = vld [vmem:[#allocation3 + $0x1d0] sm:$0xff]
        %v4091 = vld [vmem:[#allocation3 + $0x1d8] sm:$0xff]
        %v4092 = vld [vmem:[#allocation3 + $0x1e0] sm:$0xff]
        %v4093 = vld [vmem:[#allocation3 + $0x1e8] sm:$0xff]
        %v4094 = vld [vmem:[#allocation3 + $0x1f0] sm:$0xff]
        %v4095 = vld [vmem:[#allocation3 + $0x1f8] sm:$0xff]
        %v4096 = vld [vmem:[%s4] sm:$0xff]
        %v4097 = vld [vmem:[%s4 + $0x8] sm:$0xff]
        %v4098 = vld [vmem:[%s4 + $0x10] sm:$0xff]
        %v4099 = vld [vmem:[%s4 + $0x18] sm:$0xff]
        %v4100 = vld [vmem:[%s4 + $0x20] sm:$0xff]
        %v4101 = vld [vmem:[%s4 + $0x28] sm:$0xff]
        %v4102 = vld [vmem:[%s4 + $0x30] sm:$0xff]
        %v4103 = vld [vmem:[%s4 + $0x38] sm:$0xff]
        %v4104 = vld [vmem:[%s4 + $0x40] sm:$0xff]
        %v4105 = vld [vmem:[%s4 + $0x48] sm:$0xff]
        %v4106 = vld [vmem:[%s4 + $0x50] sm:$0xff]
        %v4107 = vld [vmem:[%s4 + $0x58] sm:$0xff]
        %v4108 = vld [vmem:[%s4 + $0x60] sm:$0xff]
        %v4109 = vld [vmem:[%s4 + $0x68] sm:$0xff]
        %v4110 = vld [vmem:[%s4 + $0x70] sm:$0xff]
        %v4111 = vld [vmem:[%s4 + $0x78] sm:$0xff]
        %v4112 = vld [vmem:[%s4 + $0x80] sm:$0xff]
        %v4113 = vld [vmem:[%s4 + $0x88] sm:$0xff]
        %v4115 = vsel %vm371, %v4033, 0
        %v4118 = vsel %vm371, %v4035, 0
        %v4121 = vsel %vm371, %v4037, 0
        %v4124 = vsel %vm371, %v4039, 0
        %v4127 = vsel %vm371, %v4041, 0
        %v4130 = vsel %vm371, %v4043, 0
        %v4133 = vsel %vm371, %v4045, 0
        %v4136 = vsel %vm371, %v4047, 0
        %v4139 = vsel %vm371, %v4049, 0
        %v4142 = vsel %vm371, %v4051, 0
        %v4145 = vsel %vm371, %v4053, 0
        %v4148 = vsel %vm371, %v4055, 0
        %v4151 = vsel %vm371, %v4057, 0
        %v4154 = vsel %vm371, %v4059, 0
        %v4157 = vsel %vm371, %v4061, 0
        %v4160 = vsel %vm371, %v4063, 0
        %v4163 = vsel %vm371, %v4065, 0
        %v4166 = vsel %vm371, %v4067, 0
        %v4169 = vsel %vm371, %v4069, 0
        %v4172 = vsel %vm371, %v4071, 0
        %v4175 = vsel %vm371, %v4073, 0
        %v4178 = vsel %vm371, %v4075, 0
        %v4181 = vsel %vm371, %v4077, 0
        %v4184 = vsel %vm371, %v4079, 0
        %v4187 = vsel %vm371, %v4081, 0
        %v4190 = vsel %vm371, %v4083, 0
        %v4193 = vsel %vm371, %v4085, 0
        %v4196 = vsel %vm371, %v4087, 0
        %v4199 = vsel %vm371, %v4089, 0
        %v4202 = vsel %vm371, %v4091, 0
        %v4205 = vsel %vm371, %v4093, 0
        %v4208 = vsel %vm371, %v4095, 0
        %4210 = vmatprep.subr.mxu0 0.0
        %4211 = vmatpush1.msra.mxu0 %v4096
        %4212 = vmatprep.subr.mxu0 0.0
        %4213 = vmatpush1.msra.mxu0 %v4097
        %4214 = vmatprep.subr.mxu0 0.0
        %4215 = vmatpush1.msra.mxu0 %v4098
        %4216 = vmatprep.subr.mxu0 0.0
        %4217 = vmatpush1.msra.mxu0 %v4099
        %4218 = vmatprep.subr.mxu0 0.0
        %4219 = vmatpush1.msra.mxu0 %v4100
        %4220 = vmatprep.subr.mxu0 0.0
        %4221 = vmatpush1.msra.mxu0 %v4101
        %4222 = vmatprep.subr.mxu0 0.0
        %4223 = vmatpush1.msra.mxu0 %v4102
        %4224 = vmatprep.subr.mxu0 0.0
        %4225 = vmatpush1.msra.mxu0 %v4103
        %4226 = vmatprep.subr.mxu0 0.0
        %4227 = vmatpush1.msra.mxu0 %v4104
        %4228 = vmatprep.subr.mxu0 0.0
        %4229 = vmatpush1.msra.mxu0 %v4105
        %4230 = vmatprep.subr.mxu0 0.0
        %4231 = vmatpush1.msra.mxu0 %v4106
        %4232 = vmatprep.subr.mxu0 0.0
        %4233 = vmatpush1.msra.mxu0 %v4107
        %4234 = vmatprep.subr.mxu0 0.0
        %4235 = vmatpush1.msra.mxu0 %v4108
        %4236 = vmatprep.subr.mxu0 0.0
        %4237 = vmatpush1.msra.mxu0 %v4109
        %4238 = vmatprep.subr.mxu0 0.0
        %4239 = vmatpush1.msra.mxu0 %v4110
        %4240 = vmatprep.subr.mxu0 0.0
        %4241 = vmatpush1.msra.mxu0 %v4111
        %4242 = vmatprep.subr.mxu0 0.0
        %4243 = vmatpush1.msra.mxu0 %v4112
        %4244 = vmatprep.subr.mxu0 0.0
        %4245 = vmatpush1.msra.mxu0 %v4113
        %4246 = vmatprep.subr.mxu0 0.0
        %4247 = vmatpush1.msra.mxu0 0.0
        %4248 = vmatprep.subr.mxu0 0.0
        %4249 = vmatpush1.msra.mxu0 0.0
        %4250 = vmatprep.subr.mxu0 0.0
        %4251 = vmatpush1.msra.mxu0 0.0
        %4252 = vmatprep.subr.mxu0 0.0
        %4253 = vmatpush1.msra.mxu0 0.0
        %4254 = vmatprep.subr.mxu0 0.0
        %4255 = vmatpush1.msra.mxu0 0.0
        %4256 = vmatprep.subr.mxu0 0.0
        %4257 = vmatpush1.msra.mxu0 0.0
        %4258 = vmatprep.subr.mxu0 0.0
        %4259 = vmatpush1.msra.mxu0 0.0
        %4260 = vmatprep.subr.mxu0 0.0
        %4261 = vmatpush1.msra.mxu0 0.0
        %4262 = vmatprep.subr.mxu0 0.0
        %4263 = vmatpush1.msra.mxu0 0.0
        %4264 = vmatprep.subr.mxu0 0.0
        %4265 = vmatpush1.msra.mxu0 0.0
        %4266 = vmatprep.subr.mxu0 0.0
        %4267 = vmatpush1.msra.mxu0 0.0
        %4268 = vmatprep.subr.mxu0 0.0
        %4269 = vmatpush1.msra.mxu0 0.0
        %4270 = vmatprep.subr.mxu0 0.0
        %4271 = vmatpush1.msra.mxu0 0.0
        %4272 = vmatprep.subr.mxu0 0.0
        %4273 = vmatpush1.msra.mxu0 0.0
        %4274 = vmatprep.mubr.f32.mxu0 %v4115
        %4275 = vmatmul.mubr.f32.gmra.mrb[0].mxu0 %v4032
        %v4276 = vpop.f32.mrb[0].mxu0
        %v4277 = vadd.f32 0.0, %v4276
        %v4278 = vpop.f32.mrb[0].mxu0
        %4279 = vmatprep.mubr.f32.mxu0 %v4118
        %4280 = vmatmul.mubr.f32.gmra.mrb[0].mxu0 %v4034
        %v4281 = vpop.f32.mrb[0].mxu0
        %v4282 = vadd.f32 0.0, %v4281
        %v4283 = vpop.f32.mrb[0].mxu0
        %4284 = vmatprep.mubr.f32.mxu0 %v4121
        %4285 = vmatmul.mubr.f32.gmra.mrb[0].mxu0 %v4036
        %v4286 = vpop.f32.mrb[0].mxu0
        %v4287 = vadd.f32 0.0, %v4286
        %v4288 = vpop.f32.mrb[0].mxu0
        %4289 = vmatprep.mubr.f32.mxu0 %v4124
        %4290 = vmatmul.mubr.f32.gmra.mrb[0].mxu0 %v4038
        %v4291 = vpop.f32.mrb[0].mxu0
        %v4292 = vadd.f32 0.0, %v4291
        %v4293 = vpop.f32.mrb[0].mxu0
        %4294 = vmatprep.mubr.f32.mxu0 %v4127
        %4295 = vmatmul.mubr.f32.gmra.mrb[0].mxu0 %v4040
        %v4296 = vpop.f32.mrb[0].mxu0
        %v4297 = vadd.f32 0.0, %v4296
        %v4298 = vpop.f32.mrb[0].mxu0
        %4299 = vmatprep.mubr.f32.mxu0 %v4130
        %4300 = vmatmul.mubr.f32.gmra.mrb[0].mxu0 %v4042
        %v4301 = vpop.f32.mrb[0].mxu0
        %v4302 = vadd.f32 0.0, %v4301
        %v4303 = vpop.f32.mrb[0].mxu0
        %4304 = vmatprep.mubr.f32.mxu0 %v4133
        %4305 = vmatmul.mubr.f32.gmra.mrb[0].mxu0 %v4044
        %v4306 = vpop.f32.mrb[0].mxu0
        %v4307 = vadd.f32 0.0, %v4306
        %v4308 = vpop.f32.mrb[0].mxu0
        %4309 = vmatprep.mubr.f32.mxu0 %v4136
        %4310 = vmatmul.mubr.f32.gmra.mrb[0].mxu0 %v4046
        %v4311 = vpop.f32.mrb[0].mxu0
        %v4312 = vadd.f32 0.0, %v4311
        %v4313 = vpop.f32.mrb[0].mxu0
        %4314 = vmatprep.mubr.f32.mxu0 %v4139
        %4315 = vmatmul.mubr.f32.gmra.mrb[0].mxu0 %v4048
        %v4316 = vpop.f32.mrb[0].mxu0
        %v4317 = vadd.f32 0.0, %v4316
        %v4318 = vpop.f32.mrb[0].mxu0
        %4319 = vmatprep.mubr.f32.mxu0 %v4142
        %4320 = vmatmul.mubr.f32.gmra.mrb[0].mxu0 %v4050
        %v4321 = vpop.f32.mrb[0].mxu0
        %v4322 = vadd.f32 0.0, %v4321
        %v4323 = vpop.f32.mrb[0].mxu0
        %4324 = vmatprep.mubr.f32.mxu0 %v4145
        %4325 = vmatmul.mubr.f32.gmra.mrb[0].mxu0 %v4052
        %v4326 = vpop.f32.mrb[0].mxu0
        %v4327 = vadd.f32 0.0, %v4326
        %v4328 = vpop.f32.mrb[0].mxu0
        %4329 = vmatprep.mubr.f32.mxu0 %v4148
        %4330 = vmatmul.mubr.f32.gmra.mrb[0].mxu0 %v4054
        %v4331 = vpop.f32.mrb[0].mxu0
        %v4332 = vadd.f32 0.0, %v4331
        %v4333 = vpop.f32.mrb[0].mxu0
        %4334 = vmatprep.mubr.f32.mxu0 %v4151
        %4335 = vmatmul.mubr.f32.gmra.mrb[0].mxu0 %v4056
        %v4336 = vpop.f32.mrb[0].mxu0
        %v4337 = vadd.f32 0.0, %v4336
        %v4338 = vpop.f32.mrb[0].mxu0
        %4339 = vmatprep.mubr.f32.mxu0 %v4154
        %4340 = vmatmul.mubr.f32.gmra.mrb[0].mxu0 %v4058
        %v4341 = vpop.f32.mrb[0].mxu0
        %v4342 = vadd.f32 0.0, %v4341
        %v4343 = vpop.f32.mrb[0].mxu0
        %4344 = vmatprep.mubr.f32.mxu0 %v4157
        %4345 = vmatmul.mubr.f32.gmra.mrb[0].mxu0 %v4060
        %v4346 = vpop.f32.mrb[0].mxu0
        %v4347 = vadd.f32 0.0, %v4346
        %v4348 = vpop.f32.mrb[0].mxu0
        %4349 = vmatprep.mubr.f32.mxu0 %v4160
        %4350 = vmatmul.mubr.f32.gmra.mrb[0].mxu0 %v4062
        %v4351 = vpop.f32.mrb[0].mxu0
        %v4352 = vadd.f32 0.0, %v4351
        %v4353 = vpop.f32.mrb[0].mxu0
        %4354 = vmatprep.mubr.f32.mxu0 %v4163
        %4355 = vmatmul.mubr.f32.gmra.mrb[0].mxu0 %v4064
        %v4356 = vpop.f32.mrb[0].mxu0
        %v4357 = vadd.f32 0.0, %v4356
        %v4358 = vpop.f32.mrb[0].mxu0
        %4359 = vmatprep.mubr.f32.mxu0 %v4166
        %4360 = vmatmul.mubr.f32.gmra.mrb[0].mxu0 %v4066
        %v4361 = vpop.f32.mrb[0].mxu0
        %v4362 = vadd.f32 0.0, %v4361
        %v4363 = vpop.f32.mrb[0].mxu0
        %4364 = vmatprep.mubr.f32.mxu0 %v4169
        %4365 = vmatmul.mubr.f32.gmra.mrb[0].mxu0 %v4068
        %v4366 = vpop.f32.mrb[0].mxu0
        %v4367 = vadd.f32 0.0, %v4366
        %v4368 = vpop.f32.mrb[0].mxu0
        %4369 = vmatprep.mubr.f32.mxu0 %v4172
        %4370 = vmatmul.mubr.f32.gmra.mrb[0].mxu0 %v4070
        %v4371 = vpop.f32.mrb[0].mxu0
        %v4372 = vadd.f32 0.0, %v4371
        %v4373 = vpop.f32.mrb[0].mxu0
        %4374 = vmatprep.mubr.f32.mxu0 %v4175
        %4375 = vmatmul.mubr.f32.gmra.mrb[0].mxu0 %v4072
        %v4376 = vpop.f32.mrb[0].mxu0
        %v4377 = vadd.f32 0.0, %v4376
        %v4378 = vpop.f32.mrb[0].mxu0
        %4379 = vmatprep.mubr.f32.mxu0 %v4178
        %4380 = vmatmul.mubr.f32.gmra.mrb[0].mxu0 %v4074
        %v4381 = vpop.f32.mrb[0].mxu0
        %v4382 = vadd.f32 0.0, %v4381
        %v4383 = vpop.f32.mrb[0].mxu0
        %4384 = vmatprep.mubr.f32.mxu0 %v4181
        %4385 = vmatmul.mubr.f32.gmra.mrb[0].mxu0 %v4076
        %v4386 = vpop.f32.mrb[0].mxu0
        %v4387 = vadd.f32 0.0, %v4386
        %v4388 = vpop.f32.mrb[0].mxu0
        %4389 = vmatprep.mubr.f32.mxu0 %v4184
        %4390 = vmatmul.mubr.f32.gmra.mrb[0].mxu0 %v4078
        %v4391 = vpop.f32.mrb[0].mxu0
        %v4392 = vadd.f32 0.0, %v4391
        %v4393 = vpop.f32.mrb[0].mxu0
        %4394 = vmatprep.mubr.f32.mxu0 %v4187
        %4395 = vmatmul.mubr.f32.gmra.mrb[0].mxu0 %v4080
        %v4396 = vpop.f32.mrb[0].mxu0
        %v4397 = vadd.f32 0.0, %v4396
        %v4398 = vpop.f32.mrb[0].mxu0
        %4399 = vmatprep.mubr.f32.mxu0 %v4190
        %4400 = vmatmul.mubr.f32.gmra.mrb[0].mxu0 %v4082
        %v4401 = vpop.f32.mrb[0].mxu0
        %v4402 = vadd.f32 0.0, %v4401
        %v4403 = vpop.f32.mrb[0].mxu0
        %4404 = vmatprep.mubr.f32.mxu0 %v4193
        %4405 = vmatmul.mubr.f32.gmra.mrb[0].mxu0 %v4084
        %v4406 = vpop.f32.mrb[0].mxu0
        %v4407 = vadd.f32 0.0, %v4406
        %v4408 = vpop.f32.mrb[0].mxu0
        %4409 = vmatprep.mubr.f32.mxu0 %v4196
        %4410 = vmatmul.mubr.f32.gmra.mrb[0].mxu0 %v4086
        %v4411 = vpop.f32.mrb[0].mxu0
        %v4412 = vadd.f32 0.0, %v4411
        %v4413 = vpop.f32.mrb[0].mxu0
        %4414 = vmatprep.mubr.f32.mxu0 %v4199
        %4415 = vmatmul.mubr.f32.gmra.mrb[0].mxu0 %v4088
        %v4416 = vpop.f32.mrb[0].mxu0
        %v4417 = vadd.f32 0.0, %v4416
        %v4418 = vpop.f32.mrb[0].mxu0
        %4419 = vmatprep.mubr.f32.mxu0 %v4202
        %4420 = vmatmul.mubr.f32.gmra.mrb[0].mxu0 %v4090
        %v4421 = vpop.f32.mrb[0].mxu0
        %v4422 = vadd.f32 0.0, %v4421
        %v4423 = vpop.f32.mrb[0].mxu0
        %4424 = vmatprep.mubr.f32.mxu0 %v4205
        %4425 = vmatmul.mubr.f32.gmra.mrb[0].mxu0 %v4092
        %v4426 = vpop.f32.mrb[0].mxu0
        %v4427 = vadd.f32 0.0, %v4426
        %v4428 = vpop.f32.mrb[0].mxu0
        %4429 = vmatprep.mubr.f32.mxu0 %v4208
        %4430 = vmatmul.mubr.f32.gmra.mrb[0].mxu0 %v4094
        %v4431 = vpop.f32.mrb[0].mxu0
        %v4432 = vadd.f32 0.0, %v4431
        %v4433 = vpop.f32.mrb[0].mxu0
        %4434 = vdwg.mxu0
        %v4435 = vld [vmem:[#allocation4] sm:$0x1]
        %v4437 = vlaneseq
        %v4438 = vshrl.u32 %v4437, 7
        %v4439 = vsub.s32 0, %v4438
        %v4440 = vrot.slane %v4435, %v4439
        %v4442 = vmul.f32 %v4277, %v4440
        %v4443 = vmul.f32 %v4282, %v4440
        %v4444 = vmul.f32 %v4287, %v4440
        %v4445 = vmul.f32 %v4292, %v4440
        %v4446 = vmul.f32 %v4297, %v4440
        %v4447 = vmul.f32 %v4302, %v4440
        %v4448 = vmul.f32 %v4307, %v4440
        %v4449 = vmul.f32 %v4312, %v4440
        %v4450 = vmul.f32 %v4317, %v4440
        %v4451 = vmul.f32 %v4322, %v4440
        %v4452 = vmul.f32 %v4327, %v4440
        %v4453 = vmul.f32 %v4332, %v4440
        %v4454 = vmul.f32 %v4337, %v4440
        %v4455 = vmul.f32 %v4342, %v4440
        %v4456 = vmul.f32 %v4347, %v4440
        %v4457 = vmul.f32 %v4352, %v4440
        %v4458 = vmul.f32 %v4357, %v4440
        %v4459 = vmul.f32 %v4362, %v4440
        %v4460 = vmul.f32 %v4367, %v4440
        %v4461 = vmul.f32 %v4372, %v4440
        %v4462 = vmul.f32 %v4377, %v4440
        %v4463 = vmul.f32 %v4382, %v4440
        %v4464 = vmul.f32 %v4387, %v4440
        %v4465 = vmul.f32 %v4392, %v4440
        %v4466 = vmul.f32 %v4397, %v4440
        %v4467 = vmul.f32 %v4402, %v4440
        %v4468 = vmul.f32 %v4407, %v4440
        %v4469 = vmul.f32 %v4412, %v4440
        %v4470 = vmul.f32 %v4417, %v4440
        %v4471 = vmul.f32 %v4422, %v4440
        %v4472 = vmul.f32 %v4427, %v4440
        %v4473 = vmul.f32 %v4432, %v4440
        %v4474 = vld [vmem:[%s6] sm:$0x1]
        %v4476 = vlaneseq
        %v4477 = vshrl.u32 %v4476, 7
        %v4478 = vsub.s32 0, %v4477
        %v4479 = vrot.slane %v4474, %v4478
        %v4481 = vadd.f32 %v4442, %v4479
        %v4482 = vadd.f32 %v4443, %v4479
        %v4483 = vadd.f32 %v4444, %v4479
        %v4484 = vadd.f32 %v4445, %v4479
        %v4485 = vadd.f32 %v4446, %v4479
        %v4486 = vadd.f32 %v4447, %v4479
        %v4487 = vadd.f32 %v4448, %v4479
        %v4488 = vadd.f32 %v4449, %v4479
        %v4489 = vadd.f32 %v4450, %v4479
        %v4490 = vadd.f32 %v4451, %v4479
        %v4491 = vadd.f32 %v4452, %v4479
        %v4492 = vadd.f32 %v4453, %v4479
        %v4493 = vadd.f32 %v4454, %v4479
        %v4494 = vadd.f32 %v4455, %v4479
        %v4495 = vadd.f32 %v4456, %v4479
        %v4496 = vadd.f32 %v4457, %v4479
        %v4497 = vadd.f32 %v4458, %v4479
        %v4498 = vadd.f32 %v4459, %v4479
        %v4499 = vadd.f32 %v4460, %v4479
        %v4500 = vadd.f32 %v4461, %v4479
        %v4501 = vadd.f32 %v4462, %v4479
        %v4502 = vadd.f32 %v4463, %v4479
        %v4503 = vadd.f32 %v4464, %v4479
        %v4504 = vadd.f32 %v4465, %v4479
        %v4505 = vadd.f32 %v4466, %v4479
        %v4506 = vadd.f32 %v4467, %v4479
        %v4507 = vadd.f32 %v4468, %v4479
        %v4508 = vadd.f32 %v4469, %v4479
        %v4509 = vadd.f32 %v4470, %v4479
        %v4510 = vadd.f32 %v4471, %v4479
        %v4511 = vadd.f32 %v4472, %v4479
        %v4512 = vadd.f32 %v4473, %v4479
        %v4513 = vmax.f32 %v4481, 0.0
        %v4514 = vmax.f32 %v4482, 0.0
        %v4515 = vmax.f32 %v4483, 0.0
        %v4516 = vmax.f32 %v4484, 0.0
        %v4517 = vmax.f32 %v4485, 0.0
        %v4518 = vmax.f32 %v4486, 0.0
        %v4519 = vmax.f32 %v4487, 0.0
        %v4520 = vmax.f32 %v4488, 0.0
        %v4521 = vmax.f32 %v4489, 0.0
        %v4522 = vmax.f32 %v4490, 0.0
        %v4523 = vmax.f32 %v4491, 0.0
        %v4524 = vmax.f32 %v4492, 0.0
        %v4525 = vmax.f32 %v4493, 0.0
        %v4526 = vmax.f32 %v4494, 0.0
        %v4527 = vmax.f32 %v4495, 0.0
        %v4528 = vmax.f32 %v4496, 0.0
        %v4529 = vmax.f32 %v4497, 0.0
        %v4530 = vmax.f32 %v4498, 0.0
        %v4531 = vmax.f32 %v4499, 0.0
        %v4532 = vmax.f32 %v4500, 0.0
        %v4533 = vmax.f32 %v4501, 0.0
        %v4534 = vmax.f32 %v4502, 0.0
        %v4535 = vmax.f32 %v4503, 0.0
        %v4536 = vmax.f32 %v4504, 0.0
        %v4537 = vmax.f32 %v4505, 0.0
        %v4538 = vmax.f32 %v4506, 0.0
        %v4539 = vmax.f32 %v4507, 0.0
        %v4540 = vmax.f32 %v4508, 0.0
        %v4541 = vmax.f32 %v4509, 0.0
        %v4542 = vmax.f32 %v4510, 0.0
        %v4543 = vmax.f32 %v4511, 0.0
        %v4544 = vmax.f32 %v4512, 0.0
        %4545 = vst.msk [vmem:[%s437 + $0x8] sm:$0xff] %vm371, %v4513
        %4546 = vst.msk [vmem:[%s437 + $0x10] sm:$0xff] %vm371, %v4514
        %4547 = vst.msk [vmem:[%s437 + $0x28] sm:$0xff] %vm371, %v4515
        %4548 = vst.msk [vmem:[%s437 + $0x30] sm:$0xff] %vm371, %v4516
        %4549 = vst.msk [vmem:[%s437 + $0x48] sm:$0xff] %vm371, %v4517
        %4550 = vst.msk [vmem:[%s437 + $0x50] sm:$0xff] %vm371, %v4518
        %4551 = vst.msk [vmem:[%s437 + $0x68] sm:$0xff] %vm371, %v4519
        %4552 = vst.msk [vmem:[%s437 + $0x70] sm:$0xff] %vm371, %v4520
        %4553 = vst.msk [vmem:[%s437 + $0x88] sm:$0xff] %vm371, %v4521
        %4554 = vst.msk [vmem:[%s437 + $0x90] sm:$0xff] %vm371, %v4522
        %4555 = vst.msk [vmem:[%s437 + $0xa8] sm:$0xff] %vm371, %v4523
        %4556 = vst.msk [vmem:[%s437 + $0xb0] sm:$0xff] %vm371, %v4524
        %4557 = vst.msk [vmem:[%s437 + $0xc8] sm:$0xff] %vm371, %v4525
        %4558 = vst.msk [vmem:[%s437 + $0xd0] sm:$0xff] %vm371, %v4526
        %4559 = vst.msk [vmem:[%s437 + $0xe8] sm:$0xff] %vm371, %v4527
        %4560 = vst.msk [vmem:[%s437 + $0xf0] sm:$0xff] %vm371, %v4528
        %4561 = vst.msk [vmem:[%s437 + $0x108] sm:$0xff] %vm371, %v4529
        %4562 = vst.msk [vmem:[%s437 + $0x110] sm:$0xff] %vm371, %v4530
        %4563 = vst.msk [vmem:[%s437 + $0x128] sm:$0xff] %vm371, %v4531
        %4564 = vst.msk [vmem:[%s437 + $0x130] sm:$0xff] %vm371, %v4532
        %4565 = vst.msk [vmem:[%s437 + $0x148] sm:$0xff] %vm371, %v4533
        %4566 = vst.msk [vmem:[%s437 + $0x150] sm:$0xff] %vm371, %v4534
        %4567 = vst.msk [vmem:[%s437 + $0x168] sm:$0xff] %vm371, %v4535
        %4568 = vst.msk [vmem:[%s437 + $0x170] sm:$0xff] %vm371, %v4536
        %4569 = vst.msk [vmem:[%s437 + $0x188] sm:$0xff] %vm371, %v4537
        %4570 = vst.msk [vmem:[%s437 + $0x190] sm:$0xff] %vm371, %v4538
        %4571 = vst.msk [vmem:[%s437 + $0x1a8] sm:$0xff] %vm371, %v4539
        %4572 = vst.msk [vmem:[%s437 + $0x1b0] sm:$0xff] %vm371, %v4540
        %4573 = vst.msk [vmem:[%s437 + $0x1c8] sm:$0xff] %vm371, %v4541
        %4574 = vst.msk [vmem:[%s437 + $0x1d0] sm:$0xff] %vm371, %v4542
        %4575 = vst.msk [vmem:[%s437 + $0x1e8] sm:$0xff] %vm371, %v4543
        %4576 = vst.msk [vmem:[%s437 + $0x1f0] sm:$0xff] %vm371, %v4544
        %s4577 = scalar_lea.vmem [#allocation2], 192
        %v4578 = vld [vmem:[%s4577 + $0x6] sm:$0xff]
        %v4579 = vld [vmem:[%s4577 + $0xe] sm:$0xff]
        %v4580 = vld [vmem:[%s4577 + $0x26] sm:$0xff]
        %v4581 = vld [vmem:[%s4577 + $0x2e] sm:$0xff]
        %v4582 = vld [vmem:[%s4577 + $0x46] sm:$0xff]
        %v4583 = vld [vmem:[%s4577 + $0x4e] sm:$0xff]
        %v4584 = vld [vmem:[%s4577 + $0x66] sm:$0xff]
        %v4585 = vld [vmem:[%s4577 + $0x6e] sm:$0xff]
        %v4586 = vld [vmem:[%s4577 + $0x86] sm:$0xff]
        %v4587 = vld [vmem:[%s4577 + $0x8e] sm:$0xff]
        %v4588 = vld [vmem:[%s4577 + $0xa6] sm:$0xff]
        %v4589 = vld [vmem:[%s4577 + $0xae] sm:$0xff]
        %v4590 = vld [vmem:[%s4577 + $0xc6] sm:$0xff]
        %v4591 = vld [vmem:[%s4577 + $0xce] sm:$0xff]
        %v4592 = vld [vmem:[%s4577 + $0xe6] sm:$0xff]
        %v4593 = vld [vmem:[%s4577 + $0xee] sm:$0xff]
        %v4594 = vld [vmem:[%s4577 + $0x106] sm:$0xff]
        %v4595 = vld [vmem:[%s4577 + $0x10e] sm:$0xff]
        %v4596 = vld [vmem:[%s4577 + $0x126] sm:$0xff]
        %v4597 = vld [vmem:[%s4577 + $0x12e] sm:$0xff]
        %v4598 = vld [vmem:[%s4577 + $0x146] sm:$0xff]
        %v4599 = vld [vmem:[%s4577 + $0x14e] sm:$0xff]
        %v4600 = vld [vmem:[%s4577 + $0x166] sm:$0xff]
        %v4601 = vld [vmem:[%s4577 + $0x16e] sm:$0xff]
        %v4602 = vld [vmem:[%s4577 + $0x186] sm:$0xff]
        %v4603 = vld [vmem:[%s4577 + $0x18e] sm:$0xff]
        %v4604 = vld [vmem:[%s4577 + $0x1a6] sm:$0xff]
        %v4605 = vld [vmem:[%s4577 + $0x1ae] sm:$0xff]
        %v4606 = vld [vmem:[%s4577 + $0x1c6] sm:$0xff]
        %v4607 = vld [vmem:[%s4577 + $0x1ce] sm:$0xff]
        %v4608 = vld [vmem:[%s4577 + $0x1e6] sm:$0xff]
        %v4609 = vld [vmem:[%s4577 + $0x1ee] sm:$0xff]
        %4610 = vst.msk [vmem:[#allocation3] sm:$0xff] %vm371, %v4578
        %4611 = vst.msk [vmem:[#allocation3 + $0x10] sm:$0xff] %vm371, %v4579
        %4612 = vst.msk [vmem:[#allocation3 + $0x20] sm:$0xff] %vm371, %v4580
        %4613 = vst.msk [vmem:[#allocation3 + $0x30] sm:$0xff] %vm371, %v4581
        %4614 = vst.msk [vmem:[#allocation3 + $0x40] sm:$0xff] %vm371, %v4582
        %4615 = vst.msk [vmem:[#allocation3 + $0x50] sm:$0xff] %vm371, %v4583
        %4616 = vst.msk [vmem:[#allocation3 + $0x60] sm:$0xff] %vm371, %v4584
        %4617 = vst.msk [vmem:[#allocation3 + $0x70] sm:$0xff] %vm371, %v4585
        %4618 = vst.msk [vmem:[#allocation3 + $0x80] sm:$0xff] %vm371, %v4586
        %4619 = vst.msk [vmem:[#allocation3 + $0x90] sm:$0xff] %vm371, %v4587
        %4620 = vst.msk [vmem:[#allocation3 + $0xa0] sm:$0xff] %vm371, %v4588
        %4621 = vst.msk [vmem:[#allocation3 + $0xb0] sm:$0xff] %vm371, %v4589
        %4622 = vst.msk [vmem:[#allocation3 + $0xc0] sm:$0xff] %vm371, %v4590
        %4623 = vst.msk [vmem:[#allocation3 + $0xd0] sm:$0xff] %vm371, %v4591
        %4624 = vst.msk [vmem:[#allocation3 + $0xe0] sm:$0xff] %vm371, %v4592
        %4625 = vst.msk [vmem:[#allocation3 + $0xf0] sm:$0xff] %vm371, %v4593
        %4626 = vst.msk [vmem:[#allocation3 + $0x100] sm:$0xff] %vm371, %v4594
        %4627 = vst.msk [vmem:[#allocation3 + $0x110] sm:$0xff] %vm371, %v4595
        %4628 = vst.msk [vmem:[#allocation3 + $0x120] sm:$0xff] %vm371, %v4596
        %4629 = vst.msk [vmem:[#allocation3 + $0x130] sm:$0xff] %vm371, %v4597
        %4630 = vst.msk [vmem:[#allocation3 + $0x140] sm:$0xff] %vm371, %v4598
        %4631 = vst.msk [vmem:[#allocation3 + $0x150] sm:$0xff] %vm371, %v4599
        %4632 = vst.msk [vmem:[#allocation3 + $0x160] sm:$0xff] %vm371, %v4600
        %4633 = vst.msk [vmem:[#allocation3 + $0x170] sm:$0xff] %vm371, %v4601
        %4634 = vst.msk [vmem:[#allocation3 + $0x180] sm:$0xff] %vm371, %v4602
        %4635 = vst.msk [vmem:[#allocation3 + $0x190] sm:$0xff] %vm371, %v4603
        %4636 = vst.msk [vmem:[#allocation3 + $0x1a0] sm:$0xff] %vm371, %v4604
        %4637 = vst.msk [vmem:[#allocation3 + $0x1b0] sm:$0xff] %vm371, %v4605
        %4638 = vst.msk [vmem:[#allocation3 + $0x1c0] sm:$0xff] %vm371, %v4606
        %4639 = vst.msk [vmem:[#allocation3 + $0x1d0] sm:$0xff] %vm371, %v4607
        %4640 = vst.msk [vmem:[#allocation3 + $0x1e0] sm:$0xff] %vm371, %v4608
        %4641 = vst.msk [vmem:[#allocation3 + $0x1f0] sm:$0xff] %vm371, %v4609
        %v4642 = vld [vmem:[%s4577 + $0x8] sm:$0xff]
        %v4643 = vld [vmem:[%s4577 + $0x10] sm:$0xff]
        %v4644 = vld [vmem:[%s4577 + $0x28] sm:$0xff]
        %v4645 = vld [vmem:[%s4577 + $0x30] sm:$0xff]
        %v4646 = vld [vmem:[%s4577 + $0x48] sm:$0xff]
        %v4647 = vld [vmem:[%s4577 + $0x50] sm:$0xff]
        %v4648 = vld [vmem:[%s4577 + $0x68] sm:$0xff]
        %v4649 = vld [vmem:[%s4577 + $0x70] sm:$0xff]
        %v4650 = vld [vmem:[%s4577 + $0x88] sm:$0xff]
        %v4651 = vld [vmem:[%s4577 + $0x90] sm:$0xff]
        %v4652 = vld [vmem:[%s4577 + $0xa8] sm:$0xff]
        %v4653 = vld [vmem:[%s4577 + $0xb0] sm:$0xff]
        %v4654 = vld [vmem:[%s4577 + $0xc8] sm:$0xff]
        %v4655 = vld [vmem:[%s4577 + $0xd0] sm:$0xff]
        %v4656 = vld [vmem:[%s4577 + $0xe8] sm:$0xff]
        %v4657 = vld [vmem:[%s4577 + $0xf0] sm:$0xff]
        %v4658 = vld [vmem:[%s4577 + $0x108] sm:$0xff]
        %v4659 = vld [vmem:[%s4577 + $0x110] sm:$0xff]
        %v4660 = vld [vmem:[%s4577 + $0x128] sm:$0xff]
        %v4661 = vld [vmem:[%s4577 + $0x130] sm:$0xff]
        %v4662 = vld [vmem:[%s4577 + $0x148] sm:$0xff]
        %v4663 = vld [vmem:[%s4577 + $0x150] sm:$0xff]
        %v4664 = vld [vmem:[%s4577 + $0x168] sm:$0xff]
        %v4665 = vld [vmem:[%s4577 + $0x170] sm:$0xff]
        %v4666 = vld [vmem:[%s4577 + $0x188] sm:$0xff]
        %v4667 = vld [vmem:[%s4577 + $0x190] sm:$0xff]
        %v4668 = vld [vmem:[%s4577 + $0x1a8] sm:$0xff]
        %v4669 = vld [vmem:[%s4577 + $0x1b0] sm:$0xff]
        %v4670 = vld [vmem:[%s4577 + $0x1c8] sm:$0xff]
        %v4671 = vld [vmem:[%s4577 + $0x1d0] sm:$0xff]
        %v4672 = vld [vmem:[%s4577 + $0x1e8] sm:$0xff]
        %v4673 = vld [vmem:[%s4577 + $0x1f0] sm:$0xff]
        %4706 = vrot.lane.b32.xlu0 %v4642, 16
        %v4707 = vpop.permute.xlu0 %4706
        %4708 = vrot.lane.b32.xlu0 %v4643, 16
        %v4709 = vpop.permute.xlu0 %4708
        %4710 = vrot.lane.b32.xlu0 %v4644, 16
        %v4711 = vpop.permute.xlu0 %4710
        %4712 = vrot.lane.b32.xlu0 %v4645, 16
        %v4713 = vpop.permute.xlu0 %4712
        %4714 = vrot.lane.b32.xlu0 %v4646, 16
        %v4715 = vpop.permute.xlu0 %4714
        %4716 = vrot.lane.b32.xlu0 %v4647, 16
        %v4717 = vpop.permute.xlu0 %4716
        %4718 = vrot.lane.b32.xlu0 %v4648, 16
        %v4719 = vpop.permute.xlu0 %4718
        %4720 = vrot.lane.b32.xlu0 %v4649, 16
        %v4721 = vpop.permute.xlu0 %4720
        %4722 = vrot.lane.b32.xlu0 %v4650, 16
        %v4723 = vpop.permute.xlu0 %4722
        %4724 = vrot.lane.b32.xlu0 %v4651, 16
        %v4725 = vpop.permute.xlu0 %4724
        %4726 = vrot.lane.b32.xlu0 %v4652, 16
        %v4727 = vpop.permute.xlu0 %4726
        %4728 = vrot.lane.b32.xlu0 %v4653, 16
        %v4729 = vpop.permute.xlu0 %4728
        %4730 = vrot.lane.b32.xlu0 %v4654, 16
        %v4731 = vpop.permute.xlu0 %4730
        %4732 = vrot.lane.b32.xlu0 %v4655, 16
        %v4733 = vpop.permute.xlu0 %4732
        %4734 = vrot.lane.b32.xlu0 %v4656, 16
        %v4735 = vpop.permute.xlu0 %4734
        %4736 = vrot.lane.b32.xlu0 %v4657, 16
        %v4737 = vpop.permute.xlu0 %4736
        %4738 = vrot.lane.b32.xlu0 %v4658, 16
        %v4739 = vpop.permute.xlu0 %4738
        %4740 = vrot.lane.b32.xlu0 %v4659, 16
        %v4741 = vpop.permute.xlu0 %4740
        %4742 = vrot.lane.b32.xlu0 %v4660, 16
        %v4743 = vpop.permute.xlu0 %4742
        %4744 = vrot.lane.b32.xlu0 %v4661, 16
        %v4745 = vpop.permute.xlu0 %4744
        %4746 = vrot.lane.b32.xlu0 %v4662, 16
        %v4747 = vpop.permute.xlu0 %4746
        %4748 = vrot.lane.b32.xlu0 %v4663, 16
        %v4749 = vpop.permute.xlu0 %4748
        %4750 = vrot.lane.b32.xlu0 %v4664, 16
        %v4751 = vpop.permute.xlu0 %4750
        %4752 = vrot.lane.b32.xlu0 %v4665, 16
        %v4753 = vpop.permute.xlu0 %4752
        %4754 = vrot.lane.b32.xlu0 %v4666, 16
        %v4755 = vpop.permute.xlu0 %4754
        %4756 = vrot.lane.b32.xlu0 %v4667, 16
        %v4757 = vpop.permute.xlu0 %4756
        %4758 = vrot.lane.b32.xlu0 %v4668, 16
        %v4759 = vpop.permute.xlu0 %4758
        %4760 = vrot.lane.b32.xlu0 %v4669, 16
        %v4761 = vpop.permute.xlu0 %4760
        %4762 = vrot.lane.b32.xlu0 %v4670, 16
        %v4763 = vpop.permute.xlu0 %4762
        %4764 = vrot.lane.b32.xlu0 %v4671, 16
        %v4765 = vpop.permute.xlu0 %4764
        %4766 = vrot.lane.b32.xlu0 %v4672, 16
        %v4767 = vpop.permute.xlu0 %4766
        %4768 = vrot.lane.b32.xlu0 %v4673, 16
        %v4769 = vpop.permute.xlu0 %4768
        %4802 = vst.msk [vmem:[#allocation3] sm:$0xff] %vm759, %v4707
        %4803 = vst.msk [vmem:[#allocation3 + $0x10] sm:$0xff] %vm759, %v4709
        %4804 = vst.msk [vmem:[#allocation3 + $0x20] sm:$0xff] %vm759, %v4711
        %4805 = vst.msk [vmem:[#allocation3 + $0x30] sm:$0xff] %vm759, %v4713
        %4806 = vst.msk [vmem:[#allocation3 + $0x40] sm:$0xff] %vm759, %v4715
        %4807 = vst.msk [vmem:[#allocation3 + $0x50] sm:$0xff] %vm759, %v4717
        %4808 = vst.msk [vmem:[#allocation3 + $0x60] sm:$0xff] %vm759, %v4719
        %4809 = vst.msk [vmem:[#allocation3 + $0x70] sm:$0xff] %vm759, %v4721
        %4810 = vst.msk [vmem:[#allocation3 + $0x80] sm:$0xff] %vm759, %v4723
        %4811 = vst.msk [vmem:[#allocation3 + $0x90] sm:$0xff] %vm759, %v4725
        %4812 = vst.msk [vmem:[#allocation3 + $0xa0] sm:$0xff] %vm759, %v4727
        %4813 = vst.msk [vmem:[#allocation3 + $0xb0] sm:$0xff] %vm759, %v4729
        %4814 = vst.msk [vmem:[#allocation3 + $0xc0] sm:$0xff] %vm759, %v4731
        %4815 = vst.msk [vmem:[#allocation3 + $0xd0] sm:$0xff] %vm759, %v4733
        %4816 = vst.msk [vmem:[#allocation3 + $0xe0] sm:$0xff] %vm759, %v4735
        %4817 = vst.msk [vmem:[#allocation3 + $0xf0] sm:$0xff] %vm759, %v4737
        %4818 = vst.msk [vmem:[#allocation3 + $0x100] sm:$0xff] %vm759, %v4739
        %4819 = vst.msk [vmem:[#allocation3 + $0x110] sm:$0xff] %vm759, %v4741
        %4820 = vst.msk [vmem:[#allocation3 + $0x120] sm:$0xff] %vm759, %v4743
        %4821 = vst.msk [vmem:[#allocation3 + $0x130] sm:$0xff] %vm759, %v4745
        %4822 = vst.msk [vmem:[#allocation3 + $0x140] sm:$0xff] %vm759, %v4747
        %4823 = vst.msk [vmem:[#allocation3 + $0x150] sm:$0xff] %vm759, %v4749
        %4824 = vst.msk [vmem:[#allocation3 + $0x160] sm:$0xff] %vm759, %v4751
        %4825 = vst.msk [vmem:[#allocation3 + $0x170] sm:$0xff] %vm759, %v4753
        %4826 = vst.msk [vmem:[#allocation3 + $0x180] sm:$0xff] %vm759, %v4755
        %4827 = vst.msk [vmem:[#allocation3 + $0x190] sm:$0xff] %vm759, %v4757
        %4828 = vst.msk [vmem:[#allocation3 + $0x1a0] sm:$0xff] %vm759, %v4759
        %4829 = vst.msk [vmem:[#allocation3 + $0x1b0] sm:$0xff] %vm759, %v4761
        %4830 = vst.msk [vmem:[#allocation3 + $0x1c0] sm:$0xff] %vm759, %v4763
        %4831 = vst.msk [vmem:[#allocation3 + $0x1d0] sm:$0xff] %vm759, %v4765
        %4832 = vst.msk [vmem:[#allocation3 + $0x1e0] sm:$0xff] %vm759, %v4767
        %4833 = vst.msk [vmem:[#allocation3 + $0x1f0] sm:$0xff] %vm759, %v4769
        %v4834 = vld [vmem:[%s4577 + $0xa] sm:$0xff]
        %v4835 = vld [vmem:[%s4577 + $0x12] sm:$0xff]
        %v4836 = vld [vmem:[%s4577 + $0x2a] sm:$0xff]
        %v4837 = vld [vmem:[%s4577 + $0x32] sm:$0xff]
        %v4838 = vld [vmem:[%s4577 + $0x4a] sm:$0xff]
        %v4839 = vld [vmem:[%s4577 + $0x52] sm:$0xff]
        %v4840 = vld [vmem:[%s4577 + $0x6a] sm:$0xff]
        %v4841 = vld [vmem:[%s4577 + $0x72] sm:$0xff]
        %v4842 = vld [vmem:[%s4577 + $0x8a] sm:$0xff]
        %v4843 = vld [vmem:[%s4577 + $0x92] sm:$0xff]
        %v4844 = vld [vmem:[%s4577 + $0xaa] sm:$0xff]
        %v4845 = vld [vmem:[%s4577 + $0xb2] sm:$0xff]
        %v4846 = vld [vmem:[%s4577 + $0xca] sm:$0xff]
        %v4847 = vld [vmem:[%s4577 + $0xd2] sm:$0xff]
        %v4848 = vld [vmem:[%s4577 + $0xea] sm:$0xff]
        %v4849 = vld [vmem:[%s4577 + $0xf2] sm:$0xff]
        %v4850 = vld [vmem:[%s4577 + $0x10a] sm:$0xff]
        %v4851 = vld [vmem:[%s4577 + $0x112] sm:$0xff]
        %v4852 = vld [vmem:[%s4577 + $0x12a] sm:$0xff]
        %v4853 = vld [vmem:[%s4577 + $0x132] sm:$0xff]
        %v4854 = vld [vmem:[%s4577 + $0x14a] sm:$0xff]
        %v4855 = vld [vmem:[%s4577 + $0x152] sm:$0xff]
        %v4856 = vld [vmem:[%s4577 + $0x16a] sm:$0xff]
        %v4857 = vld [vmem:[%s4577 + $0x172] sm:$0xff]
        %v4858 = vld [vmem:[%s4577 + $0x18a] sm:$0xff]
        %v4859 = vld [vmem:[%s4577 + $0x192] sm:$0xff]
        %v4860 = vld [vmem:[%s4577 + $0x1aa] sm:$0xff]
        %v4861 = vld [vmem:[%s4577 + $0x1b2] sm:$0xff]
        %v4862 = vld [vmem:[%s4577 + $0x1ca] sm:$0xff]
        %v4863 = vld [vmem:[%s4577 + $0x1d2] sm:$0xff]
        %v4864 = vld [vmem:[%s4577 + $0x1ea] sm:$0xff]
        %v4865 = vld [vmem:[%s4577 + $0x1f2] sm:$0xff]
        %4898 = vrot.lane.b32.xlu0 %v4834, 32
        %v4899 = vpop.permute.xlu0 %4898
        %4900 = vrot.lane.b32.xlu0 %v4835, 32
        %v4901 = vpop.permute.xlu0 %4900
        %4902 = vrot.lane.b32.xlu0 %v4836, 32
        %v4903 = vpop.permute.xlu0 %4902
        %4904 = vrot.lane.b32.xlu0 %v4837, 32
        %v4905 = vpop.permute.xlu0 %4904
        %4906 = vrot.lane.b32.xlu0 %v4838, 32
        %v4907 = vpop.permute.xlu0 %4906
        %4908 = vrot.lane.b32.xlu0 %v4839, 32
        %v4909 = vpop.permute.xlu0 %4908
        %4910 = vrot.lane.b32.xlu0 %v4840, 32
        %v4911 = vpop.permute.xlu0 %4910
        %4912 = vrot.lane.b32.xlu0 %v4841, 32
        %v4913 = vpop.permute.xlu0 %4912
        %4914 = vrot.lane.b32.xlu0 %v4842, 32
        %v4915 = vpop.permute.xlu0 %4914
        %4916 = vrot.lane.b32.xlu0 %v4843, 32
        %v4917 = vpop.permute.xlu0 %4916
        %4918 = vrot.lane.b32.xlu0 %v4844, 32
        %v4919 = vpop.permute.xlu0 %4918
        %4920 = vrot.lane.b32.xlu0 %v4845, 32
        %v4921 = vpop.permute.xlu0 %4920
        %4922 = vrot.lane.b32.xlu0 %v4846, 32
        %v4923 = vpop.permute.xlu0 %4922
        %4924 = vrot.lane.b32.xlu0 %v4847, 32
        %v4925 = vpop.permute.xlu0 %4924
        %4926 = vrot.lane.b32.xlu0 %v4848, 32
        %v4927 = vpop.permute.xlu0 %4926
        %4928 = vrot.lane.b32.xlu0 %v4849, 32
        %v4929 = vpop.permute.xlu0 %4928
        %4930 = vrot.lane.b32.xlu0 %v4850, 32
        %v4931 = vpop.permute.xlu0 %4930
        %4932 = vrot.lane.b32.xlu0 %v4851, 32
        %v4933 = vpop.permute.xlu0 %4932
        %4934 = vrot.lane.b32.xlu0 %v4852, 32
        %v4935 = vpop.permute.xlu0 %4934
        %4936 = vrot.lane.b32.xlu0 %v4853, 32
        %v4937 = vpop.permute.xlu0 %4936
        %4938 = vrot.lane.b32.xlu0 %v4854, 32
        %v4939 = vpop.permute.xlu0 %4938
        %4940 = vrot.lane.b32.xlu0 %v4855, 32
        %v4941 = vpop.permute.xlu0 %4940
        %4942 = vrot.lane.b32.xlu0 %v4856, 32
        %v4943 = vpop.permute.xlu0 %4942
        %4944 = vrot.lane.b32.xlu0 %v4857, 32
        %v4945 = vpop.permute.xlu0 %4944
        %4946 = vrot.lane.b32.xlu0 %v4858, 32
        %v4947 = vpop.permute.xlu0 %4946
        %4948 = vrot.lane.b32.xlu0 %v4859, 32
        %v4949 = vpop.permute.xlu0 %4948
        %4950 = vrot.lane.b32.xlu0 %v4860, 32
        %v4951 = vpop.permute.xlu0 %4950
        %4952 = vrot.lane.b32.xlu0 %v4861, 32
        %v4953 = vpop.permute.xlu0 %4952
        %4954 = vrot.lane.b32.xlu0 %v4862, 32
        %v4955 = vpop.permute.xlu0 %4954
        %4956 = vrot.lane.b32.xlu0 %v4863, 32
        %v4957 = vpop.permute.xlu0 %4956
        %4958 = vrot.lane.b32.xlu0 %v4864, 32
        %v4959 = vpop.permute.xlu0 %4958
        %4960 = vrot.lane.b32.xlu0 %v4865, 32
        %v4961 = vpop.permute.xlu0 %4960
        %4994 = vst.msk [vmem:[#allocation3] sm:$0xff] %vm952, %v4899
        %4995 = vst.msk [vmem:[#allocation3 + $0x10] sm:$0xff] %vm952, %v4901
        %4996 = vst.msk [vmem:[#allocation3 + $0x20] sm:$0xff] %vm952, %v4903
        %4997 = vst.msk [vmem:[#allocation3 + $0x30] sm:$0xff] %vm952, %v4905
        %4998 = vst.msk [vmem:[#allocation3 + $0x40] sm:$0xff] %vm952, %v4907
        %4999 = vst.msk [vmem:[#allocation3 + $0x50] sm:$0xff] %vm952, %v4909
        %5000 = vst.msk [vmem:[#allocation3 + $0x60] sm:$0xff] %vm952, %v4911
        %5001 = vst.msk [vmem:[#allocation3 + $0x70] sm:$0xff] %vm952, %v4913
        %5002 = vst.msk [vmem:[#allocation3 + $0x80] sm:$0xff] %vm952, %v4915
        %5003 = vst.msk [vmem:[#allocation3 + $0x90] sm:$0xff] %vm952, %v4917
        %5004 = vst.msk [vmem:[#allocation3 + $0xa0] sm:$0xff] %vm952, %v4919
        %5005 = vst.msk [vmem:[#allocation3 + $0xb0] sm:$0xff] %vm952, %v4921
        %5006 = vst.msk [vmem:[#allocation3 + $0xc0] sm:$0xff] %vm952, %v4923
        %5007 = vst.msk [vmem:[#allocation3 + $0xd0] sm:$0xff] %vm952, %v4925
        %5008 = vst.msk [vmem:[#allocation3 + $0xe0] sm:$0xff] %vm952, %v4927
        %5009 = vst.msk [vmem:[#allocation3 + $0xf0] sm:$0xff] %vm952, %v4929
        %5010 = vst.msk [vmem:[#allocation3 + $0x100] sm:$0xff] %vm952, %v4931
        %5011 = vst.msk [vmem:[#allocation3 + $0x110] sm:$0xff] %vm952, %v4933
        %5012 = vst.msk [vmem:[#allocation3 + $0x120] sm:$0xff] %vm952, %v4935
        %5013 = vst.msk [vmem:[#allocation3 + $0x130] sm:$0xff] %vm952, %v4937
        %5014 = vst.msk [vmem:[#allocation3 + $0x140] sm:$0xff] %vm952, %v4939
        %5015 = vst.msk [vmem:[#allocation3 + $0x150] sm:$0xff] %vm952, %v4941
        %5016 = vst.msk [vmem:[#allocation3 + $0x160] sm:$0xff] %vm952, %v4943
        %5017 = vst.msk [vmem:[#allocation3 + $0x170] sm:$0xff] %vm952, %v4945
        %5018 = vst.msk [vmem:[#allocation3 + $0x180] sm:$0xff] %vm952, %v4947
        %5019 = vst.msk [vmem:[#allocation3 + $0x190] sm:$0xff] %vm952, %v4949
        %5020 = vst.msk [vmem:[#allocation3 + $0x1a0] sm:$0xff] %vm952, %v4951
        %5021 = vst.msk [vmem:[#allocation3 + $0x1b0] sm:$0xff] %vm952, %v4953
        %5022 = vst.msk [vmem:[#allocation3 + $0x1c0] sm:$0xff] %vm952, %v4955
        %5023 = vst.msk [vmem:[#allocation3 + $0x1d0] sm:$0xff] %vm952, %v4957
        %5024 = vst.msk [vmem:[#allocation3 + $0x1e0] sm:$0xff] %vm952, %v4959
        %5025 = vst.msk [vmem:[#allocation3 + $0x1f0] sm:$0xff] %vm952, %v4961
        %v5026 = vld [vmem:[%s437 + $0x6] sm:$0xff]
        %v5027 = vld [vmem:[%s437 + $0xe] sm:$0xff]
        %v5028 = vld [vmem:[%s437 + $0x26] sm:$0xff]
        %v5029 = vld [vmem:[%s437 + $0x2e] sm:$0xff]
        %v5030 = vld [vmem:[%s437 + $0x46] sm:$0xff]
        %v5031 = vld [vmem:[%s437 + $0x4e] sm:$0xff]
        %v5032 = vld [vmem:[%s437 + $0x66] sm:$0xff]
        %v5033 = vld [vmem:[%s437 + $0x6e] sm:$0xff]
        %v5034 = vld [vmem:[%s437 + $0x86] sm:$0xff]
        %v5035 = vld [vmem:[%s437 + $0x8e] sm:$0xff]
        %v5036 = vld [vmem:[%s437 + $0xa6] sm:$0xff]
        %v5037 = vld [vmem:[%s437 + $0xae] sm:$0xff]
        %v5038 = vld [vmem:[%s437 + $0xc6] sm:$0xff]
        %v5039 = vld [vmem:[%s437 + $0xce] sm:$0xff]
        %v5040 = vld [vmem:[%s437 + $0xe6] sm:$0xff]
        %v5041 = vld [vmem:[%s437 + $0xee] sm:$0xff]
        %v5042 = vld [vmem:[%s437 + $0x106] sm:$0xff]
        %v5043 = vld [vmem:[%s437 + $0x10e] sm:$0xff]
        %v5044 = vld [vmem:[%s437 + $0x126] sm:$0xff]
        %v5045 = vld [vmem:[%s437 + $0x12e] sm:$0xff]
        %v5046 = vld [vmem:[%s437 + $0x146] sm:$0xff]
        %v5047 = vld [vmem:[%s437 + $0x14e] sm:$0xff]
        %v5048 = vld [vmem:[%s437 + $0x166] sm:$0xff]
        %v5049 = vld [vmem:[%s437 + $0x16e] sm:$0xff]
        %v5050 = vld [vmem:[%s437 + $0x186] sm:$0xff]
        %v5051 = vld [vmem:[%s437 + $0x18e] sm:$0xff]
        %v5052 = vld [vmem:[%s437 + $0x1a6] sm:$0xff]
        %v5053 = vld [vmem:[%s437 + $0x1ae] sm:$0xff]
        %v5054 = vld [vmem:[%s437 + $0x1c6] sm:$0xff]
        %v5055 = vld [vmem:[%s437 + $0x1ce] sm:$0xff]
        %v5056 = vld [vmem:[%s437 + $0x1e6] sm:$0xff]
        %v5057 = vld [vmem:[%s437 + $0x1ee] sm:$0xff]
        %5090 = vrot.lane.b32.xlu0 %v5026, 48
        %v5091 = vpop.permute.xlu0 %5090
        %5092 = vrot.lane.b32.xlu0 %v5027, 48
        %v5093 = vpop.permute.xlu0 %5092
        %5094 = vrot.lane.b32.xlu0 %v5028, 48
        %v5095 = vpop.permute.xlu0 %5094
        %5096 = vrot.lane.b32.xlu0 %v5029, 48
        %v5097 = vpop.permute.xlu0 %5096
        %5098 = vrot.lane.b32.xlu0 %v5030, 48
        %v5099 = vpop.permute.xlu0 %5098
        %5100 = vrot.lane.b32.xlu0 %v5031, 48
        %v5101 = vpop.permute.xlu0 %5100
        %5102 = vrot.lane.b32.xlu0 %v5032, 48
        %v5103 = vpop.permute.xlu0 %5102
        %5104 = vrot.lane.b32.xlu0 %v5033, 48
        %v5105 = vpop.permute.xlu0 %5104
        %5106 = vrot.lane.b32.xlu0 %v5034, 48
        %v5107 = vpop.permute.xlu0 %5106
        %5108 = vrot.lane.b32.xlu0 %v5035, 48
        %v5109 = vpop.permute.xlu0 %5108
        %5110 = vrot.lane.b32.xlu0 %v5036, 48
        %v5111 = vpop.permute.xlu0 %5110
        %5112 = vrot.lane.b32.xlu0 %v5037, 48
        %v5113 = vpop.permute.xlu0 %5112
        %5114 = vrot.lane.b32.xlu0 %v5038, 48
        %v5115 = vpop.permute.xlu0 %5114
        %5116 = vrot.lane.b32.xlu0 %v5039, 48
        %v5117 = vpop.permute.xlu0 %5116
        %5118 = vrot.lane.b32.xlu0 %v5040, 48
        %v5119 = vpop.permute.xlu0 %5118
        %5120 = vrot.lane.b32.xlu0 %v5041, 48
        %v5121 = vpop.permute.xlu0 %5120
        %5122 = vrot.lane.b32.xlu0 %v5042, 48
        %v5123 = vpop.permute.xlu0 %5122
        %5124 = vrot.lane.b32.xlu0 %v5043, 48
        %v5125 = vpop.permute.xlu0 %5124
        %5126 = vrot.lane.b32.xlu0 %v5044, 48
        %v5127 = vpop.permute.xlu0 %5126
        %5128 = vrot.lane.b32.xlu0 %v5045, 48
        %v5129 = vpop.permute.xlu0 %5128
        %5130 = vrot.lane.b32.xlu0 %v5046, 48
        %v5131 = vpop.permute.xlu0 %5130
        %5132 = vrot.lane.b32.xlu0 %v5047, 48
        %v5133 = vpop.permute.xlu0 %5132
        %5134 = vrot.lane.b32.xlu0 %v5048, 48
        %v5135 = vpop.permute.xlu0 %5134
        %5136 = vrot.lane.b32.xlu0 %v5049, 48
        %v5137 = vpop.permute.xlu0 %5136
        %5138 = vrot.lane.b32.xlu0 %v5050, 48
        %v5139 = vpop.permute.xlu0 %5138
        %5140 = vrot.lane.b32.xlu0 %v5051, 48
        %v5141 = vpop.permute.xlu0 %5140
        %5142 = vrot.lane.b32.xlu0 %v5052, 48
        %v5143 = vpop.permute.xlu0 %5142
        %5144 = vrot.lane.b32.xlu0 %v5053, 48
        %v5145 = vpop.permute.xlu0 %5144
        %5146 = vrot.lane.b32.xlu0 %v5054, 48
        %v5147 = vpop.permute.xlu0 %5146
        %5148 = vrot.lane.b32.xlu0 %v5055, 48
        %v5149 = vpop.permute.xlu0 %5148
        %5150 = vrot.lane.b32.xlu0 %v5056, 48
        %v5151 = vpop.permute.xlu0 %5150
        %5152 = vrot.lane.b32.xlu0 %v5057, 48
        %v5153 = vpop.permute.xlu0 %5152
        %5186 = vst.msk [vmem:[#allocation3] sm:$0xff] %vm1145, %v5091
        %5187 = vst.msk [vmem:[#allocation3 + $0x10] sm:$0xff] %vm1145, %v5093
        %5188 = vst.msk [vmem:[#allocation3 + $0x20] sm:$0xff] %vm1145, %v5095
        %5189 = vst.msk [vmem:[#allocation3 + $0x30] sm:$0xff] %vm1145, %v5097
        %5190 = vst.msk [vmem:[#allocation3 + $0x40] sm:$0xff] %vm1145, %v5099
        %5191 = vst.msk [vmem:[#allocation3 + $0x50] sm:$0xff] %vm1145, %v5101
        %5192 = vst.msk [vmem:[#allocation3 + $0x60] sm:$0xff] %vm1145, %v5103
        %5193 = vst.msk [vmem:[#allocation3 + $0x70] sm:$0xff] %vm1145, %v5105
        %5194 = vst.msk [vmem:[#allocation3 + $0x80] sm:$0xff] %vm1145, %v5107
        %5195 = vst.msk [vmem:[#allocation3 + $0x90] sm:$0xff] %vm1145, %v5109
        %5196 = vst.msk [vmem:[#allocation3 + $0xa0] sm:$0xff] %vm1145, %v5111
        %5197 = vst.msk [vmem:[#allocation3 + $0xb0] sm:$0xff] %vm1145, %v5113
        %5198 = vst.msk [vmem:[#allocation3 + $0xc0] sm:$0xff] %vm1145, %v5115
        %5199 = vst.msk [vmem:[#allocation3 + $0xd0] sm:$0xff] %vm1145, %v5117
        %5200 = vst.msk [vmem:[#allocation3 + $0xe0] sm:$0xff] %vm1145, %v5119
        %5201 = vst.msk [vmem:[#allocation3 + $0xf0] sm:$0xff] %vm1145, %v5121
        %5202 = vst.msk [vmem:[#allocation3 + $0x100] sm:$0xff] %vm1145, %v5123
        %5203 = vst.msk [vmem:[#allocation3 + $0x110] sm:$0xff] %vm1145, %v5125
        %5204 = vst.msk [vmem:[#allocation3 + $0x120] sm:$0xff] %vm1145, %v5127
        %5205 = vst.msk [vmem:[#allocation3 + $0x130] sm:$0xff] %vm1145, %v5129
        %5206 = vst.msk [vmem:[#allocation3 + $0x140] sm:$0xff] %vm1145, %v5131
        %5207 = vst.msk [vmem:[#allocation3 + $0x150] sm:$0xff] %vm1145, %v5133
        %5208 = vst.msk [vmem:[#allocation3 + $0x160] sm:$0xff] %vm1145, %v5135
        %5209 = vst.msk [vmem:[#allocation3 + $0x170] sm:$0xff] %vm1145, %v5137
        %5210 = vst.msk [vmem:[#allocation3 + $0x180] sm:$0xff] %vm1145, %v5139
        %5211 = vst.msk [vmem:[#allocation3 + $0x190] sm:$0xff] %vm1145, %v5141
        %5212 = vst.msk [vmem:[#allocation3 + $0x1a0] sm:$0xff] %vm1145, %v5143
        %5213 = vst.msk [vmem:[#allocation3 + $0x1b0] sm:$0xff] %vm1145, %v5145
        %5214 = vst.msk [vmem:[#allocation3 + $0x1c0] sm:$0xff] %vm1145, %v5147
        %5215 = vst.msk [vmem:[#allocation3 + $0x1d0] sm:$0xff] %vm1145, %v5149
        %5216 = vst.msk [vmem:[#allocation3 + $0x1e0] sm:$0xff] %vm1145, %v5151
        %5217 = vst.msk [vmem:[#allocation3 + $0x1f0] sm:$0xff] %vm1145, %v5153
        %v5218 = vld [vmem:[%s437 + $0x8] sm:$0xff]
        %v5219 = vld [vmem:[%s437 + $0x10] sm:$0xff]
        %v5220 = vld [vmem:[%s437 + $0x28] sm:$0xff]
        %v5221 = vld [vmem:[%s437 + $0x30] sm:$0xff]
        %v5222 = vld [vmem:[%s437 + $0x48] sm:$0xff]
        %v5223 = vld [vmem:[%s437 + $0x50] sm:$0xff]
        %v5224 = vld [vmem:[%s437 + $0x68] sm:$0xff]
        %v5225 = vld [vmem:[%s437 + $0x70] sm:$0xff]
        %v5226 = vld [vmem:[%s437 + $0x88] sm:$0xff]
        %v5227 = vld [vmem:[%s437 + $0x90] sm:$0xff]
        %v5228 = vld [vmem:[%s437 + $0xa8] sm:$0xff]
        %v5229 = vld [vmem:[%s437 + $0xb0] sm:$0xff]
        %v5230 = vld [vmem:[%s437 + $0xc8] sm:$0xff]
        %v5231 = vld [vmem:[%s437 + $0xd0] sm:$0xff]
        %v5232 = vld [vmem:[%s437 + $0xe8] sm:$0xff]
        %v5233 = vld [vmem:[%s437 + $0xf0] sm:$0xff]
        %v5234 = vld [vmem:[%s437 + $0x108] sm:$0xff]
        %v5235 = vld [vmem:[%s437 + $0x110] sm:$0xff]
        %v5236 = vld [vmem:[%s437 + $0x128] sm:$0xff]
        %v5237 = vld [vmem:[%s437 + $0x130] sm:$0xff]
        %v5238 = vld [vmem:[%s437 + $0x148] sm:$0xff]
        %v5239 = vld [vmem:[%s437 + $0x150] sm:$0xff]
        %v5240 = vld [vmem:[%s437 + $0x168] sm:$0xff]
        %v5241 = vld [vmem:[%s437 + $0x170] sm:$0xff]
        %v5242 = vld [vmem:[%s437 + $0x188] sm:$0xff]
        %v5243 = vld [vmem:[%s437 + $0x190] sm:$0xff]
        %v5244 = vld [vmem:[%s437 + $0x1a8] sm:$0xff]
        %v5245 = vld [vmem:[%s437 + $0x1b0] sm:$0xff]
        %v5246 = vld [vmem:[%s437 + $0x1c8] sm:$0xff]
        %v5247 = vld [vmem:[%s437 + $0x1d0] sm:$0xff]
        %v5248 = vld [vmem:[%s437 + $0x1e8] sm:$0xff]
        %v5249 = vld [vmem:[%s437 + $0x1f0] sm:$0xff]
        %5282 = vrot.lane.b32.xlu0 %v5218, 64
        %v5283 = vpop.permute.xlu0 %5282
        %5284 = vrot.lane.b32.xlu0 %v5219, 64
        %v5285 = vpop.permute.xlu0 %5284
        %5286 = vrot.lane.b32.xlu0 %v5220, 64
        %v5287 = vpop.permute.xlu0 %5286
        %5288 = vrot.lane.b32.xlu0 %v5221, 64
        %v5289 = vpop.permute.xlu0 %5288
        %5290 = vrot.lane.b32.xlu0 %v5222, 64
        %v5291 = vpop.permute.xlu0 %5290
        %5292 = vrot.lane.b32.xlu0 %v5223, 64
        %v5293 = vpop.permute.xlu0 %5292
        %5294 = vrot.lane.b32.xlu0 %v5224, 64
        %v5295 = vpop.permute.xlu0 %5294
        %5296 = vrot.lane.b32.xlu0 %v5225, 64
        %v5297 = vpop.permute.xlu0 %5296
        %5298 = vrot.lane.b32.xlu0 %v5226, 64
        %v5299 = vpop.permute.xlu0 %5298
        %5300 = vrot.lane.b32.xlu0 %v5227, 64
        %v5301 = vpop.permute.xlu0 %5300
        %5302 = vrot.lane.b32.xlu0 %v5228, 64
        %v5303 = vpop.permute.xlu0 %5302
        %5304 = vrot.lane.b32.xlu0 %v5229, 64
        %v5305 = vpop.permute.xlu0 %5304
        %5306 = vrot.lane.b32.xlu0 %v5230, 64
        %v5307 = vpop.permute.xlu0 %5306
        %5308 = vrot.lane.b32.xlu0 %v5231, 64
        %v5309 = vpop.permute.xlu0 %5308
        %5310 = vrot.lane.b32.xlu0 %v5232, 64
        %v5311 = vpop.permute.xlu0 %5310
        %5312 = vrot.lane.b32.xlu0 %v5233, 64
        %v5313 = vpop.permute.xlu0 %5312
        %5314 = vrot.lane.b32.xlu0 %v5234, 64
        %v5315 = vpop.permute.xlu0 %5314
        %5316 = vrot.lane.b32.xlu0 %v5235, 64
        %v5317 = vpop.permute.xlu0 %5316
        %5318 = vrot.lane.b32.xlu0 %v5236, 64
        %v5319 = vpop.permute.xlu0 %5318
        %5320 = vrot.lane.b32.xlu0 %v5237, 64
        %v5321 = vpop.permute.xlu0 %5320
        %5322 = vrot.lane.b32.xlu0 %v5238, 64
        %v5323 = vpop.permute.xlu0 %5322
        %5324 = vrot.lane.b32.xlu0 %v5239, 64
        %v5325 = vpop.permute.xlu0 %5324
        %5326 = vrot.lane.b32.xlu0 %v5240, 64
        %v5327 = vpop.permute.xlu0 %5326
        %5328 = vrot.lane.b32.xlu0 %v5241, 64
        %v5329 = vpop.permute.xlu0 %5328
        %5330 = vrot.lane.b32.xlu0 %v5242, 64
        %v5331 = vpop.permute.xlu0 %5330
        %5332 = vrot.lane.b32.xlu0 %v5243, 64
        %v5333 = vpop.permute.xlu0 %5332
        %5334 = vrot.lane.b32.xlu0 %v5244, 64
        %v5335 = vpop.permute.xlu0 %5334
        %5336 = vrot.lane.b32.xlu0 %v5245, 64
        %v5337 = vpop.permute.xlu0 %5336
        %5338 = vrot.lane.b32.xlu0 %v5246, 64
        %v5339 = vpop.permute.xlu0 %5338
        %5340 = vrot.lane.b32.xlu0 %v5247, 64
        %v5341 = vpop.permute.xlu0 %5340
        %5342 = vrot.lane.b32.xlu0 %v5248, 64
        %v5343 = vpop.permute.xlu0 %5342
        %5344 = vrot.lane.b32.xlu0 %v5249, 64
        %v5345 = vpop.permute.xlu0 %5344
        %5378 = vst.msk [vmem:[#allocation3] sm:$0xff] %vm1338, %v5283
        %5379 = vst.msk [vmem:[#allocation3 + $0x10] sm:$0xff] %vm1338, %v5285
        %5380 = vst.msk [vmem:[#allocation3 + $0x20] sm:$0xff] %vm1338, %v5287
        %5381 = vst.msk [vmem:[#allocation3 + $0x30] sm:$0xff] %vm1338, %v5289
        %5382 = vst.msk [vmem:[#allocation3 + $0x40] sm:$0xff] %vm1338, %v5291
        %5383 = vst.msk [vmem:[#allocation3 + $0x50] sm:$0xff] %vm1338, %v5293
        %5384 = vst.msk [vmem:[#allocation3 + $0x60] sm:$0xff] %vm1338, %v5295
        %5385 = vst.msk [vmem:[#allocation3 + $0x70] sm:$0xff] %vm1338, %v5297
        %5386 = vst.msk [vmem:[#allocation3 + $0x80] sm:$0xff] %vm1338, %v5299
        %5387 = vst.msk [vmem:[#allocation3 + $0x90] sm:$0xff] %vm1338, %v5301
        %5388 = vst.msk [vmem:[#allocation3 + $0xa0] sm:$0xff] %vm1338, %v5303
        %5389 = vst.msk [vmem:[#allocation3 + $0xb0] sm:$0xff] %vm1338, %v5305
        %5390 = vst.msk [vmem:[#allocation3 + $0xc0] sm:$0xff] %vm1338, %v5307
        %5391 = vst.msk [vmem:[#allocation3 + $0xd0] sm:$0xff] %vm1338, %v5309
        %5392 = vst.msk [vmem:[#allocation3 + $0xe0] sm:$0xff] %vm1338, %v5311
        %5393 = vst.msk [vmem:[#allocation3 + $0xf0] sm:$0xff] %vm1338, %v5313
        %5394 = vst.msk [vmem:[#allocation3 + $0x100] sm:$0xff] %vm1338, %v5315
        %5395 = vst.msk [vmem:[#allocation3 + $0x110] sm:$0xff] %vm1338, %v5317
        %5396 = vst.msk [vmem:[#allocation3 + $0x120] sm:$0xff] %vm1338, %v5319
        %5397 = vst.msk [vmem:[#allocation3 + $0x130] sm:$0xff] %vm1338, %v5321
        %5398 = vst.msk [vmem:[#allocation3 + $0x140] sm:$0xff] %vm1338, %v5323
        %5399 = vst.msk [vmem:[#allocation3 + $0x150] sm:$0xff] %vm1338, %v5325
        %5400 = vst.msk [vmem:[#allocation3 + $0x160] sm:$0xff] %vm1338, %v5327
        %5401 = vst.msk [vmem:[#allocation3 + $0x170] sm:$0xff] %vm1338, %v5329
        %5402 = vst.msk [vmem:[#allocation3 + $0x180] sm:$0xff] %vm1338, %v5331
        %5403 = vst.msk [vmem:[#allocation3 + $0x190] sm:$0xff] %vm1338, %v5333
        %5404 = vst.msk [vmem:[#allocation3 + $0x1a0] sm:$0xff] %vm1338, %v5335
        %5405 = vst.msk [vmem:[#allocation3 + $0x1b0] sm:$0xff] %vm1338, %v5337
        %5406 = vst.msk [vmem:[#allocation3 + $0x1c0] sm:$0xff] %vm1338, %v5339
        %5407 = vst.msk [vmem:[#allocation3 + $0x1d0] sm:$0xff] %vm1338, %v5341
        %5408 = vst.msk [vmem:[#allocation3 + $0x1e0] sm:$0xff] %vm1338, %v5343
        %5409 = vst.msk [vmem:[#allocation3 + $0x1f0] sm:$0xff] %vm1338, %v5345
        %v5410 = vld [vmem:[%s437 + $0xa] sm:$0xff]
        %v5411 = vld [vmem:[%s437 + $0x12] sm:$0xff]
        %v5412 = vld [vmem:[%s437 + $0x2a] sm:$0xff]
        %v5413 = vld [vmem:[%s437 + $0x32] sm:$0xff]
        %v5414 = vld [vmem:[%s437 + $0x4a] sm:$0xff]
        %v5415 = vld [vmem:[%s437 + $0x52] sm:$0xff]
        %v5416 = vld [vmem:[%s437 + $0x6a] sm:$0xff]
        %v5417 = vld [vmem:[%s437 + $0x72] sm:$0xff]
        %v5418 = vld [vmem:[%s437 + $0x8a] sm:$0xff]
        %v5419 = vld [vmem:[%s437 + $0x92] sm:$0xff]
        %v5420 = vld [vmem:[%s437 + $0xaa] sm:$0xff]
        %v5421 = vld [vmem:[%s437 + $0xb2] sm:$0xff]
        %v5422 = vld [vmem:[%s437 + $0xca] sm:$0xff]
        %v5423 = vld [vmem:[%s437 + $0xd2] sm:$0xff]
        %v5424 = vld [vmem:[%s437 + $0xea] sm:$0xff]
        %v5425 = vld [vmem:[%s437 + $0xf2] sm:$0xff]
        %v5426 = vld [vmem:[%s437 + $0x10a] sm:$0xff]
        %v5427 = vld [vmem:[%s437 + $0x112] sm:$0xff]
        %v5428 = vld [vmem:[%s437 + $0x12a] sm:$0xff]
        %v5429 = vld [vmem:[%s437 + $0x132] sm:$0xff]
        %v5430 = vld [vmem:[%s437 + $0x14a] sm:$0xff]
        %v5431 = vld [vmem:[%s437 + $0x152] sm:$0xff]
        %v5432 = vld [vmem:[%s437 + $0x16a] sm:$0xff]
        %v5433 = vld [vmem:[%s437 + $0x172] sm:$0xff]
        %v5434 = vld [vmem:[%s437 + $0x18a] sm:$0xff]
        %v5435 = vld [vmem:[%s437 + $0x192] sm:$0xff]
        %v5436 = vld [vmem:[%s437 + $0x1aa] sm:$0xff]
        %v5437 = vld [vmem:[%s437 + $0x1b2] sm:$0xff]
        %v5438 = vld [vmem:[%s437 + $0x1ca] sm:$0xff]
        %v5439 = vld [vmem:[%s437 + $0x1d2] sm:$0xff]
        %v5440 = vld [vmem:[%s437 + $0x1ea] sm:$0xff]
        %v5441 = vld [vmem:[%s437 + $0x1f2] sm:$0xff]
        %5474 = vrot.lane.b32.xlu0 %v5410, 80
        %v5475 = vpop.permute.xlu0 %5474
        %5476 = vrot.lane.b32.xlu0 %v5411, 80
        %v5477 = vpop.permute.xlu0 %5476
        %5478 = vrot.lane.b32.xlu0 %v5412, 80
        %v5479 = vpop.permute.xlu0 %5478
        %5480 = vrot.lane.b32.xlu0 %v5413, 80
        %v5481 = vpop.permute.xlu0 %5480
        %5482 = vrot.lane.b32.xlu0 %v5414, 80
        %v5483 = vpop.permute.xlu0 %5482
        %5484 = vrot.lane.b32.xlu0 %v5415, 80
        %v5485 = vpop.permute.xlu0 %5484
        %5486 = vrot.lane.b32.xlu0 %v5416, 80
        %v5487 = vpop.permute.xlu0 %5486
        %5488 = vrot.lane.b32.xlu0 %v5417, 80
        %v5489 = vpop.permute.xlu0 %5488
        %5490 = vrot.lane.b32.xlu0 %v5418, 80
        %v5491 = vpop.permute.xlu0 %5490
        %5492 = vrot.lane.b32.xlu0 %v5419, 80
        %v5493 = vpop.permute.xlu0 %5492
        %5494 = vrot.lane.b32.xlu0 %v5420, 80
        %v5495 = vpop.permute.xlu0 %5494
        %5496 = vrot.lane.b32.xlu0 %v5421, 80
        %v5497 = vpop.permute.xlu0 %5496
        %5498 = vrot.lane.b32.xlu0 %v5422, 80
        %v5499 = vpop.permute.xlu0 %5498
        %5500 = vrot.lane.b32.xlu0 %v5423, 80
        %v5501 = vpop.permute.xlu0 %5500
        %5502 = vrot.lane.b32.xlu0 %v5424, 80
        %v5503 = vpop.permute.xlu0 %5502
        %5504 = vrot.lane.b32.xlu0 %v5425, 80
        %v5505 = vpop.permute.xlu0 %5504
        %5506 = vrot.lane.b32.xlu0 %v5426, 80
        %v5507 = vpop.permute.xlu0 %5506
        %5508 = vrot.lane.b32.xlu0 %v5427, 80
        %v5509 = vpop.permute.xlu0 %5508
        %5510 = vrot.lane.b32.xlu0 %v5428, 80
        %v5511 = vpop.permute.xlu0 %5510
        %5512 = vrot.lane.b32.xlu0 %v5429, 80
        %v5513 = vpop.permute.xlu0 %5512
        %5514 = vrot.lane.b32.xlu0 %v5430, 80
        %v5515 = vpop.permute.xlu0 %5514
        %5516 = vrot.lane.b32.xlu0 %v5431, 80
        %v5517 = vpop.permute.xlu0 %5516
        %5518 = vrot.lane.b32.xlu0 %v5432, 80
        %v5519 = vpop.permute.xlu0 %5518
        %5520 = vrot.lane.b32.xlu0 %v5433, 80
        %v5521 = vpop.permute.xlu0 %5520
        %5522 = vrot.lane.b32.xlu0 %v5434, 80
        %v5523 = vpop.permute.xlu0 %5522
        %5524 = vrot.lane.b32.xlu0 %v5435, 80
        %v5525 = vpop.permute.xlu0 %5524
        %5526 = vrot.lane.b32.xlu0 %v5436, 80
        %v5527 = vpop.permute.xlu0 %5526
        %5528 = vrot.lane.b32.xlu0 %v5437, 80
        %v5529 = vpop.permute.xlu0 %5528
        %5530 = vrot.lane.b32.xlu0 %v5438, 80
        %v5531 = vpop.permute.xlu0 %5530
        %5532 = vrot.lane.b32.xlu0 %v5439, 80
        %v5533 = vpop.permute.xlu0 %5532
        %5534 = vrot.lane.b32.xlu0 %v5440, 80
        %v5535 = vpop.permute.xlu0 %5534
        %5536 = vrot.lane.b32.xlu0 %v5441, 80
        %v5537 = vpop.permute.xlu0 %5536
        %5570 = vst.msk [vmem:[#allocation3] sm:$0xff] %vm1531, %v5475
        %5571 = vst.msk [vmem:[#allocation3 + $0x10] sm:$0xff] %vm1531, %v5477
        %5572 = vst.msk [vmem:[#allocation3 + $0x20] sm:$0xff] %vm1531, %v5479
        %5573 = vst.msk [vmem:[#allocation3 + $0x30] sm:$0xff] %vm1531, %v5481
        %5574 = vst.msk [vmem:[#allocation3 + $0x40] sm:$0xff] %vm1531, %v5483
        %5575 = vst.msk [vmem:[#allocation3 + $0x50] sm:$0xff] %vm1531, %v5485
        %5576 = vst.msk [vmem:[#allocation3 + $0x60] sm:$0xff] %vm1531, %v5487
        %5577 = vst.msk [vmem:[#allocation3 + $0x70] sm:$0xff] %vm1531, %v5489
        %5578 = vst.msk [vmem:[#allocation3 + $0x80] sm:$0xff] %vm1531, %v5491
        %5579 = vst.msk [vmem:[#allocation3 + $0x90] sm:$0xff] %vm1531, %v5493
        %5580 = vst.msk [vmem:[#allocation3 + $0xa0] sm:$0xff] %vm1531, %v5495
        %5581 = vst.msk [vmem:[#allocation3 + $0xb0] sm:$0xff] %vm1531, %v5497
        %5582 = vst.msk [vmem:[#allocation3 + $0xc0] sm:$0xff] %vm1531, %v5499
        %5583 = vst.msk [vmem:[#allocation3 + $0xd0] sm:$0xff] %vm1531, %v5501
        %5584 = vst.msk [vmem:[#allocation3 + $0xe0] sm:$0xff] %vm1531, %v5503
        %5585 = vst.msk [vmem:[#allocation3 + $0xf0] sm:$0xff] %vm1531, %v5505
        %5586 = vst.msk [vmem:[#allocation3 + $0x100] sm:$0xff] %vm1531, %v5507
        %5587 = vst.msk [vmem:[#allocation3 + $0x110] sm:$0xff] %vm1531, %v5509
        %5588 = vst.msk [vmem:[#allocation3 + $0x120] sm:$0xff] %vm1531, %v5511
        %5589 = vst.msk [vmem:[#allocation3 + $0x130] sm:$0xff] %vm1531, %v5513
        %5590 = vst.msk [vmem:[#allocation3 + $0x140] sm:$0xff] %vm1531, %v5515
        %5591 = vst.msk [vmem:[#allocation3 + $0x150] sm:$0xff] %vm1531, %v5517
        %5592 = vst.msk [vmem:[#allocation3 + $0x160] sm:$0xff] %vm1531, %v5519
        %5593 = vst.msk [vmem:[#allocation3 + $0x170] sm:$0xff] %vm1531, %v5521
        %5594 = vst.msk [vmem:[#allocation3 + $0x180] sm:$0xff] %vm1531, %v5523
        %5595 = vst.msk [vmem:[#allocation3 + $0x190] sm:$0xff] %vm1531, %v5525
        %5596 = vst.msk [vmem:[#allocation3 + $0x1a0] sm:$0xff] %vm1531, %v5527
        %5597 = vst.msk [vmem:[#allocation3 + $0x1b0] sm:$0xff] %vm1531, %v5529
        %5598 = vst.msk [vmem:[#allocation3 + $0x1c0] sm:$0xff] %vm1531, %v5531
        %5599 = vst.msk [vmem:[#allocation3 + $0x1d0] sm:$0xff] %vm1531, %v5533
        %5600 = vst.msk [vmem:[#allocation3 + $0x1e0] sm:$0xff] %vm1531, %v5535
        %5601 = vst.msk [vmem:[#allocation3 + $0x1f0] sm:$0xff] %vm1531, %v5537
        %s5602 = scalar_lea.vmem [#allocation2], 320
        %v5603 = vld [vmem:[%s5602 + $0x6] sm:$0xff]
        %v5604 = vld [vmem:[%s5602 + $0xe] sm:$0xff]
        %v5605 = vld [vmem:[%s5602 + $0x26] sm:$0xff]
        %v5606 = vld [vmem:[%s5602 + $0x2e] sm:$0xff]
        %v5607 = vld [vmem:[%s5602 + $0x46] sm:$0xff]
        %v5608 = vld [vmem:[%s5602 + $0x4e] sm:$0xff]
        %v5609 = vld [vmem:[%s5602 + $0x66] sm:$0xff]
        %v5610 = vld [vmem:[%s5602 + $0x6e] sm:$0xff]
        %v5611 = vld [vmem:[%s5602 + $0x86] sm:$0xff]
        %v5612 = vld [vmem:[%s5602 + $0x8e] sm:$0xff]
        %v5613 = vld [vmem:[%s5602 + $0xa6] sm:$0xff]
        %v5614 = vld [vmem:[%s5602 + $0xae] sm:$0xff]
        %v5615 = vld [vmem:[%s5602 + $0xc6] sm:$0xff]
        %v5616 = vld [vmem:[%s5602 + $0xce] sm:$0xff]
        %v5617 = vld [vmem:[%s5602 + $0xe6] sm:$0xff]
        %v5618 = vld [vmem:[%s5602 + $0xee] sm:$0xff]
        %v5619 = vld [vmem:[%s5602 + $0x106] sm:$0xff]
        %v5620 = vld [vmem:[%s5602 + $0x10e] sm:$0xff]
        %v5621 = vld [vmem:[%s5602 + $0x126] sm:$0xff]
        %v5622 = vld [vmem:[%s5602 + $0x12e] sm:$0xff]
        %v5623 = vld [vmem:[%s5602 + $0x146] sm:$0xff]
        %v5624 = vld [vmem:[%s5602 + $0x14e] sm:$0xff]
        %v5625 = vld [vmem:[%s5602 + $0x166] sm:$0xff]
        %v5626 = vld [vmem:[%s5602 + $0x16e] sm:$0xff]
        %v5627 = vld [vmem:[%s5602 + $0x186] sm:$0xff]
        %v5628 = vld [vmem:[%s5602 + $0x18e] sm:$0xff]
        %v5629 = vld [vmem:[%s5602 + $0x1a6] sm:$0xff]
        %v5630 = vld [vmem:[%s5602 + $0x1ae] sm:$0xff]
        %v5631 = vld [vmem:[%s5602 + $0x1c6] sm:$0xff]
        %v5632 = vld [vmem:[%s5602 + $0x1ce] sm:$0xff]
        %v5633 = vld [vmem:[%s5602 + $0x1e6] sm:$0xff]
        %v5634 = vld [vmem:[%s5602 + $0x1ee] sm:$0xff]
        %5667 = vrot.lane.b32.xlu0 %v5603, 96
        %v5668 = vpop.permute.xlu0 %5667
        %5669 = vrot.lane.b32.xlu0 %v5604, 96
        %v5670 = vpop.permute.xlu0 %5669
        %5671 = vrot.lane.b32.xlu0 %v5605, 96
        %v5672 = vpop.permute.xlu0 %5671
        %5673 = vrot.lane.b32.xlu0 %v5606, 96
        %v5674 = vpop.permute.xlu0 %5673
        %5675 = vrot.lane.b32.xlu0 %v5607, 96
        %v5676 = vpop.permute.xlu0 %5675
        %5677 = vrot.lane.b32.xlu0 %v5608, 96
        %v5678 = vpop.permute.xlu0 %5677
        %5679 = vrot.lane.b32.xlu0 %v5609, 96
        %v5680 = vpop.permute.xlu0 %5679
        %5681 = vrot.lane.b32.xlu0 %v5610, 96
        %v5682 = vpop.permute.xlu0 %5681
        %5683 = vrot.lane.b32.xlu0 %v5611, 96
        %v5684 = vpop.permute.xlu0 %5683
        %5685 = vrot.lane.b32.xlu0 %v5612, 96
        %v5686 = vpop.permute.xlu0 %5685
        %5687 = vrot.lane.b32.xlu0 %v5613, 96
        %v5688 = vpop.permute.xlu0 %5687
        %5689 = vrot.lane.b32.xlu0 %v5614, 96
        %v5690 = vpop.permute.xlu0 %5689
        %5691 = vrot.lane.b32.xlu0 %v5615, 96
        %v5692 = vpop.permute.xlu0 %5691
        %5693 = vrot.lane.b32.xlu0 %v5616, 96
        %v5694 = vpop.permute.xlu0 %5693
        %5695 = vrot.lane.b32.xlu0 %v5617, 96
        %v5696 = vpop.permute.xlu0 %5695
        %5697 = vrot.lane.b32.xlu0 %v5618, 96
        %v5698 = vpop.permute.xlu0 %5697
        %5699 = vrot.lane.b32.xlu0 %v5619, 96
        %v5700 = vpop.permute.xlu0 %5699
        %5701 = vrot.lane.b32.xlu0 %v5620, 96
        %v5702 = vpop.permute.xlu0 %5701
        %5703 = vrot.lane.b32.xlu0 %v5621, 96
        %v5704 = vpop.permute.xlu0 %5703
        %5705 = vrot.lane.b32.xlu0 %v5622, 96
        %v5706 = vpop.permute.xlu0 %5705
        %5707 = vrot.lane.b32.xlu0 %v5623, 96
        %v5708 = vpop.permute.xlu0 %5707
        %5709 = vrot.lane.b32.xlu0 %v5624, 96
        %v5710 = vpop.permute.xlu0 %5709
        %5711 = vrot.lane.b32.xlu0 %v5625, 96
        %v5712 = vpop.permute.xlu0 %5711
        %5713 = vrot.lane.b32.xlu0 %v5626, 96
        %v5714 = vpop.permute.xlu0 %5713
        %5715 = vrot.lane.b32.xlu0 %v5627, 96
        %v5716 = vpop.permute.xlu0 %5715
        %5717 = vrot.lane.b32.xlu0 %v5628, 96
        %v5718 = vpop.permute.xlu0 %5717
        %5719 = vrot.lane.b32.xlu0 %v5629, 96
        %v5720 = vpop.permute.xlu0 %5719
        %5721 = vrot.lane.b32.xlu0 %v5630, 96
        %v5722 = vpop.permute.xlu0 %5721
        %5723 = vrot.lane.b32.xlu0 %v5631, 96
        %v5724 = vpop.permute.xlu0 %5723
        %5725 = vrot.lane.b32.xlu0 %v5632, 96
        %v5726 = vpop.permute.xlu0 %5725
        %5727 = vrot.lane.b32.xlu0 %v5633, 96
        %v5728 = vpop.permute.xlu0 %5727
        %5729 = vrot.lane.b32.xlu0 %v5634, 96
        %v5730 = vpop.permute.xlu0 %5729
        %5763 = vst.msk [vmem:[#allocation3] sm:$0xff] %vm1725, %v5668
        %5764 = vst.msk [vmem:[#allocation3 + $0x10] sm:$0xff] %vm1725, %v5670
        %5765 = vst.msk [vmem:[#allocation3 + $0x20] sm:$0xff] %vm1725, %v5672
        %5766 = vst.msk [vmem:[#allocation3 + $0x30] sm:$0xff] %vm1725, %v5674
        %5767 = vst.msk [vmem:[#allocation3 + $0x40] sm:$0xff] %vm1725, %v5676
        %5768 = vst.msk [vmem:[#allocation3 + $0x50] sm:$0xff] %vm1725, %v5678
        %5769 = vst.msk [vmem:[#allocation3 + $0x60] sm:$0xff] %vm1725, %v5680
        %5770 = vst.msk [vmem:[#allocation3 + $0x70] sm:$0xff] %vm1725, %v5682
        %5771 = vst.msk [vmem:[#allocation3 + $0x80] sm:$0xff] %vm1725, %v5684
        %5772 = vst.msk [vmem:[#allocation3 + $0x90] sm:$0xff] %vm1725, %v5686
        %5773 = vst.msk [vmem:[#allocation3 + $0xa0] sm:$0xff] %vm1725, %v5688
        %5774 = vst.msk [vmem:[#allocation3 + $0xb0] sm:$0xff] %vm1725, %v5690
        %5775 = vst.msk [vmem:[#allocation3 + $0xc0] sm:$0xff] %vm1725, %v5692
        %5776 = vst.msk [vmem:[#allocation3 + $0xd0] sm:$0xff] %vm1725, %v5694
        %5777 = vst.msk [vmem:[#allocation3 + $0xe0] sm:$0xff] %vm1725, %v5696
        %5778 = vst.msk [vmem:[#allocation3 + $0xf0] sm:$0xff] %vm1725, %v5698
        %5779 = vst.msk [vmem:[#allocation3 + $0x100] sm:$0xff] %vm1725, %v5700
        %5780 = vst.msk [vmem:[#allocation3 + $0x110] sm:$0xff] %vm1725, %v5702
        %5781 = vst.msk [vmem:[#allocation3 + $0x120] sm:$0xff] %vm1725, %v5704
        %5782 = vst.msk [vmem:[#allocation3 + $0x130] sm:$0xff] %vm1725, %v5706
        %5783 = vst.msk [vmem:[#allocation3 + $0x140] sm:$0xff] %vm1725, %v5708
        %5784 = vst.msk [vmem:[#allocation3 + $0x150] sm:$0xff] %vm1725, %v5710
        %5785 = vst.msk [vmem:[#allocation3 + $0x160] sm:$0xff] %vm1725, %v5712
        %5786 = vst.msk [vmem:[#allocation3 + $0x170] sm:$0xff] %vm1725, %v5714
        %5787 = vst.msk [vmem:[#allocation3 + $0x180] sm:$0xff] %vm1725, %v5716
        %5788 = vst.msk [vmem:[#allocation3 + $0x190] sm:$0xff] %vm1725, %v5718
        %5789 = vst.msk [vmem:[#allocation3 + $0x1a0] sm:$0xff] %vm1725, %v5720
        %5790 = vst.msk [vmem:[#allocation3 + $0x1b0] sm:$0xff] %vm1725, %v5722
        %5791 = vst.msk [vmem:[#allocation3 + $0x1c0] sm:$0xff] %vm1725, %v5724
        %5792 = vst.msk [vmem:[#allocation3 + $0x1d0] sm:$0xff] %vm1725, %v5726
        %5793 = vst.msk [vmem:[#allocation3 + $0x1e0] sm:$0xff] %vm1725, %v5728
        %5794 = vst.msk [vmem:[#allocation3 + $0x1f0] sm:$0xff] %vm1725, %v5730
        %v5795 = vld [vmem:[%s5602 + $0x8] sm:$0xff]
        %v5796 = vld [vmem:[%s5602 + $0x10] sm:$0xff]
        %v5797 = vld [vmem:[%s5602 + $0x28] sm:$0xff]
        %v5798 = vld [vmem:[%s5602 + $0x30] sm:$0xff]
        %v5799 = vld [vmem:[%s5602 + $0x48] sm:$0xff]
        %v5800 = vld [vmem:[%s5602 + $0x50] sm:$0xff]
        %v5801 = vld [vmem:[%s5602 + $0x68] sm:$0xff]
        %v5802 = vld [vmem:[%s5602 + $0x70] sm:$0xff]
        %v5803 = vld [vmem:[%s5602 + $0x88] sm:$0xff]
        %v5804 = vld [vmem:[%s5602 + $0x90] sm:$0xff]
        %v5805 = vld [vmem:[%s5602 + $0xa8] sm:$0xff]
        %v5806 = vld [vmem:[%s5602 + $0xb0] sm:$0xff]
        %v5807 = vld [vmem:[%s5602 + $0xc8] sm:$0xff]
        %v5808 = vld [vmem:[%s5602 + $0xd0] sm:$0xff]
        %v5809 = vld [vmem:[%s5602 + $0xe8] sm:$0xff]
        %v5810 = vld [vmem:[%s5602 + $0xf0] sm:$0xff]
        %v5811 = vld [vmem:[%s5602 + $0x108] sm:$0xff]
        %v5812 = vld [vmem:[%s5602 + $0x110] sm:$0xff]
        %v5813 = vld [vmem:[%s5602 + $0x128] sm:$0xff]
        %v5814 = vld [vmem:[%s5602 + $0x130] sm:$0xff]
        %v5815 = vld [vmem:[%s5602 + $0x148] sm:$0xff]
        %v5816 = vld [vmem:[%s5602 + $0x150] sm:$0xff]
        %v5817 = vld [vmem:[%s5602 + $0x168] sm:$0xff]
        %v5818 = vld [vmem:[%s5602 + $0x170] sm:$0xff]
        %v5819 = vld [vmem:[%s5602 + $0x188] sm:$0xff]
        %v5820 = vld [vmem:[%s5602 + $0x190] sm:$0xff]
        %v5821 = vld [vmem:[%s5602 + $0x1a8] sm:$0xff]
        %v5822 = vld [vmem:[%s5602 + $0x1b0] sm:$0xff]
        %v5823 = vld [vmem:[%s5602 + $0x1c8] sm:$0xff]
        %v5824 = vld [vmem:[%s5602 + $0x1d0] sm:$0xff]
        %v5825 = vld [vmem:[%s5602 + $0x1e8] sm:$0xff]
        %v5826 = vld [vmem:[%s5602 + $0x1f0] sm:$0xff]
        %5859 = vrot.lane.b32.xlu0 %v5795, 112
        %v5860 = vpop.permute.xlu0 %5859
        %5861 = vrot.lane.b32.xlu0 %v5796, 112
        %v5862 = vpop.permute.xlu0 %5861
        %5863 = vrot.lane.b32.xlu0 %v5797, 112
        %v5864 = vpop.permute.xlu0 %5863
        %5865 = vrot.lane.b32.xlu0 %v5798, 112
        %v5866 = vpop.permute.xlu0 %5865
        %5867 = vrot.lane.b32.xlu0 %v5799, 112
        %v5868 = vpop.permute.xlu0 %5867
        %5869 = vrot.lane.b32.xlu0 %v5800, 112
        %v5870 = vpop.permute.xlu0 %5869
        %5871 = vrot.lane.b32.xlu0 %v5801, 112
        %v5872 = vpop.permute.xlu0 %5871
        %5873 = vrot.lane.b32.xlu0 %v5802, 112
        %v5874 = vpop.permute.xlu0 %5873
        %5875 = vrot.lane.b32.xlu0 %v5803, 112
        %v5876 = vpop.permute.xlu0 %5875
        %5877 = vrot.lane.b32.xlu0 %v5804, 112
        %v5878 = vpop.permute.xlu0 %5877
        %5879 = vrot.lane.b32.xlu0 %v5805, 112
        %v5880 = vpop.permute.xlu0 %5879
        %5881 = vrot.lane.b32.xlu0 %v5806, 112
        %v5882 = vpop.permute.xlu0 %5881
        %5883 = vrot.lane.b32.xlu0 %v5807, 112
        %v5884 = vpop.permute.xlu0 %5883
        %5885 = vrot.lane.b32.xlu0 %v5808, 112
        %v5886 = vpop.permute.xlu0 %5885
        %5887 = vrot.lane.b32.xlu0 %v5809, 112
        %v5888 = vpop.permute.xlu0 %5887
        %5889 = vrot.lane.b32.xlu0 %v5810, 112
        %v5890 = vpop.permute.xlu0 %5889
        %5891 = vrot.lane.b32.xlu0 %v5811, 112
        %v5892 = vpop.permute.xlu0 %5891
        %5893 = vrot.lane.b32.xlu0 %v5812, 112
        %v5894 = vpop.permute.xlu0 %5893
        %5895 = vrot.lane.b32.xlu0 %v5813, 112
        %v5896 = vpop.permute.xlu0 %5895
        %5897 = vrot.lane.b32.xlu0 %v5814, 112
        %v5898 = vpop.permute.xlu0 %5897
        %5899 = vrot.lane.b32.xlu0 %v5815, 112
        %v5900 = vpop.permute.xlu0 %5899
        %5901 = vrot.lane.b32.xlu0 %v5816, 112
        %v5902 = vpop.permute.xlu0 %5901
        %5903 = vrot.lane.b32.xlu0 %v5817, 112
        %v5904 = vpop.permute.xlu0 %5903
        %5905 = vrot.lane.b32.xlu0 %v5818, 112
        %v5906 = vpop.permute.xlu0 %5905
        %5907 = vrot.lane.b32.xlu0 %v5819, 112
        %v5908 = vpop.permute.xlu0 %5907
        %5909 = vrot.lane.b32.xlu0 %v5820, 112
        %v5910 = vpop.permute.xlu0 %5909
        %5911 = vrot.lane.b32.xlu0 %v5821, 112
        %v5912 = vpop.permute.xlu0 %5911
        %5913 = vrot.lane.b32.xlu0 %v5822, 112
        %v5914 = vpop.permute.xlu0 %5913
        %5915 = vrot.lane.b32.xlu0 %v5823, 112
        %v5916 = vpop.permute.xlu0 %5915
        %5917 = vrot.lane.b32.xlu0 %v5824, 112
        %v5918 = vpop.permute.xlu0 %5917
        %5919 = vrot.lane.b32.xlu0 %v5825, 112
        %v5920 = vpop.permute.xlu0 %5919
        %5921 = vrot.lane.b32.xlu0 %v5826, 112
        %v5922 = vpop.permute.xlu0 %5921
        %5955 = vst.msk [vmem:[#allocation3] sm:$0xff] %vm1918, %v5860
        %5956 = vst.msk [vmem:[#allocation3 + $0x10] sm:$0xff] %vm1918, %v5862
        %5957 = vst.msk [vmem:[#allocation3 + $0x20] sm:$0xff] %vm1918, %v5864
        %5958 = vst.msk [vmem:[#allocation3 + $0x30] sm:$0xff] %vm1918, %v5866
        %5959 = vst.msk [vmem:[#allocation3 + $0x40] sm:$0xff] %vm1918, %v5868
        %5960 = vst.msk [vmem:[#allocation3 + $0x50] sm:$0xff] %vm1918, %v5870
        %5961 = vst.msk [vmem:[#allocation3 + $0x60] sm:$0xff] %vm1918, %v5872
        %5962 = vst.msk [vmem:[#allocation3 + $0x70] sm:$0xff] %vm1918, %v5874
        %5963 = vst.msk [vmem:[#allocation3 + $0x80] sm:$0xff] %vm1918, %v5876
        %5964 = vst.msk [vmem:[#allocation3 + $0x90] sm:$0xff] %vm1918, %v5878
        %5965 = vst.msk [vmem:[#allocation3 + $0xa0] sm:$0xff] %vm1918, %v5880
        %5966 = vst.msk [vmem:[#allocation3 + $0xb0] sm:$0xff] %vm1918, %v5882
        %5967 = vst.msk [vmem:[#allocation3 + $0xc0] sm:$0xff] %vm1918, %v5884
        %5968 = vst.msk [vmem:[#allocation3 + $0xd0] sm:$0xff] %vm1918, %v5886
        %5969 = vst.msk [vmem:[#allocation3 + $0xe0] sm:$0xff] %vm1918, %v5888
        %5970 = vst.msk [vmem:[#allocation3 + $0xf0] sm:$0xff] %vm1918, %v5890
        %5971 = vst.msk [vmem:[#allocation3 + $0x100] sm:$0xff] %vm1918, %v5892
        %5972 = vst.msk [vmem:[#allocation3 + $0x110] sm:$0xff] %vm1918, %v5894
        %5973 = vst.msk [vmem:[#allocation3 + $0x120] sm:$0xff] %vm1918, %v5896
        %5974 = vst.msk [vmem:[#allocation3 + $0x130] sm:$0xff] %vm1918, %v5898
        %5975 = vst.msk [vmem:[#allocation3 + $0x140] sm:$0xff] %vm1918, %v5900
        %5976 = vst.msk [vmem:[#allocation3 + $0x150] sm:$0xff] %vm1918, %v5902
        %5977 = vst.msk [vmem:[#allocation3 + $0x160] sm:$0xff] %vm1918, %v5904
        %5978 = vst.msk [vmem:[#allocation3 + $0x170] sm:$0xff] %vm1918, %v5906
        %5979 = vst.msk [vmem:[#allocation3 + $0x180] sm:$0xff] %vm1918, %v5908
        %5980 = vst.msk [vmem:[#allocation3 + $0x190] sm:$0xff] %vm1918, %v5910
        %5981 = vst.msk [vmem:[#allocation3 + $0x1a0] sm:$0xff] %vm1918, %v5912
        %5982 = vst.msk [vmem:[#allocation3 + $0x1b0] sm:$0xff] %vm1918, %v5914
        %5983 = vst.msk [vmem:[#allocation3 + $0x1c0] sm:$0xff] %vm1918, %v5916
        %5984 = vst.msk [vmem:[#allocation3 + $0x1d0] sm:$0xff] %vm1918, %v5918
        %5985 = vst.msk [vmem:[#allocation3 + $0x1e0] sm:$0xff] %vm1918, %v5920
        %5986 = vst.msk [vmem:[#allocation3 + $0x1f0] sm:$0xff] %vm1918, %v5922
        %v5987 = vld [vmem:[%s5602 + $0xa] sm:$0xff]
        %v5988 = vld [vmem:[%s5602 + $0x12] sm:$0xff]
        %v5989 = vld [vmem:[%s5602 + $0x2a] sm:$0xff]
        %v5990 = vld [vmem:[%s5602 + $0x32] sm:$0xff]
        %v5991 = vld [vmem:[%s5602 + $0x4a] sm:$0xff]
        %v5992 = vld [vmem:[%s5602 + $0x52] sm:$0xff]
        %v5993 = vld [vmem:[%s5602 + $0x6a] sm:$0xff]
        %v5994 = vld [vmem:[%s5602 + $0x72] sm:$0xff]
        %v5995 = vld [vmem:[%s5602 + $0x8a] sm:$0xff]
        %v5996 = vld [vmem:[%s5602 + $0x92] sm:$0xff]
        %v5997 = vld [vmem:[%s5602 + $0xaa] sm:$0xff]
        %v5998 = vld [vmem:[%s5602 + $0xb2] sm:$0xff]
        %v5999 = vld [vmem:[%s5602 + $0xca] sm:$0xff]
        %v6000 = vld [vmem:[%s5602 + $0xd2] sm:$0xff]
        %v6001 = vld [vmem:[%s5602 + $0xea] sm:$0xff]
        %v6002 = vld [vmem:[%s5602 + $0xf2] sm:$0xff]
        %v6003 = vld [vmem:[%s5602 + $0x10a] sm:$0xff]
        %v6004 = vld [vmem:[%s5602 + $0x112] sm:$0xff]
        %v6005 = vld [vmem:[%s5602 + $0x12a] sm:$0xff]
        %v6006 = vld [vmem:[%s5602 + $0x132] sm:$0xff]
        %v6007 = vld [vmem:[%s5602 + $0x14a] sm:$0xff]
        %v6008 = vld [vmem:[%s5602 + $0x152] sm:$0xff]
        %v6009 = vld [vmem:[%s5602 + $0x16a] sm:$0xff]
        %v6010 = vld [vmem:[%s5602 + $0x172] sm:$0xff]
        %v6011 = vld [vmem:[%s5602 + $0x18a] sm:$0xff]
        %v6012 = vld [vmem:[%s5602 + $0x192] sm:$0xff]
        %v6013 = vld [vmem:[%s5602 + $0x1aa] sm:$0xff]
        %v6014 = vld [vmem:[%s5602 + $0x1b2] sm:$0xff]
        %v6015 = vld [vmem:[%s5602 + $0x1ca] sm:$0xff]
        %v6016 = vld [vmem:[%s5602 + $0x1d2] sm:$0xff]
        %v6017 = vld [vmem:[%s5602 + $0x1ea] sm:$0xff]
        %v6018 = vld [vmem:[%s5602 + $0x1f2] sm:$0xff]
        %6019 = vst.msk [vmem:[#allocation3 + $0x8] sm:$0xff] %vm371, %v5987
        %6020 = vst.msk [vmem:[#allocation3 + $0x18] sm:$0xff] %vm371, %v5988
        %6021 = vst.msk [vmem:[#allocation3 + $0x28] sm:$0xff] %vm371, %v5989
        %6022 = vst.msk [vmem:[#allocation3 + $0x38] sm:$0xff] %vm371, %v5990
        %6023 = vst.msk [vmem:[#allocation3 + $0x48] sm:$0xff] %vm371, %v5991
        %6024 = vst.msk [vmem:[#allocation3 + $0x58] sm:$0xff] %vm371, %v5992
        %6025 = vst.msk [vmem:[#allocation3 + $0x68] sm:$0xff] %vm371, %v5993
        %6026 = vst.msk [vmem:[#allocation3 + $0x78] sm:$0xff] %vm371, %v5994
        %6027 = vst.msk [vmem:[#allocation3 + $0x88] sm:$0xff] %vm371, %v5995
        %6028 = vst.msk [vmem:[#allocation3 + $0x98] sm:$0xff] %vm371, %v5996
        %6029 = vst.msk [vmem:[#allocation3 + $0xa8] sm:$0xff] %vm371, %v5997
        %6030 = vst.msk [vmem:[#allocation3 + $0xb8] sm:$0xff] %vm371, %v5998
        %6031 = vst.msk [vmem:[#allocation3 + $0xc8] sm:$0xff] %vm371, %v5999
        %6032 = vst.msk [vmem:[#allocation3 + $0xd8] sm:$0xff] %vm371, %v6000
        %6033 = vst.msk [vmem:[#allocation3 + $0xe8] sm:$0xff] %vm371, %v6001
        %6034 = vst.msk [vmem:[#allocation3 + $0xf8] sm:$0xff] %vm371, %v6002
        %6035 = vst.msk [vmem:[#allocation3 + $0x108] sm:$0xff] %vm371, %v6003
        %6036 = vst.msk [vmem:[#allocation3 + $0x118] sm:$0xff] %vm371, %v6004
        %6037 = vst.msk [vmem:[#allocation3 + $0x128] sm:$0xff] %vm371, %v6005
        %6038 = vst.msk [vmem:[#allocation3 + $0x138] sm:$0xff] %vm371, %v6006
        %6039 = vst.msk [vmem:[#allocation3 + $0x148] sm:$0xff] %vm371, %v6007
        %6040 = vst.msk [vmem:[#allocation3 + $0x158] sm:$0xff] %vm371, %v6008
        %6041 = vst.msk [vmem:[#allocation3 + $0x168] sm:$0xff] %vm371, %v6009
        %6042 = vst.msk [vmem:[#allocation3 + $0x178] sm:$0xff] %vm371, %v6010
        %6043 = vst.msk [vmem:[#allocation3 + $0x188] sm:$0xff] %vm371, %v6011
        %6044 = vst.msk [vmem:[#allocation3 + $0x198] sm:$0xff] %vm371, %v6012
        %6045 = vst.msk [vmem:[#allocation3 + $0x1a8] sm:$0xff] %vm371, %v6013
        %6046 = vst.msk [vmem:[#allocation3 + $0x1b8] sm:$0xff] %vm371, %v6014
        %6047 = vst.msk [vmem:[#allocation3 + $0x1c8] sm:$0xff] %vm371, %v6015
        %6048 = vst.msk [vmem:[#allocation3 + $0x1d8] sm:$0xff] %vm371, %v6016
        %6049 = vst.msk [vmem:[#allocation3 + $0x1e8] sm:$0xff] %vm371, %v6017
        %6050 = vst.msk [vmem:[#allocation3 + $0x1f8] sm:$0xff] %vm371, %v6018
        %v6051 = vld [vmem:[#allocation3] sm:$0xff]
        %v6052 = vld [vmem:[#allocation3 + $0x8] sm:$0xff]
        %v6053 = vld [vmem:[#allocation3 + $0x10] sm:$0xff]
        %v6054 = vld [vmem:[#allocation3 + $0x18] sm:$0xff]
        %v6055 = vld [vmem:[#allocation3 + $0x20] sm:$0xff]
        %v6056 = vld [vmem:[#allocation3 + $0x28] sm:$0xff]
        %v6057 = vld [vmem:[#allocation3 + $0x30] sm:$0xff]
        %v6058 = vld [vmem:[#allocation3 + $0x38] sm:$0xff]
        %v6059 = vld [vmem:[#allocation3 + $0x40] sm:$0xff]
        %v6060 = vld [vmem:[#allocation3 + $0x48] sm:$0xff]
        %v6061 = vld [vmem:[#allocation3 + $0x50] sm:$0xff]
        %v6062 = vld [vmem:[#allocation3 + $0x58] sm:$0xff]
        %v6063 = vld [vmem:[#allocation3 + $0x60] sm:$0xff]
        %v6064 = vld [vmem:[#allocation3 + $0x68] sm:$0xff]
        %v6065 = vld [vmem:[#allocation3 + $0x70] sm:$0xff]
        %v6066 = vld [vmem:[#allocation3 + $0x78] sm:$0xff]
        %v6067 = vld [vmem:[#allocation3 + $0x80] sm:$0xff]
        %v6068 = vld [vmem:[#allocation3 + $0x88] sm:$0xff]
        %v6069 = vld [vmem:[#allocation3 + $0x90] sm:$0xff]
        %v6070 = vld [vmem:[#allocation3 + $0x98] sm:$0xff]
        %v6071 = vld [vmem:[#allocation3 + $0xa0] sm:$0xff]
        %v6072 = vld [vmem:[#allocation3 + $0xa8] sm:$0xff]
        %v6073 = vld [vmem:[#allocation3 + $0xb0] sm:$0xff]
        %v6074 = vld [vmem:[#allocation3 + $0xb8] sm:$0xff]
        %v6075 = vld [vmem:[#allocation3 + $0xc0] sm:$0xff]
        %v6076 = vld [vmem:[#allocation3 + $0xc8] sm:$0xff]
        %v6077 = vld [vmem:[#allocation3 + $0xd0] sm:$0xff]
        %v6078 = vld [vmem:[#allocation3 + $0xd8] sm:$0xff]
        %v6079 = vld [vmem:[#allocation3 + $0xe0] sm:$0xff]
        %v6080 = vld [vmem:[#allocation3 + $0xe8] sm:$0xff]
        %v6081 = vld [vmem:[#allocation3 + $0xf0] sm:$0xff]
        %v6082 = vld [vmem:[#allocation3 + $0xf8] sm:$0xff]
        %v6083 = vld [vmem:[#allocation3 + $0x100] sm:$0xff]
        %v6084 = vld [vmem:[#allocation3 + $0x108] sm:$0xff]
        %v6085 = vld [vmem:[#allocation3 + $0x110] sm:$0xff]
        %v6086 = vld [vmem:[#allocation3 + $0x118] sm:$0xff]
        %v6087 = vld [vmem:[#allocation3 + $0x120] sm:$0xff]
        %v6088 = vld [vmem:[#allocation3 + $0x128] sm:$0xff]
        %v6089 = vld [vmem:[#allocation3 + $0x130] sm:$0xff]
        %v6090 = vld [vmem:[#allocation3 + $0x138] sm:$0xff]
        %v6091 = vld [vmem:[#allocation3 + $0x140] sm:$0xff]
        %v6092 = vld [vmem:[#allocation3 + $0x148] sm:$0xff]
        %v6093 = vld [vmem:[#allocation3 + $0x150] sm:$0xff]
        %v6094 = vld [vmem:[#allocation3 + $0x158] sm:$0xff]
        %v6095 = vld [vmem:[#allocation3 + $0x160] sm:$0xff]
        %v6096 = vld [vmem:[#allocation3 + $0x168] sm:$0xff]
        %v6097 = vld [vmem:[#allocation3 + $0x170] sm:$0xff]
        %v6098 = vld [vmem:[#allocation3 + $0x178] sm:$0xff]
        %v6099 = vld [vmem:[#allocation3 + $0x180] sm:$0xff]
        %v6100 = vld [vmem:[#allocation3 + $0x188] sm:$0xff]
        %v6101 = vld [vmem:[#allocation3 + $0x190] sm:$0xff]
        %v6102 = vld [vmem:[#allocation3 + $0x198] sm:$0xff]
        %v6103 = vld [vmem:[#allocation3 + $0x1a0] sm:$0xff]
        %v6104 = vld [vmem:[#allocation3 + $0x1a8] sm:$0xff]
        %v6105 = vld [vmem:[#allocation3 + $0x1b0] sm:$0xff]
        %v6106 = vld [vmem:[#allocation3 + $0x1b8] sm:$0xff]
        %v6107 = vld [vmem:[#allocation3 + $0x1c0] sm:$0xff]
        %v6108 = vld [vmem:[#allocation3 + $0x1c8] sm:$0xff]
        %v6109 = vld [vmem:[#allocation3 + $0x1d0] sm:$0xff]
        %v6110 = vld [vmem:[#allocation3 + $0x1d8] sm:$0xff]
        %v6111 = vld [vmem:[#allocation3 + $0x1e0] sm:$0xff]
        %v6112 = vld [vmem:[#allocation3 + $0x1e8] sm:$0xff]
        %v6113 = vld [vmem:[#allocation3 + $0x1f0] sm:$0xff]
        %v6114 = vld [vmem:[#allocation3 + $0x1f8] sm:$0xff]
        %v6115 = vld [vmem:[%s7] sm:$0xff]
        %v6116 = vld [vmem:[%s7 + $0x8] sm:$0xff]
        %v6117 = vld [vmem:[%s7 + $0x10] sm:$0xff]
        %v6118 = vld [vmem:[%s7 + $0x18] sm:$0xff]
        %v6119 = vld [vmem:[%s7 + $0x20] sm:$0xff]
        %v6120 = vld [vmem:[%s7 + $0x28] sm:$0xff]
        %v6121 = vld [vmem:[%s7 + $0x30] sm:$0xff]
        %v6122 = vld [vmem:[%s7 + $0x38] sm:$0xff]
        %v6123 = vld [vmem:[%s7 + $0x40] sm:$0xff]
        %v6124 = vld [vmem:[%s7 + $0x48] sm:$0xff]
        %v6125 = vld [vmem:[%s7 + $0x50] sm:$0xff]
        %v6126 = vld [vmem:[%s7 + $0x58] sm:$0xff]
        %v6127 = vld [vmem:[%s7 + $0x60] sm:$0xff]
        %v6128 = vld [vmem:[%s7 + $0x68] sm:$0xff]
        %v6129 = vld [vmem:[%s7 + $0x70] sm:$0xff]
        %v6130 = vld [vmem:[%s7 + $0x78] sm:$0xff]
        %v6131 = vld [vmem:[%s7 + $0x80] sm:$0xff]
        %v6132 = vld [vmem:[%s7 + $0x88] sm:$0xff]
        %v6134 = vsel %vm371, %v6052, 0
        %v6137 = vsel %vm371, %v6054, 0
        %v6140 = vsel %vm371, %v6056, 0
        %v6143 = vsel %vm371, %v6058, 0
        %v6146 = vsel %vm371, %v6060, 0
        %v6149 = vsel %vm371, %v6062, 0
        %v6152 = vsel %vm371, %v6064, 0
        %v6155 = vsel %vm371, %v6066, 0
        %v6158 = vsel %vm371, %v6068, 0
        %v6161 = vsel %vm371, %v6070, 0
        %v6164 = vsel %vm371, %v6072, 0
        %v6167 = vsel %vm371, %v6074, 0
        %v6170 = vsel %vm371, %v6076, 0
        %v6173 = vsel %vm371, %v6078, 0
        %v6176 = vsel %vm371, %v6080, 0
        %v6179 = vsel %vm371, %v6082, 0
        %v6182 = vsel %vm371, %v6084, 0
        %v6185 = vsel %vm371, %v6086, 0
        %v6188 = vsel %vm371, %v6088, 0
        %v6191 = vsel %vm371, %v6090, 0
        %v6194 = vsel %vm371, %v6092, 0
        %v6197 = vsel %vm371, %v6094, 0
        %v6200 = vsel %vm371, %v6096, 0
        %v6203 = vsel %vm371, %v6098, 0
        %v6206 = vsel %vm371, %v6100, 0
        %v6209 = vsel %vm371, %v6102, 0
        %v6212 = vsel %vm371, %v6104, 0
        %v6215 = vsel %vm371, %v6106, 0
        %v6218 = vsel %vm371, %v6108, 0
        %v6221 = vsel %vm371, %v6110, 0
        %v6224 = vsel %vm371, %v6112, 0
        %v6227 = vsel %vm371, %v6114, 0
        %6229 = vmatprep.subr.mxu0 0.0
        %6230 = vmatpush1.msra.mxu0 %v6115
        %6231 = vmatprep.subr.mxu0 0.0
        %6232 = vmatpush1.msra.mxu0 %v6116
        %6233 = vmatprep.subr.mxu0 0.0
        %6234 = vmatpush1.msra.mxu0 %v6117
        %6235 = vmatprep.subr.mxu0 0.0
        %6236 = vmatpush1.msra.mxu0 %v6118
        %6237 = vmatprep.subr.mxu0 0.0
        %6238 = vmatpush1.msra.mxu0 %v6119
        %6239 = vmatprep.subr.mxu0 0.0
        %6240 = vmatpush1.msra.mxu0 %v6120
        %6241 = vmatprep.subr.mxu0 0.0
        %6242 = vmatpush1.msra.mxu0 %v6121
        %6243 = vmatprep.subr.mxu0 0.0
        %6244 = vmatpush1.msra.mxu0 %v6122
        %6245 = vmatprep.subr.mxu0 0.0
        %6246 = vmatpush1.msra.mxu0 %v6123
        %6247 = vmatprep.subr.mxu0 0.0
        %6248 = vmatpush1.msra.mxu0 %v6124
        %6249 = vmatprep.subr.mxu0 0.0
        %6250 = vmatpush1.msra.mxu0 %v6125
        %6251 = vmatprep.subr.mxu0 0.0
        %6252 = vmatpush1.msra.mxu0 %v6126
        %6253 = vmatprep.subr.mxu0 0.0
        %6254 = vmatpush1.msra.mxu0 %v6127
        %6255 = vmatprep.subr.mxu0 0.0
        %6256 = vmatpush1.msra.mxu0 %v6128
        %6257 = vmatprep.subr.mxu0 0.0
        %6258 = vmatpush1.msra.mxu0 %v6129
        %6259 = vmatprep.subr.mxu0 0.0
        %6260 = vmatpush1.msra.mxu0 %v6130
        %6261 = vmatprep.subr.mxu0 0.0
        %6262 = vmatpush1.msra.mxu0 %v6131
        %6263 = vmatprep.subr.mxu0 0.0
        %6264 = vmatpush1.msra.mxu0 %v6132
        %6265 = vmatprep.subr.mxu0 0.0
        %6266 = vmatpush1.msra.mxu0 0.0
        %6267 = vmatprep.subr.mxu0 0.0
        %6268 = vmatpush1.msra.mxu0 0.0
        %6269 = vmatprep.subr.mxu0 0.0
        %6270 = vmatpush1.msra.mxu0 0.0
        %6271 = vmatprep.subr.mxu0 0.0
        %6272 = vmatpush1.msra.mxu0 0.0
        %6273 = vmatprep.subr.mxu0 0.0
        %6274 = vmatpush1.msra.mxu0 0.0
        %6275 = vmatprep.subr.mxu0 0.0
        %6276 = vmatpush1.msra.mxu0 0.0
        %6277 = vmatprep.subr.mxu0 0.0
        %6278 = vmatpush1.msra.mxu0 0.0
        %6279 = vmatprep.subr.mxu0 0.0
        %6280 = vmatpush1.msra.mxu0 0.0
        %6281 = vmatprep.subr.mxu0 0.0
        %6282 = vmatpush1.msra.mxu0 0.0
        %6283 = vmatprep.subr.mxu0 0.0
        %6284 = vmatpush1.msra.mxu0 0.0
        %6285 = vmatprep.subr.mxu0 0.0
        %6286 = vmatpush1.msra.mxu0 0.0
        %6287 = vmatprep.subr.mxu0 0.0
        %6288 = vmatpush1.msra.mxu0 0.0
        %6289 = vmatprep.subr.mxu0 0.0
        %6290 = vmatpush1.msra.mxu0 0.0
        %6291 = vmatprep.subr.mxu0 0.0
        %6292 = vmatpush1.msra.mxu0 0.0
        %6293 = vmatprep.mubr.f32.mxu0 %v6134
        %6294 = vmatmul.mubr.f32.gmra.mrb[0].mxu0 %v6051
        %v6295 = vpop.f32.mrb[0].mxu0
        %v6296 = vadd.f32 0.0, %v6295
        %v6297 = vpop.f32.mrb[0].mxu0
        %6298 = vmatprep.mubr.f32.mxu0 %v6137
        %6299 = vmatmul.mubr.f32.gmra.mrb[0].mxu0 %v6053
        %v6300 = vpop.f32.mrb[0].mxu0
        %v6301 = vadd.f32 0.0, %v6300
        %v6302 = vpop.f32.mrb[0].mxu0
        %6303 = vmatprep.mubr.f32.mxu0 %v6140
        %6304 = vmatmul.mubr.f32.gmra.mrb[0].mxu0 %v6055
        %v6305 = vpop.f32.mrb[0].mxu0
        %v6306 = vadd.f32 0.0, %v6305
        %v6307 = vpop.f32.mrb[0].mxu0
        %6308 = vmatprep.mubr.f32.mxu0 %v6143
        %6309 = vmatmul.mubr.f32.gmra.mrb[0].mxu0 %v6057
        %v6310 = vpop.f32.mrb[0].mxu0
        %v6311 = vadd.f32 0.0, %v6310
        %v6312 = vpop.f32.mrb[0].mxu0
        %6313 = vmatprep.mubr.f32.mxu0 %v6146
        %6314 = vmatmul.mubr.f32.gmra.mrb[0].mxu0 %v6059
        %v6315 = vpop.f32.mrb[0].mxu0
        %v6316 = vadd.f32 0.0, %v6315
        %v6317 = vpop.f32.mrb[0].mxu0
        %6318 = vmatprep.mubr.f32.mxu0 %v6149
        %6319 = vmatmul.mubr.f32.gmra.mrb[0].mxu0 %v6061
        %v6320 = vpop.f32.mrb[0].mxu0
        %v6321 = vadd.f32 0.0, %v6320
        %v6322 = vpop.f32.mrb[0].mxu0
        %6323 = vmatprep.mubr.f32.mxu0 %v6152
        %6324 = vmatmul.mubr.f32.gmra.mrb[0].mxu0 %v6063
        %v6325 = vpop.f32.mrb[0].mxu0
        %v6326 = vadd.f32 0.0, %v6325
        %v6327 = vpop.f32.mrb[0].mxu0
        %6328 = vmatprep.mubr.f32.mxu0 %v6155
        %6329 = vmatmul.mubr.f32.gmra.mrb[0].mxu0 %v6065
        %v6330 = vpop.f32.mrb[0].mxu0
        %v6331 = vadd.f32 0.0, %v6330
        %v6332 = vpop.f32.mrb[0].mxu0
        %6333 = vmatprep.mubr.f32.mxu0 %v6158
        %6334 = vmatmul.mubr.f32.gmra.mrb[0].mxu0 %v6067
        %v6335 = vpop.f32.mrb[0].mxu0
        %v6336 = vadd.f32 0.0, %v6335
        %v6337 = vpop.f32.mrb[0].mxu0
        %6338 = vmatprep.mubr.f32.mxu0 %v6161
        %6339 = vmatmul.mubr.f32.gmra.mrb[0].mxu0 %v6069
        %v6340 = vpop.f32.mrb[0].mxu0
        %v6341 = vadd.f32 0.0, %v6340
        %v6342 = vpop.f32.mrb[0].mxu0
        %6343 = vmatprep.mubr.f32.mxu0 %v6164
        %6344 = vmatmul.mubr.f32.gmra.mrb[0].mxu0 %v6071
        %v6345 = vpop.f32.mrb[0].mxu0
        %v6346 = vadd.f32 0.0, %v6345
        %v6347 = vpop.f32.mrb[0].mxu0
        %6348 = vmatprep.mubr.f32.mxu0 %v6167
        %6349 = vmatmul.mubr.f32.gmra.mrb[0].mxu0 %v6073
        %v6350 = vpop.f32.mrb[0].mxu0
        %v6351 = vadd.f32 0.0, %v6350
        %v6352 = vpop.f32.mrb[0].mxu0
        %6353 = vmatprep.mubr.f32.mxu0 %v6170
        %6354 = vmatmul.mubr.f32.gmra.mrb[0].mxu0 %v6075
        %v6355 = vpop.f32.mrb[0].mxu0
        %v6356 = vadd.f32 0.0, %v6355
        %v6357 = vpop.f32.mrb[0].mxu0
        %6358 = vmatprep.mubr.f32.mxu0 %v6173
        %6359 = vmatmul.mubr.f32.gmra.mrb[0].mxu0 %v6077
        %v6360 = vpop.f32.mrb[0].mxu0
        %v6361 = vadd.f32 0.0, %v6360
        %v6362 = vpop.f32.mrb[0].mxu0
        %6363 = vmatprep.mubr.f32.mxu0 %v6176
        %6364 = vmatmul.mubr.f32.gmra.mrb[0].mxu0 %v6079
        %v6365 = vpop.f32.mrb[0].mxu0
        %v6366 = vadd.f32 0.0, %v6365
        %v6367 = vpop.f32.mrb[0].mxu0
        %6368 = vmatprep.mubr.f32.mxu0 %v6179
        %6369 = vmatmul.mubr.f32.gmra.mrb[0].mxu0 %v6081
        %v6370 = vpop.f32.mrb[0].mxu0
        %v6371 = vadd.f32 0.0, %v6370
        %v6372 = vpop.f32.mrb[0].mxu0
        %6373 = vmatprep.mubr.f32.mxu0 %v6182
        %6374 = vmatmul.mubr.f32.gmra.mrb[0].mxu0 %v6083
        %v6375 = vpop.f32.mrb[0].mxu0
        %v6376 = vadd.f32 0.0, %v6375
        %v6377 = vpop.f32.mrb[0].mxu0
        %6378 = vmatprep.mubr.f32.mxu0 %v6185
        %6379 = vmatmul.mubr.f32.gmra.mrb[0].mxu0 %v6085
        %v6380 = vpop.f32.mrb[0].mxu0
        %v6381 = vadd.f32 0.0, %v6380
        %v6382 = vpop.f32.mrb[0].mxu0
        %6383 = vmatprep.mubr.f32.mxu0 %v6188
        %6384 = vmatmul.mubr.f32.gmra.mrb[0].mxu0 %v6087
        %v6385 = vpop.f32.mrb[0].mxu0
        %v6386 = vadd.f32 0.0, %v6385
        %v6387 = vpop.f32.mrb[0].mxu0
        %6388 = vmatprep.mubr.f32.mxu0 %v6191
        %6389 = vmatmul.mubr.f32.gmra.mrb[0].mxu0 %v6089
        %v6390 = vpop.f32.mrb[0].mxu0
        %v6391 = vadd.f32 0.0, %v6390
        %v6392 = vpop.f32.mrb[0].mxu0
        %6393 = vmatprep.mubr.f32.mxu0 %v6194
        %6394 = vmatmul.mubr.f32.gmra.mrb[0].mxu0 %v6091
        %v6395 = vpop.f32.mrb[0].mxu0
        %v6396 = vadd.f32 0.0, %v6395
        %v6397 = vpop.f32.mrb[0].mxu0
        %6398 = vmatprep.mubr.f32.mxu0 %v6197
        %6399 = vmatmul.mubr.f32.gmra.mrb[0].mxu0 %v6093
        %v6400 = vpop.f32.mrb[0].mxu0
        %v6401 = vadd.f32 0.0, %v6400
        %v6402 = vpop.f32.mrb[0].mxu0
        %6403 = vmatprep.mubr.f32.mxu0 %v6200
        %6404 = vmatmul.mubr.f32.gmra.mrb[0].mxu0 %v6095
        %v6405 = vpop.f32.mrb[0].mxu0
        %v6406 = vadd.f32 0.0, %v6405
        %v6407 = vpop.f32.mrb[0].mxu0
        %6408 = vmatprep.mubr.f32.mxu0 %v6203
        %6409 = vmatmul.mubr.f32.gmra.mrb[0].mxu0 %v6097
        %v6410 = vpop.f32.mrb[0].mxu0
        %v6411 = vadd.f32 0.0, %v6410
        %v6412 = vpop.f32.mrb[0].mxu0
        %6413 = vmatprep.mubr.f32.mxu0 %v6206
        %6414 = vmatmul.mubr.f32.gmra.mrb[0].mxu0 %v6099
        %v6415 = vpop.f32.mrb[0].mxu0
        %v6416 = vadd.f32 0.0, %v6415
        %v6417 = vpop.f32.mrb[0].mxu0
        %6418 = vmatprep.mubr.f32.mxu0 %v6209
        %6419 = vmatmul.mubr.f32.gmra.mrb[0].mxu0 %v6101
        %v6420 = vpop.f32.mrb[0].mxu0
        %v6421 = vadd.f32 0.0, %v6420
        %v6422 = vpop.f32.mrb[0].mxu0
        %6423 = vmatprep.mubr.f32.mxu0 %v6212
        %6424 = vmatmul.mubr.f32.gmra.mrb[0].mxu0 %v6103
        %v6425 = vpop.f32.mrb[0].mxu0
        %v6426 = vadd.f32 0.0, %v6425
        %v6427 = vpop.f32.mrb[0].mxu0
        %6428 = vmatprep.mubr.f32.mxu0 %v6215
        %6429 = vmatmul.mubr.f32.gmra.mrb[0].mxu0 %v6105
        %v6430 = vpop.f32.mrb[0].mxu0
        %v6431 = vadd.f32 0.0, %v6430
        %v6432 = vpop.f32.mrb[0].mxu0
        %6433 = vmatprep.mubr.f32.mxu0 %v6218
        %6434 = vmatmul.mubr.f32.gmra.mrb[0].mxu0 %v6107
        %v6435 = vpop.f32.mrb[0].mxu0
        %v6436 = vadd.f32 0.0, %v6435
        %v6437 = vpop.f32.mrb[0].mxu0
        %6438 = vmatprep.mubr.f32.mxu0 %v6221
        %6439 = vmatmul.mubr.f32.gmra.mrb[0].mxu0 %v6109
        %v6440 = vpop.f32.mrb[0].mxu0
        %v6441 = vadd.f32 0.0, %v6440
        %v6442 = vpop.f32.mrb[0].mxu0
        %6443 = vmatprep.mubr.f32.mxu0 %v6224
        %6444 = vmatmul.mubr.f32.gmra.mrb[0].mxu0 %v6111
        %v6445 = vpop.f32.mrb[0].mxu0
        %v6446 = vadd.f32 0.0, %v6445
        %v6447 = vpop.f32.mrb[0].mxu0
        %6448 = vmatprep.mubr.f32.mxu0 %v6227
        %6449 = vmatmul.mubr.f32.gmra.mrb[0].mxu0 %v6113
        %v6450 = vpop.f32.mrb[0].mxu0
        %v6451 = vadd.f32 0.0, %v6450
        %v6452 = vpop.f32.mrb[0].mxu0
        %6453 = vdwg.mxu0
        %v6454 = vld [vmem:[%s8] sm:$0x1]
        %v6456 = vlaneseq
        %v6457 = vshrl.u32 %v6456, 7
        %v6458 = vsub.s32 0, %v6457
        %v6459 = vrot.slane %v6454, %v6458
        %v6461 = vmul.f32 %v6296, %v6459
        %v6462 = vmul.f32 %v6301, %v6459
        %v6463 = vmul.f32 %v6306, %v6459
        %v6464 = vmul.f32 %v6311, %v6459
        %v6465 = vmul.f32 %v6316, %v6459
        %v6466 = vmul.f32 %v6321, %v6459
        %v6467 = vmul.f32 %v6326, %v6459
        %v6468 = vmul.f32 %v6331, %v6459
        %v6469 = vmul.f32 %v6336, %v6459
        %v6470 = vmul.f32 %v6341, %v6459
        %v6471 = vmul.f32 %v6346, %v6459
        %v6472 = vmul.f32 %v6351, %v6459
        %v6473 = vmul.f32 %v6356, %v6459
        %v6474 = vmul.f32 %v6361, %v6459
        %v6475 = vmul.f32 %v6366, %v6459
        %v6476 = vmul.f32 %v6371, %v6459
        %v6477 = vmul.f32 %v6376, %v6459
        %v6478 = vmul.f32 %v6381, %v6459
        %v6479 = vmul.f32 %v6386, %v6459
        %v6480 = vmul.f32 %v6391, %v6459
        %v6481 = vmul.f32 %v6396, %v6459
        %v6482 = vmul.f32 %v6401, %v6459
        %v6483 = vmul.f32 %v6406, %v6459
        %v6484 = vmul.f32 %v6411, %v6459
        %v6485 = vmul.f32 %v6416, %v6459
        %v6486 = vmul.f32 %v6421, %v6459
        %v6487 = vmul.f32 %v6426, %v6459
        %v6488 = vmul.f32 %v6431, %v6459
        %v6489 = vmul.f32 %v6436, %v6459
        %v6490 = vmul.f32 %v6441, %v6459
        %v6491 = vmul.f32 %v6446, %v6459
        %v6492 = vmul.f32 %v6451, %v6459
        %v6493 = vld [vmem:[%s9] sm:$0x1]
        %v6495 = vlaneseq
        %v6496 = vshrl.u32 %v6495, 7
        %v6497 = vsub.s32 0, %v6496
        %v6498 = vrot.slane %v6493, %v6497
        %v6500 = vadd.f32 %v6461, %v6498
        %v6501 = vadd.f32 %v6462, %v6498
        %v6502 = vadd.f32 %v6463, %v6498
        %v6503 = vadd.f32 %v6464, %v6498
        %v6504 = vadd.f32 %v6465, %v6498
        %v6505 = vadd.f32 %v6466, %v6498
        %v6506 = vadd.f32 %v6467, %v6498
        %v6507 = vadd.f32 %v6468, %v6498
        %v6508 = vadd.f32 %v6469, %v6498
        %v6509 = vadd.f32 %v6470, %v6498
        %v6510 = vadd.f32 %v6471, %v6498
        %v6511 = vadd.f32 %v6472, %v6498
        %v6512 = vadd.f32 %v6473, %v6498
        %v6513 = vadd.f32 %v6474, %v6498
        %v6514 = vadd.f32 %v6475, %v6498
        %v6515 = vadd.f32 %v6476, %v6498
        %v6516 = vadd.f32 %v6477, %v6498
        %v6517 = vadd.f32 %v6478, %v6498
        %v6518 = vadd.f32 %v6479, %v6498
        %v6519 = vadd.f32 %v6480, %v6498
        %v6520 = vadd.f32 %v6481, %v6498
        %v6521 = vadd.f32 %v6482, %v6498
        %v6522 = vadd.f32 %v6483, %v6498
        %v6523 = vadd.f32 %v6484, %v6498
        %v6524 = vadd.f32 %v6485, %v6498
        %v6525 = vadd.f32 %v6486, %v6498
        %v6526 = vadd.f32 %v6487, %v6498
        %v6527 = vadd.f32 %v6488, %v6498
        %v6528 = vadd.f32 %v6489, %v6498
        %v6529 = vadd.f32 %v6490, %v6498
        %v6530 = vadd.f32 %v6491, %v6498
        %v6531 = vadd.f32 %v6492, %v6498
        %v6532 = vmax.f32 %v6500, 0.0
        %v6533 = vmax.f32 %v6501, 0.0
        %v6534 = vmax.f32 %v6502, 0.0
        %v6535 = vmax.f32 %v6503, 0.0
        %v6536 = vmax.f32 %v6504, 0.0
        %v6537 = vmax.f32 %v6505, 0.0
        %v6538 = vmax.f32 %v6506, 0.0
        %v6539 = vmax.f32 %v6507, 0.0
        %v6540 = vmax.f32 %v6508, 0.0
        %v6541 = vmax.f32 %v6509, 0.0
        %v6542 = vmax.f32 %v6510, 0.0
        %v6543 = vmax.f32 %v6511, 0.0
        %v6544 = vmax.f32 %v6512, 0.0
        %v6545 = vmax.f32 %v6513, 0.0
        %v6546 = vmax.f32 %v6514, 0.0
        %v6547 = vmax.f32 %v6515, 0.0
        %v6548 = vmax.f32 %v6516, 0.0
        %v6549 = vmax.f32 %v6517, 0.0
        %v6550 = vmax.f32 %v6518, 0.0
        %v6551 = vmax.f32 %v6519, 0.0
        %v6552 = vmax.f32 %v6520, 0.0
        %v6553 = vmax.f32 %v6521, 0.0
        %v6554 = vmax.f32 %v6522, 0.0
        %v6555 = vmax.f32 %v6523, 0.0
        %v6556 = vmax.f32 %v6524, 0.0
        %v6557 = vmax.f32 %v6525, 0.0
        %v6558 = vmax.f32 %v6526, 0.0
        %v6559 = vmax.f32 %v6527, 0.0
        %v6560 = vmax.f32 %v6528, 0.0
        %v6561 = vmax.f32 %v6529, 0.0
        %v6562 = vmax.f32 %v6530, 0.0
        %v6563 = vmax.f32 %v6531, 0.0
        %6564 = vxpose.xlu0.b32.start [1/16] %v6532, 128
        %6565 = vxpose.xlu0.b32.cont [2/16] %v6533, 128
        %6566 = vxpose.xlu0.b32.cont [3/16] %v6534, 128
        %6567 = vxpose.xlu0.b32.cont [4/16] %v6535, 128
        %6568 = vxpose.xlu0.b32.cont [5/16] %v6536, 128
        %6569 = vxpose.xlu0.b32.cont [6/16] %v6537, 128
        %6570 = vxpose.xlu0.b32.cont [7/16] %v6538, 128
        %6571 = vxpose.xlu0.b32.cont [8/16] %v6539, 128
        %6572 = vxpose.xlu0.b32.cont [9/16] %v6540, 128
        %6573 = vxpose.xlu0.b32.cont [10/16] %v6541, 128
        %6574 = vxpose.xlu0.b32.cont [11/16] %v6542, 128
        %6575 = vxpose.xlu0.b32.cont [12/16] %v6543, 128
        %6576 = vxpose.xlu0.b32.cont [13/16] %v6544, 128
        %6577 = vxpose.xlu0.b32.cont [14/16] %v6545, 128
        %6578 = vxpose.xlu0.b32.cont [15/16] %v6546, 128
        %6579 = vxpose.xlu0.b32.end [16/16] %v6547, 128
        %v6580 = vpop.trf.xlu0
        %v6581 = vpop.trf.xlu0
        %v6582 = vpop.trf.xlu0
        %v6583 = vpop.trf.xlu0
        %v6584 = vpop.trf.xlu0
        %v6585 = vpop.trf.xlu0
        %v6586 = vpop.trf.xlu0
        %v6587 = vpop.trf.xlu0
        %v6588 = vpop.trf.xlu0
        %v6589 = vpop.trf.xlu0
        %v6590 = vpop.trf.xlu0
        %v6591 = vpop.trf.xlu0
        %v6592 = vpop.trf.xlu0
        %v6593 = vpop.trf.xlu0
        %v6594 = vpop.trf.xlu0
        %v6595 = vpop.trf.xlu0
        %6596 = vxpose.xlu0.b32.start [1/16] %v6548, 128
        %6597 = vxpose.xlu0.b32.cont [2/16] %v6549, 128
        %6598 = vxpose.xlu0.b32.cont [3/16] %v6550, 128
        %6599 = vxpose.xlu0.b32.cont [4/16] %v6551, 128
        %6600 = vxpose.xlu0.b32.cont [5/16] %v6552, 128
        %6601 = vxpose.xlu0.b32.cont [6/16] %v6553, 128
        %6602 = vxpose.xlu0.b32.cont [7/16] %v6554, 128
        %6603 = vxpose.xlu0.b32.cont [8/16] %v6555, 128
        %6604 = vxpose.xlu0.b32.cont [9/16] %v6556, 128
        %6605 = vxpose.xlu0.b32.cont [10/16] %v6557, 128
        %6606 = vxpose.xlu0.b32.cont [11/16] %v6558, 128
        %6607 = vxpose.xlu0.b32.cont [12/16] %v6559, 128
        %6608 = vxpose.xlu0.b32.cont [13/16] %v6560, 128
        %6609 = vxpose.xlu0.b32.cont [14/16] %v6561, 128
        %6610 = vxpose.xlu0.b32.cont [15/16] %v6562, 128
        %6611 = vxpose.xlu0.b32.end [16/16] %v6563, 128
        %v6612 = vpop.trf.xlu0
        %v6613 = vpop.trf.xlu0
        %v6614 = vpop.trf.xlu0
        %v6615 = vpop.trf.xlu0
        %v6616 = vpop.trf.xlu0
        %v6617 = vpop.trf.xlu0
        %v6618 = vpop.trf.xlu0
        %v6619 = vpop.trf.xlu0
        %v6620 = vpop.trf.xlu0
        %v6621 = vpop.trf.xlu0
        %v6622 = vpop.trf.xlu0
        %v6623 = vpop.trf.xlu0
        %v6624 = vpop.trf.xlu0
        %v6625 = vpop.trf.xlu0
        %v6626 = vpop.trf.xlu0
        %v6627 = vpop.trf.xlu0
        %6628 = vst [vmem:[%s365] sm:$0xff] %v6580
        %6629 = vst [vmem:[%s365 + $0x8] sm:$0xff] %v6612
        %6630 = vst [vmem:[%s365 + $0x10] sm:$0xff] %v6581
        %6631 = vst [vmem:[%s365 + $0x18] sm:$0xff] %v6613
        %s6632 = sand.u32 %s248, 1
        %s6633 = scalar_lea.sflag [#allocation6], %s6632
        %s6634 = sand.u32 %s248, 1
        %s6635 = smul.addr %s6634, 32
        %s6636 = scalar_lea.vmem [#allocation7], %s6635
        // Predicated region
        $region65: #{tpu_custom_call.1} parent=59 // pred_check
          %p6637 = pneg %p258
        $region66: #{tpu_custom_call.1} parent=59 // pred_check_branch
          %6639 = sbr.rel (%p6637) target = $region68
        $region67: #{tpu_custom_call.1} parent=59 // pred_region
          %s6641 = ssub.s32 512, 512
          %6642 = vsyncadd %s6633, %s6641
          %s6643 = smul.addr %s25, 4
          %s6644 = smul.addr %s6643, 128
          %s6645 = scalar_lea.hbm %s10, %s6644
          %s6646 = sshll.u32 %s6636, 4
          %s6647 = int_to_ptr.vmem [resolvable:$true] %s6646
          %6652 = dma.vmem_to_hbm [thread:$0]  %s6647, 512, %s6645, %s6633, 256, 256, 16
        $region68: #{tpu_custom_call.1} parent=59 // pred_fallthru
          _
      $region60: #{tpu_custom_call.1} parent=5 // pred_fallthru
        _
      %p6653 = scmp.le.s32.totalorder 2, %s20
      // Predicated region
      $region69: #{tpu_custom_call.1} parent=5 // pred_check
        %p6654 = pneg %p6653
      $region70: #{tpu_custom_call.1} parent=5 // pred_check_branch
        %6656 = sbr.rel (%p6654) target = $region72
      $region71: #{tpu_custom_call.1} parent=5 // pred_region
        %s6657 = ssub.s32 %s20, 2
        // Predicated region
        $region73: #{tpu_custom_call.1} parent=71 // pred_check
          %p6658 = pneg %p264
        $region74: #{tpu_custom_call.1} parent=71 // pred_check_branch
          %6660 = sbr.rel (%p6658) target = $region76
        $region75: #{tpu_custom_call.1} parent=71 // pred_region
          %s6661 = sand.u32 %s249, 1
          %s6662 = scalar_lea.sflag [#allocation6], %s6661
          %s6663 = sand.u32 %s249, 1
          %s6664 = smul.addr %s6663, 32
          %s6665 = scalar_lea.vmem [#allocation7], %s6664
          %6666 = dma.done %s6662, 512
        $region76: #{tpu_custom_call.1} parent=71 // pred_fallthru
          _
      $region72: #{tpu_custom_call.1} parent=5 // pred_fallthru
        _
    $region6: #{tpu_custom_call.1} parent=1 // loop_footer
      %s24 = sadd.s32 1, %s20
    $region7: #{tpu_custom_call.1} parent=1 // loop_footer_branch
      %19 = sbr.rel target = $region3
    $region8: #{tpu_custom_call.1} parent=1 // loop_exit
      _
    %6667 = vsyncpa [#allocation5], 1
    %s6668 = scalar_lea.sflag [#allocation5], 1
    %6669 = vsyncpa %s6668, 1
    %6670 = vsyncpa [#allocation6], 1
    %s6671 = scalar_lea.sflag [#allocation6], 1
    %6672 = vsyncpa %s6671, 1

</llo_original>
